<compile_context>
chip_gen: v5e
topology: v5e:2x2
jax: 0.10.0
libtpu: 0.0.40
codegen_flags: <defaults>
</compile_context>

<pallas_src>
import functools

import jax
import jax.numpy as jnp
from jax import lax
from jax.experimental import pallas as pl
from jax.experimental.pallas import tpu as pltpu


_DEFAULT_VMEM_LIMIT = 32 << 20   # <= default scoped limit on v6e/v7x, safe on v5e


# ----------------------------- Pallas kernels -----------------------------

def _regularizer_kernel(img_r_ref, img_i_ref, sen_r_ref, sen_i_ref,
                        w1_ref, b1_ref, w2_ref, b2_ref,
                        out_r_ref, out_i_ref,
                        redp_ref, hpad_ref, *, C, H, W, hidden):
    """Fused reduce_operator -> conv3x3+ReLU -> conv3x3 -> expand_operator.

    Blocks: img/sens/out (1, C, H, W).  redp scratch (2, H+4, W+4) holds the
    reduce output zero-padded by 2 (so both SAME convs become static-slice
    taps); hpad scratch (hidden, H+2, W+2) holds the zero-bordered hidden
    activation, i.e. conv2's already-zero-padded input.
    """
    H2, W2 = H + 2, W + 2

    # ---- reduce_operator: sum_coil conj(S) * img, per coil so live values stay
    # small; written into the interior of a freshly zeroed padded scratch
    # (scratch persists across grid steps -> border re-zeroed every step).
    red_r = jnp.zeros((H, W), jnp.float32)
    red_i = jnp.zeros((H, W), jnp.float32)
    for c in range(C):
        sr = sen_r_ref[0, c]
        si = sen_i_ref[0, c]
        xr = img_r_ref[0, c]
        xi = img_i_ref[0, c]
        red_r = red_r + sr * xr + si * xi
        red_i = red_i + sr * xi - si * xr
    redp_ref[...] = jnp.zeros_like(redp_ref)
    redp_ref[0, pl.ds(2, H), pl.ds(2, W)] = red_r
    redp_ref[1, pl.ds(2, H), pl.ds(2, W)] = red_i

    # ---- conv1 (2 -> hidden, 3x3 SAME) evaluated on the (H+2, W+2) domain so
    # its border-zeroed output doubles as conv2's zero-padded input.
    # Taps-outer / out-channel-inner: each shifted slice is loaded ONCE and
    # broadcast into `hidden` register-resident accumulators (load-slot relief).
    accs = [jnp.zeros((H2, W2), jnp.float32) for _ in range(hidden)]
    for ci in range(2):
        for dy in range(3):
            for dx in range(3):
                tap = redp_ref[ci, pl.ds(dy, H2), pl.ds(dx, W2)]
                for co in range(hidden):
                    wv = w1_ref[((co * 2 + ci) * 3 + dy) * 3 + dx]
                    accs[co] = accs[co] + wv * tap

    row = lax.broadcasted_iota(jnp.int32, (H2, W2), 0)
    col = lax.broadcasted_iota(jnp.int32, (H2, W2), 1)
    interior = (row >= 1) & (row <= H) & (col >= 1) & (col <= W)
    for co in range(hidden):
        h = jnp.maximum(accs[co] + b1_ref[co], 0.0)
        hpad_ref[co] = jnp.where(interior, h, 0.0)   # full-plane store, no offsets

    # ---- conv2 (hidden -> 2, 3x3 SAME) == VALID conv on the zero-bordered
    # hidden activation.  Same taps-outer ordering, 2 register accumulators.
    raccs = [jnp.zeros((H, W), jnp.float32) for _ in range(2)]
    for ci in range(hidden):
        for dy in range(3):
            for dx in range(3):
                tap = hpad_ref[ci, pl.ds(dy, H), pl.ds(dx, W)]
                for co in range(2):
                    wv = w2_ref[((co * hidden + ci) * 3 + dy) * 3 + dx]
                    raccs[co] = raccs[co] + wv * tap
    reg_r = raccs[0] + b2_ref[0]
    reg_i = raccs[1] + b2_ref[1]

    # ---- expand_operator: S * reg, per coil.
    for c in range(C):
        sr = sen_r_ref[0, c]
        si = sen_i_ref[0, c]
        out_r_ref[0, c] = sr * reg_r - si * reg_i
        out_i_ref[0, c] = sr * reg_i + si * reg_r


def _combine_kernel(lr_ref, cur_ref, msk_ref, mask_ref, reg_ref, out_ref):
    # out = current - lr * where(mask == 0, 0, current - masked) + regularization
    # (exact module semantics; also correct for non-binary masks)
    lr = lr_ref[0]
    cur = cur_ref[...]                                 # (1, C, chunk) r/i interleaved
    err = jnp.where(mask_ref[...] == 0.0, 0.0, cur - msk_ref[...])
    out_ref[...] = cur - lr * err + reg_ref[...]


# ----------------------------- Pallas wrappers -----------------------------

def _vmem_budget_bytes():
    """Conservative per-kernel block budget derived from the hardware."""
    try:
        cap = pltpu.get_tpu_info().vmem_capacity_bytes
        if cap:
            return int(max(4 << 20, min(cap // 8, 16 << 20)))
    except Exception:                                   # e.g. interpret mode
        pass
    return 8 << 20


def _pick_chunk(total, per_lane_bytes, budget):
    """Largest multiple-of-128 divisor of `total` within `budget`; prefer >=512
    lanes (128-lane chunks only reach ~29% of HBM roofline)."""
    if total % 128 != 0:
        return total                      # callers pre-pad `total`, not hit here
    max_lanes = max(128, budget // max(per_lane_bytes, 1))
    divs = [c for c in range(128, total + 1, 128) if total % c == 0]
    fit = [c for c in divs if c <= max_lanes]
    best = fit[-1] if fit else divs[0]
    if best < 512:
        geq = [c for c in divs if c >= 512]
        if geq:
            best = geq[0]
    return best


def pallas_regularizer_expand(img_r, img_i, sen_r, sen_i, params):
    N, C, H, W = img_r.shape
    hidden = params["w1"].shape[0]

    w1_flat = params["w1"].reshape(-1).astype(jnp.float32)   # (hidden*2*9,) -> SMEM
    w2_flat = params["w2"].reshape(-1).astype(jnp.float32)   # (2*hidden*9,) -> SMEM

    blk_spec = pl.BlockSpec((1, C, H, W), lambda n: (n, 0, 0, 0))
    smem_spec = pl.BlockSpec(memory_space=pltpu.MemorySpace.SMEM)
    out_sd = jax.ShapeDtypeStruct((N, C, H, W), jnp.float32)

    kernel = functools.partial(_regularizer_kernel, C=C, H=H, W=W, hidden=hidden)
    return pl.pallas_call(
        kernel,
        grid=(N,),
        in_specs=[blk_spec, blk_spec, blk_spec, blk_spec,
                  smem_spec, smem_spec, smem_spec, smem_spec],
        out_specs=[blk_spec, blk_spec],
        out_shape=(out_sd, out_sd),
        scratch_shapes=[pltpu.VMEM((2, H + 4, W + 4), jnp.float32),
                        pltpu.VMEM((hidden, H + 2, W + 2), jnp.float32)],
        compiler_params=pltpu.CompilerParams(
            dimension_semantics=("parallel",),
            vmem_limit_bytes=_DEFAULT_VMEM_LIMIT),
    )(img_r, img_i, sen_r, sen_i, w1_flat, params["b1"], w2_flat, params["b2"])


def pallas_combine(lr, cur2, msk2, mask2, reg2):
    N, C, L = cur2.shape
    Lp = L
    if L % 128 != 0:                         # lane-tile pad (not hit at demo sizes)
        Lp = ((L + 127) // 128) * 128
        pad = ((0, 0), (0, 0), (0, Lp - L))
        cur2 = jnp.pad(cur2, pad)
        msk2 = jnp.pad(msk2, pad)
        reg2 = jnp.pad(reg2, pad)
        mask2 = jnp.pad(mask2, pad)

    # 4 C-wide blocks (cur, msk, reg, out) + mask, double-buffered, f32.
    chunk = _pick_chunk(Lp, (4 * C + 1) * 4 * 2, _vmem_budget_bytes())
    grid = (N, Lp // chunk)

    data_spec = pl.BlockSpec((1, C, chunk), lambda n, j: (n, 0, j))
    mask_spec = pl.BlockSpec((1, 1, chunk), lambda n, j: (n, 0, j))
    lr_spec = pl.BlockSpec(memory_space=pltpu.MemorySpace.SMEM)

    out = pl.pallas_call(
        _combine_kernel,
        grid=grid,
        in_specs=[lr_spec, data_spec, data_spec, mask_spec, data_spec],
        out_specs=data_spec,
        out_shape=jax.ShapeDtypeStruct((N, C, Lp), jnp.float32),
        compiler_params=pltpu.CompilerParams(
            dimension_semantics=("parallel", "parallel"),
            vmem_limit_bytes=_DEFAULT_VMEM_LIMIT),
    )(lr, cur2, msk2, mask2, reg2)
    return out[..., :L] if Lp != L else out


# ----------------------- forward / backward operators -----------------------
# Centered, ortho-normalized 2-D FFT / iFFT over spatial dims (as in DIRECT).

def _fft2c(x):
    x = jnp.fft.ifftshift(x, axes=(-2, -1))
    x = jnp.fft.fft2(x, axes=(-2, -1), norm="ortho")
    return jnp.fft.fftshift(x, axes=(-2, -1))


def _ifft2c(x):
    x = jnp.fft.ifftshift(x, axes=(-2, -1))
    x = jnp.fft.ifft2(x, axes=(-2, -1), norm="ortho")
    return jnp.fft.fftshift(x, axes=(-2, -1))


# ------------------------------ module forward ------------------------------
# regularizer_model: Conv3x3(2->hidden) -> ReLU -> Conv3x3(hidden->2)

def end_to_end_varnet_block(params, current_kspace, masked_kspace,
                            sampling_mask, sensitivity_map):
    N, C, H, W, _ = current_kspace.shape
    L = H * W * 2

    cur_c = lax.complex(current_kspace[..., 0], current_kspace[..., 1])

    # backward_operator(current_kspace)
    img = _ifft2c(cur_c)                                   # complex64 (N,C,H,W)

    # fused: reduce_operator -> conv+ReLU -> conv -> expand_operator   (Pallas)
    exp_r, exp_i = pallas_regularizer_expand(
        jnp.real(img), jnp.imag(img),
        sensitivity_map[..., 0], sensitivity_map[..., 1], params)

    # forward_operator(expanded)
    kreg = _fft2c(lax.complex(exp_r, exp_i))
    kreg2 = jnp.stack([jnp.real(kreg), jnp.imag(kreg)], axis=-1).reshape(N, C, L)

    # data consistency on the interleaved lane-dense layout            (Pallas)
    cur2 = current_kspace.reshape(N, C, L)
    msk2 = masked_kspace.reshape(N, C, L)
    mask2 = jnp.broadcast_to(sampling_mask, (N, 1, H, W, 2)).reshape(N, 1, L)
    out2 = pallas_combine(params["learning_rate"], cur2, msk2, mask2, kreg2)
    return out2.reshape(N, C, H, W, 2)


# ------------------------------ pure-JAX reference ------------------------------

def reference_forward(params, cur, msk, mask, sens):
    cur_c = lax.complex(cur[..., 0], cur[..., 1])
    msk_c = lax.complex(msk[..., 0], msk[..., 1])
    sen_c = lax.complex(sens[..., 0], sens[..., 1])
    m = mask[..., 0]

    err = jnp.where(m == 0.0, jnp.zeros((), cur_c.dtype), cur_c - msk_c)
    img = _ifft2c(cur_c)
    red = jnp.sum(jnp.conj(sen_c) * img, axis=1)           # (N, H, W)
    reg_in = jnp.stack([jnp.real(red), jnp.imag(red)], axis=1)
    h = lax.conv_general_dilated(reg_in, params["w1"], (1, 1), "SAME")
    h = jnp.maximum(h + params["b1"][None, :, None, None], 0.0)
    reg = lax.conv_general_dilated(h, params["w2"], (1, 1), "SAME")
    reg = reg + params["b2"][None, :, None, None]
    reg_c = lax.complex(reg[:, 0], reg[:, 1])
    kreg = _fft2c(sen_c * reg_c[:, None])
    out = cur_c - params["learning_rate"][0] * err + kreg
    return jnp.stack([jnp.real(out), jnp.imag(out)], axis=-1)


# ------------------------------------ main ------------------------------------

if __name__ == "__main__":
    N, C, H, W = 2, 4, 16, 16
    hidden = 8

    key = jax.random.PRNGKey(0)
    k_cur, k_msk, k_mask, k_sens, k_w1, k_b1, k_w2 = jax.random.split(key, 7)

    current_kspace = jax.random.normal(k_cur, (N, C, H, W, 2), jnp.float32)
    masked_kspace = jax.random.normal(k_msk, (N, C, H, W, 2), jnp.float32)
    sampling_mask = (jax.random.uniform(k_mask, (N, 1, H, W, 1)) > 0.5
                     ).astype(jnp.float32)
    sensitivity_map = jax.random.normal(k_sens, (N, C, H, W, 2), jnp.float32)

    params = {
        "learning_rate": jnp.array([1.0], jnp.float32),       # nn.Parameter([1.0])
        "w1": 0.1 * jax.random.normal(k_w1, (hidden, 2, 3, 3), jnp.float32),
        "b1": 0.05 * jax.random.normal(k_b1, (hidden,), jnp.float32),
        "w2": 0.1 * jax.random.normal(k_w2, (2, hidden, 3, 3), jnp.float32),
        "b2": jnp.zeros((2,), jnp.float32),
    }

    out = end_to_end_varnet_block(params, current_kspace, masked_kspace,
                                  sampling_mask, sensitivity_map)
    out = jax.block_until_ready(out)

    ref = jax.block_until_ready(
        reference_forward(params, current_kspace, masked_kspace,
                          sampling_mask, sensitivity_map))

    assert out.shape == (N, C, H, W, 2)
    assert bool(jnp.allclose(out, ref, rtol=1e-2, atol=1e-2))
    print("KERNEL_OK")
</pallas_src>

<mosaic_0001>
module attributes {stable_mosaic.version = 11 : i64} {
  func.func @_regularizer_kernel(%arg0: i32, %arg1: memref<1x4x16x16xf32, #tpu.memory_space<vmem>>, %arg2: memref<1x4x16x16xf32, #tpu.memory_space<vmem>>, %arg3: memref<1x4x16x16xf32, #tpu.memory_space<vmem>>, %arg4: memref<1x4x16x16xf32, #tpu.memory_space<vmem>>, %arg5: memref<144xf32, #tpu.memory_space<smem>>, %arg6: memref<8xf32, #tpu.memory_space<smem>>, %arg7: memref<144xf32, #tpu.memory_space<smem>>, %arg8: memref<2xf32, #tpu.memory_space<smem>>, %arg9: memref<1x4x16x16xf32, #tpu.memory_space<vmem>>, %arg10: memref<1x4x16x16xf32, #tpu.memory_space<vmem>>, %arg11: memref<2x20x20xf32, #tpu.memory_space<vmem>>, %arg12: memref<8x18x18xf32, #tpu.memory_space<vmem>>) attributes {dimension_semantics = [#tpu.dimension_semantics<parallel>], iteration_bounds = array<i64: 2>, scalar_prefetch = 0 : i64, scratch_operands = 2 : i64, tpu.core_type = #tpu.core_type<tc>, window_params = [{transform_indices = @transform_0, window_bounds = array<i64: 1, 4, 16, 16>}, {transform_indices = @transform_1, window_bounds = array<i64: 1, 4, 16, 16>}, {transform_indices = @transform_2, window_bounds = array<i64: 1, 4, 16, 16>}, {transform_indices = @transform_3, window_bounds = array<i64: 1, 4, 16, 16>}, {transform_indices = @transform_4, window_bounds = array<i64: 144>}, {transform_indices = @transform_5, window_bounds = array<i64: 8>}, {transform_indices = @transform_6, window_bounds = array<i64: 144>}, {transform_indices = @transform_7, window_bounds = array<i64: 2>}, {transform_indices = @transform_8, window_bounds = array<i64: 1, 4, 16, 16>}, {transform_indices = @transform_9, window_bounds = array<i64: 1, 4, 16, 16>}]} {
    %cst = arith.constant 0.000000e+00 : f32
    %0 = vector.broadcast %cst : f32 to vector<16x16xf32>
    %cst_0 = arith.constant 0.000000e+00 : f32
    %1 = vector.broadcast %cst_0 : f32 to vector<16x16xf32>
    %c0 = arith.constant 0 : index
    %c0_1 = arith.constant 0 : index
    %c0_2 = arith.constant 0 : index
    %c0_3 = arith.constant 0 : index
    %2 = vector.load %arg3[%c0, %c0_1, %c0_2, %c0_3] : memref<1x4x16x16xf32, #tpu.memory_space<vmem>>, vector<1x1x16x16xf32>
    %3 = vector.shape_cast %2 : vector<1x1x16x16xf32> to vector<16x16xf32>
    %c0_4 = arith.constant 0 : index
    %c0_5 = arith.constant 0 : index
    %c0_6 = arith.constant 0 : index
    %c0_7 = arith.constant 0 : index
    %4 = vector.load %arg4[%c0_4, %c0_5, %c0_6, %c0_7] : memref<1x4x16x16xf32, #tpu.memory_space<vmem>>, vector<1x1x16x16xf32>
    %5 = vector.shape_cast %4 : vector<1x1x16x16xf32> to vector<16x16xf32>
    %c0_8 = arith.constant 0 : index
    %c0_9 = arith.constant 0 : index
    %c0_10 = arith.constant 0 : index
    %c0_11 = arith.constant 0 : index
    %6 = vector.load %arg1[%c0_8, %c0_9, %c0_10, %c0_11] : memref<1x4x16x16xf32, #tpu.memory_space<vmem>>, vector<1x1x16x16xf32>
    %7 = vector.shape_cast %6 : vector<1x1x16x16xf32> to vector<16x16xf32>
    %c0_12 = arith.constant 0 : index
    %c0_13 = arith.constant 0 : index
    %c0_14 = arith.constant 0 : index
    %c0_15 = arith.constant 0 : index
    %8 = vector.load %arg2[%c0_12, %c0_13, %c0_14, %c0_15] : memref<1x4x16x16xf32, #tpu.memory_space<vmem>>, vector<1x1x16x16xf32>
    %9 = vector.shape_cast %8 : vector<1x1x16x16xf32> to vector<16x16xf32>
    %10 = arith.mulf %3, %7 : vector<16x16xf32>
    %11 = arith.addf %0, %10 : vector<16x16xf32>
    %12 = arith.mulf %5, %9 : vector<16x16xf32>
    %13 = arith.addf %11, %12 : vector<16x16xf32>
    %14 = arith.mulf %3, %9 : vector<16x16xf32>
    %15 = arith.addf %1, %14 : vector<16x16xf32>
    %16 = arith.mulf %5, %7 : vector<16x16xf32>
    %17 = arith.subf %15, %16 : vector<16x16xf32>
    %c0_16 = arith.constant 0 : index
    %c1 = arith.constant 1 : index
    %c0_17 = arith.constant 0 : index
    %c0_18 = arith.constant 0 : index
    %18 = vector.load %arg3[%c0_16, %c1, %c0_17, %c0_18] : memref<1x4x16x16xf32, #tpu.memory_space<vmem>>, vector<1x1x16x16xf32>
    %19 = vector.shape_cast %18 : vector<1x1x16x16xf32> to vector<16x16xf32>
    %c0_19 = arith.constant 0 : index
    %c1_20 = arith.constant 1 : index
    %c0_21 = arith.constant 0 : index
    %c0_22 = arith.constant 0 : index
    %20 = vector.load %arg4[%c0_19, %c1_20, %c0_21, %c0_22] : memref<1x4x16x16xf32, #tpu.memory_space<vmem>>, vector<1x1x16x16xf32>
    %21 = vector.shape_cast %20 : vector<1x1x16x16xf32> to vector<16x16xf32>
    %c0_23 = arith.constant 0 : index
    %c1_24 = arith.constant 1 : index
    %c0_25 = arith.constant 0 : index
    %c0_26 = arith.constant 0 : index
    %22 = vector.load %arg1[%c0_23, %c1_24, %c0_25, %c0_26] : memref<1x4x16x16xf32, #tpu.memory_space<vmem>>, vector<1x1x16x16xf32>
    %23 = vector.shape_cast %22 : vector<1x1x16x16xf32> to vector<16x16xf32>
    %c0_27 = arith.constant 0 : index
    %c1_28 = arith.constant 1 : index
    %c0_29 = arith.constant 0 : index
    %c0_30 = arith.constant 0 : index
    %24 = vector.load %arg2[%c0_27, %c1_28, %c0_29, %c0_30] : memref<1x4x16x16xf32, #tpu.memory_space<vmem>>, vector<1x1x16x16xf32>
    %25 = vector.shape_cast %24 : vector<1x1x16x16xf32> to vector<16x16xf32>
    %26 = arith.mulf %19, %23 : vector<16x16xf32>
    %27 = arith.addf %13, %26 : vector<16x16xf32>
    %28 = arith.mulf %21, %25 : vector<16x16xf32>
    %29 = arith.addf %27, %28 : vector<16x16xf32>
    %30 = arith.mulf %19, %25 : vector<16x16xf32>
    %31 = arith.addf %17, %30 : vector<16x16xf32>
    %32 = arith.mulf %21, %23 : vector<16x16xf32>
    %33 = arith.subf %31, %32 : vector<16x16xf32>
    %c0_31 = arith.constant 0 : index
    %c2 = arith.constant 2 : index
    %c0_32 = arith.constant 0 : index
    %c0_33 = arith.constant 0 : index
    %34 = vector.load %arg3[%c0_31, %c2, %c0_32, %c0_33] : memref<1x4x16x16xf32, #tpu.memory_space<vmem>>, vector<1x1x16x16xf32>
    %35 = vector.shape_cast %34 : vector<1x1x16x16xf32> to vector<16x16xf32>
    %c0_34 = arith.constant 0 : index
    %c2_35 = arith.constant 2 : index
    %c0_36 = arith.constant 0 : index
    %c0_37 = arith.constant 0 : index
    %36 = vector.load %arg4[%c0_34, %c2_35, %c0_36, %c0_37] : memref<1x4x16x16xf32, #tpu.memory_space<vmem>>, vector<1x1x16x16xf32>
    %37 = vector.shape_cast %36 : vector<1x1x16x16xf32> to vector<16x16xf32>
    %c0_38 = arith.constant 0 : index
    %c2_39 = arith.constant 2 : index
    %c0_40 = arith.constant 0 : index
    %c0_41 = arith.constant 0 : index
    %38 = vector.load %arg1[%c0_38, %c2_39, %c0_40, %c0_41] : memref<1x4x16x16xf32, #tpu.memory_space<vmem>>, vector<1x1x16x16xf32>
    %39 = vector.shape_cast %38 : vector<1x1x16x16xf32> to vector<16x16xf32>
    %c0_42 = arith.constant 0 : index
    %c2_43 = arith.constant 2 : index
    %c0_44 = arith.constant 0 : index
    %c0_45 = arith.constant 0 : index
    %40 = vector.load %arg2[%c0_42, %c2_43, %c0_44, %c0_45] : memref<1x4x16x16xf32, #tpu.memory_space<vmem>>, vector<1x1x16x16xf32>
    %41 = vector.shape_cast %40 : vector<1x1x16x16xf32> to vector<16x16xf32>
    %42 = arith.mulf %35, %39 : vector<16x16xf32>
    %43 = arith.addf %29, %42 : vector<16x16xf32>
    %44 = arith.mulf %37, %41 : vector<16x16xf32>
    %45 = arith.addf %43, %44 : vector<16x16xf32>
    %46 = arith.mulf %35, %41 : vector<16x16xf32>
    %47 = arith.addf %33, %46 : vector<16x16xf32>
    %48 = arith.mulf %37, %39 : vector<16x16xf32>
    %49 = arith.subf %47, %48 : vector<16x16xf32>
    %c0_46 = arith.constant 0 : index
    %c3 = arith.constant 3 : index
    %c0_47 = arith.constant 0 : index
    %c0_48 = arith.constant 0 : index
    %50 = vector.load %arg3[%c0_46, %c3, %c0_47, %c0_48] : memref<1x4x16x16xf32, #tpu.memory_space<vmem>>, vector<1x1x16x16xf32>
    %51 = vector.shape_cast %50 : vector<1x1x16x16xf32> to vector<16x16xf32>
    %c0_49 = arith.constant 0 : index
    %c3_50 = arith.constant 3 : index
    %c0_51 = arith.constant 0 : index
    %c0_52 = arith.constant 0 : index
    %52 = vector.load %arg4[%c0_49, %c3_50, %c0_51, %c0_52] : memref<1x4x16x16xf32, #tpu.memory_space<vmem>>, vector<1x1x16x16xf32>
    %53 = vector.shape_cast %52 : vector<1x1x16x16xf32> to vector<16x16xf32>
    %c0_53 = arith.constant 0 : index
    %c3_54 = arith.constant 3 : index
    %c0_55 = arith.constant 0 : index
    %c0_56 = arith.constant 0 : index
    %54 = vector.load %arg1[%c0_53, %c3_54, %c0_55, %c0_56] : memref<1x4x16x16xf32, #tpu.memory_space<vmem>>, vector<1x1x16x16xf32>
    %55 = vector.shape_cast %54 : vector<1x1x16x16xf32> to vector<16x16xf32>
    %c0_57 = arith.constant 0 : index
    %c3_58 = arith.constant 3 : index
    %c0_59 = arith.constant 0 : index
    %c0_60 = arith.constant 0 : index
    %56 = vector.load %arg2[%c0_57, %c3_58, %c0_59, %c0_60] : memref<1x4x16x16xf32, #tpu.memory_space<vmem>>, vector<1x1x16x16xf32>
    %57 = vector.shape_cast %56 : vector<1x1x16x16xf32> to vector<16x16xf32>
    %58 = arith.mulf %51, %55 : vector<16x16xf32>
    %59 = arith.addf %45, %58 : vector<16x16xf32>
    %60 = arith.mulf %53, %57 : vector<16x16xf32>
    %61 = arith.addf %59, %60 : vector<16x16xf32>
    %62 = arith.mulf %51, %57 : vector<16x16xf32>
    %63 = arith.addf %49, %62 : vector<16x16xf32>
    %64 = arith.mulf %53, %55 : vector<16x16xf32>
    %65 = arith.subf %63, %64 : vector<16x16xf32>
    %cst_61 = arith.constant 0.000000e+00 : f32
    %66 = vector.broadcast %cst_61 : f32 to vector<2x20x20xf32>
    %c0_62 = arith.constant 0 : index
    %c0_63 = arith.constant 0 : index
    %c0_64 = arith.constant 0 : index
    %67 = vector.load %arg11[%c0_62, %c0_63, %c0_64] : memref<2x20x20xf32, #tpu.memory_space<vmem>>, vector<2x20x20xf32>
    tpu.vector_store %arg11[%c0_62, %c0_63, %c0_64], %66 {strides = array<i32>} : memref<2x20x20xf32, #tpu.memory_space<vmem>>, vector<2x20x20xf32>,
    %c0_65 = arith.constant 0 : index
    %c2_66 = arith.constant 2 : index
    %c2_67 = arith.constant 2 : index
    %68 = vector.load %arg11[%c0_65, %c2_66, %c2_67] : memref<2x20x20xf32, #tpu.memory_space<vmem>>, vector<1x16x16xf32>
    %69 = vector.shape_cast %68 : vector<1x16x16xf32> to vector<16x16xf32>
    %70 = vector.shape_cast %61 : vector<16x16xf32> to vector<1x16x16xf32>
    tpu.vector_store %arg11[%c0_65, %c2_66, %c2_67], %70 {strides = array<i32>} : memref<2x20x20xf32, #tpu.memory_space<vmem>>, vector<1x16x16xf32>,
    %c1_68 = arith.constant 1 : index
    %c2_69 = arith.constant 2 : index
    %c2_70 = arith.constant 2 : index
    %71 = vector.load %arg11[%c1_68, %c2_69, %c2_70] : memref<2x20x20xf32, #tpu.memory_space<vmem>>, vector<1x16x16xf32>
    %72 = vector.shape_cast %71 : vector<1x16x16xf32> to vector<16x16xf32>
    %73 = vector.shape_cast %65 : vector<16x16xf32> to vector<1x16x16xf32>
    tpu.vector_store %arg11[%c1_68, %c2_69, %c2_70], %73 {strides = array<i32>} : memref<2x20x20xf32, #tpu.memory_space<vmem>>, vector<1x16x16xf32>,
    %cst_71 = arith.constant 0.000000e+00 : f32
    %74 = vector.broadcast %cst_71 : f32 to vector<18x18xf32>
    %cst_72 = arith.constant 0.000000e+00 : f32
    %75 = vector.broadcast %cst_72 : f32 to vector<18x18xf32>
    %cst_73 = arith.constant 0.000000e+00 : f32
    %76 = vector.broadcast %cst_73 : f32 to vector<18x18xf32>
    %cst_74 = arith.constant 0.000000e+00 : f32
    %77 = vector.broadcast %cst_74 : f32 to vector<18x18xf32>
    %cst_75 = arith.constant 0.000000e+00 : f32
    %78 = vector.broadcast %cst_75 : f32 to vector<18x18xf32>
    %cst_76 = arith.constant 0.000000e+00 : f32
    %79 = vector.broadcast %cst_76 : f32 to vector<18x18xf32>
    %cst_77 = arith.constant 0.000000e+00 : f32
    %80 = vector.broadcast %cst_77 : f32 to vector<18x18xf32>
    %cst_78 = arith.constant 0.000000e+00 : f32
    %81 = vector.broadcast %cst_78 : f32 to vector<18x18xf32>
    %c0_79 = arith.constant 0 : index
    %c0_80 = arith.constant 0 : index
    %c0_81 = arith.constant 0 : index
    %82 = vector.load %arg11[%c0_79, %c0_80, %c0_81] : memref<2x20x20xf32, #tpu.memory_space<vmem>>, vector<1x18x18xf32>
    %83 = vector.shape_cast %82 : vector<1x18x18xf32> to vector<18x18xf32>
    %c0_82 = arith.constant 0 : index
    %84 = memref.load %arg5[%c0_82] : memref<144xf32, #tpu.memory_space<smem>>
    %85 = vector.broadcast %84 : f32 to vector<18x18xf32>
    %86 = arith.mulf %85, %83 : vector<18x18xf32>
    %87 = arith.addf %74, %86 : vector<18x18xf32>
    %c18 = arith.constant 18 : index
    %88 = memref.load %arg5[%c18] : memref<144xf32, #tpu.memory_space<smem>>
    %89 = vector.broadcast %88 : f32 to vector<18x18xf32>
    %90 = arith.mulf %89, %83 : vector<18x18xf32>
    %91 = arith.addf %75, %90 : vector<18x18xf32>
    %c36 = arith.constant 36 : index
    %92 = memref.load %arg5[%c36] : memref<144xf32, #tpu.memory_space<smem>>
    %93 = vector.broadcast %92 : f32 to vector<18x18xf32>
    %94 = arith.mulf %93, %83 : vector<18x18xf32>
    %95 = arith.addf %76, %94 : vector<18x18xf32>
    %c54 = arith.constant 54 : index
    %96 = memref.load %arg5[%c54] : memref<144xf32, #tpu.memory_space<smem>>
    %97 = vector.broadcast %96 : f32 to vector<18x18xf32>
    %98 = arith.mulf %97, %83 : vector<18x18xf32>
    %99 = arith.addf %77, %98 : vector<18x18xf32>
    %c72 = arith.constant 72 : index
    %100 = memref.load %arg5[%c72] : memref<144xf32, #tpu.memory_space<smem>>
    %101 = vector.broadcast %100 : f32 to vector<18x18xf32>
    %102 = arith.mulf %101, %83 : vector<18x18xf32>
    %103 = arith.addf %78, %102 : vector<18x18xf32>
    %c90 = arith.constant 90 : index
    %104 = memref.load %arg5[%c90] : memref<144xf32, #tpu.memory_space<smem>>
    %105 = vector.broadcast %104 : f32 to vector<18x18xf32>
    %106 = arith.mulf %105, %83 : vector<18x18xf32>
    %107 = arith.addf %79, %106 : vector<18x18xf32>
    %c108 = arith.constant 108 : index
    %108 = memref.load %arg5[%c108] : memref<144xf32, #tpu.memory_space<smem>>
    %109 = vector.broadcast %108 : f32 to vector<18x18xf32>
    %110 = arith.mulf %109, %83 : vector<18x18xf32>
    %111 = arith.addf %80, %110 : vector<18x18xf32>
    %c126 = arith.constant 126 : index
    %112 = memref.load %arg5[%c126] : memref<144xf32, #tpu.memory_space<smem>>
    %113 = vector.broadcast %112 : f32 to vector<18x18xf32>
    %114 = arith.mulf %113, %83 : vector<18x18xf32>
    %115 = arith.addf %81, %114 : vector<18x18xf32>
    %c0_83 = arith.constant 0 : index
    %c0_84 = arith.constant 0 : index
    %c1_85 = arith.constant 1 : index
    %116 = vector.load %arg11[%c0_83, %c0_84, %c1_85] : memref<2x20x20xf32, #tpu.memory_space<vmem>>, vector<1x18x18xf32>
    %117 = vector.shape_cast %116 : vector<1x18x18xf32> to vector<18x18xf32>
    %c1_86 = arith.constant 1 : index
    %118 = memref.load %arg5[%c1_86] : memref<144xf32, #tpu.memory_space<smem>>
    %119 = vector.broadcast %118 : f32 to vector<18x18xf32>
    %120 = arith.mulf %119, %117 : vector<18x18xf32>
    %121 = arith.addf %87, %120 : vector<18x18xf32>
    %c19 = arith.constant 19 : index
    %122 = memref.load %arg5[%c19] : memref<144xf32, #tpu.memory_space<smem>>
    %123 = vector.broadcast %122 : f32 to vector<18x18xf32>
    %124 = arith.mulf %123, %117 : vector<18x18xf32>
    %125 = arith.addf %91, %124 : vector<18x18xf32>
    %c37 = arith.constant 37 : index
    %126 = memref.load %arg5[%c37] : memref<144xf32, #tpu.memory_space<smem>>
    %127 = vector.broadcast %126 : f32 to vector<18x18xf32>
    %128 = arith.mulf %127, %117 : vector<18x18xf32>
    %129 = arith.addf %95, %128 : vector<18x18xf32>
    %c55 = arith.constant 55 : index
    %130 = memref.load %arg5[%c55] : memref<144xf32, #tpu.memory_space<smem>>
    %131 = vector.broadcast %130 : f32 to vector<18x18xf32>
    %132 = arith.mulf %131, %117 : vector<18x18xf32>
    %133 = arith.addf %99, %132 : vector<18x18xf32>
    %c73 = arith.constant 73 : index
    %134 = memref.load %arg5[%c73] : memref<144xf32, #tpu.memory_space<smem>>
    %135 = vector.broadcast %134 : f32 to vector<18x18xf32>
    %136 = arith.mulf %135, %117 : vector<18x18xf32>
    %137 = arith.addf %103, %136 : vector<18x18xf32>
    %c91 = arith.constant 91 : index
    %138 = memref.load %arg5[%c91] : memref<144xf32, #tpu.memory_space<smem>>
    %139 = vector.broadcast %138 : f32 to vector<18x18xf32>
    %140 = arith.mulf %139, %117 : vector<18x18xf32>
    %141 = arith.addf %107, %140 : vector<18x18xf32>
    %c109 = arith.constant 109 : index
    %142 = memref.load %arg5[%c109] : memref<144xf32, #tpu.memory_space<smem>>
    %143 = vector.broadcast %142 : f32 to vector<18x18xf32>
    %144 = arith.mulf %143, %117 : vector<18x18xf32>
    %145 = arith.addf %111, %144 : vector<18x18xf32>
    %c127 = arith.constant 127 : index
    %146 = memref.load %arg5[%c127] : memref<144xf32, #tpu.memory_space<smem>>
    %147 = vector.broadcast %146 : f32 to vector<18x18xf32>
    %148 = arith.mulf %147, %117 : vector<18x18xf32>
    %149 = arith.addf %115, %148 : vector<18x18xf32>
    %c0_87 = arith.constant 0 : index
    %c0_88 = arith.constant 0 : index
    %c2_89 = arith.constant 2 : index
    %150 = vector.load %arg11[%c0_87, %c0_88, %c2_89] : memref<2x20x20xf32, #tpu.memory_space<vmem>>, vector<1x18x18xf32>
    %151 = vector.shape_cast %150 : vector<1x18x18xf32> to vector<18x18xf32>
    %c2_90 = arith.constant 2 : index
    %152 = memref.load %arg5[%c2_90] : memref<144xf32, #tpu.memory_space<smem>>
    %153 = vector.broadcast %152 : f32 to vector<18x18xf32>
    %154 = arith.mulf %153, %151 : vector<18x18xf32>
    %155 = arith.addf %121, %154 : vector<18x18xf32>
    %c20 = arith.constant 20 : index
    %156 = memref.load %arg5[%c20] : memref<144xf32, #tpu.memory_space<smem>>
    %157 = vector.broadcast %156 : f32 to vector<18x18xf32>
    %158 = arith.mulf %157, %151 : vector<18x18xf32>
    %159 = arith.addf %125, %158 : vector<18x18xf32>
    %c38 = arith.constant 38 : index
    %160 = memref.load %arg5[%c38] : memref<144xf32, #tpu.memory_space<smem>>
    %161 = vector.broadcast %160 : f32 to vector<18x18xf32>
    %162 = arith.mulf %161, %151 : vector<18x18xf32>
    %163 = arith.addf %129, %162 : vector<18x18xf32>
    %c56 = arith.constant 56 : index
    %164 = memref.load %arg5[%c56] : memref<144xf32, #tpu.memory_space<smem>>
    %165 = vector.broadcast %164 : f32 to vector<18x18xf32>
    %166 = arith.mulf %165, %151 : vector<18x18xf32>
    %167 = arith.addf %133, %166 : vector<18x18xf32>
    %c74 = arith.constant 74 : index
    %168 = memref.load %arg5[%c74] : memref<144xf32, #tpu.memory_space<smem>>
    %169 = vector.broadcast %168 : f32 to vector<18x18xf32>
    %170 = arith.mulf %169, %151 : vector<18x18xf32>
    %171 = arith.addf %137, %170 : vector<18x18xf32>
    %c92 = arith.constant 92 : index
    %172 = memref.load %arg5[%c92] : memref<144xf32, #tpu.memory_space<smem>>
    %173 = vector.broadcast %172 : f32 to vector<18x18xf32>
    %174 = arith.mulf %173, %151 : vector<18x18xf32>
    %175 = arith.addf %141, %174 : vector<18x18xf32>
    %c110 = arith.constant 110 : index
    %176 = memref.load %arg5[%c110] : memref<144xf32, #tpu.memory_space<smem>>
    %177 = vector.broadcast %176 : f32 to vector<18x18xf32>
    %178 = arith.mulf %177, %151 : vector<18x18xf32>
    %179 = arith.addf %145, %178 : vector<18x18xf32>
    %c128 = arith.constant 128 : index
    %180 = memref.load %arg5[%c128] : memref<144xf32, #tpu.memory_space<smem>>
    %181 = vector.broadcast %180 : f32 to vector<18x18xf32>
    %182 = arith.mulf %181, %151 : vector<18x18xf32>
    %183 = arith.addf %149, %182 : vector<18x18xf32>
    %c0_91 = arith.constant 0 : index
    %c1_92 = arith.constant 1 : index
    %c0_93 = arith.constant 0 : index
    %184 = vector.load %arg11[%c0_91, %c1_92, %c0_93] : memref<2x20x20xf32, #tpu.memory_space<vmem>>, vector<1x18x18xf32>
    %185 = vector.shape_cast %184 : vector<1x18x18xf32> to vector<18x18xf32>
    %c3_94 = arith.constant 3 : index
    %186 = memref.load %arg5[%c3_94] : memref<144xf32, #tpu.memory_space<smem>>
    %187 = vector.broadcast %186 : f32 to vector<18x18xf32>
    %188 = arith.mulf %187, %185 : vector<18x18xf32>
    %189 = arith.addf %155, %188 : vector<18x18xf32>
    %c21 = arith.constant 21 : index
    %190 = memref.load %arg5[%c21] : memref<144xf32, #tpu.memory_space<smem>>
    %191 = vector.broadcast %190 : f32 to vector<18x18xf32>
    %192 = arith.mulf %191, %185 : vector<18x18xf32>
    %193 = arith.addf %159, %192 : vector<18x18xf32>
    %c39 = arith.constant 39 : index
    %194 = memref.load %arg5[%c39] : memref<144xf32, #tpu.memory_space<smem>>
    %195 = vector.broadcast %194 : f32 to vector<18x18xf32>
    %196 = arith.mulf %195, %185 : vector<18x18xf32>
    %197 = arith.addf %163, %196 : vector<18x18xf32>
    %c57 = arith.constant 57 : index
    %198 = memref.load %arg5[%c57] : memref<144xf32, #tpu.memory_space<smem>>
    %199 = vector.broadcast %198 : f32 to vector<18x18xf32>
    %200 = arith.mulf %199, %185 : vector<18x18xf32>
    %201 = arith.addf %167, %200 : vector<18x18xf32>
    %c75 = arith.constant 75 : index
    %202 = memref.load %arg5[%c75] : memref<144xf32, #tpu.memory_space<smem>>
    %203 = vector.broadcast %202 : f32 to vector<18x18xf32>
    %204 = arith.mulf %203, %185 : vector<18x18xf32>
    %205 = arith.addf %171, %204 : vector<18x18xf32>
    %c93 = arith.constant 93 : index
    %206 = memref.load %arg5[%c93] : memref<144xf32, #tpu.memory_space<smem>>
    %207 = vector.broadcast %206 : f32 to vector<18x18xf32>
    %208 = arith.mulf %207, %185 : vector<18x18xf32>
    %209 = arith.addf %175, %208 : vector<18x18xf32>
    %c111 = arith.constant 111 : index
    %210 = memref.load %arg5[%c111] : memref<144xf32, #tpu.memory_space<smem>>
    %211 = vector.broadcast %210 : f32 to vector<18x18xf32>
    %212 = arith.mulf %211, %185 : vector<18x18xf32>
    %213 = arith.addf %179, %212 : vector<18x18xf32>
    %c129 = arith.constant 129 : index
    %214 = memref.load %arg5[%c129] : memref<144xf32, #tpu.memory_space<smem>>
    %215 = vector.broadcast %214 : f32 to vector<18x18xf32>
    %216 = arith.mulf %215, %185 : vector<18x18xf32>
    %217 = arith.addf %183, %216 : vector<18x18xf32>
    %c0_95 = arith.constant 0 : index
    %c1_96 = arith.constant 1 : index
    %c1_97 = arith.constant 1 : index
    %218 = vector.load %arg11[%c0_95, %c1_96, %c1_97] : memref<2x20x20xf32, #tpu.memory_space<vmem>>, vector<1x18x18xf32>
    %219 = vector.shape_cast %218 : vector<1x18x18xf32> to vector<18x18xf32>
    %c4 = arith.constant 4 : index
    %220 = memref.load %arg5[%c4] : memref<144xf32, #tpu.memory_space<smem>>
    %221 = vector.broadcast %220 : f32 to vector<18x18xf32>
    %222 = arith.mulf %221, %219 : vector<18x18xf32>
    %223 = arith.addf %189, %222 : vector<18x18xf32>
    %c22 = arith.constant 22 : index
    %224 = memref.load %arg5[%c22] : memref<144xf32, #tpu.memory_space<smem>>
    %225 = vector.broadcast %224 : f32 to vector<18x18xf32>
    %226 = arith.mulf %225, %219 : vector<18x18xf32>
    %227 = arith.addf %193, %226 : vector<18x18xf32>
    %c40 = arith.constant 40 : index
    %228 = memref.load %arg5[%c40] : memref<144xf32, #tpu.memory_space<smem>>
    %229 = vector.broadcast %228 : f32 to vector<18x18xf32>
    %230 = arith.mulf %229, %219 : vector<18x18xf32>
    %231 = arith.addf %197, %230 : vector<18x18xf32>
    %c58 = arith.constant 58 : index
    %232 = memref.load %arg5[%c58] : memref<144xf32, #tpu.memory_space<smem>>
    %233 = vector.broadcast %232 : f32 to vector<18x18xf32>
    %234 = arith.mulf %233, %219 : vector<18x18xf32>
    %235 = arith.addf %201, %234 : vector<18x18xf32>
    %c76 = arith.constant 76 : index
    %236 = memref.load %arg5[%c76] : memref<144xf32, #tpu.memory_space<smem>>
    %237 = vector.broadcast %236 : f32 to vector<18x18xf32>
    %238 = arith.mulf %237, %219 : vector<18x18xf32>
    %239 = arith.addf %205, %238 : vector<18x18xf32>
    %c94 = arith.constant 94 : index
    %240 = memref.load %arg5[%c94] : memref<144xf32, #tpu.memory_space<smem>>
    %241 = vector.broadcast %240 : f32 to vector<18x18xf32>
    %242 = arith.mulf %241, %219 : vector<18x18xf32>
    %243 = arith.addf %209, %242 : vector<18x18xf32>
    %c112 = arith.constant 112 : index
    %244 = memref.load %arg5[%c112] : memref<144xf32, #tpu.memory_space<smem>>
    %245 = vector.broadcast %244 : f32 to vector<18x18xf32>
    %246 = arith.mulf %245, %219 : vector<18x18xf32>
    %247 = arith.addf %213, %246 : vector<18x18xf32>
    %c130 = arith.constant 130 : index
    %248 = memref.load %arg5[%c130] : memref<144xf32, #tpu.memory_space<smem>>
    %249 = vector.broadcast %248 : f32 to vector<18x18xf32>
    %250 = arith.mulf %249, %219 : vector<18x18xf32>
    %251 = arith.addf %217, %250 : vector<18x18xf32>
    %c0_98 = arith.constant 0 : index
    %c1_99 = arith.constant 1 : index
    %c2_100 = arith.constant 2 : index
    %252 = vector.load %arg11[%c0_98, %c1_99, %c2_100] : memref<2x20x20xf32, #tpu.memory_space<vmem>>, vector<1x18x18xf32>
    %253 = vector.shape_cast %252 : vector<1x18x18xf32> to vector<18x18xf32>
    %c5 = arith.constant 5 : index
    %254 = memref.load %arg5[%c5] : memref<144xf32, #tpu.memory_space<smem>>
    %255 = vector.broadcast %254 : f32 to vector<18x18xf32>
    %256 = arith.mulf %255, %253 : vector<18x18xf32>
    %257 = arith.addf %223, %256 : vector<18x18xf32>
    %c23 = arith.constant 23 : index
    %258 = memref.load %arg5[%c23] : memref<144xf32, #tpu.memory_space<smem>>
    %259 = vector.broadcast %258 : f32 to vector<18x18xf32>
    %260 = arith.mulf %259, %253 : vector<18x18xf32>
    %261 = arith.addf %227, %260 : vector<18x18xf32>
    %c41 = arith.constant 41 : index
    %262 = memref.load %arg5[%c41] : memref<144xf32, #tpu.memory_space<smem>>
    %263 = vector.broadcast %262 : f32 to vector<18x18xf32>
    %264 = arith.mulf %263, %253 : vector<18x18xf32>
    %265 = arith.addf %231, %264 : vector<18x18xf32>
    %c59 = arith.constant 59 : index
    %266 = memref.load %arg5[%c59] : memref<144xf32, #tpu.memory_space<smem>>
    %267 = vector.broadcast %266 : f32 to vector<18x18xf32>
    %268 = arith.mulf %267, %253 : vector<18x18xf32>
    %269 = arith.addf %235, %268 : vector<18x18xf32>
    %c77 = arith.constant 77 : index
    %270 = memref.load %arg5[%c77] : memref<144xf32, #tpu.memory_space<smem>>
    %271 = vector.broadcast %270 : f32 to vector<18x18xf32>
    %272 = arith.mulf %271, %253 : vector<18x18xf32>
    %273 = arith.addf %239, %272 : vector<18x18xf32>
    %c95 = arith.constant 95 : index
    %274 = memref.load %arg5[%c95] : memref<144xf32, #tpu.memory_space<smem>>
    %275 = vector.broadcast %274 : f32 to vector<18x18xf32>
    %276 = arith.mulf %275, %253 : vector<18x18xf32>
    %277 = arith.addf %243, %276 : vector<18x18xf32>
    %c113 = arith.constant 113 : index
    %278 = memref.load %arg5[%c113] : memref<144xf32, #tpu.memory_space<smem>>
    %279 = vector.broadcast %278 : f32 to vector<18x18xf32>
    %280 = arith.mulf %279, %253 : vector<18x18xf32>
    %281 = arith.addf %247, %280 : vector<18x18xf32>
    %c131 = arith.constant 131 : index
    %282 = memref.load %arg5[%c131] : memref<144xf32, #tpu.memory_space<smem>>
    %283 = vector.broadcast %282 : f32 to vector<18x18xf32>
    %284 = arith.mulf %283, %253 : vector<18x18xf32>
    %285 = arith.addf %251, %284 : vector<18x18xf32>
    %c0_101 = arith.constant 0 : index
    %c2_102 = arith.constant 2 : index
    %c0_103 = arith.constant 0 : index
    %286 = vector.load %arg11[%c0_101, %c2_102, %c0_103] : memref<2x20x20xf32, #tpu.memory_space<vmem>>, vector<1x18x18xf32>
    %287 = vector.shape_cast %286 : vector<1x18x18xf32> to vector<18x18xf32>
    %c6 = arith.constant 6 : index
    %288 = memref.load %arg5[%c6] : memref<144xf32, #tpu.memory_space<smem>>
    %289 = vector.broadcast %288 : f32 to vector<18x18xf32>
    %290 = arith.mulf %289, %287 : vector<18x18xf32>
    %291 = arith.addf %257, %290 : vector<18x18xf32>
    %c24 = arith.constant 24 : index
    %292 = memref.load %arg5[%c24] : memref<144xf32, #tpu.memory_space<smem>>
    %293 = vector.broadcast %292 : f32 to vector<18x18xf32>
    %294 = arith.mulf %293, %287 : vector<18x18xf32>
    %295 = arith.addf %261, %294 : vector<18x18xf32>
    %c42 = arith.constant 42 : index
    %296 = memref.load %arg5[%c42] : memref<144xf32, #tpu.memory_space<smem>>
    %297 = vector.broadcast %296 : f32 to vector<18x18xf32>
    %298 = arith.mulf %297, %287 : vector<18x18xf32>
    %299 = arith.addf %265, %298 : vector<18x18xf32>
    %c60 = arith.constant 60 : index
    %300 = memref.load %arg5[%c60] : memref<144xf32, #tpu.memory_space<smem>>
    %301 = vector.broadcast %300 : f32 to vector<18x18xf32>
    %302 = arith.mulf %301, %287 : vector<18x18xf32>
    %303 = arith.addf %269, %302 : vector<18x18xf32>
    %c78 = arith.constant 78 : index
    %304 = memref.load %arg5[%c78] : memref<144xf32, #tpu.memory_space<smem>>
    %305 = vector.broadcast %304 : f32 to vector<18x18xf32>
    %306 = arith.mulf %305, %287 : vector<18x18xf32>
    %307 = arith.addf %273, %306 : vector<18x18xf32>
    %c96 = arith.constant 96 : index
    %308 = memref.load %arg5[%c96] : memref<144xf32, #tpu.memory_space<smem>>
    %309 = vector.broadcast %308 : f32 to vector<18x18xf32>
    %310 = arith.mulf %309, %287 : vector<18x18xf32>
    %311 = arith.addf %277, %310 : vector<18x18xf32>
    %c114 = arith.constant 114 : index
    %312 = memref.load %arg5[%c114] : memref<144xf32, #tpu.memory_space<smem>>
    %313 = vector.broadcast %312 : f32 to vector<18x18xf32>
    %314 = arith.mulf %313, %287 : vector<18x18xf32>
    %315 = arith.addf %281, %314 : vector<18x18xf32>
    %c132 = arith.constant 132 : index
    %316 = memref.load %arg5[%c132] : memref<144xf32, #tpu.memory_space<smem>>
    %317 = vector.broadcast %316 : f32 to vector<18x18xf32>
    %318 = arith.mulf %317, %287 : vector<18x18xf32>
    %319 = arith.addf %285, %318 : vector<18x18xf32>
    %c0_104 = arith.constant 0 : index
    %c2_105 = arith.constant 2 : index
    %c1_106 = arith.constant 1 : index
    %320 = vector.load %arg11[%c0_104, %c2_105, %c1_106] : memref<2x20x20xf32, #tpu.memory_space<vmem>>, vector<1x18x18xf32>
    %321 = vector.shape_cast %320 : vector<1x18x18xf32> to vector<18x18xf32>
    %c7 = arith.constant 7 : index
    %322 = memref.load %arg5[%c7] : memref<144xf32, #tpu.memory_space<smem>>
    %323 = vector.broadcast %322 : f32 to vector<18x18xf32>
    %324 = arith.mulf %323, %321 : vector<18x18xf32>
    %325 = arith.addf %291, %324 : vector<18x18xf32>
    %c25 = arith.constant 25 : index
    %326 = memref.load %arg5[%c25] : memref<144xf32, #tpu.memory_space<smem>>
    %327 = vector.broadcast %326 : f32 to vector<18x18xf32>
    %328 = arith.mulf %327, %321 : vector<18x18xf32>
    %329 = arith.addf %295, %328 : vector<18x18xf32>
    %c43 = arith.constant 43 : index
    %330 = memref.load %arg5[%c43] : memref<144xf32, #tpu.memory_space<smem>>
    %331 = vector.broadcast %330 : f32 to vector<18x18xf32>
    %332 = arith.mulf %331, %321 : vector<18x18xf32>
    %333 = arith.addf %299, %332 : vector<18x18xf32>
    %c61 = arith.constant 61 : index
    %334 = memref.load %arg5[%c61] : memref<144xf32, #tpu.memory_space<smem>>
    %335 = vector.broadcast %334 : f32 to vector<18x18xf32>
    %336 = arith.mulf %335, %321 : vector<18x18xf32>
    %337 = arith.addf %303, %336 : vector<18x18xf32>
    %c79 = arith.constant 79 : index
    %338 = memref.load %arg5[%c79] : memref<144xf32, #tpu.memory_space<smem>>
    %339 = vector.broadcast %338 : f32 to vector<18x18xf32>
    %340 = arith.mulf %339, %321 : vector<18x18xf32>
    %341 = arith.addf %307, %340 : vector<18x18xf32>
    %c97 = arith.constant 97 : index
    %342 = memref.load %arg5[%c97] : memref<144xf32, #tpu.memory_space<smem>>
    %343 = vector.broadcast %342 : f32 to vector<18x18xf32>
    %344 = arith.mulf %343, %321 : vector<18x18xf32>
    %345 = arith.addf %311, %344 : vector<18x18xf32>
    %c115 = arith.constant 115 : index
    %346 = memref.load %arg5[%c115] : memref<144xf32, #tpu.memory_space<smem>>
    %347 = vector.broadcast %346 : f32 to vector<18x18xf32>
    %348 = arith.mulf %347, %321 : vector<18x18xf32>
    %349 = arith.addf %315, %348 : vector<18x18xf32>
    %c133 = arith.constant 133 : index
    %350 = memref.load %arg5[%c133] : memref<144xf32, #tpu.memory_space<smem>>
    %351 = vector.broadcast %350 : f32 to vector<18x18xf32>
    %352 = arith.mulf %351, %321 : vector<18x18xf32>
    %353 = arith.addf %319, %352 : vector<18x18xf32>
    %c0_107 = arith.constant 0 : index
    %c2_108 = arith.constant 2 : index
    %c2_109 = arith.constant 2 : index
    %354 = vector.load %arg11[%c0_107, %c2_108, %c2_109] : memref<2x20x20xf32, #tpu.memory_space<vmem>>, vector<1x18x18xf32>
    %355 = vector.shape_cast %354 : vector<1x18x18xf32> to vector<18x18xf32>
    %c8 = arith.constant 8 : index
    %356 = memref.load %arg5[%c8] : memref<144xf32, #tpu.memory_space<smem>>
    %357 = vector.broadcast %356 : f32 to vector<18x18xf32>
    %358 = arith.mulf %357, %355 : vector<18x18xf32>
    %359 = arith.addf %325, %358 : vector<18x18xf32>
    %c26 = arith.constant 26 : index
    %360 = memref.load %arg5[%c26] : memref<144xf32, #tpu.memory_space<smem>>
    %361 = vector.broadcast %360 : f32 to vector<18x18xf32>
    %362 = arith.mulf %361, %355 : vector<18x18xf32>
    %363 = arith.addf %329, %362 : vector<18x18xf32>
    %c44 = arith.constant 44 : index
    %364 = memref.load %arg5[%c44] : memref<144xf32, #tpu.memory_space<smem>>
    %365 = vector.broadcast %364 : f32 to vector<18x18xf32>
    %366 = arith.mulf %365, %355 : vector<18x18xf32>
    %367 = arith.addf %333, %366 : vector<18x18xf32>
    %c62 = arith.constant 62 : index
    %368 = memref.load %arg5[%c62] : memref<144xf32, #tpu.memory_space<smem>>
    %369 = vector.broadcast %368 : f32 to vector<18x18xf32>
    %370 = arith.mulf %369, %355 : vector<18x18xf32>
    %371 = arith.addf %337, %370 : vector<18x18xf32>
    %c80 = arith.constant 80 : index
    %372 = memref.load %arg5[%c80] : memref<144xf32, #tpu.memory_space<smem>>
    %373 = vector.broadcast %372 : f32 to vector<18x18xf32>
    %374 = arith.mulf %373, %355 : vector<18x18xf32>
    %375 = arith.addf %341, %374 : vector<18x18xf32>
    %c98 = arith.constant 98 : index
    %376 = memref.load %arg5[%c98] : memref<144xf32, #tpu.memory_space<smem>>
    %377 = vector.broadcast %376 : f32 to vector<18x18xf32>
    %378 = arith.mulf %377, %355 : vector<18x18xf32>
    %379 = arith.addf %345, %378 : vector<18x18xf32>
    %c116 = arith.constant 116 : index
    %380 = memref.load %arg5[%c116] : memref<144xf32, #tpu.memory_space<smem>>
    %381 = vector.broadcast %380 : f32 to vector<18x18xf32>
    %382 = arith.mulf %381, %355 : vector<18x18xf32>
    %383 = arith.addf %349, %382 : vector<18x18xf32>
    %c134 = arith.constant 134 : index
    %384 = memref.load %arg5[%c134] : memref<144xf32, #tpu.memory_space<smem>>
    %385 = vector.broadcast %384 : f32 to vector<18x18xf32>
    %386 = arith.mulf %385, %355 : vector<18x18xf32>
    %387 = arith.addf %353, %386 : vector<18x18xf32>
    %c1_110 = arith.constant 1 : index
    %c0_111 = arith.constant 0 : index
    %c0_112 = arith.constant 0 : index
    %388 = vector.load %arg11[%c1_110, %c0_111, %c0_112] : memref<2x20x20xf32, #tpu.memory_space<vmem>>, vector<1x18x18xf32>
    %389 = vector.shape_cast %388 : vector<1x18x18xf32> to vector<18x18xf32>
    %c9 = arith.constant 9 : index
    %390 = memref.load %arg5[%c9] : memref<144xf32, #tpu.memory_space<smem>>
    %391 = vector.broadcast %390 : f32 to vector<18x18xf32>
    %392 = arith.mulf %391, %389 : vector<18x18xf32>
    %393 = arith.addf %359, %392 : vector<18x18xf32>
    %c27 = arith.constant 27 : index
    %394 = memref.load %arg5[%c27] : memref<144xf32, #tpu.memory_space<smem>>
    %395 = vector.broadcast %394 : f32 to vector<18x18xf32>
    %396 = arith.mulf %395, %389 : vector<18x18xf32>
    %397 = arith.addf %363, %396 : vector<18x18xf32>
    %c45 = arith.constant 45 : index
    %398 = memref.load %arg5[%c45] : memref<144xf32, #tpu.memory_space<smem>>
    %399 = vector.broadcast %398 : f32 to vector<18x18xf32>
    %400 = arith.mulf %399, %389 : vector<18x18xf32>
    %401 = arith.addf %367, %400 : vector<18x18xf32>
    %c63 = arith.constant 63 : index
    %402 = memref.load %arg5[%c63] : memref<144xf32, #tpu.memory_space<smem>>
    %403 = vector.broadcast %402 : f32 to vector<18x18xf32>
    %404 = arith.mulf %403, %389 : vector<18x18xf32>
    %405 = arith.addf %371, %404 : vector<18x18xf32>
    %c81 = arith.constant 81 : index
    %406 = memref.load %arg5[%c81] : memref<144xf32, #tpu.memory_space<smem>>
    %407 = vector.broadcast %406 : f32 to vector<18x18xf32>
    %408 = arith.mulf %407, %389 : vector<18x18xf32>
    %409 = arith.addf %375, %408 : vector<18x18xf32>
    %c99 = arith.constant 99 : index
    %410 = memref.load %arg5[%c99] : memref<144xf32, #tpu.memory_space<smem>>
    %411 = vector.broadcast %410 : f32 to vector<18x18xf32>
    %412 = arith.mulf %411, %389 : vector<18x18xf32>
    %413 = arith.addf %379, %412 : vector<18x18xf32>
    %c117 = arith.constant 117 : index
    %414 = memref.load %arg5[%c117] : memref<144xf32, #tpu.memory_space<smem>>
    %415 = vector.broadcast %414 : f32 to vector<18x18xf32>
    %416 = arith.mulf %415, %389 : vector<18x18xf32>
    %417 = arith.addf %383, %416 : vector<18x18xf32>
    %c135 = arith.constant 135 : index
    %418 = memref.load %arg5[%c135] : memref<144xf32, #tpu.memory_space<smem>>
    %419 = vector.broadcast %418 : f32 to vector<18x18xf32>
    %420 = arith.mulf %419, %389 : vector<18x18xf32>
    %421 = arith.addf %387, %420 : vector<18x18xf32>
    %c1_113 = arith.constant 1 : index
    %c0_114 = arith.constant 0 : index
    %c1_115 = arith.constant 1 : index
    %422 = vector.load %arg11[%c1_113, %c0_114, %c1_115] : memref<2x20x20xf32, #tpu.memory_space<vmem>>, vector<1x18x18xf32>
    %423 = vector.shape_cast %422 : vector<1x18x18xf32> to vector<18x18xf32>
    %c10 = arith.constant 10 : index
    %424 = memref.load %arg5[%c10] : memref<144xf32, #tpu.memory_space<smem>>
    %425 = vector.broadcast %424 : f32 to vector<18x18xf32>
    %426 = arith.mulf %425, %423 : vector<18x18xf32>
    %427 = arith.addf %393, %426 : vector<18x18xf32>
    %c28 = arith.constant 28 : index
    %428 = memref.load %arg5[%c28] : memref<144xf32, #tpu.memory_space<smem>>
    %429 = vector.broadcast %428 : f32 to vector<18x18xf32>
    %430 = arith.mulf %429, %423 : vector<18x18xf32>
    %431 = arith.addf %397, %430 : vector<18x18xf32>
    %c46 = arith.constant 46 : index
    %432 = memref.load %arg5[%c46] : memref<144xf32, #tpu.memory_space<smem>>
    %433 = vector.broadcast %432 : f32 to vector<18x18xf32>
    %434 = arith.mulf %433, %423 : vector<18x18xf32>
    %435 = arith.addf %401, %434 : vector<18x18xf32>
    %c64 = arith.constant 64 : index
    %436 = memref.load %arg5[%c64] : memref<144xf32, #tpu.memory_space<smem>>
    %437 = vector.broadcast %436 : f32 to vector<18x18xf32>
    %438 = arith.mulf %437, %423 : vector<18x18xf32>
    %439 = arith.addf %405, %438 : vector<18x18xf32>
    %c82 = arith.constant 82 : index
    %440 = memref.load %arg5[%c82] : memref<144xf32, #tpu.memory_space<smem>>
    %441 = vector.broadcast %440 : f32 to vector<18x18xf32>
    %442 = arith.mulf %441, %423 : vector<18x18xf32>
    %443 = arith.addf %409, %442 : vector<18x18xf32>
    %c100 = arith.constant 100 : index
    %444 = memref.load %arg5[%c100] : memref<144xf32, #tpu.memory_space<smem>>
    %445 = vector.broadcast %444 : f32 to vector<18x18xf32>
    %446 = arith.mulf %445, %423 : vector<18x18xf32>
    %447 = arith.addf %413, %446 : vector<18x18xf32>
    %c118 = arith.constant 118 : index
    %448 = memref.load %arg5[%c118] : memref<144xf32, #tpu.memory_space<smem>>
    %449 = vector.broadcast %448 : f32 to vector<18x18xf32>
    %450 = arith.mulf %449, %423 : vector<18x18xf32>
    %451 = arith.addf %417, %450 : vector<18x18xf32>
    %c136 = arith.constant 136 : index
    %452 = memref.load %arg5[%c136] : memref<144xf32, #tpu.memory_space<smem>>
    %453 = vector.broadcast %452 : f32 to vector<18x18xf32>
    %454 = arith.mulf %453, %423 : vector<18x18xf32>
    %455 = arith.addf %421, %454 : vector<18x18xf32>
    %c1_116 = arith.constant 1 : index
    %c0_117 = arith.constant 0 : index
    %c2_118 = arith.constant 2 : index
    %456 = vector.load %arg11[%c1_116, %c0_117, %c2_118] : memref<2x20x20xf32, #tpu.memory_space<vmem>>, vector<1x18x18xf32>
    %457 = vector.shape_cast %456 : vector<1x18x18xf32> to vector<18x18xf32>
    %c11 = arith.constant 11 : index
    %458 = memref.load %arg5[%c11] : memref<144xf32, #tpu.memory_space<smem>>
    %459 = vector.broadcast %458 : f32 to vector<18x18xf32>
    %460 = arith.mulf %459, %457 : vector<18x18xf32>
    %461 = arith.addf %427, %460 : vector<18x18xf32>
    %c29 = arith.constant 29 : index
    %462 = memref.load %arg5[%c29] : memref<144xf32, #tpu.memory_space<smem>>
    %463 = vector.broadcast %462 : f32 to vector<18x18xf32>
    %464 = arith.mulf %463, %457 : vector<18x18xf32>
    %465 = arith.addf %431, %464 : vector<18x18xf32>
    %c47 = arith.constant 47 : index
    %466 = memref.load %arg5[%c47] : memref<144xf32, #tpu.memory_space<smem>>
    %467 = vector.broadcast %466 : f32 to vector<18x18xf32>
    %468 = arith.mulf %467, %457 : vector<18x18xf32>
    %469 = arith.addf %435, %468 : vector<18x18xf32>
    %c65 = arith.constant 65 : index
    %470 = memref.load %arg5[%c65] : memref<144xf32, #tpu.memory_space<smem>>
    %471 = vector.broadcast %470 : f32 to vector<18x18xf32>
    %472 = arith.mulf %471, %457 : vector<18x18xf32>
    %473 = arith.addf %439, %472 : vector<18x18xf32>
    %c83 = arith.constant 83 : index
    %474 = memref.load %arg5[%c83] : memref<144xf32, #tpu.memory_space<smem>>
    %475 = vector.broadcast %474 : f32 to vector<18x18xf32>
    %476 = arith.mulf %475, %457 : vector<18x18xf32>
    %477 = arith.addf %443, %476 : vector<18x18xf32>
    %c101 = arith.constant 101 : index
    %478 = memref.load %arg5[%c101] : memref<144xf32, #tpu.memory_space<smem>>
    %479 = vector.broadcast %478 : f32 to vector<18x18xf32>
    %480 = arith.mulf %479, %457 : vector<18x18xf32>
    %481 = arith.addf %447, %480 : vector<18x18xf32>
    %c119 = arith.constant 119 : index
    %482 = memref.load %arg5[%c119] : memref<144xf32, #tpu.memory_space<smem>>
    %483 = vector.broadcast %482 : f32 to vector<18x18xf32>
    %484 = arith.mulf %483, %457 : vector<18x18xf32>
    %485 = arith.addf %451, %484 : vector<18x18xf32>
    %c137 = arith.constant 137 : index
    %486 = memref.load %arg5[%c137] : memref<144xf32, #tpu.memory_space<smem>>
    %487 = vector.broadcast %486 : f32 to vector<18x18xf32>
    %488 = arith.mulf %487, %457 : vector<18x18xf32>
    %489 = arith.addf %455, %488 : vector<18x18xf32>
    %c1_119 = arith.constant 1 : index
    %c1_120 = arith.constant 1 : index
    %c0_121 = arith.constant 0 : index
    %490 = vector.load %arg11[%c1_119, %c1_120, %c0_121] : memref<2x20x20xf32, #tpu.memory_space<vmem>>, vector<1x18x18xf32>
    %491 = vector.shape_cast %490 : vector<1x18x18xf32> to vector<18x18xf32>
    %c12 = arith.constant 12 : index
    %492 = memref.load %arg5[%c12] : memref<144xf32, #tpu.memory_space<smem>>
    %493 = vector.broadcast %492 : f32 to vector<18x18xf32>
    %494 = arith.mulf %493, %491 : vector<18x18xf32>
    %495 = arith.addf %461, %494 : vector<18x18xf32>
    %c30 = arith.constant 30 : index
    %496 = memref.load %arg5[%c30] : memref<144xf32, #tpu.memory_space<smem>>
    %497 = vector.broadcast %496 : f32 to vector<18x18xf32>
    %498 = arith.mulf %497, %491 : vector<18x18xf32>
    %499 = arith.addf %465, %498 : vector<18x18xf32>
    %c48 = arith.constant 48 : index
    %500 = memref.load %arg5[%c48] : memref<144xf32, #tpu.memory_space<smem>>
    %501 = vector.broadcast %500 : f32 to vector<18x18xf32>
    %502 = arith.mulf %501, %491 : vector<18x18xf32>
    %503 = arith.addf %469, %502 : vector<18x18xf32>
    %c66 = arith.constant 66 : index
    %504 = memref.load %arg5[%c66] : memref<144xf32, #tpu.memory_space<smem>>
    %505 = vector.broadcast %504 : f32 to vector<18x18xf32>
    %506 = arith.mulf %505, %491 : vector<18x18xf32>
    %507 = arith.addf %473, %506 : vector<18x18xf32>
    %c84 = arith.constant 84 : index
    %508 = memref.load %arg5[%c84] : memref<144xf32, #tpu.memory_space<smem>>
    %509 = vector.broadcast %508 : f32 to vector<18x18xf32>
    %510 = arith.mulf %509, %491 : vector<18x18xf32>
    %511 = arith.addf %477, %510 : vector<18x18xf32>
    %c102 = arith.constant 102 : index
    %512 = memref.load %arg5[%c102] : memref<144xf32, #tpu.memory_space<smem>>
    %513 = vector.broadcast %512 : f32 to vector<18x18xf32>
    %514 = arith.mulf %513, %491 : vector<18x18xf32>
    %515 = arith.addf %481, %514 : vector<18x18xf32>
    %c120 = arith.constant 120 : index
    %516 = memref.load %arg5[%c120] : memref<144xf32, #tpu.memory_space<smem>>
    %517 = vector.broadcast %516 : f32 to vector<18x18xf32>
    %518 = arith.mulf %517, %491 : vector<18x18xf32>
    %519 = arith.addf %485, %518 : vector<18x18xf32>
    %c138 = arith.constant 138 : index
    %520 = memref.load %arg5[%c138] : memref<144xf32, #tpu.memory_space<smem>>
    %521 = vector.broadcast %520 : f32 to vector<18x18xf32>
    %522 = arith.mulf %521, %491 : vector<18x18xf32>
    %523 = arith.addf %489, %522 : vector<18x18xf32>
    %c1_122 = arith.constant 1 : index
    %c1_123 = arith.constant 1 : index
    %c1_124 = arith.constant 1 : index
    %524 = vector.load %arg11[%c1_122, %c1_123, %c1_124] : memref<2x20x20xf32, #tpu.memory_space<vmem>>, vector<1x18x18xf32>
    %525 = vector.shape_cast %524 : vector<1x18x18xf32> to vector<18x18xf32>
    %c13 = arith.constant 13 : index
    %526 = memref.load %arg5[%c13] : memref<144xf32, #tpu.memory_space<smem>>
    %527 = vector.broadcast %526 : f32 to vector<18x18xf32>
    %528 = arith.mulf %527, %525 : vector<18x18xf32>
    %529 = arith.addf %495, %528 : vector<18x18xf32>
    %c31 = arith.constant 31 : index
    %530 = memref.load %arg5[%c31] : memref<144xf32, #tpu.memory_space<smem>>
    %531 = vector.broadcast %530 : f32 to vector<18x18xf32>
    %532 = arith.mulf %531, %525 : vector<18x18xf32>
    %533 = arith.addf %499, %532 : vector<18x18xf32>
    %c49 = arith.constant 49 : index
    %534 = memref.load %arg5[%c49] : memref<144xf32, #tpu.memory_space<smem>>
    %535 = vector.broadcast %534 : f32 to vector<18x18xf32>
    %536 = arith.mulf %535, %525 : vector<18x18xf32>
    %537 = arith.addf %503, %536 : vector<18x18xf32>
    %c67 = arith.constant 67 : index
    %538 = memref.load %arg5[%c67] : memref<144xf32, #tpu.memory_space<smem>>
    %539 = vector.broadcast %538 : f32 to vector<18x18xf32>
    %540 = arith.mulf %539, %525 : vector<18x18xf32>
    %541 = arith.addf %507, %540 : vector<18x18xf32>
    %c85 = arith.constant 85 : index
    %542 = memref.load %arg5[%c85] : memref<144xf32, #tpu.memory_space<smem>>
    %543 = vector.broadcast %542 : f32 to vector<18x18xf32>
    %544 = arith.mulf %543, %525 : vector<18x18xf32>
    %545 = arith.addf %511, %544 : vector<18x18xf32>
    %c103 = arith.constant 103 : index
    %546 = memref.load %arg5[%c103] : memref<144xf32, #tpu.memory_space<smem>>
    %547 = vector.broadcast %546 : f32 to vector<18x18xf32>
    %548 = arith.mulf %547, %525 : vector<18x18xf32>
    %549 = arith.addf %515, %548 : vector<18x18xf32>
    %c121 = arith.constant 121 : index
    %550 = memref.load %arg5[%c121] : memref<144xf32, #tpu.memory_space<smem>>
    %551 = vector.broadcast %550 : f32 to vector<18x18xf32>
    %552 = arith.mulf %551, %525 : vector<18x18xf32>
    %553 = arith.addf %519, %552 : vector<18x18xf32>
    %c139 = arith.constant 139 : index
    %554 = memref.load %arg5[%c139] : memref<144xf32, #tpu.memory_space<smem>>
    %555 = vector.broadcast %554 : f32 to vector<18x18xf32>
    %556 = arith.mulf %555, %525 : vector<18x18xf32>
    %557 = arith.addf %523, %556 : vector<18x18xf32>
    %c1_125 = arith.constant 1 : index
    %c1_126 = arith.constant 1 : index
    %c2_127 = arith.constant 2 : index
    %558 = vector.load %arg11[%c1_125, %c1_126, %c2_127] : memref<2x20x20xf32, #tpu.memory_space<vmem>>, vector<1x18x18xf32>
    %559 = vector.shape_cast %558 : vector<1x18x18xf32> to vector<18x18xf32>
    %c14 = arith.constant 14 : index
    %560 = memref.load %arg5[%c14] : memref<144xf32, #tpu.memory_space<smem>>
    %561 = vector.broadcast %560 : f32 to vector<18x18xf32>
    %562 = arith.mulf %561, %559 : vector<18x18xf32>
    %563 = arith.addf %529, %562 : vector<18x18xf32>
    %c32 = arith.constant 32 : index
    %564 = memref.load %arg5[%c32] : memref<144xf32, #tpu.memory_space<smem>>
    %565 = vector.broadcast %564 : f32 to vector<18x18xf32>
    %566 = arith.mulf %565, %559 : vector<18x18xf32>
    %567 = arith.addf %533, %566 : vector<18x18xf32>
    %c50 = arith.constant 50 : index
    %568 = memref.load %arg5[%c50] : memref<144xf32, #tpu.memory_space<smem>>
    %569 = vector.broadcast %568 : f32 to vector<18x18xf32>
    %570 = arith.mulf %569, %559 : vector<18x18xf32>
    %571 = arith.addf %537, %570 : vector<18x18xf32>
    %c68 = arith.constant 68 : index
    %572 = memref.load %arg5[%c68] : memref<144xf32, #tpu.memory_space<smem>>
    %573 = vector.broadcast %572 : f32 to vector<18x18xf32>
    %574 = arith.mulf %573, %559 : vector<18x18xf32>
    %575 = arith.addf %541, %574 : vector<18x18xf32>
    %c86 = arith.constant 86 : index
    %576 = memref.load %arg5[%c86] : memref<144xf32, #tpu.memory_space<smem>>
    %577 = vector.broadcast %576 : f32 to vector<18x18xf32>
    %578 = arith.mulf %577, %559 : vector<18x18xf32>
    %579 = arith.addf %545, %578 : vector<18x18xf32>
    %c104 = arith.constant 104 : index
    %580 = memref.load %arg5[%c104] : memref<144xf32, #tpu.memory_space<smem>>
    %581 = vector.broadcast %580 : f32 to vector<18x18xf32>
    %582 = arith.mulf %581, %559 : vector<18x18xf32>
    %583 = arith.addf %549, %582 : vector<18x18xf32>
    %c122 = arith.constant 122 : index
    %584 = memref.load %arg5[%c122] : memref<144xf32, #tpu.memory_space<smem>>
    %585 = vector.broadcast %584 : f32 to vector<18x18xf32>
    %586 = arith.mulf %585, %559 : vector<18x18xf32>
    %587 = arith.addf %553, %586 : vector<18x18xf32>
    %c140 = arith.constant 140 : index
    %588 = memref.load %arg5[%c140] : memref<144xf32, #tpu.memory_space<smem>>
    %589 = vector.broadcast %588 : f32 to vector<18x18xf32>
    %590 = arith.mulf %589, %559 : vector<18x18xf32>
    %591 = arith.addf %557, %590 : vector<18x18xf32>
    %c1_128 = arith.constant 1 : index
    %c2_129 = arith.constant 2 : index
    %c0_130 = arith.constant 0 : index
    %592 = vector.load %arg11[%c1_128, %c2_129, %c0_130] : memref<2x20x20xf32, #tpu.memory_space<vmem>>, vector<1x18x18xf32>
    %593 = vector.shape_cast %592 : vector<1x18x18xf32> to vector<18x18xf32>
    %c15 = arith.constant 15 : index
    %594 = memref.load %arg5[%c15] : memref<144xf32, #tpu.memory_space<smem>>
    %595 = vector.broadcast %594 : f32 to vector<18x18xf32>
    %596 = arith.mulf %595, %593 : vector<18x18xf32>
    %597 = arith.addf %563, %596 : vector<18x18xf32>
    %c33 = arith.constant 33 : index
    %598 = memref.load %arg5[%c33] : memref<144xf32, #tpu.memory_space<smem>>
    %599 = vector.broadcast %598 : f32 to vector<18x18xf32>
    %600 = arith.mulf %599, %593 : vector<18x18xf32>
    %601 = arith.addf %567, %600 : vector<18x18xf32>
    %c51 = arith.constant 51 : index
    %602 = memref.load %arg5[%c51] : memref<144xf32, #tpu.memory_space<smem>>
    %603 = vector.broadcast %602 : f32 to vector<18x18xf32>
    %604 = arith.mulf %603, %593 : vector<18x18xf32>
    %605 = arith.addf %571, %604 : vector<18x18xf32>
    %c69 = arith.constant 69 : index
    %606 = memref.load %arg5[%c69] : memref<144xf32, #tpu.memory_space<smem>>
    %607 = vector.broadcast %606 : f32 to vector<18x18xf32>
    %608 = arith.mulf %607, %593 : vector<18x18xf32>
    %609 = arith.addf %575, %608 : vector<18x18xf32>
    %c87 = arith.constant 87 : index
    %610 = memref.load %arg5[%c87] : memref<144xf32, #tpu.memory_space<smem>>
    %611 = vector.broadcast %610 : f32 to vector<18x18xf32>
    %612 = arith.mulf %611, %593 : vector<18x18xf32>
    %613 = arith.addf %579, %612 : vector<18x18xf32>
    %c105 = arith.constant 105 : index
    %614 = memref.load %arg5[%c105] : memref<144xf32, #tpu.memory_space<smem>>
    %615 = vector.broadcast %614 : f32 to vector<18x18xf32>
    %616 = arith.mulf %615, %593 : vector<18x18xf32>
    %617 = arith.addf %583, %616 : vector<18x18xf32>
    %c123 = arith.constant 123 : index
    %618 = memref.load %arg5[%c123] : memref<144xf32, #tpu.memory_space<smem>>
    %619 = vector.broadcast %618 : f32 to vector<18x18xf32>
    %620 = arith.mulf %619, %593 : vector<18x18xf32>
    %621 = arith.addf %587, %620 : vector<18x18xf32>
    %c141 = arith.constant 141 : index
    %622 = memref.load %arg5[%c141] : memref<144xf32, #tpu.memory_space<smem>>
    %623 = vector.broadcast %622 : f32 to vector<18x18xf32>
    %624 = arith.mulf %623, %593 : vector<18x18xf32>
    %625 = arith.addf %591, %624 : vector<18x18xf32>
    %c1_131 = arith.constant 1 : index
    %c2_132 = arith.constant 2 : index
    %c1_133 = arith.constant 1 : index
    %626 = vector.load %arg11[%c1_131, %c2_132, %c1_133] : memref<2x20x20xf32, #tpu.memory_space<vmem>>, vector<1x18x18xf32>
    %627 = vector.shape_cast %626 : vector<1x18x18xf32> to vector<18x18xf32>
    %c16 = arith.constant 16 : index
    %628 = memref.load %arg5[%c16] : memref<144xf32, #tpu.memory_space<smem>>
    %629 = vector.broadcast %628 : f32 to vector<18x18xf32>
    %630 = arith.mulf %629, %627 : vector<18x18xf32>
    %631 = arith.addf %597, %630 : vector<18x18xf32>
    %c34 = arith.constant 34 : index
    %632 = memref.load %arg5[%c34] : memref<144xf32, #tpu.memory_space<smem>>
    %633 = vector.broadcast %632 : f32 to vector<18x18xf32>
    %634 = arith.mulf %633, %627 : vector<18x18xf32>
    %635 = arith.addf %601, %634 : vector<18x18xf32>
    %c52 = arith.constant 52 : index
    %636 = memref.load %arg5[%c52] : memref<144xf32, #tpu.memory_space<smem>>
    %637 = vector.broadcast %636 : f32 to vector<18x18xf32>
    %638 = arith.mulf %637, %627 : vector<18x18xf32>
    %639 = arith.addf %605, %638 : vector<18x18xf32>
    %c70 = arith.constant 70 : index
    %640 = memref.load %arg5[%c70] : memref<144xf32, #tpu.memory_space<smem>>
    %641 = vector.broadcast %640 : f32 to vector<18x18xf32>
    %642 = arith.mulf %641, %627 : vector<18x18xf32>
    %643 = arith.addf %609, %642 : vector<18x18xf32>
    %c88 = arith.constant 88 : index
    %644 = memref.load %arg5[%c88] : memref<144xf32, #tpu.memory_space<smem>>
    %645 = vector.broadcast %644 : f32 to vector<18x18xf32>
    %646 = arith.mulf %645, %627 : vector<18x18xf32>
    %647 = arith.addf %613, %646 : vector<18x18xf32>
    %c106 = arith.constant 106 : index
    %648 = memref.load %arg5[%c106] : memref<144xf32, #tpu.memory_space<smem>>
    %649 = vector.broadcast %648 : f32 to vector<18x18xf32>
    %650 = arith.mulf %649, %627 : vector<18x18xf32>
    %651 = arith.addf %617, %650 : vector<18x18xf32>
    %c124 = arith.constant 124 : index
    %652 = memref.load %arg5[%c124] : memref<144xf32, #tpu.memory_space<smem>>
    %653 = vector.broadcast %652 : f32 to vector<18x18xf32>
    %654 = arith.mulf %653, %627 : vector<18x18xf32>
    %655 = arith.addf %621, %654 : vector<18x18xf32>
    %c142 = arith.constant 142 : index
    %656 = memref.load %arg5[%c142] : memref<144xf32, #tpu.memory_space<smem>>
    %657 = vector.broadcast %656 : f32 to vector<18x18xf32>
    %658 = arith.mulf %657, %627 : vector<18x18xf32>
    %659 = arith.addf %625, %658 : vector<18x18xf32>
    %c1_134 = arith.constant 1 : index
    %c2_135 = arith.constant 2 : index
    %c2_136 = arith.constant 2 : index
    %660 = vector.load %arg11[%c1_134, %c2_135, %c2_136] : memref<2x20x20xf32, #tpu.memory_space<vmem>>, vector<1x18x18xf32>
    %661 = vector.shape_cast %660 : vector<1x18x18xf32> to vector<18x18xf32>
    %c17 = arith.constant 17 : index
    %662 = memref.load %arg5[%c17] : memref<144xf32, #tpu.memory_space<smem>>
    %663 = vector.broadcast %662 : f32 to vector<18x18xf32>
    %664 = arith.mulf %663, %661 : vector<18x18xf32>
    %665 = arith.addf %631, %664 : vector<18x18xf32>
    %c35 = arith.constant 35 : index
    %666 = memref.load %arg5[%c35] : memref<144xf32, #tpu.memory_space<smem>>
    %667 = vector.broadcast %666 : f32 to vector<18x18xf32>
    %668 = arith.mulf %667, %661 : vector<18x18xf32>
    %669 = arith.addf %635, %668 : vector<18x18xf32>
    %c53 = arith.constant 53 : index
    %670 = memref.load %arg5[%c53] : memref<144xf32, #tpu.memory_space<smem>>
    %671 = vector.broadcast %670 : f32 to vector<18x18xf32>
    %672 = arith.mulf %671, %661 : vector<18x18xf32>
    %673 = arith.addf %639, %672 : vector<18x18xf32>
    %c71 = arith.constant 71 : index
    %674 = memref.load %arg5[%c71] : memref<144xf32, #tpu.memory_space<smem>>
    %675 = vector.broadcast %674 : f32 to vector<18x18xf32>
    %676 = arith.mulf %675, %661 : vector<18x18xf32>
    %677 = arith.addf %643, %676 : vector<18x18xf32>
    %c89 = arith.constant 89 : index
    %678 = memref.load %arg5[%c89] : memref<144xf32, #tpu.memory_space<smem>>
    %679 = vector.broadcast %678 : f32 to vector<18x18xf32>
    %680 = arith.mulf %679, %661 : vector<18x18xf32>
    %681 = arith.addf %647, %680 : vector<18x18xf32>
    %c107 = arith.constant 107 : index
    %682 = memref.load %arg5[%c107] : memref<144xf32, #tpu.memory_space<smem>>
    %683 = vector.broadcast %682 : f32 to vector<18x18xf32>
    %684 = arith.mulf %683, %661 : vector<18x18xf32>
    %685 = arith.addf %651, %684 : vector<18x18xf32>
    %c125 = arith.constant 125 : index
    %686 = memref.load %arg5[%c125] : memref<144xf32, #tpu.memory_space<smem>>
    %687 = vector.broadcast %686 : f32 to vector<18x18xf32>
    %688 = arith.mulf %687, %661 : vector<18x18xf32>
    %689 = arith.addf %655, %688 : vector<18x18xf32>
    %c143 = arith.constant 143 : index
    %690 = memref.load %arg5[%c143] : memref<144xf32, #tpu.memory_space<smem>>
    %691 = vector.broadcast %690 : f32 to vector<18x18xf32>
    %692 = arith.mulf %691, %661 : vector<18x18xf32>
    %693 = arith.addf %659, %692 : vector<18x18xf32>
    %694 = tpu.iota {dimensions = array<i32: 0>} : vector<18x18xi32>
    %695 = tpu.iota {dimensions = array<i32: 1>} : vector<18x18xi32>
    %c1_i32 = arith.constant 1 : i32
    %696 = vector.broadcast %c1_i32 : i32 to vector<18x18xi32>
    %697 = arith.cmpi sge, %694, %696 : vector<18x18xi32>
    %c16_i32 = arith.constant 16 : i32
    %698 = vector.broadcast %c16_i32 : i32 to vector<18x18xi32>
    %699 = arith.cmpi sle, %694, %698 : vector<18x18xi32>
    %700 = arith.andi %697, %699 : vector<18x18xi1>
    %c1_i32_137 = arith.constant 1 : i32
    %701 = vector.broadcast %c1_i32_137 : i32 to vector<18x18xi32>
    %702 = arith.cmpi sge, %695, %701 : vector<18x18xi32>
    %703 = arith.andi %700, %702 : vector<18x18xi1>
    %c16_i32_138 = arith.constant 16 : i32
    %704 = vector.broadcast %c16_i32_138 : i32 to vector<18x18xi32>
    %705 = arith.cmpi sle, %695, %704 : vector<18x18xi32>
    %706 = arith.andi %703, %705 : vector<18x18xi1>
    %c0_139 = arith.constant 0 : index
    %707 = memref.load %arg6[%c0_139] : memref<8xf32, #tpu.memory_space<smem>>
    %708 = vector.broadcast %707 : f32 to vector<18x18xf32>
    %709 = arith.addf %665, %708 : vector<18x18xf32>
    %cst_140 = arith.constant 0.000000e+00 : f32
    %710 = vector.broadcast %cst_140 : f32 to vector<18x18xf32>
    %711 = arith.maximumf %709, %710 : vector<18x18xf32>
    %cst_141 = arith.constant 0.000000e+00 : f32
    %712 = vector.broadcast %cst_141 : f32 to vector<18x18xf32>
    %713 = arith.select %706, %711, %712 : vector<18x18xi1>, vector<18x18xf32>
    %c0_142 = arith.constant 0 : index
    %c0_143 = arith.constant 0 : index
    %c0_144 = arith.constant 0 : index
    %714 = vector.load %arg12[%c0_142, %c0_143, %c0_144] : memref<8x18x18xf32, #tpu.memory_space<vmem>>, vector<1x18x18xf32>
    %715 = vector.shape_cast %714 : vector<1x18x18xf32> to vector<18x18xf32>
    %716 = vector.shape_cast %713 : vector<18x18xf32> to vector<1x18x18xf32>
    tpu.vector_store %arg12[%c0_142, %c0_143, %c0_144], %716 {strides = array<i32>} : memref<8x18x18xf32, #tpu.memory_space<vmem>>, vector<1x18x18xf32>,
    %c1_145 = arith.constant 1 : index
    %717 = memref.load %arg6[%c1_145] : memref<8xf32, #tpu.memory_space<smem>>
    %718 = vector.broadcast %717 : f32 to vector<18x18xf32>
    %719 = arith.addf %669, %718 : vector<18x18xf32>
    %cst_146 = arith.constant 0.000000e+00 : f32
    %720 = vector.broadcast %cst_146 : f32 to vector<18x18xf32>
    %721 = arith.maximumf %719, %720 : vector<18x18xf32>
    %cst_147 = arith.constant 0.000000e+00 : f32
    %722 = vector.broadcast %cst_147 : f32 to vector<18x18xf32>
    %723 = arith.select %706, %721, %722 : vector<18x18xi1>, vector<18x18xf32>
    %c1_148 = arith.constant 1 : index
    %c0_149 = arith.constant 0 : index
    %c0_150 = arith.constant 0 : index
    %724 = vector.load %arg12[%c1_148, %c0_149, %c0_150] : memref<8x18x18xf32, #tpu.memory_space<vmem>>, vector<1x18x18xf32>
    %725 = vector.shape_cast %724 : vector<1x18x18xf32> to vector<18x18xf32>
    %726 = vector.shape_cast %723 : vector<18x18xf32> to vector<1x18x18xf32>
    tpu.vector_store %arg12[%c1_148, %c0_149, %c0_150], %726 {strides = array<i32>} : memref<8x18x18xf32, #tpu.memory_space<vmem>>, vector<1x18x18xf32>,
    %c2_151 = arith.constant 2 : index
    %727 = memref.load %arg6[%c2_151] : memref<8xf32, #tpu.memory_space<smem>>
    %728 = vector.broadcast %727 : f32 to vector<18x18xf32>
    %729 = arith.addf %673, %728 : vector<18x18xf32>
    %cst_152 = arith.constant 0.000000e+00 : f32
    %730 = vector.broadcast %cst_152 : f32 to vector<18x18xf32>
    %731 = arith.maximumf %729, %730 : vector<18x18xf32>
    %cst_153 = arith.constant 0.000000e+00 : f32
    %732 = vector.broadcast %cst_153 : f32 to vector<18x18xf32>
    %733 = arith.select %706, %731, %732 : vector<18x18xi1>, vector<18x18xf32>
    %c2_154 = arith.constant 2 : index
    %c0_155 = arith.constant 0 : index
    %c0_156 = arith.constant 0 : index
    %734 = vector.load %arg12[%c2_154, %c0_155, %c0_156] : memref<8x18x18xf32, #tpu.memory_space<vmem>>, vector<1x18x18xf32>
    %735 = vector.shape_cast %734 : vector<1x18x18xf32> to vector<18x18xf32>
    %736 = vector.shape_cast %733 : vector<18x18xf32> to vector<1x18x18xf32>
    tpu.vector_store %arg12[%c2_154, %c0_155, %c0_156], %736 {strides = array<i32>} : memref<8x18x18xf32, #tpu.memory_space<vmem>>, vector<1x18x18xf32>,
    %c3_157 = arith.constant 3 : index
    %737 = memref.load %arg6[%c3_157] : memref<8xf32, #tpu.memory_space<smem>>
    %738 = vector.broadcast %737 : f32 to vector<18x18xf32>
    %739 = arith.addf %677, %738 : vector<18x18xf32>
    %cst_158 = arith.constant 0.000000e+00 : f32
    %740 = vector.broadcast %cst_158 : f32 to vector<18x18xf32>
    %741 = arith.maximumf %739, %740 : vector<18x18xf32>
    %cst_159 = arith.constant 0.000000e+00 : f32
    %742 = vector.broadcast %cst_159 : f32 to vector<18x18xf32>
    %743 = arith.select %706, %741, %742 : vector<18x18xi1>, vector<18x18xf32>
    %c3_160 = arith.constant 3 : index
    %c0_161 = arith.constant 0 : index
    %c0_162 = arith.constant 0 : index
    %744 = vector.load %arg12[%c3_160, %c0_161, %c0_162] : memref<8x18x18xf32, #tpu.memory_space<vmem>>, vector<1x18x18xf32>
    %745 = vector.shape_cast %744 : vector<1x18x18xf32> to vector<18x18xf32>
    %746 = vector.shape_cast %743 : vector<18x18xf32> to vector<1x18x18xf32>
    tpu.vector_store %arg12[%c3_160, %c0_161, %c0_162], %746 {strides = array<i32>} : memref<8x18x18xf32, #tpu.memory_space<vmem>>, vector<1x18x18xf32>,
    %c4_163 = arith.constant 4 : index
    %747 = memref.load %arg6[%c4_163] : memref<8xf32, #tpu.memory_space<smem>>
    %748 = vector.broadcast %747 : f32 to vector<18x18xf32>
    %749 = arith.addf %681, %748 : vector<18x18xf32>
    %cst_164 = arith.constant 0.000000e+00 : f32
    %750 = vector.broadcast %cst_164 : f32 to vector<18x18xf32>
    %751 = arith.maximumf %749, %750 : vector<18x18xf32>
    %cst_165 = arith.constant 0.000000e+00 : f32
    %752 = vector.broadcast %cst_165 : f32 to vector<18x18xf32>
    %753 = arith.select %706, %751, %752 : vector<18x18xi1>, vector<18x18xf32>
    %c4_166 = arith.constant 4 : index
    %c0_167 = arith.constant 0 : index
    %c0_168 = arith.constant 0 : index
    %754 = vector.load %arg12[%c4_166, %c0_167, %c0_168] : memref<8x18x18xf32, #tpu.memory_space<vmem>>, vector<1x18x18xf32>
    %755 = vector.shape_cast %754 : vector<1x18x18xf32> to vector<18x18xf32>
    %756 = vector.shape_cast %753 : vector<18x18xf32> to vector<1x18x18xf32>
    tpu.vector_store %arg12[%c4_166, %c0_167, %c0_168], %756 {strides = array<i32>} : memref<8x18x18xf32, #tpu.memory_space<vmem>>, vector<1x18x18xf32>,
    %c5_169 = arith.constant 5 : index
    %757 = memref.load %arg6[%c5_169] : memref<8xf32, #tpu.memory_space<smem>>
    %758 = vector.broadcast %757 : f32 to vector<18x18xf32>
    %759 = arith.addf %685, %758 : vector<18x18xf32>
    %cst_170 = arith.constant 0.000000e+00 : f32
    %760 = vector.broadcast %cst_170 : f32 to vector<18x18xf32>
    %761 = arith.maximumf %759, %760 : vector<18x18xf32>
    %cst_171 = arith.constant 0.000000e+00 : f32
    %762 = vector.broadcast %cst_171 : f32 to vector<18x18xf32>
    %763 = arith.select %706, %761, %762 : vector<18x18xi1>, vector<18x18xf32>
    %c5_172 = arith.constant 5 : index
    %c0_173 = arith.constant 0 : index
    %c0_174 = arith.constant 0 : index
    %764 = vector.load %arg12[%c5_172, %c0_173, %c0_174] : memref<8x18x18xf32, #tpu.memory_space<vmem>>, vector<1x18x18xf32>
    %765 = vector.shape_cast %764 : vector<1x18x18xf32> to vector<18x18xf32>
    %766 = vector.shape_cast %763 : vector<18x18xf32> to vector<1x18x18xf32>
    tpu.vector_store %arg12[%c5_172, %c0_173, %c0_174], %766 {strides = array<i32>} : memref<8x18x18xf32, #tpu.memory_space<vmem>>, vector<1x18x18xf32>,
    %c6_175 = arith.constant 6 : index
    %767 = memref.load %arg6[%c6_175] : memref<8xf32, #tpu.memory_space<smem>>
    %768 = vector.broadcast %767 : f32 to vector<18x18xf32>
    %769 = arith.addf %689, %768 : vector<18x18xf32>
    %cst_176 = arith.constant 0.000000e+00 : f32
    %770 = vector.broadcast %cst_176 : f32 to vector<18x18xf32>
    %771 = arith.maximumf %769, %770 : vector<18x18xf32>
    %cst_177 = arith.constant 0.000000e+00 : f32
    %772 = vector.broadcast %cst_177 : f32 to vector<18x18xf32>
    %773 = arith.select %706, %771, %772 : vector<18x18xi1>, vector<18x18xf32>
    %c6_178 = arith.constant 6 : index
    %c0_179 = arith.constant 0 : index
    %c0_180 = arith.constant 0 : index
    %774 = vector.load %arg12[%c6_178, %c0_179, %c0_180] : memref<8x18x18xf32, #tpu.memory_space<vmem>>, vector<1x18x18xf32>
    %775 = vector.shape_cast %774 : vector<1x18x18xf32> to vector<18x18xf32>
    %776 = vector.shape_cast %773 : vector<18x18xf32> to vector<1x18x18xf32>
    tpu.vector_store %arg12[%c6_178, %c0_179, %c0_180], %776 {strides = array<i32>} : memref<8x18x18xf32, #tpu.memory_space<vmem>>, vector<1x18x18xf32>,
    %c7_181 = arith.constant 7 : index
    %777 = memref.load %arg6[%c7_181] : memref<8xf32, #tpu.memory_space<smem>>
    %778 = vector.broadcast %777 : f32 to vector<18x18xf32>
    %779 = arith.addf %693, %778 : vector<18x18xf32>
    %cst_182 = arith.constant 0.000000e+00 : f32
    %780 = vector.broadcast %cst_182 : f32 to vector<18x18xf32>
    %781 = arith.maximumf %779, %780 : vector<18x18xf32>
    %cst_183 = arith.constant 0.000000e+00 : f32
    %782 = vector.broadcast %cst_183 : f32 to vector<18x18xf32>
    %783 = arith.select %706, %781, %782 : vector<18x18xi1>, vector<18x18xf32>
    %c7_184 = arith.constant 7 : index
    %c0_185 = arith.constant 0 : index
    %c0_186 = arith.constant 0 : index
    %784 = vector.load %arg12[%c7_184, %c0_185, %c0_186] : memref<8x18x18xf32, #tpu.memory_space<vmem>>, vector<1x18x18xf32>
    %785 = vector.shape_cast %784 : vector<1x18x18xf32> to vector<18x18xf32>
    %786 = vector.shape_cast %783 : vector<18x18xf32> to vector<1x18x18xf32>
    tpu.vector_store %arg12[%c7_184, %c0_185, %c0_186], %786 {strides = array<i32>} : memref<8x18x18xf32, #tpu.memory_space<vmem>>, vector<1x18x18xf32>,
    %cst_187 = arith.constant 0.000000e+00 : f32
    %787 = vector.broadcast %cst_187 : f32 to vector<16x16xf32>
    %cst_188 = arith.constant 0.000000e+00 : f32
    %788 = vector.broadcast %cst_188 : f32 to vector<16x16xf32>
    %c0_189 = arith.constant 0 : index
    %c0_190 = arith.constant 0 : index
    %c0_191 = arith.constant 0 : index
    %789 = vector.load %arg12[%c0_189, %c0_190, %c0_191] : memref<8x18x18xf32, #tpu.memory_space<vmem>>, vector<1x16x16xf32>
    %790 = vector.shape_cast %789 : vector<1x16x16xf32> to vector<16x16xf32>
    %c0_192 = arith.constant 0 : index
    %791 = memref.load %arg7[%c0_192] : memref<144xf32, #tpu.memory_space<smem>>
    %792 = vector.broadcast %791 : f32 to vector<16x16xf32>
    %793 = arith.mulf %792, %790 : vector<16x16xf32>
    %794 = arith.addf %787, %793 : vector<16x16xf32>
    %c72_193 = arith.constant 72 : index
    %795 = memref.load %arg7[%c72_193] : memref<144xf32, #tpu.memory_space<smem>>
    %796 = vector.broadcast %795 : f32 to vector<16x16xf32>
    %797 = arith.mulf %796, %790 : vector<16x16xf32>
    %798 = arith.addf %788, %797 : vector<16x16xf32>
    %c0_194 = arith.constant 0 : index
    %c0_195 = arith.constant 0 : index
    %c1_196 = arith.constant 1 : index
    %799 = vector.load %arg12[%c0_194, %c0_195, %c1_196] : memref<8x18x18xf32, #tpu.memory_space<vmem>>, vector<1x16x16xf32>
    %800 = vector.shape_cast %799 : vector<1x16x16xf32> to vector<16x16xf32>
    %c1_197 = arith.constant 1 : index
    %801 = memref.load %arg7[%c1_197] : memref<144xf32, #tpu.memory_space<smem>>
    %802 = vector.broadcast %801 : f32 to vector<16x16xf32>
    %803 = arith.mulf %802, %800 : vector<16x16xf32>
    %804 = arith.addf %794, %803 : vector<16x16xf32>
    %c73_198 = arith.constant 73 : index
    %805 = memref.load %arg7[%c73_198] : memref<144xf32, #tpu.memory_space<smem>>
    %806 = vector.broadcast %805 : f32 to vector<16x16xf32>
    %807 = arith.mulf %806, %800 : vector<16x16xf32>
    %808 = arith.addf %798, %807 : vector<16x16xf32>
    %c0_199 = arith.constant 0 : index
    %c0_200 = arith.constant 0 : index
    %c2_201 = arith.constant 2 : index
    %809 = vector.load %arg12[%c0_199, %c0_200, %c2_201] : memref<8x18x18xf32, #tpu.memory_space<vmem>>, vector<1x16x16xf32>
    %810 = vector.shape_cast %809 : vector<1x16x16xf32> to vector<16x16xf32>
    %c2_202 = arith.constant 2 : index
    %811 = memref.load %arg7[%c2_202] : memref<144xf32, #tpu.memory_space<smem>>
    %812 = vector.broadcast %811 : f32 to vector<16x16xf32>
    %813 = arith.mulf %812, %810 : vector<16x16xf32>
    %814 = arith.addf %804, %813 : vector<16x16xf32>
    %c74_203 = arith.constant 74 : index
    %815 = memref.load %arg7[%c74_203] : memref<144xf32, #tpu.memory_space<smem>>
    %816 = vector.broadcast %815 : f32 to vector<16x16xf32>
    %817 = arith.mulf %816, %810 : vector<16x16xf32>
    %818 = arith.addf %808, %817 : vector<16x16xf32>
    %c0_204 = arith.constant 0 : index
    %c1_205 = arith.constant 1 : index
    %c0_206 = arith.constant 0 : index
    %819 = vector.load %arg12[%c0_204, %c1_205, %c0_206] : memref<8x18x18xf32, #tpu.memory_space<vmem>>, vector<1x16x16xf32>
    %820 = vector.shape_cast %819 : vector<1x16x16xf32> to vector<16x16xf32>
    %c3_207 = arith.constant 3 : index
    %821 = memref.load %arg7[%c3_207] : memref<144xf32, #tpu.memory_space<smem>>
    %822 = vector.broadcast %821 : f32 to vector<16x16xf32>
    %823 = arith.mulf %822, %820 : vector<16x16xf32>
    %824 = arith.addf %814, %823 : vector<16x16xf32>
    %c75_208 = arith.constant 75 : index
    %825 = memref.load %arg7[%c75_208] : memref<144xf32, #tpu.memory_space<smem>>
    %826 = vector.broadcast %825 : f32 to vector<16x16xf32>
    %827 = arith.mulf %826, %820 : vector<16x16xf32>
    %828 = arith.addf %818, %827 : vector<16x16xf32>
    %c0_209 = arith.constant 0 : index
    %c1_210 = arith.constant 1 : index
    %c1_211 = arith.constant 1 : index
    %829 = vector.load %arg12[%c0_209, %c1_210, %c1_211] : memref<8x18x18xf32, #tpu.memory_space<vmem>>, vector<1x16x16xf32>
    %830 = vector.shape_cast %829 : vector<1x16x16xf32> to vector<16x16xf32>
    %c4_212 = arith.constant 4 : index
    %831 = memref.load %arg7[%c4_212] : memref<144xf32, #tpu.memory_space<smem>>
    %832 = vector.broadcast %831 : f32 to vector<16x16xf32>
    %833 = arith.mulf %832, %830 : vector<16x16xf32>
    %834 = arith.addf %824, %833 : vector<16x16xf32>
    %c76_213 = arith.constant 76 : index
    %835 = memref.load %arg7[%c76_213] : memref<144xf32, #tpu.memory_space<smem>>
    %836 = vector.broadcast %835 : f32 to vector<16x16xf32>
    %837 = arith.mulf %836, %830 : vector<16x16xf32>
    %838 = arith.addf %828, %837 : vector<16x16xf32>
    %c0_214 = arith.constant 0 : index
    %c1_215 = arith.constant 1 : index
    %c2_216 = arith.constant 2 : index
    %839 = vector.load %arg12[%c0_214, %c1_215, %c2_216] : memref<8x18x18xf32, #tpu.memory_space<vmem>>, vector<1x16x16xf32>
    %840 = vector.shape_cast %839 : vector<1x16x16xf32> to vector<16x16xf32>
    %c5_217 = arith.constant 5 : index
    %841 = memref.load %arg7[%c5_217] : memref<144xf32, #tpu.memory_space<smem>>
    %842 = vector.broadcast %841 : f32 to vector<16x16xf32>
    %843 = arith.mulf %842, %840 : vector<16x16xf32>
    %844 = arith.addf %834, %843 : vector<16x16xf32>
    %c77_218 = arith.constant 77 : index
    %845 = memref.load %arg7[%c77_218] : memref<144xf32, #tpu.memory_space<smem>>
    %846 = vector.broadcast %845 : f32 to vector<16x16xf32>
    %847 = arith.mulf %846, %840 : vector<16x16xf32>
    %848 = arith.addf %838, %847 : vector<16x16xf32>
    %c0_219 = arith.constant 0 : index
    %c2_220 = arith.constant 2 : index
    %c0_221 = arith.constant 0 : index
    %849 = vector.load %arg12[%c0_219, %c2_220, %c0_221] : memref<8x18x18xf32, #tpu.memory_space<vmem>>, vector<1x16x16xf32>
    %850 = vector.shape_cast %849 : vector<1x16x16xf32> to vector<16x16xf32>
    %c6_222 = arith.constant 6 : index
    %851 = memref.load %arg7[%c6_222] : memref<144xf32, #tpu.memory_space<smem>>
    %852 = vector.broadcast %851 : f32 to vector<16x16xf32>
    %853 = arith.mulf %852, %850 : vector<16x16xf32>
    %854 = arith.addf %844, %853 : vector<16x16xf32>
    %c78_223 = arith.constant 78 : index
    %855 = memref.load %arg7[%c78_223] : memref<144xf32, #tpu.memory_space<smem>>
    %856 = vector.broadcast %855 : f32 to vector<16x16xf32>
    %857 = arith.mulf %856, %850 : vector<16x16xf32>
    %858 = arith.addf %848, %857 : vector<16x16xf32>
    %c0_224 = arith.constant 0 : index
    %c2_225 = arith.constant 2 : index
    %c1_226 = arith.constant 1 : index
    %859 = vector.load %arg12[%c0_224, %c2_225, %c1_226] : memref<8x18x18xf32, #tpu.memory_space<vmem>>, vector<1x16x16xf32>
    %860 = vector.shape_cast %859 : vector<1x16x16xf32> to vector<16x16xf32>
    %c7_227 = arith.constant 7 : index
    %861 = memref.load %arg7[%c7_227] : memref<144xf32, #tpu.memory_space<smem>>
    %862 = vector.broadcast %861 : f32 to vector<16x16xf32>
    %863 = arith.mulf %862, %860 : vector<16x16xf32>
    %864 = arith.addf %854, %863 : vector<16x16xf32>
    %c79_228 = arith.constant 79 : index
    %865 = memref.load %arg7[%c79_228] : memref<144xf32, #tpu.memory_space<smem>>
    %866 = vector.broadcast %865 : f32 to vector<16x16xf32>
    %867 = arith.mulf %866, %860 : vector<16x16xf32>
    %868 = arith.addf %858, %867 : vector<16x16xf32>
    %c0_229 = arith.constant 0 : index
    %c2_230 = arith.constant 2 : index
    %c2_231 = arith.constant 2 : index
    %869 = vector.load %arg12[%c0_229, %c2_230, %c2_231] : memref<8x18x18xf32, #tpu.memory_space<vmem>>, vector<1x16x16xf32>
    %870 = vector.shape_cast %869 : vector<1x16x16xf32> to vector<16x16xf32>
    %c8_232 = arith.constant 8 : index
    %871 = memref.load %arg7[%c8_232] : memref<144xf32, #tpu.memory_space<smem>>
    %872 = vector.broadcast %871 : f32 to vector<16x16xf32>
    %873 = arith.mulf %872, %870 : vector<16x16xf32>
    %874 = arith.addf %864, %873 : vector<16x16xf32>
    %c80_233 = arith.constant 80 : index
    %875 = memref.load %arg7[%c80_233] : memref<144xf32, #tpu.memory_space<smem>>
    %876 = vector.broadcast %875 : f32 to vector<16x16xf32>
    %877 = arith.mulf %876, %870 : vector<16x16xf32>
    %878 = arith.addf %868, %877 : vector<16x16xf32>
    %c1_234 = arith.constant 1 : index
    %c0_235 = arith.constant 0 : index
    %c0_236 = arith.constant 0 : index
    %879 = vector.load %arg12[%c1_234, %c0_235, %c0_236] : memref<8x18x18xf32, #tpu.memory_space<vmem>>, vector<1x16x16xf32>
    %880 = vector.shape_cast %879 : vector<1x16x16xf32> to vector<16x16xf32>
    %c9_237 = arith.constant 9 : index
    %881 = memref.load %arg7[%c9_237] : memref<144xf32, #tpu.memory_space<smem>>
    %882 = vector.broadcast %881 : f32 to vector<16x16xf32>
    %883 = arith.mulf %882, %880 : vector<16x16xf32>
    %884 = arith.addf %874, %883 : vector<16x16xf32>
    %c81_238 = arith.constant 81 : index
    %885 = memref.load %arg7[%c81_238] : memref<144xf32, #tpu.memory_space<smem>>
    %886 = vector.broadcast %885 : f32 to vector<16x16xf32>
    %887 = arith.mulf %886, %880 : vector<16x16xf32>
    %888 = arith.addf %878, %887 : vector<16x16xf32>
    %c1_239 = arith.constant 1 : index
    %c0_240 = arith.constant 0 : index
    %c1_241 = arith.constant 1 : index
    %889 = vector.load %arg12[%c1_239, %c0_240, %c1_241] : memref<8x18x18xf32, #tpu.memory_space<vmem>>, vector<1x16x16xf32>
    %890 = vector.shape_cast %889 : vector<1x16x16xf32> to vector<16x16xf32>
    %c10_242 = arith.constant 10 : index
    %891 = memref.load %arg7[%c10_242] : memref<144xf32, #tpu.memory_space<smem>>
    %892 = vector.broadcast %891 : f32 to vector<16x16xf32>
    %893 = arith.mulf %892, %890 : vector<16x16xf32>
    %894 = arith.addf %884, %893 : vector<16x16xf32>
    %c82_243 = arith.constant 82 : index
    %895 = memref.load %arg7[%c82_243] : memref<144xf32, #tpu.memory_space<smem>>
    %896 = vector.broadcast %895 : f32 to vector<16x16xf32>
    %897 = arith.mulf %896, %890 : vector<16x16xf32>
    %898 = arith.addf %888, %897 : vector<16x16xf32>
    %c1_244 = arith.constant 1 : index
    %c0_245 = arith.constant 0 : index
    %c2_246 = arith.constant 2 : index
    %899 = vector.load %arg12[%c1_244, %c0_245, %c2_246] : memref<8x18x18xf32, #tpu.memory_space<vmem>>, vector<1x16x16xf32>
    %900 = vector.shape_cast %899 : vector<1x16x16xf32> to vector<16x16xf32>
    %c11_247 = arith.constant 11 : index
    %901 = memref.load %arg7[%c11_247] : memref<144xf32, #tpu.memory_space<smem>>
    %902 = vector.broadcast %901 : f32 to vector<16x16xf32>
    %903 = arith.mulf %902, %900 : vector<16x16xf32>
    %904 = arith.addf %894, %903 : vector<16x16xf32>
    %c83_248 = arith.constant 83 : index
    %905 = memref.load %arg7[%c83_248] : memref<144xf32, #tpu.memory_space<smem>>
    %906 = vector.broadcast %905 : f32 to vector<16x16xf32>
    %907 = arith.mulf %906, %900 : vector<16x16xf32>
    %908 = arith.addf %898, %907 : vector<16x16xf32>
    %c1_249 = arith.constant 1 : index
    %c1_250 = arith.constant 1 : index
    %c0_251 = arith.constant 0 : index
    %909 = vector.load %arg12[%c1_249, %c1_250, %c0_251] : memref<8x18x18xf32, #tpu.memory_space<vmem>>, vector<1x16x16xf32>
    %910 = vector.shape_cast %909 : vector<1x16x16xf32> to vector<16x16xf32>
    %c12_252 = arith.constant 12 : index
    %911 = memref.load %arg7[%c12_252] : memref<144xf32, #tpu.memory_space<smem>>
    %912 = vector.broadcast %911 : f32 to vector<16x16xf32>
    %913 = arith.mulf %912, %910 : vector<16x16xf32>
    %914 = arith.addf %904, %913 : vector<16x16xf32>
    %c84_253 = arith.constant 84 : index
    %915 = memref.load %arg7[%c84_253] : memref<144xf32, #tpu.memory_space<smem>>
    %916 = vector.broadcast %915 : f32 to vector<16x16xf32>
    %917 = arith.mulf %916, %910 : vector<16x16xf32>
    %918 = arith.addf %908, %917 : vector<16x16xf32>
    %c1_254 = arith.constant 1 : index
    %c1_255 = arith.constant 1 : index
    %c1_256 = arith.constant 1 : index
    %919 = vector.load %arg12[%c1_254, %c1_255, %c1_256] : memref<8x18x18xf32, #tpu.memory_space<vmem>>, vector<1x16x16xf32>
    %920 = vector.shape_cast %919 : vector<1x16x16xf32> to vector<16x16xf32>
    %c13_257 = arith.constant 13 : index
    %921 = memref.load %arg7[%c13_257] : memref<144xf32, #tpu.memory_space<smem>>
    %922 = vector.broadcast %921 : f32 to vector<16x16xf32>
    %923 = arith.mulf %922, %920 : vector<16x16xf32>
    %924 = arith.addf %914, %923 : vector<16x16xf32>
    %c85_258 = arith.constant 85 : index
    %925 = memref.load %arg7[%c85_258] : memref<144xf32, #tpu.memory_space<smem>>
    %926 = vector.broadcast %925 : f32 to vector<16x16xf32>
    %927 = arith.mulf %926, %920 : vector<16x16xf32>
    %928 = arith.addf %918, %927 : vector<16x16xf32>
    %c1_259 = arith.constant 1 : index
    %c1_260 = arith.constant 1 : index
    %c2_261 = arith.constant 2 : index
    %929 = vector.load %arg12[%c1_259, %c1_260, %c2_261] : memref<8x18x18xf32, #tpu.memory_space<vmem>>, vector<1x16x16xf32>
    %930 = vector.shape_cast %929 : vector<1x16x16xf32> to vector<16x16xf32>
    %c14_262 = arith.constant 14 : index
    %931 = memref.load %arg7[%c14_262] : memref<144xf32, #tpu.memory_space<smem>>
    %932 = vector.broadcast %931 : f32 to vector<16x16xf32>
    %933 = arith.mulf %932, %930 : vector<16x16xf32>
    %934 = arith.addf %924, %933 : vector<16x16xf32>
    %c86_263 = arith.constant 86 : index
    %935 = memref.load %arg7[%c86_263] : memref<144xf32, #tpu.memory_space<smem>>
    %936 = vector.broadcast %935 : f32 to vector<16x16xf32>
    %937 = arith.mulf %936, %930 : vector<16x16xf32>
    %938 = arith.addf %928, %937 : vector<16x16xf32>
    %c1_264 = arith.constant 1 : index
    %c2_265 = arith.constant 2 : index
    %c0_266 = arith.constant 0 : index
    %939 = vector.load %arg12[%c1_264, %c2_265, %c0_266] : memref<8x18x18xf32, #tpu.memory_space<vmem>>, vector<1x16x16xf32>
    %940 = vector.shape_cast %939 : vector<1x16x16xf32> to vector<16x16xf32>
    %c15_267 = arith.constant 15 : index
    %941 = memref.load %arg7[%c15_267] : memref<144xf32, #tpu.memory_space<smem>>
    %942 = vector.broadcast %941 : f32 to vector<16x16xf32>
    %943 = arith.mulf %942, %940 : vector<16x16xf32>
    %944 = arith.addf %934, %943 : vector<16x16xf32>
    %c87_268 = arith.constant 87 : index
    %945 = memref.load %arg7[%c87_268] : memref<144xf32, #tpu.memory_space<smem>>
    %946 = vector.broadcast %945 : f32 to vector<16x16xf32>
    %947 = arith.mulf %946, %940 : vector<16x16xf32>
    %948 = arith.addf %938, %947 : vector<16x16xf32>
    %c1_269 = arith.constant 1 : index
    %c2_270 = arith.constant 2 : index
    %c1_271 = arith.constant 1 : index
    %949 = vector.load %arg12[%c1_269, %c2_270, %c1_271] : memref<8x18x18xf32, #tpu.memory_space<vmem>>, vector<1x16x16xf32>
    %950 = vector.shape_cast %949 : vector<1x16x16xf32> to vector<16x16xf32>
    %c16_272 = arith.constant 16 : index
    %951 = memref.load %arg7[%c16_272] : memref<144xf32, #tpu.memory_space<smem>>
    %952 = vector.broadcast %951 : f32 to vector<16x16xf32>
    %953 = arith.mulf %952, %950 : vector<16x16xf32>
    %954 = arith.addf %944, %953 : vector<16x16xf32>
    %c88_273 = arith.constant 88 : index
    %955 = memref.load %arg7[%c88_273] : memref<144xf32, #tpu.memory_space<smem>>
    %956 = vector.broadcast %955 : f32 to vector<16x16xf32>
    %957 = arith.mulf %956, %950 : vector<16x16xf32>
    %958 = arith.addf %948, %957 : vector<16x16xf32>
    %c1_274 = arith.constant 1 : index
    %c2_275 = arith.constant 2 : index
    %c2_276 = arith.constant 2 : index
    %959 = vector.load %arg12[%c1_274, %c2_275, %c2_276] : memref<8x18x18xf32, #tpu.memory_space<vmem>>, vector<1x16x16xf32>
    %960 = vector.shape_cast %959 : vector<1x16x16xf32> to vector<16x16xf32>
    %c17_277 = arith.constant 17 : index
    %961 = memref.load %arg7[%c17_277] : memref<144xf32, #tpu.memory_space<smem>>
    %962 = vector.broadcast %961 : f32 to vector<16x16xf32>
    %963 = arith.mulf %962, %960 : vector<16x16xf32>
    %964 = arith.addf %954, %963 : vector<16x16xf32>
    %c89_278 = arith.constant 89 : index
    %965 = memref.load %arg7[%c89_278] : memref<144xf32, #tpu.memory_space<smem>>
    %966 = vector.broadcast %965 : f32 to vector<16x16xf32>
    %967 = arith.mulf %966, %960 : vector<16x16xf32>
    %968 = arith.addf %958, %967 : vector<16x16xf32>
    %c2_279 = arith.constant 2 : index
    %c0_280 = arith.constant 0 : index
    %c0_281 = arith.constant 0 : index
    %969 = vector.load %arg12[%c2_279, %c0_280, %c0_281] : memref<8x18x18xf32, #tpu.memory_space<vmem>>, vector<1x16x16xf32>
    %970 = vector.shape_cast %969 : vector<1x16x16xf32> to vector<16x16xf32>
    %c18_282 = arith.constant 18 : index
    %971 = memref.load %arg7[%c18_282] : memref<144xf32, #tpu.memory_space<smem>>
    %972 = vector.broadcast %971 : f32 to vector<16x16xf32>
    %973 = arith.mulf %972, %970 : vector<16x16xf32>
    %974 = arith.addf %964, %973 : vector<16x16xf32>
    %c90_283 = arith.constant 90 : index
    %975 = memref.load %arg7[%c90_283] : memref<144xf32, #tpu.memory_space<smem>>
    %976 = vector.broadcast %975 : f32 to vector<16x16xf32>
    %977 = arith.mulf %976, %970 : vector<16x16xf32>
    %978 = arith.addf %968, %977 : vector<16x16xf32>
    %c2_284 = arith.constant 2 : index
    %c0_285 = arith.constant 0 : index
    %c1_286 = arith.constant 1 : index
    %979 = vector.load %arg12[%c2_284, %c0_285, %c1_286] : memref<8x18x18xf32, #tpu.memory_space<vmem>>, vector<1x16x16xf32>
    %980 = vector.shape_cast %979 : vector<1x16x16xf32> to vector<16x16xf32>
    %c19_287 = arith.constant 19 : index
    %981 = memref.load %arg7[%c19_287] : memref<144xf32, #tpu.memory_space<smem>>
    %982 = vector.broadcast %981 : f32 to vector<16x16xf32>
    %983 = arith.mulf %982, %980 : vector<16x16xf32>
    %984 = arith.addf %974, %983 : vector<16x16xf32>
    %c91_288 = arith.constant 91 : index
    %985 = memref.load %arg7[%c91_288] : memref<144xf32, #tpu.memory_space<smem>>
    %986 = vector.broadcast %985 : f32 to vector<16x16xf32>
    %987 = arith.mulf %986, %980 : vector<16x16xf32>
    %988 = arith.addf %978, %987 : vector<16x16xf32>
    %c2_289 = arith.constant 2 : index
    %c0_290 = arith.constant 0 : index
    %c2_291 = arith.constant 2 : index
    %989 = vector.load %arg12[%c2_289, %c0_290, %c2_291] : memref<8x18x18xf32, #tpu.memory_space<vmem>>, vector<1x16x16xf32>
    %990 = vector.shape_cast %989 : vector<1x16x16xf32> to vector<16x16xf32>
    %c20_292 = arith.constant 20 : index
    %991 = memref.load %arg7[%c20_292] : memref<144xf32, #tpu.memory_space<smem>>
    %992 = vector.broadcast %991 : f32 to vector<16x16xf32>
    %993 = arith.mulf %992, %990 : vector<16x16xf32>
    %994 = arith.addf %984, %993 : vector<16x16xf32>
    %c92_293 = arith.constant 92 : index
    %995 = memref.load %arg7[%c92_293] : memref<144xf32, #tpu.memory_space<smem>>
    %996 = vector.broadcast %995 : f32 to vector<16x16xf32>
    %997 = arith.mulf %996, %990 : vector<16x16xf32>
    %998 = arith.addf %988, %997 : vector<16x16xf32>
    %c2_294 = arith.constant 2 : index
    %c1_295 = arith.constant 1 : index
    %c0_296 = arith.constant 0 : index
    %999 = vector.load %arg12[%c2_294, %c1_295, %c0_296] : memref<8x18x18xf32, #tpu.memory_space<vmem>>, vector<1x16x16xf32>
    %1000 = vector.shape_cast %999 : vector<1x16x16xf32> to vector<16x16xf32>
    %c21_297 = arith.constant 21 : index
    %1001 = memref.load %arg7[%c21_297] : memref<144xf32, #tpu.memory_space<smem>>
    %1002 = vector.broadcast %1001 : f32 to vector<16x16xf32>
    %1003 = arith.mulf %1002, %1000 : vector<16x16xf32>
    %1004 = arith.addf %994, %1003 : vector<16x16xf32>
    %c93_298 = arith.constant 93 : index
    %1005 = memref.load %arg7[%c93_298] : memref<144xf32, #tpu.memory_space<smem>>
    %1006 = vector.broadcast %1005 : f32 to vector<16x16xf32>
    %1007 = arith.mulf %1006, %1000 : vector<16x16xf32>
    %1008 = arith.addf %998, %1007 : vector<16x16xf32>
    %c2_299 = arith.constant 2 : index
    %c1_300 = arith.constant 1 : index
    %c1_301 = arith.constant 1 : index
    %1009 = vector.load %arg12[%c2_299, %c1_300, %c1_301] : memref<8x18x18xf32, #tpu.memory_space<vmem>>, vector<1x16x16xf32>
    %1010 = vector.shape_cast %1009 : vector<1x16x16xf32> to vector<16x16xf32>
    %c22_302 = arith.constant 22 : index
    %1011 = memref.load %arg7[%c22_302] : memref<144xf32, #tpu.memory_space<smem>>
    %1012 = vector.broadcast %1011 : f32 to vector<16x16xf32>
    %1013 = arith.mulf %1012, %1010 : vector<16x16xf32>
    %1014 = arith.addf %1004, %1013 : vector<16x16xf32>
    %c94_303 = arith.constant 94 : index
    %1015 = memref.load %arg7[%c94_303] : memref<144xf32, #tpu.memory_space<smem>>
    %1016 = vector.broadcast %1015 : f32 to vector<16x16xf32>
    %1017 = arith.mulf %1016, %1010 : vector<16x16xf32>
    %1018 = arith.addf %1008, %1017 : vector<16x16xf32>
    %c2_304 = arith.constant 2 : index
    %c1_305 = arith.constant 1 : index
    %c2_306 = arith.constant 2 : index
    %1019 = vector.load %arg12[%c2_304, %c1_305, %c2_306] : memref<8x18x18xf32, #tpu.memory_space<vmem>>, vector<1x16x16xf32>
    %1020 = vector.shape_cast %1019 : vector<1x16x16xf32> to vector<16x16xf32>
    %c23_307 = arith.constant 23 : index
    %1021 = memref.load %arg7[%c23_307] : memref<144xf32, #tpu.memory_space<smem>>
    %1022 = vector.broadcast %1021 : f32 to vector<16x16xf32>
    %1023 = arith.mulf %1022, %1020 : vector<16x16xf32>
    %1024 = arith.addf %1014, %1023 : vector<16x16xf32>
    %c95_308 = arith.constant 95 : index
    %1025 = memref.load %arg7[%c95_308] : memref<144xf32, #tpu.memory_space<smem>>
    %1026 = vector.broadcast %1025 : f32 to vector<16x16xf32>
    %1027 = arith.mulf %1026, %1020 : vector<16x16xf32>
    %1028 = arith.addf %1018, %1027 : vector<16x16xf32>
    %c2_309 = arith.constant 2 : index
    %c2_310 = arith.constant 2 : index
    %c0_311 = arith.constant 0 : index
    %1029 = vector.load %arg12[%c2_309, %c2_310, %c0_311] : memref<8x18x18xf32, #tpu.memory_space<vmem>>, vector<1x16x16xf32>
    %1030 = vector.shape_cast %1029 : vector<1x16x16xf32> to vector<16x16xf32>
    %c24_312 = arith.constant 24 : index
    %1031 = memref.load %arg7[%c24_312] : memref<144xf32, #tpu.memory_space<smem>>
    %1032 = vector.broadcast %1031 : f32 to vector<16x16xf32>
    %1033 = arith.mulf %1032, %1030 : vector<16x16xf32>
    %1034 = arith.addf %1024, %1033 : vector<16x16xf32>
    %c96_313 = arith.constant 96 : index
    %1035 = memref.load %arg7[%c96_313] : memref<144xf32, #tpu.memory_space<smem>>
    %1036 = vector.broadcast %1035 : f32 to vector<16x16xf32>
    %1037 = arith.mulf %1036, %1030 : vector<16x16xf32>
    %1038 = arith.addf %1028, %1037 : vector<16x16xf32>
    %c2_314 = arith.constant 2 : index
    %c2_315 = arith.constant 2 : index
    %c1_316 = arith.constant 1 : index
    %1039 = vector.load %arg12[%c2_314, %c2_315, %c1_316] : memref<8x18x18xf32, #tpu.memory_space<vmem>>, vector<1x16x16xf32>
    %1040 = vector.shape_cast %1039 : vector<1x16x16xf32> to vector<16x16xf32>
    %c25_317 = arith.constant 25 : index
    %1041 = memref.load %arg7[%c25_317] : memref<144xf32, #tpu.memory_space<smem>>
    %1042 = vector.broadcast %1041 : f32 to vector<16x16xf32>
    %1043 = arith.mulf %1042, %1040 : vector<16x16xf32>
    %1044 = arith.addf %1034, %1043 : vector<16x16xf32>
    %c97_318 = arith.constant 97 : index
    %1045 = memref.load %arg7[%c97_318] : memref<144xf32, #tpu.memory_space<smem>>
    %1046 = vector.broadcast %1045 : f32 to vector<16x16xf32>
    %1047 = arith.mulf %1046, %1040 : vector<16x16xf32>
    %1048 = arith.addf %1038, %1047 : vector<16x16xf32>
    %c2_319 = arith.constant 2 : index
    %c2_320 = arith.constant 2 : index
    %c2_321 = arith.constant 2 : index
    %1049 = vector.load %arg12[%c2_319, %c2_320, %c2_321] : memref<8x18x18xf32, #tpu.memory_space<vmem>>, vector<1x16x16xf32>
    %1050 = vector.shape_cast %1049 : vector<1x16x16xf32> to vector<16x16xf32>
    %c26_322 = arith.constant 26 : index
    %1051 = memref.load %arg7[%c26_322] : memref<144xf32, #tpu.memory_space<smem>>
    %1052 = vector.broadcast %1051 : f32 to vector<16x16xf32>
    %1053 = arith.mulf %1052, %1050 : vector<16x16xf32>
    %1054 = arith.addf %1044, %1053 : vector<16x16xf32>
    %c98_323 = arith.constant 98 : index
    %1055 = memref.load %arg7[%c98_323] : memref<144xf32, #tpu.memory_space<smem>>
    %1056 = vector.broadcast %1055 : f32 to vector<16x16xf32>
    %1057 = arith.mulf %1056, %1050 : vector<16x16xf32>
    %1058 = arith.addf %1048, %1057 : vector<16x16xf32>
    %c3_324 = arith.constant 3 : index
    %c0_325 = arith.constant 0 : index
    %c0_326 = arith.constant 0 : index
    %1059 = vector.load %arg12[%c3_324, %c0_325, %c0_326] : memref<8x18x18xf32, #tpu.memory_space<vmem>>, vector<1x16x16xf32>
    %1060 = vector.shape_cast %1059 : vector<1x16x16xf32> to vector<16x16xf32>
    %c27_327 = arith.constant 27 : index
    %1061 = memref.load %arg7[%c27_327] : memref<144xf32, #tpu.memory_space<smem>>
    %1062 = vector.broadcast %1061 : f32 to vector<16x16xf32>
    %1063 = arith.mulf %1062, %1060 : vector<16x16xf32>
    %1064 = arith.addf %1054, %1063 : vector<16x16xf32>
    %c99_328 = arith.constant 99 : index
    %1065 = memref.load %arg7[%c99_328] : memref<144xf32, #tpu.memory_space<smem>>
    %1066 = vector.broadcast %1065 : f32 to vector<16x16xf32>
    %1067 = arith.mulf %1066, %1060 : vector<16x16xf32>
    %1068 = arith.addf %1058, %1067 : vector<16x16xf32>
    %c3_329 = arith.constant 3 : index
    %c0_330 = arith.constant 0 : index
    %c1_331 = arith.constant 1 : index
    %1069 = vector.load %arg12[%c3_329, %c0_330, %c1_331] : memref<8x18x18xf32, #tpu.memory_space<vmem>>, vector<1x16x16xf32>
    %1070 = vector.shape_cast %1069 : vector<1x16x16xf32> to vector<16x16xf32>
    %c28_332 = arith.constant 28 : index
    %1071 = memref.load %arg7[%c28_332] : memref<144xf32, #tpu.memory_space<smem>>
    %1072 = vector.broadcast %1071 : f32 to vector<16x16xf32>
    %1073 = arith.mulf %1072, %1070 : vector<16x16xf32>
    %1074 = arith.addf %1064, %1073 : vector<16x16xf32>
    %c100_333 = arith.constant 100 : index
    %1075 = memref.load %arg7[%c100_333] : memref<144xf32, #tpu.memory_space<smem>>
    %1076 = vector.broadcast %1075 : f32 to vector<16x16xf32>
    %1077 = arith.mulf %1076, %1070 : vector<16x16xf32>
    %1078 = arith.addf %1068, %1077 : vector<16x16xf32>
    %c3_334 = arith.constant 3 : index
    %c0_335 = arith.constant 0 : index
    %c2_336 = arith.constant 2 : index
    %1079 = vector.load %arg12[%c3_334, %c0_335, %c2_336] : memref<8x18x18xf32, #tpu.memory_space<vmem>>, vector<1x16x16xf32>
    %1080 = vector.shape_cast %1079 : vector<1x16x16xf32> to vector<16x16xf32>
    %c29_337 = arith.constant 29 : index
    %1081 = memref.load %arg7[%c29_337] : memref<144xf32, #tpu.memory_space<smem>>
    %1082 = vector.broadcast %1081 : f32 to vector<16x16xf32>
    %1083 = arith.mulf %1082, %1080 : vector<16x16xf32>
    %1084 = arith.addf %1074, %1083 : vector<16x16xf32>
    %c101_338 = arith.constant 101 : index
    %1085 = memref.load %arg7[%c101_338] : memref<144xf32, #tpu.memory_space<smem>>
    %1086 = vector.broadcast %1085 : f32 to vector<16x16xf32>
    %1087 = arith.mulf %1086, %1080 : vector<16x16xf32>
    %1088 = arith.addf %1078, %1087 : vector<16x16xf32>
    %c3_339 = arith.constant 3 : index
    %c1_340 = arith.constant 1 : index
    %c0_341 = arith.constant 0 : index
    %1089 = vector.load %arg12[%c3_339, %c1_340, %c0_341] : memref<8x18x18xf32, #tpu.memory_space<vmem>>, vector<1x16x16xf32>
    %1090 = vector.shape_cast %1089 : vector<1x16x16xf32> to vector<16x16xf32>
    %c30_342 = arith.constant 30 : index
    %1091 = memref.load %arg7[%c30_342] : memref<144xf32, #tpu.memory_space<smem>>
    %1092 = vector.broadcast %1091 : f32 to vector<16x16xf32>
    %1093 = arith.mulf %1092, %1090 : vector<16x16xf32>
    %1094 = arith.addf %1084, %1093 : vector<16x16xf32>
    %c102_343 = arith.constant 102 : index
    %1095 = memref.load %arg7[%c102_343] : memref<144xf32, #tpu.memory_space<smem>>
    %1096 = vector.broadcast %1095 : f32 to vector<16x16xf32>
    %1097 = arith.mulf %1096, %1090 : vector<16x16xf32>
    %1098 = arith.addf %1088, %1097 : vector<16x16xf32>
    %c3_344 = arith.constant 3 : index
    %c1_345 = arith.constant 1 : index
    %c1_346 = arith.constant 1 : index
    %1099 = vector.load %arg12[%c3_344, %c1_345, %c1_346] : memref<8x18x18xf32, #tpu.memory_space<vmem>>, vector<1x16x16xf32>
    %1100 = vector.shape_cast %1099 : vector<1x16x16xf32> to vector<16x16xf32>
    %c31_347 = arith.constant 31 : index
    %1101 = memref.load %arg7[%c31_347] : memref<144xf32, #tpu.memory_space<smem>>
    %1102 = vector.broadcast %1101 : f32 to vector<16x16xf32>
    %1103 = arith.mulf %1102, %1100 : vector<16x16xf32>
    %1104 = arith.addf %1094, %1103 : vector<16x16xf32>
    %c103_348 = arith.constant 103 : index
    %1105 = memref.load %arg7[%c103_348] : memref<144xf32, #tpu.memory_space<smem>>
    %1106 = vector.broadcast %1105 : f32 to vector<16x16xf32>
    %1107 = arith.mulf %1106, %1100 : vector<16x16xf32>
    %1108 = arith.addf %1098, %1107 : vector<16x16xf32>
    %c3_349 = arith.constant 3 : index
    %c1_350 = arith.constant 1 : index
    %c2_351 = arith.constant 2 : index
    %1109 = vector.load %arg12[%c3_349, %c1_350, %c2_351] : memref<8x18x18xf32, #tpu.memory_space<vmem>>, vector<1x16x16xf32>
    %1110 = vector.shape_cast %1109 : vector<1x16x16xf32> to vector<16x16xf32>
    %c32_352 = arith.constant 32 : index
    %1111 = memref.load %arg7[%c32_352] : memref<144xf32, #tpu.memory_space<smem>>
    %1112 = vector.broadcast %1111 : f32 to vector<16x16xf32>
    %1113 = arith.mulf %1112, %1110 : vector<16x16xf32>
    %1114 = arith.addf %1104, %1113 : vector<16x16xf32>
    %c104_353 = arith.constant 104 : index
    %1115 = memref.load %arg7[%c104_353] : memref<144xf32, #tpu.memory_space<smem>>
    %1116 = vector.broadcast %1115 : f32 to vector<16x16xf32>
    %1117 = arith.mulf %1116, %1110 : vector<16x16xf32>
    %1118 = arith.addf %1108, %1117 : vector<16x16xf32>
    %c3_354 = arith.constant 3 : index
    %c2_355 = arith.constant 2 : index
    %c0_356 = arith.constant 0 : index
    %1119 = vector.load %arg12[%c3_354, %c2_355, %c0_356] : memref<8x18x18xf32, #tpu.memory_space<vmem>>, vector<1x16x16xf32>
    %1120 = vector.shape_cast %1119 : vector<1x16x16xf32> to vector<16x16xf32>
    %c33_357 = arith.constant 33 : index
    %1121 = memref.load %arg7[%c33_357] : memref<144xf32, #tpu.memory_space<smem>>
    %1122 = vector.broadcast %1121 : f32 to vector<16x16xf32>
    %1123 = arith.mulf %1122, %1120 : vector<16x16xf32>
    %1124 = arith.addf %1114, %1123 : vector<16x16xf32>
    %c105_358 = arith.constant 105 : index
    %1125 = memref.load %arg7[%c105_358] : memref<144xf32, #tpu.memory_space<smem>>
    %1126 = vector.broadcast %1125 : f32 to vector<16x16xf32>
    %1127 = arith.mulf %1126, %1120 : vector<16x16xf32>
    %1128 = arith.addf %1118, %1127 : vector<16x16xf32>
    %c3_359 = arith.constant 3 : index
    %c2_360 = arith.constant 2 : index
    %c1_361 = arith.constant 1 : index
    %1129 = vector.load %arg12[%c3_359, %c2_360, %c1_361] : memref<8x18x18xf32, #tpu.memory_space<vmem>>, vector<1x16x16xf32>
    %1130 = vector.shape_cast %1129 : vector<1x16x16xf32> to vector<16x16xf32>
    %c34_362 = arith.constant 34 : index
    %1131 = memref.load %arg7[%c34_362] : memref<144xf32, #tpu.memory_space<smem>>
    %1132 = vector.broadcast %1131 : f32 to vector<16x16xf32>
    %1133 = arith.mulf %1132, %1130 : vector<16x16xf32>
    %1134 = arith.addf %1124, %1133 : vector<16x16xf32>
    %c106_363 = arith.constant 106 : index
    %1135 = memref.load %arg7[%c106_363] : memref<144xf32, #tpu.memory_space<smem>>
    %1136 = vector.broadcast %1135 : f32 to vector<16x16xf32>
    %1137 = arith.mulf %1136, %1130 : vector<16x16xf32>
    %1138 = arith.addf %1128, %1137 : vector<16x16xf32>
    %c3_364 = arith.constant 3 : index
    %c2_365 = arith.constant 2 : index
    %c2_366 = arith.constant 2 : index
    %1139 = vector.load %arg12[%c3_364, %c2_365, %c2_366] : memref<8x18x18xf32, #tpu.memory_space<vmem>>, vector<1x16x16xf32>
    %1140 = vector.shape_cast %1139 : vector<1x16x16xf32> to vector<16x16xf32>
    %c35_367 = arith.constant 35 : index
    %1141 = memref.load %arg7[%c35_367] : memref<144xf32, #tpu.memory_space<smem>>
    %1142 = vector.broadcast %1141 : f32 to vector<16x16xf32>
    %1143 = arith.mulf %1142, %1140 : vector<16x16xf32>
    %1144 = arith.addf %1134, %1143 : vector<16x16xf32>
    %c107_368 = arith.constant 107 : index
    %1145 = memref.load %arg7[%c107_368] : memref<144xf32, #tpu.memory_space<smem>>
    %1146 = vector.broadcast %1145 : f32 to vector<16x16xf32>
    %1147 = arith.mulf %1146, %1140 : vector<16x16xf32>
    %1148 = arith.addf %1138, %1147 : vector<16x16xf32>
    %c4_369 = arith.constant 4 : index
    %c0_370 = arith.constant 0 : index
    %c0_371 = arith.constant 0 : index
    %1149 = vector.load %arg12[%c4_369, %c0_370, %c0_371] : memref<8x18x18xf32, #tpu.memory_space<vmem>>, vector<1x16x16xf32>
    %1150 = vector.shape_cast %1149 : vector<1x16x16xf32> to vector<16x16xf32>
    %c36_372 = arith.constant 36 : index
    %1151 = memref.load %arg7[%c36_372] : memref<144xf32, #tpu.memory_space<smem>>
    %1152 = vector.broadcast %1151 : f32 to vector<16x16xf32>
    %1153 = arith.mulf %1152, %1150 : vector<16x16xf32>
    %1154 = arith.addf %1144, %1153 : vector<16x16xf32>
    %c108_373 = arith.constant 108 : index
    %1155 = memref.load %arg7[%c108_373] : memref<144xf32, #tpu.memory_space<smem>>
    %1156 = vector.broadcast %1155 : f32 to vector<16x16xf32>
    %1157 = arith.mulf %1156, %1150 : vector<16x16xf32>
    %1158 = arith.addf %1148, %1157 : vector<16x16xf32>
    %c4_374 = arith.constant 4 : index
    %c0_375 = arith.constant 0 : index
    %c1_376 = arith.constant 1 : index
    %1159 = vector.load %arg12[%c4_374, %c0_375, %c1_376] : memref<8x18x18xf32, #tpu.memory_space<vmem>>, vector<1x16x16xf32>
    %1160 = vector.shape_cast %1159 : vector<1x16x16xf32> to vector<16x16xf32>
    %c37_377 = arith.constant 37 : index
    %1161 = memref.load %arg7[%c37_377] : memref<144xf32, #tpu.memory_space<smem>>
    %1162 = vector.broadcast %1161 : f32 to vector<16x16xf32>
    %1163 = arith.mulf %1162, %1160 : vector<16x16xf32>
    %1164 = arith.addf %1154, %1163 : vector<16x16xf32>
    %c109_378 = arith.constant 109 : index
    %1165 = memref.load %arg7[%c109_378] : memref<144xf32, #tpu.memory_space<smem>>
    %1166 = vector.broadcast %1165 : f32 to vector<16x16xf32>
    %1167 = arith.mulf %1166, %1160 : vector<16x16xf32>
    %1168 = arith.addf %1158, %1167 : vector<16x16xf32>
    %c4_379 = arith.constant 4 : index
    %c0_380 = arith.constant 0 : index
    %c2_381 = arith.constant 2 : index
    %1169 = vector.load %arg12[%c4_379, %c0_380, %c2_381] : memref<8x18x18xf32, #tpu.memory_space<vmem>>, vector<1x16x16xf32>
    %1170 = vector.shape_cast %1169 : vector<1x16x16xf32> to vector<16x16xf32>
    %c38_382 = arith.constant 38 : index
    %1171 = memref.load %arg7[%c38_382] : memref<144xf32, #tpu.memory_space<smem>>
    %1172 = vector.broadcast %1171 : f32 to vector<16x16xf32>
    %1173 = arith.mulf %1172, %1170 : vector<16x16xf32>
    %1174 = arith.addf %1164, %1173 : vector<16x16xf32>
    %c110_383 = arith.constant 110 : index
    %1175 = memref.load %arg7[%c110_383] : memref<144xf32, #tpu.memory_space<smem>>
    %1176 = vector.broadcast %1175 : f32 to vector<16x16xf32>
    %1177 = arith.mulf %1176, %1170 : vector<16x16xf32>
    %1178 = arith.addf %1168, %1177 : vector<16x16xf32>
    %c4_384 = arith.constant 4 : index
    %c1_385 = arith.constant 1 : index
    %c0_386 = arith.constant 0 : index
    %1179 = vector.load %arg12[%c4_384, %c1_385, %c0_386] : memref<8x18x18xf32, #tpu.memory_space<vmem>>, vector<1x16x16xf32>
    %1180 = vector.shape_cast %1179 : vector<1x16x16xf32> to vector<16x16xf32>
    %c39_387 = arith.constant 39 : index
    %1181 = memref.load %arg7[%c39_387] : memref<144xf32, #tpu.memory_space<smem>>
    %1182 = vector.broadcast %1181 : f32 to vector<16x16xf32>
    %1183 = arith.mulf %1182, %1180 : vector<16x16xf32>
    %1184 = arith.addf %1174, %1183 : vector<16x16xf32>
    %c111_388 = arith.constant 111 : index
    %1185 = memref.load %arg7[%c111_388] : memref<144xf32, #tpu.memory_space<smem>>
    %1186 = vector.broadcast %1185 : f32 to vector<16x16xf32>
    %1187 = arith.mulf %1186, %1180 : vector<16x16xf32>
    %1188 = arith.addf %1178, %1187 : vector<16x16xf32>
    %c4_389 = arith.constant 4 : index
    %c1_390 = arith.constant 1 : index
    %c1_391 = arith.constant 1 : index
    %1189 = vector.load %arg12[%c4_389, %c1_390, %c1_391] : memref<8x18x18xf32, #tpu.memory_space<vmem>>, vector<1x16x16xf32>
    %1190 = vector.shape_cast %1189 : vector<1x16x16xf32> to vector<16x16xf32>
    %c40_392 = arith.constant 40 : index
    %1191 = memref.load %arg7[%c40_392] : memref<144xf32, #tpu.memory_space<smem>>
    %1192 = vector.broadcast %1191 : f32 to vector<16x16xf32>
    %1193 = arith.mulf %1192, %1190 : vector<16x16xf32>
    %1194 = arith.addf %1184, %1193 : vector<16x16xf32>
    %c112_393 = arith.constant 112 : index
    %1195 = memref.load %arg7[%c112_393] : memref<144xf32, #tpu.memory_space<smem>>
    %1196 = vector.broadcast %1195 : f32 to vector<16x16xf32>
    %1197 = arith.mulf %1196, %1190 : vector<16x16xf32>
    %1198 = arith.addf %1188, %1197 : vector<16x16xf32>
    %c4_394 = arith.constant 4 : index
    %c1_395 = arith.constant 1 : index
    %c2_396 = arith.constant 2 : index
    %1199 = vector.load %arg12[%c4_394, %c1_395, %c2_396] : memref<8x18x18xf32, #tpu.memory_space<vmem>>, vector<1x16x16xf32>
    %1200 = vector.shape_cast %1199 : vector<1x16x16xf32> to vector<16x16xf32>
    %c41_397 = arith.constant 41 : index
    %1201 = memref.load %arg7[%c41_397] : memref<144xf32, #tpu.memory_space<smem>>
    %1202 = vector.broadcast %1201 : f32 to vector<16x16xf32>
    %1203 = arith.mulf %1202, %1200 : vector<16x16xf32>
    %1204 = arith.addf %1194, %1203 : vector<16x16xf32>
    %c113_398 = arith.constant 113 : index
    %1205 = memref.load %arg7[%c113_398] : memref<144xf32, #tpu.memory_space<smem>>
    %1206 = vector.broadcast %1205 : f32 to vector<16x16xf32>
    %1207 = arith.mulf %1206, %1200 : vector<16x16xf32>
    %1208 = arith.addf %1198, %1207 : vector<16x16xf32>
    %c4_399 = arith.constant 4 : index
    %c2_400 = arith.constant 2 : index
    %c0_401 = arith.constant 0 : index
    %1209 = vector.load %arg12[%c4_399, %c2_400, %c0_401] : memref<8x18x18xf32, #tpu.memory_space<vmem>>, vector<1x16x16xf32>
    %1210 = vector.shape_cast %1209 : vector<1x16x16xf32> to vector<16x16xf32>
    %c42_402 = arith.constant 42 : index
    %1211 = memref.load %arg7[%c42_402] : memref<144xf32, #tpu.memory_space<smem>>
    %1212 = vector.broadcast %1211 : f32 to vector<16x16xf32>
    %1213 = arith.mulf %1212, %1210 : vector<16x16xf32>
    %1214 = arith.addf %1204, %1213 : vector<16x16xf32>
    %c114_403 = arith.constant 114 : index
    %1215 = memref.load %arg7[%c114_403] : memref<144xf32, #tpu.memory_space<smem>>
    %1216 = vector.broadcast %1215 : f32 to vector<16x16xf32>
    %1217 = arith.mulf %1216, %1210 : vector<16x16xf32>
    %1218 = arith.addf %1208, %1217 : vector<16x16xf32>
    %c4_404 = arith.constant 4 : index
    %c2_405 = arith.constant 2 : index
    %c1_406 = arith.constant 1 : index
    %1219 = vector.load %arg12[%c4_404, %c2_405, %c1_406] : memref<8x18x18xf32, #tpu.memory_space<vmem>>, vector<1x16x16xf32>
    %1220 = vector.shape_cast %1219 : vector<1x16x16xf32> to vector<16x16xf32>
    %c43_407 = arith.constant 43 : index
    %1221 = memref.load %arg7[%c43_407] : memref<144xf32, #tpu.memory_space<smem>>
    %1222 = vector.broadcast %1221 : f32 to vector<16x16xf32>
    %1223 = arith.mulf %1222, %1220 : vector<16x16xf32>
    %1224 = arith.addf %1214, %1223 : vector<16x16xf32>
    %c115_408 = arith.constant 115 : index
    %1225 = memref.load %arg7[%c115_408] : memref<144xf32, #tpu.memory_space<smem>>
    %1226 = vector.broadcast %1225 : f32 to vector<16x16xf32>
    %1227 = arith.mulf %1226, %1220 : vector<16x16xf32>
    %1228 = arith.addf %1218, %1227 : vector<16x16xf32>
    %c4_409 = arith.constant 4 : index
    %c2_410 = arith.constant 2 : index
    %c2_411 = arith.constant 2 : index
    %1229 = vector.load %arg12[%c4_409, %c2_410, %c2_411] : memref<8x18x18xf32, #tpu.memory_space<vmem>>, vector<1x16x16xf32>
    %1230 = vector.shape_cast %1229 : vector<1x16x16xf32> to vector<16x16xf32>
    %c44_412 = arith.constant 44 : index
    %1231 = memref.load %arg7[%c44_412] : memref<144xf32, #tpu.memory_space<smem>>
    %1232 = vector.broadcast %1231 : f32 to vector<16x16xf32>
    %1233 = arith.mulf %1232, %1230 : vector<16x16xf32>
    %1234 = arith.addf %1224, %1233 : vector<16x16xf32>
    %c116_413 = arith.constant 116 : index
    %1235 = memref.load %arg7[%c116_413] : memref<144xf32, #tpu.memory_space<smem>>
    %1236 = vector.broadcast %1235 : f32 to vector<16x16xf32>
    %1237 = arith.mulf %1236, %1230 : vector<16x16xf32>
    %1238 = arith.addf %1228, %1237 : vector<16x16xf32>
    %c5_414 = arith.constant 5 : index
    %c0_415 = arith.constant 0 : index
    %c0_416 = arith.constant 0 : index
    %1239 = vector.load %arg12[%c5_414, %c0_415, %c0_416] : memref<8x18x18xf32, #tpu.memory_space<vmem>>, vector<1x16x16xf32>
    %1240 = vector.shape_cast %1239 : vector<1x16x16xf32> to vector<16x16xf32>
    %c45_417 = arith.constant 45 : index
    %1241 = memref.load %arg7[%c45_417] : memref<144xf32, #tpu.memory_space<smem>>
    %1242 = vector.broadcast %1241 : f32 to vector<16x16xf32>
    %1243 = arith.mulf %1242, %1240 : vector<16x16xf32>
    %1244 = arith.addf %1234, %1243 : vector<16x16xf32>
    %c117_418 = arith.constant 117 : index
    %1245 = memref.load %arg7[%c117_418] : memref<144xf32, #tpu.memory_space<smem>>
    %1246 = vector.broadcast %1245 : f32 to vector<16x16xf32>
    %1247 = arith.mulf %1246, %1240 : vector<16x16xf32>
    %1248 = arith.addf %1238, %1247 : vector<16x16xf32>
    %c5_419 = arith.constant 5 : index
    %c0_420 = arith.constant 0 : index
    %c1_421 = arith.constant 1 : index
    %1249 = vector.load %arg12[%c5_419, %c0_420, %c1_421] : memref<8x18x18xf32, #tpu.memory_space<vmem>>, vector<1x16x16xf32>
    %1250 = vector.shape_cast %1249 : vector<1x16x16xf32> to vector<16x16xf32>
    %c46_422 = arith.constant 46 : index
    %1251 = memref.load %arg7[%c46_422] : memref<144xf32, #tpu.memory_space<smem>>
    %1252 = vector.broadcast %1251 : f32 to vector<16x16xf32>
    %1253 = arith.mulf %1252, %1250 : vector<16x16xf32>
    %1254 = arith.addf %1244, %1253 : vector<16x16xf32>
    %c118_423 = arith.constant 118 : index
    %1255 = memref.load %arg7[%c118_423] : memref<144xf32, #tpu.memory_space<smem>>
    %1256 = vector.broadcast %1255 : f32 to vector<16x16xf32>
    %1257 = arith.mulf %1256, %1250 : vector<16x16xf32>
    %1258 = arith.addf %1248, %1257 : vector<16x16xf32>
    %c5_424 = arith.constant 5 : index
    %c0_425 = arith.constant 0 : index
    %c2_426 = arith.constant 2 : index
    %1259 = vector.load %arg12[%c5_424, %c0_425, %c2_426] : memref<8x18x18xf32, #tpu.memory_space<vmem>>, vector<1x16x16xf32>
    %1260 = vector.shape_cast %1259 : vector<1x16x16xf32> to vector<16x16xf32>
    %c47_427 = arith.constant 47 : index
    %1261 = memref.load %arg7[%c47_427] : memref<144xf32, #tpu.memory_space<smem>>
    %1262 = vector.broadcast %1261 : f32 to vector<16x16xf32>
    %1263 = arith.mulf %1262, %1260 : vector<16x16xf32>
    %1264 = arith.addf %1254, %1263 : vector<16x16xf32>
    %c119_428 = arith.constant 119 : index
    %1265 = memref.load %arg7[%c119_428] : memref<144xf32, #tpu.memory_space<smem>>
    %1266 = vector.broadcast %1265 : f32 to vector<16x16xf32>
    %1267 = arith.mulf %1266, %1260 : vector<16x16xf32>
    %1268 = arith.addf %1258, %1267 : vector<16x16xf32>
    %c5_429 = arith.constant 5 : index
    %c1_430 = arith.constant 1 : index
    %c0_431 = arith.constant 0 : index
    %1269 = vector.load %arg12[%c5_429, %c1_430, %c0_431] : memref<8x18x18xf32, #tpu.memory_space<vmem>>, vector<1x16x16xf32>
    %1270 = vector.shape_cast %1269 : vector<1x16x16xf32> to vector<16x16xf32>
    %c48_432 = arith.constant 48 : index
    %1271 = memref.load %arg7[%c48_432] : memref<144xf32, #tpu.memory_space<smem>>
    %1272 = vector.broadcast %1271 : f32 to vector<16x16xf32>
    %1273 = arith.mulf %1272, %1270 : vector<16x16xf32>
    %1274 = arith.addf %1264, %1273 : vector<16x16xf32>
    %c120_433 = arith.constant 120 : index
    %1275 = memref.load %arg7[%c120_433] : memref<144xf32, #tpu.memory_space<smem>>
    %1276 = vector.broadcast %1275 : f32 to vector<16x16xf32>
    %1277 = arith.mulf %1276, %1270 : vector<16x16xf32>
    %1278 = arith.addf %1268, %1277 : vector<16x16xf32>
    %c5_434 = arith.constant 5 : index
    %c1_435 = arith.constant 1 : index
    %c1_436 = arith.constant 1 : index
    %1279 = vector.load %arg12[%c5_434, %c1_435, %c1_436] : memref<8x18x18xf32, #tpu.memory_space<vmem>>, vector<1x16x16xf32>
    %1280 = vector.shape_cast %1279 : vector<1x16x16xf32> to vector<16x16xf32>
    %c49_437 = arith.constant 49 : index
    %1281 = memref.load %arg7[%c49_437] : memref<144xf32, #tpu.memory_space<smem>>
    %1282 = vector.broadcast %1281 : f32 to vector<16x16xf32>
    %1283 = arith.mulf %1282, %1280 : vector<16x16xf32>
    %1284 = arith.addf %1274, %1283 : vector<16x16xf32>
    %c121_438 = arith.constant 121 : index
    %1285 = memref.load %arg7[%c121_438] : memref<144xf32, #tpu.memory_space<smem>>
    %1286 = vector.broadcast %1285 : f32 to vector<16x16xf32>
    %1287 = arith.mulf %1286, %1280 : vector<16x16xf32>
    %1288 = arith.addf %1278, %1287 : vector<16x16xf32>
    %c5_439 = arith.constant 5 : index
    %c1_440 = arith.constant 1 : index
    %c2_441 = arith.constant 2 : index
    %1289 = vector.load %arg12[%c5_439, %c1_440, %c2_441] : memref<8x18x18xf32, #tpu.memory_space<vmem>>, vector<1x16x16xf32>
    %1290 = vector.shape_cast %1289 : vector<1x16x16xf32> to vector<16x16xf32>
    %c50_442 = arith.constant 50 : index
    %1291 = memref.load %arg7[%c50_442] : memref<144xf32, #tpu.memory_space<smem>>
    %1292 = vector.broadcast %1291 : f32 to vector<16x16xf32>
    %1293 = arith.mulf %1292, %1290 : vector<16x16xf32>
    %1294 = arith.addf %1284, %1293 : vector<16x16xf32>
    %c122_443 = arith.constant 122 : index
    %1295 = memref.load %arg7[%c122_443] : memref<144xf32, #tpu.memory_space<smem>>
    %1296 = vector.broadcast %1295 : f32 to vector<16x16xf32>
    %1297 = arith.mulf %1296, %1290 : vector<16x16xf32>
    %1298 = arith.addf %1288, %1297 : vector<16x16xf32>
    %c5_444 = arith.constant 5 : index
    %c2_445 = arith.constant 2 : index
    %c0_446 = arith.constant 0 : index
    %1299 = vector.load %arg12[%c5_444, %c2_445, %c0_446] : memref<8x18x18xf32, #tpu.memory_space<vmem>>, vector<1x16x16xf32>
    %1300 = vector.shape_cast %1299 : vector<1x16x16xf32> to vector<16x16xf32>
    %c51_447 = arith.constant 51 : index
    %1301 = memref.load %arg7[%c51_447] : memref<144xf32, #tpu.memory_space<smem>>
    %1302 = vector.broadcast %1301 : f32 to vector<16x16xf32>
    %1303 = arith.mulf %1302, %1300 : vector<16x16xf32>
    %1304 = arith.addf %1294, %1303 : vector<16x16xf32>
    %c123_448 = arith.constant 123 : index
    %1305 = memref.load %arg7[%c123_448] : memref<144xf32, #tpu.memory_space<smem>>
    %1306 = vector.broadcast %1305 : f32 to vector<16x16xf32>
    %1307 = arith.mulf %1306, %1300 : vector<16x16xf32>
    %1308 = arith.addf %1298, %1307 : vector<16x16xf32>
    %c5_449 = arith.constant 5 : index
    %c2_450 = arith.constant 2 : index
    %c1_451 = arith.constant 1 : index
    %1309 = vector.load %arg12[%c5_449, %c2_450, %c1_451] : memref<8x18x18xf32, #tpu.memory_space<vmem>>, vector<1x16x16xf32>
    %1310 = vector.shape_cast %1309 : vector<1x16x16xf32> to vector<16x16xf32>
    %c52_452 = arith.constant 52 : index
    %1311 = memref.load %arg7[%c52_452] : memref<144xf32, #tpu.memory_space<smem>>
    %1312 = vector.broadcast %1311 : f32 to vector<16x16xf32>
    %1313 = arith.mulf %1312, %1310 : vector<16x16xf32>
    %1314 = arith.addf %1304, %1313 : vector<16x16xf32>
    %c124_453 = arith.constant 124 : index
    %1315 = memref.load %arg7[%c124_453] : memref<144xf32, #tpu.memory_space<smem>>
    %1316 = vector.broadcast %1315 : f32 to vector<16x16xf32>
    %1317 = arith.mulf %1316, %1310 : vector<16x16xf32>
    %1318 = arith.addf %1308, %1317 : vector<16x16xf32>
    %c5_454 = arith.constant 5 : index
    %c2_455 = arith.constant 2 : index
    %c2_456 = arith.constant 2 : index
    %1319 = vector.load %arg12[%c5_454, %c2_455, %c2_456] : memref<8x18x18xf32, #tpu.memory_space<vmem>>, vector<1x16x16xf32>
    %1320 = vector.shape_cast %1319 : vector<1x16x16xf32> to vector<16x16xf32>
    %c53_457 = arith.constant 53 : index
    %1321 = memref.load %arg7[%c53_457] : memref<144xf32, #tpu.memory_space<smem>>
    %1322 = vector.broadcast %1321 : f32 to vector<16x16xf32>
    %1323 = arith.mulf %1322, %1320 : vector<16x16xf32>
    %1324 = arith.addf %1314, %1323 : vector<16x16xf32>
    %c125_458 = arith.constant 125 : index
    %1325 = memref.load %arg7[%c125_458] : memref<144xf32, #tpu.memory_space<smem>>
    %1326 = vector.broadcast %1325 : f32 to vector<16x16xf32>
    %1327 = arith.mulf %1326, %1320 : vector<16x16xf32>
    %1328 = arith.addf %1318, %1327 : vector<16x16xf32>
    %c6_459 = arith.constant 6 : index
    %c0_460 = arith.constant 0 : index
    %c0_461 = arith.constant 0 : index
    %1329 = vector.load %arg12[%c6_459, %c0_460, %c0_461] : memref<8x18x18xf32, #tpu.memory_space<vmem>>, vector<1x16x16xf32>
    %1330 = vector.shape_cast %1329 : vector<1x16x16xf32> to vector<16x16xf32>
    %c54_462 = arith.constant 54 : index
    %1331 = memref.load %arg7[%c54_462] : memref<144xf32, #tpu.memory_space<smem>>
    %1332 = vector.broadcast %1331 : f32 to vector<16x16xf32>
    %1333 = arith.mulf %1332, %1330 : vector<16x16xf32>
    %1334 = arith.addf %1324, %1333 : vector<16x16xf32>
    %c126_463 = arith.constant 126 : index
    %1335 = memref.load %arg7[%c126_463] : memref<144xf32, #tpu.memory_space<smem>>
    %1336 = vector.broadcast %1335 : f32 to vector<16x16xf32>
    %1337 = arith.mulf %1336, %1330 : vector<16x16xf32>
    %1338 = arith.addf %1328, %1337 : vector<16x16xf32>
    %c6_464 = arith.constant 6 : index
    %c0_465 = arith.constant 0 : index
    %c1_466 = arith.constant 1 : index
    %1339 = vector.load %arg12[%c6_464, %c0_465, %c1_466] : memref<8x18x18xf32, #tpu.memory_space<vmem>>, vector<1x16x16xf32>
    %1340 = vector.shape_cast %1339 : vector<1x16x16xf32> to vector<16x16xf32>
    %c55_467 = arith.constant 55 : index
    %1341 = memref.load %arg7[%c55_467] : memref<144xf32, #tpu.memory_space<smem>>
    %1342 = vector.broadcast %1341 : f32 to vector<16x16xf32>
    %1343 = arith.mulf %1342, %1340 : vector<16x16xf32>
    %1344 = arith.addf %1334, %1343 : vector<16x16xf32>
    %c127_468 = arith.constant 127 : index
    %1345 = memref.load %arg7[%c127_468] : memref<144xf32, #tpu.memory_space<smem>>
    %1346 = vector.broadcast %1345 : f32 to vector<16x16xf32>
    %1347 = arith.mulf %1346, %1340 : vector<16x16xf32>
    %1348 = arith.addf %1338, %1347 : vector<16x16xf32>
    %c6_469 = arith.constant 6 : index
    %c0_470 = arith.constant 0 : index
    %c2_471 = arith.constant 2 : index
    %1349 = vector.load %arg12[%c6_469, %c0_470, %c2_471] : memref<8x18x18xf32, #tpu.memory_space<vmem>>, vector<1x16x16xf32>
    %1350 = vector.shape_cast %1349 : vector<1x16x16xf32> to vector<16x16xf32>
    %c56_472 = arith.constant 56 : index
    %1351 = memref.load %arg7[%c56_472] : memref<144xf32, #tpu.memory_space<smem>>
    %1352 = vector.broadcast %1351 : f32 to vector<16x16xf32>
    %1353 = arith.mulf %1352, %1350 : vector<16x16xf32>
    %1354 = arith.addf %1344, %1353 : vector<16x16xf32>
    %c128_473 = arith.constant 128 : index
    %1355 = memref.load %arg7[%c128_473] : memref<144xf32, #tpu.memory_space<smem>>
    %1356 = vector.broadcast %1355 : f32 to vector<16x16xf32>
    %1357 = arith.mulf %1356, %1350 : vector<16x16xf32>
    %1358 = arith.addf %1348, %1357 : vector<16x16xf32>
    %c6_474 = arith.constant 6 : index
    %c1_475 = arith.constant 1 : index
    %c0_476 = arith.constant 0 : index
    %1359 = vector.load %arg12[%c6_474, %c1_475, %c0_476] : memref<8x18x18xf32, #tpu.memory_space<vmem>>, vector<1x16x16xf32>
    %1360 = vector.shape_cast %1359 : vector<1x16x16xf32> to vector<16x16xf32>
    %c57_477 = arith.constant 57 : index
    %1361 = memref.load %arg7[%c57_477] : memref<144xf32, #tpu.memory_space<smem>>
    %1362 = vector.broadcast %1361 : f32 to vector<16x16xf32>
    %1363 = arith.mulf %1362, %1360 : vector<16x16xf32>
    %1364 = arith.addf %1354, %1363 : vector<16x16xf32>
    %c129_478 = arith.constant 129 : index
    %1365 = memref.load %arg7[%c129_478] : memref<144xf32, #tpu.memory_space<smem>>
    %1366 = vector.broadcast %1365 : f32 to vector<16x16xf32>
    %1367 = arith.mulf %1366, %1360 : vector<16x16xf32>
    %1368 = arith.addf %1358, %1367 : vector<16x16xf32>
    %c6_479 = arith.constant 6 : index
    %c1_480 = arith.constant 1 : index
    %c1_481 = arith.constant 1 : index
    %1369 = vector.load %arg12[%c6_479, %c1_480, %c1_481] : memref<8x18x18xf32, #tpu.memory_space<vmem>>, vector<1x16x16xf32>
    %1370 = vector.shape_cast %1369 : vector<1x16x16xf32> to vector<16x16xf32>
    %c58_482 = arith.constant 58 : index
    %1371 = memref.load %arg7[%c58_482] : memref<144xf32, #tpu.memory_space<smem>>
    %1372 = vector.broadcast %1371 : f32 to vector<16x16xf32>
    %1373 = arith.mulf %1372, %1370 : vector<16x16xf32>
    %1374 = arith.addf %1364, %1373 : vector<16x16xf32>
    %c130_483 = arith.constant 130 : index
    %1375 = memref.load %arg7[%c130_483] : memref<144xf32, #tpu.memory_space<smem>>
    %1376 = vector.broadcast %1375 : f32 to vector<16x16xf32>
    %1377 = arith.mulf %1376, %1370 : vector<16x16xf32>
    %1378 = arith.addf %1368, %1377 : vector<16x16xf32>
    %c6_484 = arith.constant 6 : index
    %c1_485 = arith.constant 1 : index
    %c2_486 = arith.constant 2 : index
    %1379 = vector.load %arg12[%c6_484, %c1_485, %c2_486] : memref<8x18x18xf32, #tpu.memory_space<vmem>>, vector<1x16x16xf32>
    %1380 = vector.shape_cast %1379 : vector<1x16x16xf32> to vector<16x16xf32>
    %c59_487 = arith.constant 59 : index
    %1381 = memref.load %arg7[%c59_487] : memref<144xf32, #tpu.memory_space<smem>>
    %1382 = vector.broadcast %1381 : f32 to vector<16x16xf32>
    %1383 = arith.mulf %1382, %1380 : vector<16x16xf32>
    %1384 = arith.addf %1374, %1383 : vector<16x16xf32>
    %c131_488 = arith.constant 131 : index
    %1385 = memref.load %arg7[%c131_488] : memref<144xf32, #tpu.memory_space<smem>>
    %1386 = vector.broadcast %1385 : f32 to vector<16x16xf32>
    %1387 = arith.mulf %1386, %1380 : vector<16x16xf32>
    %1388 = arith.addf %1378, %1387 : vector<16x16xf32>
    %c6_489 = arith.constant 6 : index
    %c2_490 = arith.constant 2 : index
    %c0_491 = arith.constant 0 : index
    %1389 = vector.load %arg12[%c6_489, %c2_490, %c0_491] : memref<8x18x18xf32, #tpu.memory_space<vmem>>, vector<1x16x16xf32>
    %1390 = vector.shape_cast %1389 : vector<1x16x16xf32> to vector<16x16xf32>
    %c60_492 = arith.constant 60 : index
    %1391 = memref.load %arg7[%c60_492] : memref<144xf32, #tpu.memory_space<smem>>
    %1392 = vector.broadcast %1391 : f32 to vector<16x16xf32>
    %1393 = arith.mulf %1392, %1390 : vector<16x16xf32>
    %1394 = arith.addf %1384, %1393 : vector<16x16xf32>
    %c132_493 = arith.constant 132 : index
    %1395 = memref.load %arg7[%c132_493] : memref<144xf32, #tpu.memory_space<smem>>
    %1396 = vector.broadcast %1395 : f32 to vector<16x16xf32>
    %1397 = arith.mulf %1396, %1390 : vector<16x16xf32>
    %1398 = arith.addf %1388, %1397 : vector<16x16xf32>
    %c6_494 = arith.constant 6 : index
    %c2_495 = arith.constant 2 : index
    %c1_496 = arith.constant 1 : index
    %1399 = vector.load %arg12[%c6_494, %c2_495, %c1_496] : memref<8x18x18xf32, #tpu.memory_space<vmem>>, vector<1x16x16xf32>
    %1400 = vector.shape_cast %1399 : vector<1x16x16xf32> to vector<16x16xf32>
    %c61_497 = arith.constant 61 : index
    %1401 = memref.load %arg7[%c61_497] : memref<144xf32, #tpu.memory_space<smem>>
    %1402 = vector.broadcast %1401 : f32 to vector<16x16xf32>
    %1403 = arith.mulf %1402, %1400 : vector<16x16xf32>
    %1404 = arith.addf %1394, %1403 : vector<16x16xf32>
    %c133_498 = arith.constant 133 : index
    %1405 = memref.load %arg7[%c133_498] : memref<144xf32, #tpu.memory_space<smem>>
    %1406 = vector.broadcast %1405 : f32 to vector<16x16xf32>
    %1407 = arith.mulf %1406, %1400 : vector<16x16xf32>
    %1408 = arith.addf %1398, %1407 : vector<16x16xf32>
    %c6_499 = arith.constant 6 : index
    %c2_500 = arith.constant 2 : index
    %c2_501 = arith.constant 2 : index
    %1409 = vector.load %arg12[%c6_499, %c2_500, %c2_501] : memref<8x18x18xf32, #tpu.memory_space<vmem>>, vector<1x16x16xf32>
    %1410 = vector.shape_cast %1409 : vector<1x16x16xf32> to vector<16x16xf32>
    %c62_502 = arith.constant 62 : index
    %1411 = memref.load %arg7[%c62_502] : memref<144xf32, #tpu.memory_space<smem>>
    %1412 = vector.broadcast %1411 : f32 to vector<16x16xf32>
    %1413 = arith.mulf %1412, %1410 : vector<16x16xf32>
    %1414 = arith.addf %1404, %1413 : vector<16x16xf32>
    %c134_503 = arith.constant 134 : index
    %1415 = memref.load %arg7[%c134_503] : memref<144xf32, #tpu.memory_space<smem>>
    %1416 = vector.broadcast %1415 : f32 to vector<16x16xf32>
    %1417 = arith.mulf %1416, %1410 : vector<16x16xf32>
    %1418 = arith.addf %1408, %1417 : vector<16x16xf32>
    %c7_504 = arith.constant 7 : index
    %c0_505 = arith.constant 0 : index
    %c0_506 = arith.constant 0 : index
    %1419 = vector.load %arg12[%c7_504, %c0_505, %c0_506] : memref<8x18x18xf32, #tpu.memory_space<vmem>>, vector<1x16x16xf32>
    %1420 = vector.shape_cast %1419 : vector<1x16x16xf32> to vector<16x16xf32>
    %c63_507 = arith.constant 63 : index
    %1421 = memref.load %arg7[%c63_507] : memref<144xf32, #tpu.memory_space<smem>>
    %1422 = vector.broadcast %1421 : f32 to vector<16x16xf32>
    %1423 = arith.mulf %1422, %1420 : vector<16x16xf32>
    %1424 = arith.addf %1414, %1423 : vector<16x16xf32>
    %c135_508 = arith.constant 135 : index
    %1425 = memref.load %arg7[%c135_508] : memref<144xf32, #tpu.memory_space<smem>>
    %1426 = vector.broadcast %1425 : f32 to vector<16x16xf32>
    %1427 = arith.mulf %1426, %1420 : vector<16x16xf32>
    %1428 = arith.addf %1418, %1427 : vector<16x16xf32>
    %c7_509 = arith.constant 7 : index
    %c0_510 = arith.constant 0 : index
    %c1_511 = arith.constant 1 : index
    %1429 = vector.load %arg12[%c7_509, %c0_510, %c1_511] : memref<8x18x18xf32, #tpu.memory_space<vmem>>, vector<1x16x16xf32>
    %1430 = vector.shape_cast %1429 : vector<1x16x16xf32> to vector<16x16xf32>
    %c64_512 = arith.constant 64 : index
    %1431 = memref.load %arg7[%c64_512] : memref<144xf32, #tpu.memory_space<smem>>
    %1432 = vector.broadcast %1431 : f32 to vector<16x16xf32>
    %1433 = arith.mulf %1432, %1430 : vector<16x16xf32>
    %1434 = arith.addf %1424, %1433 : vector<16x16xf32>
    %c136_513 = arith.constant 136 : index
    %1435 = memref.load %arg7[%c136_513] : memref<144xf32, #tpu.memory_space<smem>>
    %1436 = vector.broadcast %1435 : f32 to vector<16x16xf32>
    %1437 = arith.mulf %1436, %1430 : vector<16x16xf32>
    %1438 = arith.addf %1428, %1437 : vector<16x16xf32>
    %c7_514 = arith.constant 7 : index
    %c0_515 = arith.constant 0 : index
    %c2_516 = arith.constant 2 : index
    %1439 = vector.load %arg12[%c7_514, %c0_515, %c2_516] : memref<8x18x18xf32, #tpu.memory_space<vmem>>, vector<1x16x16xf32>
    %1440 = vector.shape_cast %1439 : vector<1x16x16xf32> to vector<16x16xf32>
    %c65_517 = arith.constant 65 : index
    %1441 = memref.load %arg7[%c65_517] : memref<144xf32, #tpu.memory_space<smem>>
    %1442 = vector.broadcast %1441 : f32 to vector<16x16xf32>
    %1443 = arith.mulf %1442, %1440 : vector<16x16xf32>
    %1444 = arith.addf %1434, %1443 : vector<16x16xf32>
    %c137_518 = arith.constant 137 : index
    %1445 = memref.load %arg7[%c137_518] : memref<144xf32, #tpu.memory_space<smem>>
    %1446 = vector.broadcast %1445 : f32 to vector<16x16xf32>
    %1447 = arith.mulf %1446, %1440 : vector<16x16xf32>
    %1448 = arith.addf %1438, %1447 : vector<16x16xf32>
    %c7_519 = arith.constant 7 : index
    %c1_520 = arith.constant 1 : index
    %c0_521 = arith.constant 0 : index
    %1449 = vector.load %arg12[%c7_519, %c1_520, %c0_521] : memref<8x18x18xf32, #tpu.memory_space<vmem>>, vector<1x16x16xf32>
    %1450 = vector.shape_cast %1449 : vector<1x16x16xf32> to vector<16x16xf32>
    %c66_522 = arith.constant 66 : index
    %1451 = memref.load %arg7[%c66_522] : memref<144xf32, #tpu.memory_space<smem>>
    %1452 = vector.broadcast %1451 : f32 to vector<16x16xf32>
    %1453 = arith.mulf %1452, %1450 : vector<16x16xf32>
    %1454 = arith.addf %1444, %1453 : vector<16x16xf32>
    %c138_523 = arith.constant 138 : index
    %1455 = memref.load %arg7[%c138_523] : memref<144xf32, #tpu.memory_space<smem>>
    %1456 = vector.broadcast %1455 : f32 to vector<16x16xf32>
    %1457 = arith.mulf %1456, %1450 : vector<16x16xf32>
    %1458 = arith.addf %1448, %1457 : vector<16x16xf32>
    %c7_524 = arith.constant 7 : index
    %c1_525 = arith.constant 1 : index
    %c1_526 = arith.constant 1 : index
    %1459 = vector.load %arg12[%c7_524, %c1_525, %c1_526] : memref<8x18x18xf32, #tpu.memory_space<vmem>>, vector<1x16x16xf32>
    %1460 = vector.shape_cast %1459 : vector<1x16x16xf32> to vector<16x16xf32>
    %c67_527 = arith.constant 67 : index
    %1461 = memref.load %arg7[%c67_527] : memref<144xf32, #tpu.memory_space<smem>>
    %1462 = vector.broadcast %1461 : f32 to vector<16x16xf32>
    %1463 = arith.mulf %1462, %1460 : vector<16x16xf32>
    %1464 = arith.addf %1454, %1463 : vector<16x16xf32>
    %c139_528 = arith.constant 139 : index
    %1465 = memref.load %arg7[%c139_528] : memref<144xf32, #tpu.memory_space<smem>>
    %1466 = vector.broadcast %1465 : f32 to vector<16x16xf32>
    %1467 = arith.mulf %1466, %1460 : vector<16x16xf32>
    %1468 = arith.addf %1458, %1467 : vector<16x16xf32>
    %c7_529 = arith.constant 7 : index
    %c1_530 = arith.constant 1 : index
    %c2_531 = arith.constant 2 : index
    %1469 = vector.load %arg12[%c7_529, %c1_530, %c2_531] : memref<8x18x18xf32, #tpu.memory_space<vmem>>, vector<1x16x16xf32>
    %1470 = vector.shape_cast %1469 : vector<1x16x16xf32> to vector<16x16xf32>
    %c68_532 = arith.constant 68 : index
    %1471 = memref.load %arg7[%c68_532] : memref<144xf32, #tpu.memory_space<smem>>
    %1472 = vector.broadcast %1471 : f32 to vector<16x16xf32>
    %1473 = arith.mulf %1472, %1470 : vector<16x16xf32>
    %1474 = arith.addf %1464, %1473 : vector<16x16xf32>
    %c140_533 = arith.constant 140 : index
    %1475 = memref.load %arg7[%c140_533] : memref<144xf32, #tpu.memory_space<smem>>
    %1476 = vector.broadcast %1475 : f32 to vector<16x16xf32>
    %1477 = arith.mulf %1476, %1470 : vector<16x16xf32>
    %1478 = arith.addf %1468, %1477 : vector<16x16xf32>
    %c7_534 = arith.constant 7 : index
    %c2_535 = arith.constant 2 : index
    %c0_536 = arith.constant 0 : index
    %1479 = vector.load %arg12[%c7_534, %c2_535, %c0_536] : memref<8x18x18xf32, #tpu.memory_space<vmem>>, vector<1x16x16xf32>
    %1480 = vector.shape_cast %1479 : vector<1x16x16xf32> to vector<16x16xf32>
    %c69_537 = arith.constant 69 : index
    %1481 = memref.load %arg7[%c69_537] : memref<144xf32, #tpu.memory_space<smem>>
    %1482 = vector.broadcast %1481 : f32 to vector<16x16xf32>
    %1483 = arith.mulf %1482, %1480 : vector<16x16xf32>
    %1484 = arith.addf %1474, %1483 : vector<16x16xf32>
    %c141_538 = arith.constant 141 : index
    %1485 = memref.load %arg7[%c141_538] : memref<144xf32, #tpu.memory_space<smem>>
    %1486 = vector.broadcast %1485 : f32 to vector<16x16xf32>
    %1487 = arith.mulf %1486, %1480 : vector<16x16xf32>
    %1488 = arith.addf %1478, %1487 : vector<16x16xf32>
    %c7_539 = arith.constant 7 : index
    %c2_540 = arith.constant 2 : index
    %c1_541 = arith.constant 1 : index
    %1489 = vector.load %arg12[%c7_539, %c2_540, %c1_541] : memref<8x18x18xf32, #tpu.memory_space<vmem>>, vector<1x16x16xf32>
    %1490 = vector.shape_cast %1489 : vector<1x16x16xf32> to vector<16x16xf32>
    %c70_542 = arith.constant 70 : index
    %1491 = memref.load %arg7[%c70_542] : memref<144xf32, #tpu.memory_space<smem>>
    %1492 = vector.broadcast %1491 : f32 to vector<16x16xf32>
    %1493 = arith.mulf %1492, %1490 : vector<16x16xf32>
    %1494 = arith.addf %1484, %1493 : vector<16x16xf32>
    %c142_543 = arith.constant 142 : index
    %1495 = memref.load %arg7[%c142_543] : memref<144xf32, #tpu.memory_space<smem>>
    %1496 = vector.broadcast %1495 : f32 to vector<16x16xf32>
    %1497 = arith.mulf %1496, %1490 : vector<16x16xf32>
    %1498 = arith.addf %1488, %1497 : vector<16x16xf32>
    %c7_544 = arith.constant 7 : index
    %c2_545 = arith.constant 2 : index
    %c2_546 = arith.constant 2 : index
    %1499 = vector.load %arg12[%c7_544, %c2_545, %c2_546] : memref<8x18x18xf32, #tpu.memory_space<vmem>>, vector<1x16x16xf32>
    %1500 = vector.shape_cast %1499 : vector<1x16x16xf32> to vector<16x16xf32>
    %c71_547 = arith.constant 71 : index
    %1501 = memref.load %arg7[%c71_547] : memref<144xf32, #tpu.memory_space<smem>>
    %1502 = vector.broadcast %1501 : f32 to vector<16x16xf32>
    %1503 = arith.mulf %1502, %1500 : vector<16x16xf32>
    %1504 = arith.addf %1494, %1503 : vector<16x16xf32>
    %c143_548 = arith.constant 143 : index
    %1505 = memref.load %arg7[%c143_548] : memref<144xf32, #tpu.memory_space<smem>>
    %1506 = vector.broadcast %1505 : f32 to vector<16x16xf32>
    %1507 = arith.mulf %1506, %1500 : vector<16x16xf32>
    %1508 = arith.addf %1498, %1507 : vector<16x16xf32>
    %c0_549 = arith.constant 0 : index
    %1509 = memref.load %arg8[%c0_549] : memref<2xf32, #tpu.memory_space<smem>>
    %1510 = vector.broadcast %1509 : f32 to vector<16x16xf32>
    %1511 = arith.addf %1504, %1510 : vector<16x16xf32>
    %c1_550 = arith.constant 1 : index
    %1512 = memref.load %arg8[%c1_550] : memref<2xf32, #tpu.memory_space<smem>>
    %1513 = vector.broadcast %1512 : f32 to vector<16x16xf32>
    %1514 = arith.addf %1508, %1513 : vector<16x16xf32>
    %c0_551 = arith.constant 0 : index
    %c0_552 = arith.constant 0 : index
    %c0_553 = arith.constant 0 : index
    %c0_554 = arith.constant 0 : index
    %1515 = vector.load %arg3[%c0_551, %c0_552, %c0_553, %c0_554] : memref<1x4x16x16xf32, #tpu.memory_space<vmem>>, vector<1x1x16x16xf32>
    %1516 = vector.shape_cast %1515 : vector<1x1x16x16xf32> to vector<16x16xf32>
    %c0_555 = arith.constant 0 : index
    %c0_556 = arith.constant 0 : index
    %c0_557 = arith.constant 0 : index
    %c0_558 = arith.constant 0 : index
    %1517 = vector.load %arg4[%c0_555, %c0_556, %c0_557, %c0_558] : memref<1x4x16x16xf32, #tpu.memory_space<vmem>>, vector<1x1x16x16xf32>
    %1518 = vector.shape_cast %1517 : vector<1x1x16x16xf32> to vector<16x16xf32>
    %1519 = arith.mulf %1516, %1511 : vector<16x16xf32>
    %1520 = arith.mulf %1518, %1514 : vector<16x16xf32>
    %1521 = arith.subf %1519, %1520 : vector<16x16xf32>
    %c0_559 = arith.constant 0 : index
    %c0_560 = arith.constant 0 : index
    %c0_561 = arith.constant 0 : index
    %c0_562 = arith.constant 0 : index
    %1522 = vector.load %arg9[%c0_559, %c0_560, %c0_561, %c0_562] : memref<1x4x16x16xf32, #tpu.memory_space<vmem>>, vector<1x1x16x16xf32>
    %1523 = vector.shape_cast %1522 : vector<1x1x16x16xf32> to vector<16x16xf32>
    %1524 = vector.shape_cast %1521 : vector<16x16xf32> to vector<1x1x16x16xf32>
    tpu.vector_store %arg9[%c0_559, %c0_560, %c0_561, %c0_562], %1524 {strides = array<i32>} : memref<1x4x16x16xf32, #tpu.memory_space<vmem>>, vector<1x1x16x16xf32>,
    %1525 = arith.mulf %1516, %1514 : vector<16x16xf32>
    %1526 = arith.mulf %1518, %1511 : vector<16x16xf32>
    %1527 = arith.addf %1525, %1526 : vector<16x16xf32>
    %c0_563 = arith.constant 0 : index
    %c0_564 = arith.constant 0 : index
    %c0_565 = arith.constant 0 : index
    %c0_566 = arith.constant 0 : index
    %1528 = vector.load %arg10[%c0_563, %c0_564, %c0_565, %c0_566] : memref<1x4x16x16xf32, #tpu.memory_space<vmem>>, vector<1x1x16x16xf32>
    %1529 = vector.shape_cast %1528 : vector<1x1x16x16xf32> to vector<16x16xf32>
    %1530 = vector.shape_cast %1527 : vector<16x16xf32> to vector<1x1x16x16xf32>
    tpu.vector_store %arg10[%c0_563, %c0_564, %c0_565, %c0_566], %1530 {strides = array<i32>} : memref<1x4x16x16xf32, #tpu.memory_space<vmem>>, vector<1x1x16x16xf32>,
    %c0_567 = arith.constant 0 : index
    %c1_568 = arith.constant 1 : index
    %c0_569 = arith.constant 0 : index
    %c0_570 = arith.constant 0 : index
    %1531 = vector.load %arg3[%c0_567, %c1_568, %c0_569, %c0_570] : memref<1x4x16x16xf32, #tpu.memory_space<vmem>>, vector<1x1x16x16xf32>
    %1532 = vector.shape_cast %1531 : vector<1x1x16x16xf32> to vector<16x16xf32>
    %c0_571 = arith.constant 0 : index
    %c1_572 = arith.constant 1 : index
    %c0_573 = arith.constant 0 : index
    %c0_574 = arith.constant 0 : index
    %1533 = vector.load %arg4[%c0_571, %c1_572, %c0_573, %c0_574] : memref<1x4x16x16xf32, #tpu.memory_space<vmem>>, vector<1x1x16x16xf32>
    %1534 = vector.shape_cast %1533 : vector<1x1x16x16xf32> to vector<16x16xf32>
    %1535 = arith.mulf %1532, %1511 : vector<16x16xf32>
    %1536 = arith.mulf %1534, %1514 : vector<16x16xf32>
    %1537 = arith.subf %1535, %1536 : vector<16x16xf32>
    %c0_575 = arith.constant 0 : index
    %c1_576 = arith.constant 1 : index
    %c0_577 = arith.constant 0 : index
    %c0_578 = arith.constant 0 : index
    %1538 = vector.load %arg9[%c0_575, %c1_576, %c0_577, %c0_578] : memref<1x4x16x16xf32, #tpu.memory_space<vmem>>, vector<1x1x16x16xf32>
    %1539 = vector.shape_cast %1538 : vector<1x1x16x16xf32> to vector<16x16xf32>
    %1540 = vector.shape_cast %1537 : vector<16x16xf32> to vector<1x1x16x16xf32>
    tpu.vector_store %arg9[%c0_575, %c1_576, %c0_577, %c0_578], %1540 {strides = array<i32>} : memref<1x4x16x16xf32, #tpu.memory_space<vmem>>, vector<1x1x16x16xf32>,
    %1541 = arith.mulf %1532, %1514 : vector<16x16xf32>
    %1542 = arith.mulf %1534, %1511 : vector<16x16xf32>
    %1543 = arith.addf %1541, %1542 : vector<16x16xf32>
    %c0_579 = arith.constant 0 : index
    %c1_580 = arith.constant 1 : index
    %c0_581 = arith.constant 0 : index
    %c0_582 = arith.constant 0 : index
    %1544 = vector.load %arg10[%c0_579, %c1_580, %c0_581, %c0_582] : memref<1x4x16x16xf32, #tpu.memory_space<vmem>>, vector<1x1x16x16xf32>
    %1545 = vector.shape_cast %1544 : vector<1x1x16x16xf32> to vector<16x16xf32>
    %1546 = vector.shape_cast %1543 : vector<16x16xf32> to vector<1x1x16x16xf32>
    tpu.vector_store %arg10[%c0_579, %c1_580, %c0_581, %c0_582], %1546 {strides = array<i32>} : memref<1x4x16x16xf32, #tpu.memory_space<vmem>>, vector<1x1x16x16xf32>,
    %c0_583 = arith.constant 0 : index
    %c2_584 = arith.constant 2 : index
    %c0_585 = arith.constant 0 : index
    %c0_586 = arith.constant 0 : index
    %1547 = vector.load %arg3[%c0_583, %c2_584, %c0_585, %c0_586] : memref<1x4x16x16xf32, #tpu.memory_space<vmem>>, vector<1x1x16x16xf32>
    %1548 = vector.shape_cast %1547 : vector<1x1x16x16xf32> to vector<16x16xf32>
    %c0_587 = arith.constant 0 : index
    %c2_588 = arith.constant 2 : index
    %c0_589 = arith.constant 0 : index
    %c0_590 = arith.constant 0 : index
    %1549 = vector.load %arg4[%c0_587, %c2_588, %c0_589, %c0_590] : memref<1x4x16x16xf32, #tpu.memory_space<vmem>>, vector<1x1x16x16xf32>
    %1550 = vector.shape_cast %1549 : vector<1x1x16x16xf32> to vector<16x16xf32>
    %1551 = arith.mulf %1548, %1511 : vector<16x16xf32>
    %1552 = arith.mulf %1550, %1514 : vector<16x16xf32>
    %1553 = arith.subf %1551, %1552 : vector<16x16xf32>
    %c0_591 = arith.constant 0 : index
    %c2_592 = arith.constant 2 : index
    %c0_593 = arith.constant 0 : index
    %c0_594 = arith.constant 0 : index
    %1554 = vector.load %arg9[%c0_591, %c2_592, %c0_593, %c0_594] : memref<1x4x16x16xf32, #tpu.memory_space<vmem>>, vector<1x1x16x16xf32>
    %1555 = vector.shape_cast %1554 : vector<1x1x16x16xf32> to vector<16x16xf32>
    %1556 = vector.shape_cast %1553 : vector<16x16xf32> to vector<1x1x16x16xf32>
    tpu.vector_store %arg9[%c0_591, %c2_592, %c0_593, %c0_594], %1556 {strides = array<i32>} : memref<1x4x16x16xf32, #tpu.memory_space<vmem>>, vector<1x1x16x16xf32>,
    %1557 = arith.mulf %1548, %1514 : vector<16x16xf32>
    %1558 = arith.mulf %1550, %1511 : vector<16x16xf32>
    %1559 = arith.addf %1557, %1558 : vector<16x16xf32>
    %c0_595 = arith.constant 0 : index
    %c2_596 = arith.constant 2 : index
    %c0_597 = arith.constant 0 : index
    %c0_598 = arith.constant 0 : index
    %1560 = vector.load %arg10[%c0_595, %c2_596, %c0_597, %c0_598] : memref<1x4x16x16xf32, #tpu.memory_space<vmem>>, vector<1x1x16x16xf32>
    %1561 = vector.shape_cast %1560 : vector<1x1x16x16xf32> to vector<16x16xf32>
    %1562 = vector.shape_cast %1559 : vector<16x16xf32> to vector<1x1x16x16xf32>
    tpu.vector_store %arg10[%c0_595, %c2_596, %c0_597, %c0_598], %1562 {strides = array<i32>} : memref<1x4x16x16xf32, #tpu.memory_space<vmem>>, vector<1x1x16x16xf32>,
    %c0_599 = arith.constant 0 : index
    %c3_600 = arith.constant 3 : index
    %c0_601 = arith.constant 0 : index
    %c0_602 = arith.constant 0 : index
    %1563 = vector.load %arg3[%c0_599, %c3_600, %c0_601, %c0_602] : memref<1x4x16x16xf32, #tpu.memory_space<vmem>>, vector<1x1x16x16xf32>
    %1564 = vector.shape_cast %1563 : vector<1x1x16x16xf32> to vector<16x16xf32>
    %c0_603 = arith.constant 0 : index
    %c3_604 = arith.constant 3 : index
    %c0_605 = arith.constant 0 : index
    %c0_606 = arith.constant 0 : index
    %1565 = vector.load %arg4[%c0_603, %c3_604, %c0_605, %c0_606] : memref<1x4x16x16xf32, #tpu.memory_space<vmem>>, vector<1x1x16x16xf32>
    %1566 = vector.shape_cast %1565 : vector<1x1x16x16xf32> to vector<16x16xf32>
    %1567 = arith.mulf %1564, %1511 : vector<16x16xf32>
    %1568 = arith.mulf %1566, %1514 : vector<16x16xf32>
    %1569 = arith.subf %1567, %1568 : vector<16x16xf32>
    %c0_607 = arith.constant 0 : index
    %c3_608 = arith.constant 3 : index
    %c0_609 = arith.constant 0 : index
    %c0_610 = arith.constant 0 : index
    %1570 = vector.load %arg9[%c0_607, %c3_608, %c0_609, %c0_610] : memref<1x4x16x16xf32, #tpu.memory_space<vmem>>, vector<1x1x16x16xf32>
    %1571 = vector.shape_cast %1570 : vector<1x1x16x16xf32> to vector<16x16xf32>
    %1572 = vector.shape_cast %1569 : vector<16x16xf32> to vector<1x1x16x16xf32>
    tpu.vector_store %arg9[%c0_607, %c3_608, %c0_609, %c0_610], %1572 {strides = array<i32>} : memref<1x4x16x16xf32, #tpu.memory_space<vmem>>, vector<1x1x16x16xf32>,
    %1573 = arith.mulf %1564, %1514 : vector<16x16xf32>
    %1574 = arith.mulf %1566, %1511 : vector<16x16xf32>
    %1575 = arith.addf %1573, %1574 : vector<16x16xf32>
    %c0_611 = arith.constant 0 : index
    %c3_612 = arith.constant 3 : index
    %c0_613 = arith.constant 0 : index
    %c0_614 = arith.constant 0 : index
    %1576 = vector.load %arg10[%c0_611, %c3_612, %c0_613, %c0_614] : memref<1x4x16x16xf32, #tpu.memory_space<vmem>>, vector<1x1x16x16xf32>
    %1577 = vector.shape_cast %1576 : vector<1x1x16x16xf32> to vector<16x16xf32>
    %1578 = vector.shape_cast %1575 : vector<16x16xf32> to vector<1x1x16x16xf32>
    tpu.vector_store %arg10[%c0_611, %c3_612, %c0_613, %c0_614], %1578 {strides = array<i32>} : memref<1x4x16x16xf32, #tpu.memory_space<vmem>>, vector<1x1x16x16xf32>,
    return
  }
  func.func @transform_0(%arg0: i32) -> (i32, i32, i32, i32) {
    %c0_i32 = arith.constant 0 : i32
    %c0_i32_0 = arith.constant 0 : i32
    %c0_i32_1 = arith.constant 0 : i32
    %c0_i32_2 = arith.constant 0 : i32
    return %arg0, %c0_i32, %c0_i32_0, %c0_i32_1 : i32, i32, i32, i32
  }
  func.func @transform_1(%arg0: i32) -> (i32, i32, i32, i32) {
    %c0_i32 = arith.constant 0 : i32
    %c0_i32_0 = arith.constant 0 : i32
    %c0_i32_1 = arith.constant 0 : i32
    %c0_i32_2 = arith.constant 0 : i32
    return %arg0, %c0_i32, %c0_i32_0, %c0_i32_1 : i32, i32, i32, i32
  }
  func.func @transform_2(%arg0: i32) -> (i32, i32, i32, i32) {
    %c0_i32 = arith.constant 0 : i32
    %c0_i32_0 = arith.constant 0 : i32
    %c0_i32_1 = arith.constant 0 : i32
    %c0_i32_2 = arith.constant 0 : i32
    return %arg0, %c0_i32, %c0_i32_0, %c0_i32_1 : i32, i32, i32, i32
  }
  func.func @transform_3(%arg0: i32) -> (i32, i32, i32, i32) {
    %c0_i32 = arith.constant 0 : i32
    %c0_i32_0 = arith.constant 0 : i32
    %c0_i32_1 = arith.constant 0 : i32
    %c0_i32_2 = arith.constant 0 : i32
    return %arg0, %c0_i32, %c0_i32_0, %c0_i32_1 : i32, i32, i32, i32
  }
  func.func @transform_4(%arg0: i32) -> i32 {
    %c0_i32 = arith.constant 0 : i32
    %c0_i32_0 = arith.constant 0 : i32
    return %c0_i32 : i32
  }
  func.func @transform_5(%arg0: i32) -> i32 {
    %c0_i32 = arith.constant 0 : i32
    %c0_i32_0 = arith.constant 0 : i32
    return %c0_i32 : i32
  }
  func.func @transform_6(%arg0: i32) -> i32 {
    %c0_i32 = arith.constant 0 : i32
    %c0_i32_0 = arith.constant 0 : i32
    return %c0_i32 : i32
  }
  func.func @transform_7(%arg0: i32) -> i32 {
    %c0_i32 = arith.constant 0 : i32
    %c0_i32_0 = arith.constant 0 : i32
    return %c0_i32 : i32
  }
  func.func @transform_8(%arg0: i32) -> (i32, i32, i32, i32) {
    %c0_i32 = arith.constant 0 : i32
    %c0_i32_0 = arith.constant 0 : i32
    %c0_i32_1 = arith.constant 0 : i32
    %c0_i32_2 = arith.constant 0 : i32
    return %arg0, %c0_i32, %c0_i32_0, %c0_i32_1 : i32, i32, i32, i32
  }
  func.func @transform_9(%arg0: i32) -> (i32, i32, i32, i32) {
    %c0_i32 = arith.constant 0 : i32
    %c0_i32_0 = arith.constant 0 : i32
    %c0_i32_1 = arith.constant 0 : i32
    %c0_i32_2 = arith.constant 0 : i32
    return %arg0, %c0_i32, %c0_i32_0, %c0_i32_1 : i32, i32, i32, i32
  }
}

</mosaic_0001>

<llo_original>
// kernel: tpu_custom_call.1
$region0: #{tpu_custom_call.1}
  #allocation0 [shape = 'u32[]', space=smem, size = 0x4, offset = 0x4, fixed_abs, tag = 'smem constant byte address 0x4 - core index']
  #allocation1 [shape = 'u32[72,128]{1,0:T(1,128)}', space=vmem, size = 0x9000, scoped, tag = 'internal scratch']
  #allocation2 [shape = 'f32[2,20,20]{2,1,0:T(8,128)}', space=vmem, size = 0x6000, scoped, tag = 'scratch operand']
  #allocation3 [shape = 'f32[8,18,18]{2,1,0:T(8,128)}', space=vmem, size = 0x18000, scoped, tag = 'scratch operand']
  %s0 = inlined_call_operand.hbm [shape: f32[2,4,16,16], index: 0, kind: input, shape index: {}]
  %s1 = inlined_call_operand.hbm [shape: f32[2,4,16,16], index: 1, kind: input, shape index: {}]
  %s2 = inlined_call_operand.hbm [shape: f32[2,4,16,16], index: 2, kind: input, shape index: {}]
  %s3 = inlined_call_operand.hbm [shape: f32[2,4,16,16], index: 3, kind: input, shape index: {}]
  %s4 = inlined_call_operand.vmem [shape: f32[144], index: 4, kind: input, shape index: {}]
  %s5 = inlined_call_operand.hbm [shape: f32[8], index: 5, kind: input, shape index: {}]
  %s6 = inlined_call_operand.vmem [shape: f32[144], index: 6, kind: input, shape index: {}]
  %s7 = inlined_call_operand.vmem [shape: f32[2], index: 7, kind: input, shape index: {}]
  %s8 = inlined_call_operand.hbm [shape: f32[2,4,16,16], index: 8, kind: output, shape index: {0}]
  %s9 = inlined_call_operand.hbm [shape: f32[2,4,16,16], index: 9, kind: output, shape index: {1}]
  %10 = xla_tuple %s8, %s9
  %s11 = sld [smem:[#allocation0]]
  $region105: #{tpu_custom_call.1} parent=0
    _
  %s13 = ssub.s32 1, %s11
  %s14 = scalar_select 0, %s13, %s11
  $region1: #{tpu_custom_call.1} parent=0
    #allocation4 [shape = 'u8[65536]{0}', space=vmem, size = 0x10000, scoped, tag = 'input window, operand 0']
    #allocation5 [shape = 's32[2]{0}', space=sflag, size = 0x8, scoped, tag = 'scoped memory for tpu_custom_call.1']
    #allocation6 [shape = 's32[2]{0}', space=sflag, size = 0x8, scoped, tag = 'scoped memory for tpu_custom_call.1']
    #allocation7 [shape = 's32[2]{0}', space=sflag, size = 0x8, scoped, tag = 'scoped memory for tpu_custom_call.1']
    #allocation8 [shape = 's32[2]{0}', space=sflag, size = 0x8, scoped, tag = 'scoped memory for tpu_custom_call.1']
    #allocation9 [shape = 'u8[65536]{0}', space=vmem, size = 0x10000, scoped, tag = 'input window, operand 1']
    #allocation10 [shape = 's32[2]{0}', space=sflag, size = 0x8, scoped, tag = 'scoped memory for tpu_custom_call.1']
    #allocation11 [shape = 'u8[65536]{0}', space=vmem, size = 0x10000, scoped, tag = 'input window, operand 2']
    #allocation12 [shape = 'u8[65536]{0}', space=vmem, size = 0x10000, scoped, tag = 'input window, operand 3']
    #allocation13 [shape = 's32[2]{0}', space=sflag, size = 0x8, scoped, tag = 'scoped memory for tpu_custom_call.1']
    #allocation14 [shape = 'u8[1024]{0}', space=smem, size = 0x400, scoped, tag = 'input window, operand 4, single buffered']
    #allocation15 [shape = 'u8[512]{0}', space=smem, size = 0x200, scoped, tag = 'input window, operand 5, single buffered']
    #allocation16 [shape = 'u8[1024]{0}', space=smem, size = 0x400, scoped, tag = 'input window, operand 6, single buffered']
    #allocation17 [shape = 's32[1]{0}', space=sflag, size = 0x4, scoped, tag = 'scoped memory for tpu_custom_call.1']
    #allocation18 [shape = 'u8[512]{0}', space=smem, size = 0x200, scoped, tag = 'input window, operand 7, single buffered']
    #allocation19 [shape = 'u8[65536]{0}', space=vmem, size = 0x10000, scoped, tag = 'output window, operand 0']
    #allocation20 [shape = 'u8[65536]{0}', space=vmem, size = 0x10000, scoped, tag = 'output window, operand 1']
    #allocation21 [shape = 's32[2]{0}', space=sflag, size = 0x8, scoped, tag = 'scoped memory for tpu_custom_call.1']
    %15 = vsyncpa [#allocation5], 0
    %s16 = scalar_lea.sflag [#allocation5], 1
    %17 = vsyncpa %s16, 0
    %18 = vsyncpa [#allocation10], 0
    %s19 = scalar_lea.sflag [#allocation10], 1
    %20 = vsyncpa %s19, 0
    %21 = vsyncpa [#allocation13], 0
    %s22 = scalar_lea.sflag [#allocation13], 1
    %23 = vsyncpa %s22, 0
    %24 = vsyncpa [#allocation8], 0
    %25 = vsyncpa [#allocation7], 0
    %26 = vsyncpa [#allocation17], 0
    %27 = vsyncpa [#allocation6], 0
    %s28 = scalar_lea.sflag [#allocation6], 1
    %29 = vsyncpa %s28, 0
    %30 = vsyncpa [#allocation21], 0
    %s31 = scalar_lea.sflag [#allocation21], 1
    %32 = vsyncpa %s31, 0
    loop: start=0, step=1, limit=4
    $region2: #{tpu_custom_call.1} parent=1 // loop_pre_header
      _
    $region3: #{tpu_custom_call.1} parent=1 // loop_header
      %s34 = sphi 0, %s38
      %p35 = scmp.ge.s32.totalorder %s34, 4
      %s44 = sphi 0, %s46
      %s47 = sphi 0, %s44
      %s48 = sphi 0, %s47
      %s64 = sphi 0, %s48
      %s70 = sphi 0, %s72
      %s73 = sphi 0, %s70
      %s74 = sphi 0, %s73
      %s90 = sphi 0, %s74
      %s96 = sphi 0, %s98
      %s99 = sphi 0, %s96
      %s100 = sphi 0, %s99
      %s116 = sphi 0, %s100
      %s122 = sphi 0, %s124
      %s125 = sphi 0, %s122
      %s126 = sphi 0, %s125
      %s142 = sphi 0, %s126
      %s146 = sphi 0, %s146
      %s148 = sphi 0, %s146
      %s149 = sphi 0, %s148
      %s163 = sphi 0, %s149
      %s167 = sphi 0, %s167
      %s169 = sphi 0, %s167
      %s170 = sphi 0, %s169
      %s184 = sphi 0, %s170
      %s188 = sphi 0, %s188
      %s190 = sphi 0, %s188
      %s191 = sphi 0, %s190
      %s205 = sphi 0, %s191
      %s209 = sphi 0, %s209
      %s211 = sphi 0, %s209
      %s212 = sphi 0, %s211
      %s226 = sphi 0, %s212
      %s232 = sphi 0, %s234
      %s235 = sphi 0, %s232
      %s236 = sphi 0, %s235
      %s252 = sphi 0, %s236
      %s258 = sphi 0, %s260
      %s261 = sphi 0, %s258
      %s262 = sphi 0, %s261
      %s278 = sphi 0, %s262
    $region4: #{tpu_custom_call.1} parent=1 // loop_header_branch
      %37 = sbr.rel (%p35) target = $region8
    $region5: #{tpu_custom_call.1} parent=1 // loop_body
      %s39 = ssub.s32 %s34, 1
      %s40 = ssub.s32 %s34, 2
      %s41 = sadd.s32 %s34, 1
      %s42 = ssub.s32 %s34, %s41
      %p43 = scmp.eq.s32.totalorder %s42, 0
      %s45 = sadd.s32 %s44, 1
      %s46 = scalar_select %p43, %s44, %s45
      %p49 = pneg %p43
      %p50 = scmp.eq.s32.totalorder %s34, 1
      %p51 = por %p49, %p50
      %p52 = scmp.ne.s32.totalorder %s44, %s47
      %p53 = scmp.eq.s32.totalorder %s34, 0
      %p54 = por %p52, %p53
      %p55 = scmp.ne.s32.totalorder %s44, %s47
      %p56 = scmp.eq.s32.totalorder %s39, 1
      %p57 = por %p55, %p56
      %p58 = scmp.ne.s32.totalorder %s47, %s48
      %p59 = scmp.eq.s32.totalorder %s39, 0
      %p60 = por %p58, %p59
      %p61 = scmp.ne.s32.totalorder %s47, %s48
      %p62 = scmp.eq.s32.totalorder %s40, 1
      %p63 = por %p61, %p62
      %p65 = scmp.ne.s32.totalorder %s48, %s64
      %p66 = scmp.eq.s32.totalorder %s40, 0
      %p67 = por %p65, %p66
      %s68 = ssub.s32 %s34, %s41
      %p69 = scmp.eq.s32.totalorder %s68, 0
      %s71 = sadd.s32 %s70, 1
      %s72 = scalar_select %p69, %s70, %s71
      %p75 = pneg %p69
      %p76 = scmp.eq.s32.totalorder %s34, 1
      %p77 = por %p75, %p76
      %p78 = scmp.ne.s32.totalorder %s70, %s73
      %p79 = scmp.eq.s32.totalorder %s34, 0
      %p80 = por %p78, %p79
      %p81 = scmp.ne.s32.totalorder %s70, %s73
      %p82 = scmp.eq.s32.totalorder %s39, 1
      %p83 = por %p81, %p82
      %p84 = scmp.ne.s32.totalorder %s73, %s74
      %p85 = scmp.eq.s32.totalorder %s39, 0
      %p86 = por %p84, %p85
      %p87 = scmp.ne.s32.totalorder %s73, %s74
      %p88 = scmp.eq.s32.totalorder %s40, 1
      %p89 = por %p87, %p88
      %p91 = scmp.ne.s32.totalorder %s74, %s90
      %p92 = scmp.eq.s32.totalorder %s40, 0
      %p93 = por %p91, %p92
      %s94 = ssub.s32 %s34, %s41
      %p95 = scmp.eq.s32.totalorder %s94, 0
      %s97 = sadd.s32 %s96, 1
      %s98 = scalar_select %p95, %s96, %s97
      %p101 = pneg %p95
      %p102 = scmp.eq.s32.totalorder %s34, 1
      %p103 = por %p101, %p102
      %p104 = scmp.ne.s32.totalorder %s96, %s99
      %p105 = scmp.eq.s32.totalorder %s34, 0
      %p106 = por %p104, %p105
      %p107 = scmp.ne.s32.totalorder %s96, %s99
      %p108 = scmp.eq.s32.totalorder %s39, 1
      %p109 = por %p107, %p108
      %p110 = scmp.ne.s32.totalorder %s99, %s100
      %p111 = scmp.eq.s32.totalorder %s39, 0
      %p112 = por %p110, %p111
      %p113 = scmp.ne.s32.totalorder %s99, %s100
      %p114 = scmp.eq.s32.totalorder %s40, 1
      %p115 = por %p113, %p114
      %p117 = scmp.ne.s32.totalorder %s100, %s116
      %p118 = scmp.eq.s32.totalorder %s40, 0
      %p119 = por %p117, %p118
      %s120 = ssub.s32 %s34, %s41
      %p121 = scmp.eq.s32.totalorder %s120, 0
      %s123 = sadd.s32 %s122, 1
      %s124 = scalar_select %p121, %s122, %s123
      %p127 = pneg %p121
      %p128 = scmp.eq.s32.totalorder %s34, 1
      %p129 = por %p127, %p128
      %p130 = scmp.ne.s32.totalorder %s122, %s125
      %p131 = scmp.eq.s32.totalorder %s34, 0
      %p132 = por %p130, %p131
      %p133 = scmp.ne.s32.totalorder %s122, %s125
      %p134 = scmp.eq.s32.totalorder %s39, 1
      %p135 = por %p133, %p134
      %p136 = scmp.ne.s32.totalorder %s125, %s126
      %p137 = scmp.eq.s32.totalorder %s39, 0
      %p138 = por %p136, %p137
      %p139 = scmp.ne.s32.totalorder %s125, %s126
      %p140 = scmp.eq.s32.totalorder %s40, 1
      %p141 = por %p139, %p140
      %p143 = scmp.ne.s32.totalorder %s126, %s142
      %p144 = scmp.eq.s32.totalorder %s40, 0
      %p145 = por %p143, %p144
      %s147 = sadd.s32 %s146, 1
      %p150 = scmp.eq.s32.totalorder %s34, 1
      %p151 = scmp.ne.s32.totalorder %s146, %s148
      %p152 = scmp.eq.s32.totalorder %s34, 0
      %p153 = por %p151, %p152
      %p154 = scmp.ne.s32.totalorder %s146, %s148
      %p155 = scmp.eq.s32.totalorder %s39, 1
      %p156 = por %p154, %p155
      %p157 = scmp.ne.s32.totalorder %s148, %s149
      %p158 = scmp.eq.s32.totalorder %s39, 0
      %p159 = por %p157, %p158
      %p160 = scmp.ne.s32.totalorder %s148, %s149
      %p161 = scmp.eq.s32.totalorder %s40, 1
      %p162 = por %p160, %p161
      %p164 = scmp.ne.s32.totalorder %s149, %s163
      %p165 = scmp.eq.s32.totalorder %s40, 0
      %p166 = por %p164, %p165
      %s168 = sadd.s32 %s167, 1
      %p171 = scmp.eq.s32.totalorder %s34, 1
      %p172 = scmp.ne.s32.totalorder %s167, %s169
      %p173 = scmp.eq.s32.totalorder %s34, 0
      %p174 = por %p172, %p173
      %p175 = scmp.ne.s32.totalorder %s167, %s169
      %p176 = scmp.eq.s32.totalorder %s39, 1
      %p177 = por %p175, %p176
      %p178 = scmp.ne.s32.totalorder %s169, %s170
      %p179 = scmp.eq.s32.totalorder %s39, 0
      %p180 = por %p178, %p179
      %p181 = scmp.ne.s32.totalorder %s169, %s170
      %p182 = scmp.eq.s32.totalorder %s40, 1
      %p183 = por %p181, %p182
      %p185 = scmp.ne.s32.totalorder %s170, %s184
      %p186 = scmp.eq.s32.totalorder %s40, 0
      %p187 = por %p185, %p186
      %s189 = sadd.s32 %s188, 1
      %p192 = scmp.eq.s32.totalorder %s34, 1
      %p193 = scmp.ne.s32.totalorder %s188, %s190
      %p194 = scmp.eq.s32.totalorder %s34, 0
      %p195 = por %p193, %p194
      %p196 = scmp.ne.s32.totalorder %s188, %s190
      %p197 = scmp.eq.s32.totalorder %s39, 1
      %p198 = por %p196, %p197
      %p199 = scmp.ne.s32.totalorder %s190, %s191
      %p200 = scmp.eq.s32.totalorder %s39, 0
      %p201 = por %p199, %p200
      %p202 = scmp.ne.s32.totalorder %s190, %s191
      %p203 = scmp.eq.s32.totalorder %s40, 1
      %p204 = por %p202, %p203
      %p206 = scmp.ne.s32.totalorder %s191, %s205
      %p207 = scmp.eq.s32.totalorder %s40, 0
      %p208 = por %p206, %p207
      %s210 = sadd.s32 %s209, 1
      %p213 = scmp.eq.s32.totalorder %s34, 1
      %p214 = scmp.ne.s32.totalorder %s209, %s211
      %p215 = scmp.eq.s32.totalorder %s34, 0
      %p216 = por %p214, %p215
      %p217 = scmp.ne.s32.totalorder %s209, %s211
      %p218 = scmp.eq.s32.totalorder %s39, 1
      %p219 = por %p217, %p218
      %p220 = scmp.ne.s32.totalorder %s211, %s212
      %p221 = scmp.eq.s32.totalorder %s39, 0
      %p222 = por %p220, %p221
      %p223 = scmp.ne.s32.totalorder %s211, %s212
      %p224 = scmp.eq.s32.totalorder %s40, 1
      %p225 = por %p223, %p224
      %p227 = scmp.ne.s32.totalorder %s212, %s226
      %p228 = scmp.eq.s32.totalorder %s40, 0
      %p229 = por %p227, %p228
      %s230 = ssub.s32 %s34, %s41
      %p231 = scmp.eq.s32.totalorder %s230, 0
      %s233 = sadd.s32 %s232, 1
      %s234 = scalar_select %p231, %s232, %s233
      %p237 = pneg %p231
      %p238 = scmp.eq.s32.totalorder %s34, 1
      %p239 = por %p237, %p238
      %p240 = scmp.ne.s32.totalorder %s232, %s235
      %p241 = scmp.eq.s32.totalorder %s34, 0
      %p242 = por %p240, %p241
      %p243 = scmp.ne.s32.totalorder %s232, %s235
      %p244 = scmp.eq.s32.totalorder %s39, 1
      %p245 = por %p243, %p244
      %p246 = scmp.ne.s32.totalorder %s235, %s236
      %p247 = scmp.eq.s32.totalorder %s39, 0
      %p248 = por %p246, %p247
      %p249 = scmp.ne.s32.totalorder %s235, %s236
      %p250 = scmp.eq.s32.totalorder %s40, 1
      %p251 = por %p249, %p250
      %p253 = scmp.ne.s32.totalorder %s236, %s252
      %p254 = scmp.eq.s32.totalorder %s40, 0
      %p255 = por %p253, %p254
      %s256 = ssub.s32 %s34, %s41
      %p257 = scmp.eq.s32.totalorder %s256, 0
      %s259 = sadd.s32 %s258, 1
      %s260 = scalar_select %p257, %s258, %s259
      %p263 = pneg %p257
      %p264 = scmp.eq.s32.totalorder %s34, 1
      %p265 = por %p263, %p264
      %p266 = scmp.ne.s32.totalorder %s258, %s261
      %p267 = scmp.eq.s32.totalorder %s34, 0
      %p268 = por %p266, %p267
      %p269 = scmp.ne.s32.totalorder %s258, %s261
      %p270 = scmp.eq.s32.totalorder %s39, 1
      %p271 = por %p269, %p270
      %p272 = scmp.ne.s32.totalorder %s261, %s262
      %p273 = scmp.eq.s32.totalorder %s39, 0
      %p274 = por %p272, %p273
      %p275 = scmp.ne.s32.totalorder %s261, %s262
      %p276 = scmp.eq.s32.totalorder %s40, 1
      %p277 = por %p275, %p276
      %p279 = scmp.ne.s32.totalorder %s262, %s278
      %p280 = scmp.eq.s32.totalorder %s40, 0
      %p281 = por %p279, %p280
      %p282 = scmp.le.s32.totalorder 1, %s34
      %p283 = scmp.lt.s32.totalorder %s34, 3
      %p284 = pnand %p282, %p283
      %p285 = pneg %p284
      // Predicated region
      $region9: #{tpu_custom_call.1} parent=5 // pred_check
        _
      $region10: #{tpu_custom_call.1} parent=5 // pred_check_branch
        %287 = sbr.rel (%p284) target = $region12
      $region11: #{tpu_custom_call.1} parent=5 // pred_region
        %s288 = ssub.s32 %s34, 1
        // Predicated region
        $region13: #{tpu_custom_call.1} parent=11 // pred_check
          %p289 = pneg %p159
        $region14: #{tpu_custom_call.1} parent=11 // pred_check_branch
          %291 = sbr.rel (%p289) target = $region16
        $region15: #{tpu_custom_call.1} parent=11 // pred_region
          %293 = vsyncadd [#allocation8], 0
          %s295 = sshll.u32 %s4, 4
          %s296 = int_to_ptr.vmem [resolvable:$true] %s295
          %298 = dma.vmem_to_smem %s296, 32, [#allocation14], [#allocation8]
        $region16: #{tpu_custom_call.1} parent=11 // pred_fallthru
          _
        // Predicated region
        $region17: #{tpu_custom_call.1} parent=11 // pred_check
          %p299 = pneg %p180
        $region18: #{tpu_custom_call.1} parent=11 // pred_check_branch
          %301 = sbr.rel (%p299) target = $region20
        $region19: #{tpu_custom_call.1} parent=11 // pred_region
          %303 = vsyncadd [#allocation7], 0
          %s305 = sshll.u32 %s5, 4
          %s306 = int_to_ptr.hbm [resolvable:$true] %s305
          %308 = dma.hbm_to_smem %s306, 16, [#allocation15], [#allocation7]
        $region20: #{tpu_custom_call.1} parent=11 // pred_fallthru
          _
        // Predicated region
        $region21: #{tpu_custom_call.1} parent=11 // pred_check
          %p309 = pneg %p201
        $region22: #{tpu_custom_call.1} parent=11 // pred_check_branch
          %311 = sbr.rel (%p309) target = $region24
        $region23: #{tpu_custom_call.1} parent=11 // pred_region
          %313 = vsyncadd [#allocation17], 0
          %s315 = sshll.u32 %s6, 4
          %s316 = int_to_ptr.vmem [resolvable:$true] %s315
          %318 = dma.vmem_to_smem %s316, 32, [#allocation16], [#allocation17]
        $region24: #{tpu_custom_call.1} parent=11 // pred_fallthru
          _
        // Predicated region
        $region25: #{tpu_custom_call.1} parent=11 // pred_check
          %p319 = pneg %p222
        $region26: #{tpu_custom_call.1} parent=11 // pred_check_branch
          %321 = sbr.rel (%p319) target = $region28
        $region27: #{tpu_custom_call.1} parent=11 // pred_region
          %323 = vsyncadd [#allocation17], 0
          %s325 = sshll.u32 %s7, 4
          %s326 = int_to_ptr.vmem [resolvable:$true] %s325
          %328 = dma.vmem_to_smem %s326, 16, [#allocation18], [#allocation17]
        $region28: #{tpu_custom_call.1} parent=11 // pred_fallthru
          _
      $region12: #{tpu_custom_call.1} parent=5 // pred_fallthru
        _
      %p329 = scmp.lt.s32.totalorder %s34, 2
      // Predicated region
      $region29: #{tpu_custom_call.1} parent=5 // pred_check
        %p330 = pneg %p329
      $region30: #{tpu_custom_call.1} parent=5 // pred_check_branch
        %332 = sbr.rel (%p330) target = $region32
      $region31: #{tpu_custom_call.1} parent=5 // pred_region
        // Predicated region
        $region33: #{tpu_custom_call.1} parent=31 // pred_check
          %p333 = pneg %p54
        $region34: #{tpu_custom_call.1} parent=31 // pred_check_branch
          %335 = sbr.rel (%p333) target = $region36
        $region35: #{tpu_custom_call.1} parent=31 // pred_region
          %s336 = sand.u32 %s44, 1
          %s337 = scalar_lea.sflag [#allocation5], %s336
          %s338 = sand.u32 %s44, 1
          %s339 = smul.addr %s338, 64
          %s340 = scalar_lea.vmem [#allocation4], %s339
          %342 = vsyncadd %s337, 0
          %s343 = smul.addr %s34, 8
          %s344 = smul.addr %s343, 8
          %s345 = scalar_lea.hbm %s0, %s344
          %s346 = sshll.u32 %s345, 4
          %s347 = int_to_ptr.hbm [resolvable:$true] %s346
          %s348 = sshll.u32 %s340, 4
          %s349 = int_to_ptr.vmem [resolvable:$true] %s348
          %354 = dma.hbm_to_vmem [thread:$0]  %s347, 1024, %s349, %s337, 128, 128, 8
        $region36: #{tpu_custom_call.1} parent=31 // pred_fallthru
          _
        // Predicated region
        $region37: #{tpu_custom_call.1} parent=31 // pred_check
          %p355 = pneg %p80
        $region38: #{tpu_custom_call.1} parent=31 // pred_check_branch
          %357 = sbr.rel (%p355) target = $region40
        $region39: #{tpu_custom_call.1} parent=31 // pred_region
          %s358 = sand.u32 %s34, 1
          %s359 = scalar_lea.sflag [#allocation10], %s358
          %s360 = sand.u32 %s70, 1
          %s361 = smul.addr %s360, 64
          %s362 = scalar_lea.vmem [#allocation9], %s361
          %364 = vsyncadd %s359, 0
          %s365 = smul.addr %s34, 8
          %s366 = smul.addr %s365, 8
          %s367 = scalar_lea.hbm %s1, %s366
          %s368 = sshll.u32 %s367, 4
          %s369 = int_to_ptr.hbm [resolvable:$true] %s368
          %s370 = sshll.u32 %s362, 4
          %s371 = int_to_ptr.vmem [resolvable:$true] %s370
          %376 = dma.hbm_to_vmem [thread:$0]  %s369, 1024, %s371, %s359, 128, 128, 8
        $region40: #{tpu_custom_call.1} parent=31 // pred_fallthru
          _
        // Predicated region
        $region41: #{tpu_custom_call.1} parent=31 // pred_check
          %p377 = pneg %p106
        $region42: #{tpu_custom_call.1} parent=31 // pred_check_branch
          %379 = sbr.rel (%p377) target = $region44
        $region43: #{tpu_custom_call.1} parent=31 // pred_region
          %s380 = sand.u32 %s34, 1
          %s381 = scalar_lea.sflag [#allocation10], %s380
          %s382 = sand.u32 %s96, 1
          %s383 = smul.addr %s382, 64
          %s384 = scalar_lea.vmem [#allocation11], %s383
          %386 = vsyncadd %s381, 0
          %s387 = smul.addr %s34, 8
          %s388 = smul.addr %s387, 8
          %s389 = scalar_lea.hbm %s2, %s388
          %s390 = sshll.u32 %s389, 4
          %s391 = int_to_ptr.hbm [resolvable:$true] %s390
          %s392 = sshll.u32 %s384, 4
          %s393 = int_to_ptr.vmem [resolvable:$true] %s392
          %398 = dma.hbm_to_vmem [thread:$0]  %s391, 1024, %s393, %s381, 128, 128, 8
        $region44: #{tpu_custom_call.1} parent=31 // pred_fallthru
          _
        // Predicated region
        $region45: #{tpu_custom_call.1} parent=31 // pred_check
          %p399 = pneg %p132
        $region46: #{tpu_custom_call.1} parent=31 // pred_check_branch
          %401 = sbr.rel (%p399) target = $region48
        $region47: #{tpu_custom_call.1} parent=31 // pred_region
          %s402 = sand.u32 %s122, 1
          %s403 = scalar_lea.sflag [#allocation13], %s402
          %s404 = sand.u32 %s122, 1
          %s405 = smul.addr %s404, 64
          %s406 = scalar_lea.vmem [#allocation12], %s405
          %408 = vsyncadd %s403, 0
          %s409 = smul.addr %s34, 8
          %s410 = smul.addr %s409, 8
          %s411 = scalar_lea.hbm %s3, %s410
          %s412 = sshll.u32 %s411, 4
          %s413 = int_to_ptr.hbm [resolvable:$true] %s412
          %s414 = sshll.u32 %s406, 4
          %s415 = int_to_ptr.vmem [resolvable:$true] %s414
          %420 = dma.hbm_to_vmem [thread:$0]  %s413, 1024, %s415, %s403, 128, 128, 8
        $region48: #{tpu_custom_call.1} parent=31 // pred_fallthru
          _
      $region32: #{tpu_custom_call.1} parent=5 // pred_fallthru
        _
      %p421 = scmp.le.s32.totalorder 1, %s34
      %p422 = scmp.lt.s32.totalorder %s34, 3
      %p423 = pnand %p421, %p422
      %p424 = pneg %p423
      // Predicated region
      $region49: #{tpu_custom_call.1} parent=5 // pred_check
        _
      $region50: #{tpu_custom_call.1} parent=5 // pred_check_branch
        %426 = sbr.rel (%p423) target = $region52
      $region51: #{tpu_custom_call.1} parent=5 // pred_region
        %s427 = ssub.s32 %s34, 1
        %s428 = sand.u32 %s47, 1
        %s429 = scalar_lea.sflag [#allocation5], %s428
        %s430 = sand.u32 %s47, 1
        %s431 = smul.addr %s430, 64
        %s432 = scalar_lea.vmem [#allocation4], %s431
        // Predicated region
        $region53: #{tpu_custom_call.1} parent=51 // pred_check
          %p433 = pneg %p60
        $region54: #{tpu_custom_call.1} parent=51 // pred_check_branch
          %435 = sbr.rel (%p433) target = $region56
        $region55: #{tpu_custom_call.1} parent=51 // pred_region
          %437 = dma.done %s429, 1024
        $region56: #{tpu_custom_call.1} parent=51 // pred_fallthru
          _
        %s438 = sand.u32 %s39, 1
        %s439 = scalar_lea.sflag [#allocation10], %s438
        %s440 = sand.u32 %s73, 1
        %s441 = smul.addr %s440, 64
        %s442 = scalar_lea.vmem [#allocation9], %s441
        // Predicated region
        $region57: #{tpu_custom_call.1} parent=51 // pred_check
          %p443 = pneg %p86
        $region58: #{tpu_custom_call.1} parent=51 // pred_check_branch
          %445 = sbr.rel (%p443) target = $region60
        $region59: #{tpu_custom_call.1} parent=51 // pred_region
          %447 = dma.done %s439, 1024
        $region60: #{tpu_custom_call.1} parent=51 // pred_fallthru
          _
        %s448 = sand.u32 %s39, 1
        %s449 = scalar_lea.sflag [#allocation10], %s448
        %s450 = sand.u32 %s99, 1
        %s451 = smul.addr %s450, 64
        %s452 = scalar_lea.vmem [#allocation11], %s451
        // Predicated region
        $region61: #{tpu_custom_call.1} parent=51 // pred_check
          %p453 = pneg %p112
        $region62: #{tpu_custom_call.1} parent=51 // pred_check_branch
          %455 = sbr.rel (%p453) target = $region64
        $region63: #{tpu_custom_call.1} parent=51 // pred_region
          %457 = dma.done %s449, 1024
        $region64: #{tpu_custom_call.1} parent=51 // pred_fallthru
          _
        %s458 = sand.u32 %s125, 1
        %s459 = scalar_lea.sflag [#allocation13], %s458
        %s460 = sand.u32 %s125, 1
        %s461 = smul.addr %s460, 64
        %s462 = scalar_lea.vmem [#allocation12], %s461
        // Predicated region
        $region65: #{tpu_custom_call.1} parent=51 // pred_check
          %p463 = pneg %p138
        $region66: #{tpu_custom_call.1} parent=51 // pred_check_branch
          %465 = sbr.rel (%p463) target = $region68
        $region67: #{tpu_custom_call.1} parent=51 // pred_region
          %467 = dma.done %s459, 1024
        $region68: #{tpu_custom_call.1} parent=51 // pred_fallthru
          _
        // Predicated region
        $region69: #{tpu_custom_call.1} parent=51 // pred_check
          %p468 = pneg %p159
        $region70: #{tpu_custom_call.1} parent=51 // pred_check_branch
          %470 = sbr.rel (%p468) target = $region72
        $region71: #{tpu_custom_call.1} parent=51 // pred_region
          %472 = dma.done [#allocation8], 32
        $region72: #{tpu_custom_call.1} parent=51 // pred_fallthru
          _
        // Predicated region
        $region73: #{tpu_custom_call.1} parent=51 // pred_check
          %p473 = pneg %p180
        $region74: #{tpu_custom_call.1} parent=51 // pred_check_branch
          %475 = sbr.rel (%p473) target = $region76
        $region75: #{tpu_custom_call.1} parent=51 // pred_region
          %477 = dma.done [#allocation7], 16
        $region76: #{tpu_custom_call.1} parent=51 // pred_fallthru
          _
        // Predicated region
        $region77: #{tpu_custom_call.1} parent=51 // pred_check
          %p478 = pneg %p201
        $region78: #{tpu_custom_call.1} parent=51 // pred_check_branch
          %480 = sbr.rel (%p478) target = $region80
        $region79: #{tpu_custom_call.1} parent=51 // pred_region
          %482 = dma.done [#allocation17], 32
        $region80: #{tpu_custom_call.1} parent=51 // pred_fallthru
          _
        // Predicated region
        $region81: #{tpu_custom_call.1} parent=51 // pred_check
          %p483 = pneg %p222
        $region82: #{tpu_custom_call.1} parent=51 // pred_check_branch
          %485 = sbr.rel (%p483) target = $region84
        $region83: #{tpu_custom_call.1} parent=51 // pred_region
          %487 = dma.done [#allocation17], 16
        $region84: #{tpu_custom_call.1} parent=51 // pred_fallthru
          _
        %488 = sfence
        %s489 = sand.u32 %s47, 1
        %s490 = scalar_lea.sflag [#allocation5], %s489
        %s491 = sand.u32 %s47, 1
        %s492 = smul.addr %s491, 64
        %s493 = scalar_lea.vmem [#allocation4], %s492
        %p494 = pneg %p60
        %p495 = pneg %p57
        %s496 = sand.u32 %s39, 1
        %s497 = scalar_lea.sflag [#allocation10], %s496
        %s498 = sand.u32 %s73, 1
        %s499 = smul.addr %s498, 64
        %s500 = scalar_lea.vmem [#allocation9], %s499
        %p501 = pneg %p86
        %p502 = pneg %p83
        %s503 = sand.u32 %s39, 1
        %s504 = scalar_lea.sflag [#allocation10], %s503
        %s505 = sand.u32 %s99, 1
        %s506 = smul.addr %s505, 64
        %s507 = scalar_lea.vmem [#allocation11], %s506
        %p508 = pneg %p112
        %p509 = pneg %p109
        %s510 = sand.u32 %s125, 1
        %s511 = scalar_lea.sflag [#allocation13], %s510
        %s512 = sand.u32 %s125, 1
        %s513 = smul.addr %s512, 64
        %s514 = scalar_lea.vmem [#allocation12], %s513
        %p515 = pneg %p138
        %p516 = pneg %p135
        %p517 = pneg %p159
        %p518 = pneg %p156
        %p519 = pneg %p180
        %p520 = pneg %p177
        %p521 = pneg %p201
        %p522 = pneg %p198
        %p523 = pneg %p222
        %p524 = pneg %p219
        %p525 = pneg %p248
        %p526 = pneg %p245
        %s527 = sand.u32 %s235, 1
        %s528 = scalar_lea.sflag [#allocation6], %s527
        %s529 = sand.u32 %s235, 1
        %s530 = smul.addr %s529, 64
        %s531 = scalar_lea.vmem [#allocation19], %s530
        %p532 = pneg %p274
        %p533 = pneg %p271
        %s534 = sand.u32 %s261, 1
        %s535 = scalar_lea.sflag [#allocation21], %s534
        %s536 = sand.u32 %s261, 1
        %s537 = smul.addr %s536, 64
        %s538 = scalar_lea.vmem [#allocation20], %s537
        %v539 = vld [vmem:[%s452] sm:$0xff]
        %v540 = vld [vmem:[%s452 + $0x8] sm:$0xff]
        %v541 = vld [vmem:[%s462] sm:$0xff]
        %v542 = vld [vmem:[%s462 + $0x8] sm:$0xff]
        %v543 = vld [vmem:[%s432] sm:$0xff]
        %v544 = vld [vmem:[%s432 + $0x8] sm:$0xff]
        %v545 = vld [vmem:[%s442] sm:$0xff]
        %v546 = vld [vmem:[%s442 + $0x8] sm:$0xff]
        %v547 = vmul.f32 %v539, %v543
        %v548 = vmul.f32 %v540, %v544
        %v549 = vadd.f32 %v547, 0.0
        %v550 = vadd.f32 %v548, 0.0
        %v551 = vmul.f32 %v541, %v545
        %v552 = vmul.f32 %v542, %v546
        %v553 = vadd.f32 %v549, %v551
        %v554 = vadd.f32 %v550, %v552
        %v555 = vmul.f32 %v539, %v545
        %v556 = vmul.f32 %v540, %v546
        %v557 = vadd.f32 %v555, 0.0
        %v558 = vadd.f32 %v556, 0.0
        %v559 = vmul.f32 %v541, %v543
        %v560 = vmul.f32 %v542, %v544
        %v561 = vsub.f32 %v557, %v559
        %v562 = vsub.f32 %v558, %v560
        %s563 = scalar_lea.vmem %s452, 16 [#allocation11]
        %v564 = vld [vmem:[%s563] sm:$0xff]
        %v565 = vld [vmem:[%s563 + $0x8] sm:$0xff]
        %s566 = scalar_lea.vmem %s462, 16 [#allocation12]
        %v567 = vld [vmem:[%s566] sm:$0xff]
        %v568 = vld [vmem:[%s566 + $0x8] sm:$0xff]
        %s569 = scalar_lea.vmem %s432, 16 [#allocation4]
        %v570 = vld [vmem:[%s569] sm:$0xff]
        %v571 = vld [vmem:[%s569 + $0x8] sm:$0xff]
        %s572 = scalar_lea.vmem %s442, 16 [#allocation9]
        %v573 = vld [vmem:[%s572] sm:$0xff]
        %v574 = vld [vmem:[%s572 + $0x8] sm:$0xff]
        %v575 = vmul.f32 %v564, %v570
        %v576 = vmul.f32 %v565, %v571
        %v577 = vadd.f32 %v553, %v575
        %v578 = vadd.f32 %v554, %v576
        %v579 = vmul.f32 %v567, %v573
        %v580 = vmul.f32 %v568, %v574
        %v581 = vadd.f32 %v577, %v579
        %v582 = vadd.f32 %v578, %v580
        %v583 = vmul.f32 %v564, %v573
        %v584 = vmul.f32 %v565, %v574
        %v585 = vadd.f32 %v561, %v583
        %v586 = vadd.f32 %v562, %v584
        %v587 = vmul.f32 %v567, %v570
        %v588 = vmul.f32 %v568, %v571
        %v589 = vsub.f32 %v585, %v587
        %v590 = vsub.f32 %v586, %v588
        %s591 = scalar_lea.vmem %s452, 32 [#allocation11]
        %v592 = vld [vmem:[%s591] sm:$0xff]
        %v593 = vld [vmem:[%s591 + $0x8] sm:$0xff]
        %s594 = scalar_lea.vmem %s462, 32 [#allocation12]
        %v595 = vld [vmem:[%s594] sm:$0xff]
        %v596 = vld [vmem:[%s594 + $0x8] sm:$0xff]
        %s597 = scalar_lea.vmem %s432, 32 [#allocation4]
        %v598 = vld [vmem:[%s597] sm:$0xff]
        %v599 = vld [vmem:[%s597 + $0x8] sm:$0xff]
        %s600 = scalar_lea.vmem %s442, 32 [#allocation9]
        %v601 = vld [vmem:[%s600] sm:$0xff]
        %v602 = vld [vmem:[%s600 + $0x8] sm:$0xff]
        %v603 = vmul.f32 %v592, %v598
        %v604 = vmul.f32 %v593, %v599
        %v605 = vadd.f32 %v581, %v603
        %v606 = vadd.f32 %v582, %v604
        %v607 = vmul.f32 %v595, %v601
        %v608 = vmul.f32 %v596, %v602
        %v609 = vadd.f32 %v605, %v607
        %v610 = vadd.f32 %v606, %v608
        %v611 = vmul.f32 %v592, %v601
        %v612 = vmul.f32 %v593, %v602
        %v613 = vadd.f32 %v589, %v611
        %v614 = vadd.f32 %v590, %v612
        %v615 = vmul.f32 %v595, %v598
        %v616 = vmul.f32 %v596, %v599
        %v617 = vsub.f32 %v613, %v615
        %v618 = vsub.f32 %v614, %v616
        %s619 = scalar_lea.vmem %s452, 48 [#allocation11]
        %v620 = vld [vmem:[%s619] sm:$0xff]
        %v621 = vld [vmem:[%s619 + $0x8] sm:$0xff]
        %s622 = scalar_lea.vmem %s462, 48 [#allocation12]
        %v623 = vld [vmem:[%s622] sm:$0xff]
        %v624 = vld [vmem:[%s622 + $0x8] sm:$0xff]
        %s625 = scalar_lea.vmem %s432, 48 [#allocation4]
        %v626 = vld [vmem:[%s625] sm:$0xff]
        %v627 = vld [vmem:[%s625 + $0x8] sm:$0xff]
        %s628 = scalar_lea.vmem %s442, 48 [#allocation9]
        %v629 = vld [vmem:[%s628] sm:$0xff]
        %v630 = vld [vmem:[%s628 + $0x8] sm:$0xff]
        %v631 = vmul.f32 %v620, %v626
        %v632 = vmul.f32 %v621, %v627
        %v633 = vadd.f32 %v609, %v631
        %v634 = vadd.f32 %v610, %v632
        %v635 = vmul.f32 %v623, %v629
        %v636 = vmul.f32 %v624, %v630
        %v637 = vadd.f32 %v633, %v635
        %v638 = vadd.f32 %v634, %v636
        %v639 = vmul.f32 %v620, %v629
        %v640 = vmul.f32 %v621, %v630
        %v641 = vadd.f32 %v617, %v639
        %v642 = vadd.f32 %v618, %v640
        %v643 = vmul.f32 %v623, %v626
        %v644 = vmul.f32 %v624, %v627
        %v645 = vsub.f32 %v641, %v643
        %v646 = vsub.f32 %v642, %v644
        %vm647 = vcmask 162816
        %648 = vst.msk [vmem:[#allocation2] sm:$0xff] %vm647, 0.0
        %649 = vst.msk [vmem:[#allocation2 + $0x8] sm:$0xff] %vm647, 0.0
        %vm650 = vcmask 158720
        %651 = vst.msk [vmem:[#allocation2 + $0x10] sm:$0xf] %vm650, 0.0
        %652 = vst.msk [vmem:[#allocation2 + $0x18] sm:$0xff] %vm647, 0.0
        %653 = vst.msk [vmem:[#allocation2 + $0x20] sm:$0xff] %vm647, 0.0
        %654 = vst.msk [vmem:[#allocation2 + $0x28] sm:$0xf] %vm650, 0.0
        %657 = vrot.lane.b32.xlu0 %v637, 2
        %v658 = vpop.permute.xlu0 %657
        %659 = vrot.lane.b32.xlu0 %v638, 2
        %v660 = vpop.permute.xlu0 %659
        %vm663 = vcmask 146448
        %664 = vst.msk [vmem:[#allocation2 + $0x2] sm:$0xff] %vm663, %v658
        %665 = vst.msk [vmem:[#allocation2 + $0xa] sm:$0xff] %vm663, %v660
        %668 = vrot.lane.b32.xlu0 %v645, 2
        %v669 = vpop.permute.xlu0 %668
        %670 = vrot.lane.b32.xlu0 %v646, 2
        %v671 = vpop.permute.xlu0 %670
        %s674 = scalar_lea.vmem [#allocation2], 24
        %675 = vst.msk [vmem:[%s674 + $0x2] sm:$0xff] %vm663, %v669
        %676 = vst.msk [vmem:[%s674 + $0xa] sm:$0xff] %vm663, %v671
        %v677 = vld [vmem:[#allocation2] sm:$0xff]
        %v678 = vld [vmem:[#allocation2 + $0x8] sm:$0xff]
        %v679 = vld [vmem:[#allocation2 + $0x10] sm:$0x3]
        %s680 = sld [smem:[#allocation14]]
        %v681 = vstv %s680
        %v682 = vmul.f32 %v681, %v677
        %v683 = vmul.f32 %v681, %v678
        %v684 = vmul.f32 %v681, %v679
        %v685 = vadd.f32 %v682, 0.0
        %v686 = vadd.f32 %v683, 0.0
        %v687 = vadd.f32 %v684, 0.0
        %s688 = sld [smem:[#allocation14 + $0x12]]
        %v689 = vstv %s688
        %v690 = vmul.f32 %v689, %v677
        %v691 = vmul.f32 %v689, %v678
        %v692 = vmul.f32 %v689, %v679
        %v693 = vadd.f32 %v690, 0.0
        %v694 = vadd.f32 %v691, 0.0
        %v695 = vadd.f32 %v692, 0.0
        %s696 = sld [smem:[#allocation14 + $0x24]]
        %v697 = vstv %s696
        %v698 = vmul.f32 %v697, %v677
        %v699 = vmul.f32 %v697, %v678
        %v700 = vmul.f32 %v697, %v679
        %v701 = vadd.f32 %v698, 0.0
        %v702 = vadd.f32 %v699, 0.0
        %v703 = vadd.f32 %v700, 0.0
        %s704 = sld [smem:[#allocation14 + $0x36]]
        %v705 = vstv %s704
        %v706 = vmul.f32 %v705, %v677
        %v707 = vmul.f32 %v705, %v678
        %v708 = vmul.f32 %v705, %v679
        %v709 = vadd.f32 %v706, 0.0
        %v710 = vadd.f32 %v707, 0.0
        %v711 = vadd.f32 %v708, 0.0
        %s712 = sld [smem:[#allocation14 + $0x48]]
        %v713 = vstv %s712
        %v714 = vmul.f32 %v713, %v677
        %v715 = vmul.f32 %v713, %v678
        %v716 = vmul.f32 %v713, %v679
        %v717 = vadd.f32 %v714, 0.0
        %v718 = vadd.f32 %v715, 0.0
        %v719 = vadd.f32 %v716, 0.0
        %s720 = sld [smem:[#allocation14 + $0x5a]]
        %v721 = vstv %s720
        %v722 = vmul.f32 %v721, %v677
        %v723 = vmul.f32 %v721, %v678
        %v724 = vmul.f32 %v721, %v679
        %v725 = vadd.f32 %v722, 0.0
        %v726 = vadd.f32 %v723, 0.0
        %v727 = vadd.f32 %v724, 0.0
        %s728 = sld [smem:[#allocation14 + $0x6c]]
        %v729 = vstv %s728
        %v730 = vmul.f32 %v729, %v677
        %v731 = vmul.f32 %v729, %v678
        %v732 = vmul.f32 %v729, %v679
        %v733 = vadd.f32 %v730, 0.0
        %v734 = vadd.f32 %v731, 0.0
        %v735 = vadd.f32 %v732, 0.0
        %s736 = sld [smem:[#allocation14 + $0x7e]]
        %v737 = vstv %s736
        %v738 = vmul.f32 %v737, %v677
        %v739 = vmul.f32 %v737, %v678
        %v740 = vmul.f32 %v737, %v679
        %v741 = vadd.f32 %v738, 0.0
        %v742 = vadd.f32 %v739, 0.0
        %v743 = vadd.f32 %v740, 0.0
        %s744 = sld [smem:[#allocation14 + $0x1]]
        %v745 = vstv %s744
        %v746 = vmul.f32 %v745, %v677
        %v747 = vmul.f32 %v745, %v678
        %v748 = vmul.f32 %v745, %v679
        %752 = vrot.lane.b32.xlu0 %v746, 127
        %v753 = vpop.permute.xlu0 %752
        %754 = vrot.lane.b32.xlu0 %v747, 127
        %v755 = vpop.permute.xlu0 %754
        %756 = vrot.lane.b32.xlu0 %v748, 127
        %v757 = vpop.permute.xlu0 %756
        %v761 = vadd.f32 %v685, %v753
        %v762 = vadd.f32 %v686, %v755
        %v763 = vadd.f32 %v687, %v757
        %s764 = sld [smem:[#allocation14 + $0x13]]
        %v765 = vstv %s764
        %v766 = vmul.f32 %v765, %v677
        %v767 = vmul.f32 %v765, %v678
        %v768 = vmul.f32 %v765, %v679
        %772 = vrot.lane.b32.xlu0 %v766, 127
        %v773 = vpop.permute.xlu0 %772
        %774 = vrot.lane.b32.xlu0 %v767, 127
        %v775 = vpop.permute.xlu0 %774
        %776 = vrot.lane.b32.xlu0 %v768, 127
        %v777 = vpop.permute.xlu0 %776
        %v781 = vadd.f32 %v693, %v773
        %v782 = vadd.f32 %v694, %v775
        %v783 = vadd.f32 %v695, %v777
        %s784 = sld [smem:[#allocation14 + $0x25]]
        %v785 = vstv %s784
        %v786 = vmul.f32 %v785, %v677
        %v787 = vmul.f32 %v785, %v678
        %v788 = vmul.f32 %v785, %v679
        %792 = vrot.lane.b32.xlu0 %v786, 127
        %v793 = vpop.permute.xlu0 %792
        %794 = vrot.lane.b32.xlu0 %v787, 127
        %v795 = vpop.permute.xlu0 %794
        %796 = vrot.lane.b32.xlu0 %v788, 127
        %v797 = vpop.permute.xlu0 %796
        %v801 = vadd.f32 %v701, %v793
        %v802 = vadd.f32 %v702, %v795
        %v803 = vadd.f32 %v703, %v797
        %s804 = sld [smem:[#allocation14 + $0x37]]
        %v805 = vstv %s804
        %v806 = vmul.f32 %v805, %v677
        %v807 = vmul.f32 %v805, %v678
        %v808 = vmul.f32 %v805, %v679
        %812 = vrot.lane.b32.xlu0 %v806, 127
        %v813 = vpop.permute.xlu0 %812
        %814 = vrot.lane.b32.xlu0 %v807, 127
        %v815 = vpop.permute.xlu0 %814
        %816 = vrot.lane.b32.xlu0 %v808, 127
        %v817 = vpop.permute.xlu0 %816
        %v821 = vadd.f32 %v709, %v813
        %v822 = vadd.f32 %v710, %v815
        %v823 = vadd.f32 %v711, %v817
        %s824 = sld [smem:[#allocation14 + $0x49]]
        %v825 = vstv %s824
        %v826 = vmul.f32 %v825, %v677
        %v827 = vmul.f32 %v825, %v678
        %v828 = vmul.f32 %v825, %v679
        %832 = vrot.lane.b32.xlu0 %v826, 127
        %v833 = vpop.permute.xlu0 %832
        %834 = vrot.lane.b32.xlu0 %v827, 127
        %v835 = vpop.permute.xlu0 %834
        %836 = vrot.lane.b32.xlu0 %v828, 127
        %v837 = vpop.permute.xlu0 %836
        %v841 = vadd.f32 %v717, %v833
        %v842 = vadd.f32 %v718, %v835
        %v843 = vadd.f32 %v719, %v837
        %s844 = sld [smem:[#allocation14 + $0x5b]]
        %v845 = vstv %s844
        %v846 = vmul.f32 %v845, %v677
        %v847 = vmul.f32 %v845, %v678
        %v848 = vmul.f32 %v845, %v679
        %852 = vrot.lane.b32.xlu0 %v846, 127
        %v853 = vpop.permute.xlu0 %852
        %854 = vrot.lane.b32.xlu0 %v847, 127
        %v855 = vpop.permute.xlu0 %854
        %856 = vrot.lane.b32.xlu0 %v848, 127
        %v857 = vpop.permute.xlu0 %856
        %v861 = vadd.f32 %v725, %v853
        %v862 = vadd.f32 %v726, %v855
        %v863 = vadd.f32 %v727, %v857
        %s864 = sld [smem:[#allocation14 + $0x6d]]
        %v865 = vstv %s864
        %v866 = vmul.f32 %v865, %v677
        %v867 = vmul.f32 %v865, %v678
        %v868 = vmul.f32 %v865, %v679
        %872 = vrot.lane.b32.xlu0 %v866, 127
        %v873 = vpop.permute.xlu0 %872
        %874 = vrot.lane.b32.xlu0 %v867, 127
        %v875 = vpop.permute.xlu0 %874
        %876 = vrot.lane.b32.xlu0 %v868, 127
        %v877 = vpop.permute.xlu0 %876
        %v881 = vadd.f32 %v733, %v873
        %v882 = vadd.f32 %v734, %v875
        %v883 = vadd.f32 %v735, %v877
        %s884 = sld [smem:[#allocation14 + $0x7f]]
        %v885 = vstv %s884
        %v886 = vmul.f32 %v885, %v677
        %v887 = vmul.f32 %v885, %v678
        %v888 = vmul.f32 %v885, %v679
        %892 = vrot.lane.b32.xlu0 %v886, 127
        %v893 = vpop.permute.xlu0 %892
        %894 = vrot.lane.b32.xlu0 %v887, 127
        %v895 = vpop.permute.xlu0 %894
        %896 = vrot.lane.b32.xlu0 %v888, 127
        %v897 = vpop.permute.xlu0 %896
        %v901 = vadd.f32 %v741, %v893
        %v902 = vadd.f32 %v742, %v895
        %v903 = vadd.f32 %v743, %v897
        %s904 = sld [smem:[#allocation14 + $0x2]]
        %v905 = vstv %s904
        %v906 = vmul.f32 %v905, %v677
        %v907 = vmul.f32 %v905, %v678
        %v908 = vmul.f32 %v905, %v679
        %912 = vrot.lane.b32.xlu0 %v906, 126
        %v913 = vpop.permute.xlu0 %912
        %914 = vrot.lane.b32.xlu0 %v907, 126
        %v915 = vpop.permute.xlu0 %914
        %916 = vrot.lane.b32.xlu0 %v908, 126
        %v917 = vpop.permute.xlu0 %916
        %v921 = vadd.f32 %v761, %v913
        %v922 = vadd.f32 %v762, %v915
        %v923 = vadd.f32 %v763, %v917
        %s924 = sld [smem:[#allocation14 + $0x14]]
        %v925 = vstv %s924
        %v926 = vmul.f32 %v925, %v677
        %v927 = vmul.f32 %v925, %v678
        %v928 = vmul.f32 %v925, %v679
        %932 = vrot.lane.b32.xlu0 %v926, 126
        %v933 = vpop.permute.xlu0 %932
        %934 = vrot.lane.b32.xlu0 %v927, 126
        %v935 = vpop.permute.xlu0 %934
        %936 = vrot.lane.b32.xlu0 %v928, 126
        %v937 = vpop.permute.xlu0 %936
        %v941 = vadd.f32 %v781, %v933
        %v942 = vadd.f32 %v782, %v935
        %v943 = vadd.f32 %v783, %v937
        %s944 = sld [smem:[#allocation14 + $0x26]]
        %v945 = vstv %s944
        %v946 = vmul.f32 %v945, %v677
        %v947 = vmul.f32 %v945, %v678
        %v948 = vmul.f32 %v945, %v679
        %952 = vrot.lane.b32.xlu0 %v946, 126
        %v953 = vpop.permute.xlu0 %952
        %954 = vrot.lane.b32.xlu0 %v947, 126
        %v955 = vpop.permute.xlu0 %954
        %956 = vrot.lane.b32.xlu0 %v948, 126
        %v957 = vpop.permute.xlu0 %956
        %v961 = vadd.f32 %v801, %v953
        %v962 = vadd.f32 %v802, %v955
        %v963 = vadd.f32 %v803, %v957
        %s964 = sld [smem:[#allocation14 + $0x38]]
        %v965 = vstv %s964
        %v966 = vmul.f32 %v965, %v677
        %v967 = vmul.f32 %v965, %v678
        %v968 = vmul.f32 %v965, %v679
        %972 = vrot.lane.b32.xlu0 %v966, 126
        %v973 = vpop.permute.xlu0 %972
        %974 = vrot.lane.b32.xlu0 %v967, 126
        %v975 = vpop.permute.xlu0 %974
        %976 = vrot.lane.b32.xlu0 %v968, 126
        %v977 = vpop.permute.xlu0 %976
        %v981 = vadd.f32 %v821, %v973
        %v982 = vadd.f32 %v822, %v975
        %v983 = vadd.f32 %v823, %v977
        %s984 = sld [smem:[#allocation14 + $0x4a]]
        %v985 = vstv %s984
        %v986 = vmul.f32 %v985, %v677
        %v987 = vmul.f32 %v985, %v678
        %v988 = vmul.f32 %v985, %v679
        %992 = vrot.lane.b32.xlu0 %v986, 126
        %v993 = vpop.permute.xlu0 %992
        %994 = vrot.lane.b32.xlu0 %v987, 126
        %v995 = vpop.permute.xlu0 %994
        %996 = vrot.lane.b32.xlu0 %v988, 126
        %v997 = vpop.permute.xlu0 %996
        %v1001 = vadd.f32 %v841, %v993
        %v1002 = vadd.f32 %v842, %v995
        %v1003 = vadd.f32 %v843, %v997
        %s1004 = sld [smem:[#allocation14 + $0x5c]]
        %v1005 = vstv %s1004
        %v1006 = vmul.f32 %v1005, %v677
        %v1007 = vmul.f32 %v1005, %v678
        %v1008 = vmul.f32 %v1005, %v679
        %1012 = vrot.lane.b32.xlu0 %v1006, 126
        %v1013 = vpop.permute.xlu0 %1012
        %1014 = vrot.lane.b32.xlu0 %v1007, 126
        %v1015 = vpop.permute.xlu0 %1014
        %1016 = vrot.lane.b32.xlu0 %v1008, 126
        %v1017 = vpop.permute.xlu0 %1016
        %v1021 = vadd.f32 %v861, %v1013
        %v1022 = vadd.f32 %v862, %v1015
        %v1023 = vadd.f32 %v863, %v1017
        %s1024 = sld [smem:[#allocation14 + $0x6e]]
        %v1025 = vstv %s1024
        %v1026 = vmul.f32 %v1025, %v677
        %v1027 = vmul.f32 %v1025, %v678
        %v1028 = vmul.f32 %v1025, %v679
        %1032 = vrot.lane.b32.xlu0 %v1026, 126
        %v1033 = vpop.permute.xlu0 %1032
        %1034 = vrot.lane.b32.xlu0 %v1027, 126
        %v1035 = vpop.permute.xlu0 %1034
        %1036 = vrot.lane.b32.xlu0 %v1028, 126
        %v1037 = vpop.permute.xlu0 %1036
        %v1041 = vadd.f32 %v881, %v1033
        %v1042 = vadd.f32 %v882, %v1035
        %v1043 = vadd.f32 %v883, %v1037
        %s1044 = sld [smem:[#allocation14 + $0x80]]
        %v1045 = vstv %s1044
        %v1046 = vmul.f32 %v1045, %v677
        %v1047 = vmul.f32 %v1045, %v678
        %v1048 = vmul.f32 %v1045, %v679
        %1052 = vrot.lane.b32.xlu0 %v1046, 126
        %v1053 = vpop.permute.xlu0 %1052
        %1054 = vrot.lane.b32.xlu0 %v1047, 126
        %v1055 = vpop.permute.xlu0 %1054
        %1056 = vrot.lane.b32.xlu0 %v1048, 126
        %v1057 = vpop.permute.xlu0 %1056
        %v1061 = vadd.f32 %v901, %v1053
        %v1062 = vadd.f32 %v902, %v1055
        %v1063 = vadd.f32 %v903, %v1057
        %v1064 = vld [vmem:[#allocation2 + $0x1] sm:$0xff]
        %v1065 = vld [vmem:[#allocation2 + $0x9] sm:$0xff]
        %v1066 = vld [vmem:[#allocation2 + $0x11] sm:$0x3]
        %s1067 = sld [smem:[#allocation14 + $0x3]]
        %v1068 = vstv %s1067
        %v1069 = vmul.f32 %v1068, %v1064
        %v1070 = vmul.f32 %v1068, %v1065
        %v1071 = vmul.f32 %v1068, %v1066
        %v1072 = vadd.f32 %v921, %v1069
        %v1073 = vadd.f32 %v922, %v1070
        %v1074 = vadd.f32 %v923, %v1071
        %s1075 = sld [smem:[#allocation14 + $0x15]]
        %v1076 = vstv %s1075
        %v1077 = vmul.f32 %v1076, %v1064
        %v1078 = vmul.f32 %v1076, %v1065
        %v1079 = vmul.f32 %v1076, %v1066
        %v1080 = vadd.f32 %v941, %v1077
        %v1081 = vadd.f32 %v942, %v1078
        %v1082 = vadd.f32 %v943, %v1079
        %s1083 = sld [smem:[#allocation14 + $0x27]]
        %v1084 = vstv %s1083
        %v1085 = vmul.f32 %v1084, %v1064
        %v1086 = vmul.f32 %v1084, %v1065
        %v1087 = vmul.f32 %v1084, %v1066
        %v1088 = vadd.f32 %v961, %v1085
        %v1089 = vadd.f32 %v962, %v1086
        %v1090 = vadd.f32 %v963, %v1087
        %s1091 = sld [smem:[#allocation14 + $0x39]]
        %v1092 = vstv %s1091
        %v1093 = vmul.f32 %v1092, %v1064
        %v1094 = vmul.f32 %v1092, %v1065
        %v1095 = vmul.f32 %v1092, %v1066
        %v1096 = vadd.f32 %v981, %v1093
        %v1097 = vadd.f32 %v982, %v1094
        %v1098 = vadd.f32 %v983, %v1095
        %s1099 = sld [smem:[#allocation14 + $0x4b]]
        %v1100 = vstv %s1099
        %v1101 = vmul.f32 %v1100, %v1064
        %v1102 = vmul.f32 %v1100, %v1065
        %v1103 = vmul.f32 %v1100, %v1066
        %v1104 = vadd.f32 %v1001, %v1101
        %v1105 = vadd.f32 %v1002, %v1102
        %v1106 = vadd.f32 %v1003, %v1103
        %s1107 = sld [smem:[#allocation14 + $0x5d]]
        %v1108 = vstv %s1107
        %v1109 = vmul.f32 %v1108, %v1064
        %v1110 = vmul.f32 %v1108, %v1065
        %v1111 = vmul.f32 %v1108, %v1066
        %v1112 = vadd.f32 %v1021, %v1109
        %v1113 = vadd.f32 %v1022, %v1110
        %v1114 = vadd.f32 %v1023, %v1111
        %s1115 = sld [smem:[#allocation14 + $0x6f]]
        %v1116 = vstv %s1115
        %v1117 = vmul.f32 %v1116, %v1064
        %v1118 = vmul.f32 %v1116, %v1065
        %v1119 = vmul.f32 %v1116, %v1066
        %v1120 = vadd.f32 %v1041, %v1117
        %v1121 = vadd.f32 %v1042, %v1118
        %v1122 = vadd.f32 %v1043, %v1119
        %s1123 = sld [smem:[#allocation14 + $0x81]]
        %v1124 = vstv %s1123
        %v1125 = vmul.f32 %v1124, %v1064
        %v1126 = vmul.f32 %v1124, %v1065
        %v1127 = vmul.f32 %v1124, %v1066
        %v1128 = vadd.f32 %v1061, %v1125
        %v1129 = vadd.f32 %v1062, %v1126
        %v1130 = vadd.f32 %v1063, %v1127
        %s1131 = sld [smem:[#allocation14 + $0x4]]
        %v1132 = vstv %s1131
        %v1133 = vmul.f32 %v1132, %v1064
        %v1134 = vmul.f32 %v1132, %v1065
        %v1135 = vmul.f32 %v1132, %v1066
        %1139 = vrot.lane.b32.xlu0 %v1133, 127
        %v1140 = vpop.permute.xlu0 %1139
        %1141 = vrot.lane.b32.xlu0 %v1134, 127
        %v1142 = vpop.permute.xlu0 %1141
        %1143 = vrot.lane.b32.xlu0 %v1135, 127
        %v1144 = vpop.permute.xlu0 %1143
        %v1148 = vadd.f32 %v1072, %v1140
        %v1149 = vadd.f32 %v1073, %v1142
        %v1150 = vadd.f32 %v1074, %v1144
        %s1151 = sld [smem:[#allocation14 + $0x16]]
        %v1152 = vstv %s1151
        %v1153 = vmul.f32 %v1152, %v1064
        %v1154 = vmul.f32 %v1152, %v1065
        %v1155 = vmul.f32 %v1152, %v1066
        %1159 = vrot.lane.b32.xlu0 %v1153, 127
        %v1160 = vpop.permute.xlu0 %1159
        %1161 = vrot.lane.b32.xlu0 %v1154, 127
        %v1162 = vpop.permute.xlu0 %1161
        %1163 = vrot.lane.b32.xlu0 %v1155, 127
        %v1164 = vpop.permute.xlu0 %1163
        %v1168 = vadd.f32 %v1080, %v1160
        %v1169 = vadd.f32 %v1081, %v1162
        %v1170 = vadd.f32 %v1082, %v1164
        %s1171 = sld [smem:[#allocation14 + $0x28]]
        %v1172 = vstv %s1171
        %v1173 = vmul.f32 %v1172, %v1064
        %v1174 = vmul.f32 %v1172, %v1065
        %v1175 = vmul.f32 %v1172, %v1066
        %1179 = vrot.lane.b32.xlu0 %v1173, 127
        %v1180 = vpop.permute.xlu0 %1179
        %1181 = vrot.lane.b32.xlu0 %v1174, 127
        %v1182 = vpop.permute.xlu0 %1181
        %1183 = vrot.lane.b32.xlu0 %v1175, 127
        %v1184 = vpop.permute.xlu0 %1183
        %v1188 = vadd.f32 %v1088, %v1180
        %v1189 = vadd.f32 %v1089, %v1182
        %v1190 = vadd.f32 %v1090, %v1184
        %s1191 = sld [smem:[#allocation14 + $0x3a]]
        %v1192 = vstv %s1191
        %v1193 = vmul.f32 %v1192, %v1064
        %v1194 = vmul.f32 %v1192, %v1065
        %v1195 = vmul.f32 %v1192, %v1066
        %1199 = vrot.lane.b32.xlu0 %v1193, 127
        %v1200 = vpop.permute.xlu0 %1199
        %1201 = vrot.lane.b32.xlu0 %v1194, 127
        %v1202 = vpop.permute.xlu0 %1201
        %1203 = vrot.lane.b32.xlu0 %v1195, 127
        %v1204 = vpop.permute.xlu0 %1203
        %v1208 = vadd.f32 %v1096, %v1200
        %v1209 = vadd.f32 %v1097, %v1202
        %v1210 = vadd.f32 %v1098, %v1204
        %s1211 = sld [smem:[#allocation14 + $0x4c]]
        %v1212 = vstv %s1211
        %v1213 = vmul.f32 %v1212, %v1064
        %v1214 = vmul.f32 %v1212, %v1065
        %v1215 = vmul.f32 %v1212, %v1066
        %1219 = vrot.lane.b32.xlu0 %v1213, 127
        %v1220 = vpop.permute.xlu0 %1219
        %1221 = vrot.lane.b32.xlu0 %v1214, 127
        %v1222 = vpop.permute.xlu0 %1221
        %1223 = vrot.lane.b32.xlu0 %v1215, 127
        %v1224 = vpop.permute.xlu0 %1223
        %v1228 = vadd.f32 %v1104, %v1220
        %v1229 = vadd.f32 %v1105, %v1222
        %v1230 = vadd.f32 %v1106, %v1224
        %s1231 = sld [smem:[#allocation14 + $0x5e]]
        %v1232 = vstv %s1231
        %v1233 = vmul.f32 %v1232, %v1064
        %v1234 = vmul.f32 %v1232, %v1065
        %v1235 = vmul.f32 %v1232, %v1066
        %1239 = vrot.lane.b32.xlu0 %v1233, 127
        %v1240 = vpop.permute.xlu0 %1239
        %1241 = vrot.lane.b32.xlu0 %v1234, 127
        %v1242 = vpop.permute.xlu0 %1241
        %1243 = vrot.lane.b32.xlu0 %v1235, 127
        %v1244 = vpop.permute.xlu0 %1243
        %v1248 = vadd.f32 %v1112, %v1240
        %v1249 = vadd.f32 %v1113, %v1242
        %v1250 = vadd.f32 %v1114, %v1244
        %s1251 = sld [smem:[#allocation14 + $0x70]]
        %v1252 = vstv %s1251
        %v1253 = vmul.f32 %v1252, %v1064
        %v1254 = vmul.f32 %v1252, %v1065
        %v1255 = vmul.f32 %v1252, %v1066
        %1259 = vrot.lane.b32.xlu0 %v1253, 127
        %v1260 = vpop.permute.xlu0 %1259
        %1261 = vrot.lane.b32.xlu0 %v1254, 127
        %v1262 = vpop.permute.xlu0 %1261
        %1263 = vrot.lane.b32.xlu0 %v1255, 127
        %v1264 = vpop.permute.xlu0 %1263
        %v1268 = vadd.f32 %v1120, %v1260
        %v1269 = vadd.f32 %v1121, %v1262
        %v1270 = vadd.f32 %v1122, %v1264
        %s1271 = sld [smem:[#allocation14 + $0x82]]
        %v1272 = vstv %s1271
        %v1273 = vmul.f32 %v1272, %v1064
        %v1274 = vmul.f32 %v1272, %v1065
        %v1275 = vmul.f32 %v1272, %v1066
        %1279 = vrot.lane.b32.xlu0 %v1273, 127
        %v1280 = vpop.permute.xlu0 %1279
        %1281 = vrot.lane.b32.xlu0 %v1274, 127
        %v1282 = vpop.permute.xlu0 %1281
        %1283 = vrot.lane.b32.xlu0 %v1275, 127
        %v1284 = vpop.permute.xlu0 %1283
        %v1288 = vadd.f32 %v1128, %v1280
        %v1289 = vadd.f32 %v1129, %v1282
        %v1290 = vadd.f32 %v1130, %v1284
        %s1291 = sld [smem:[#allocation14 + $0x5]]
        %v1292 = vstv %s1291
        %v1293 = vmul.f32 %v1292, %v1064
        %v1294 = vmul.f32 %v1292, %v1065
        %v1295 = vmul.f32 %v1292, %v1066
        %1299 = vrot.lane.b32.xlu0 %v1293, 126
        %v1300 = vpop.permute.xlu0 %1299
        %1301 = vrot.lane.b32.xlu0 %v1294, 126
        %v1302 = vpop.permute.xlu0 %1301
        %1303 = vrot.lane.b32.xlu0 %v1295, 126
        %v1304 = vpop.permute.xlu0 %1303
        %v1308 = vadd.f32 %v1148, %v1300
        %v1309 = vadd.f32 %v1149, %v1302
        %v1310 = vadd.f32 %v1150, %v1304
        %s1311 = sld [smem:[#allocation14 + $0x17]]
        %v1312 = vstv %s1311
        %v1313 = vmul.f32 %v1312, %v1064
        %v1314 = vmul.f32 %v1312, %v1065
        %v1315 = vmul.f32 %v1312, %v1066
        %1319 = vrot.lane.b32.xlu0 %v1313, 126
        %v1320 = vpop.permute.xlu0 %1319
        %1321 = vrot.lane.b32.xlu0 %v1314, 126
        %v1322 = vpop.permute.xlu0 %1321
        %1323 = vrot.lane.b32.xlu0 %v1315, 126
        %v1324 = vpop.permute.xlu0 %1323
        %v1328 = vadd.f32 %v1168, %v1320
        %v1329 = vadd.f32 %v1169, %v1322
        %v1330 = vadd.f32 %v1170, %v1324
        %s1331 = sld [smem:[#allocation14 + $0x29]]
        %v1332 = vstv %s1331
        %v1333 = vmul.f32 %v1332, %v1064
        %v1334 = vmul.f32 %v1332, %v1065
        %v1335 = vmul.f32 %v1332, %v1066
        %1339 = vrot.lane.b32.xlu0 %v1333, 126
        %v1340 = vpop.permute.xlu0 %1339
        %1341 = vrot.lane.b32.xlu0 %v1334, 126
        %v1342 = vpop.permute.xlu0 %1341
        %1343 = vrot.lane.b32.xlu0 %v1335, 126
        %v1344 = vpop.permute.xlu0 %1343
        %v1348 = vadd.f32 %v1188, %v1340
        %v1349 = vadd.f32 %v1189, %v1342
        %v1350 = vadd.f32 %v1190, %v1344
        %s1351 = sld [smem:[#allocation14 + $0x3b]]
        %v1352 = vstv %s1351
        %v1353 = vmul.f32 %v1352, %v1064
        %v1354 = vmul.f32 %v1352, %v1065
        %v1355 = vmul.f32 %v1352, %v1066
        %1359 = vrot.lane.b32.xlu0 %v1353, 126
        %v1360 = vpop.permute.xlu0 %1359
        %1361 = vrot.lane.b32.xlu0 %v1354, 126
        %v1362 = vpop.permute.xlu0 %1361
        %1363 = vrot.lane.b32.xlu0 %v1355, 126
        %v1364 = vpop.permute.xlu0 %1363
        %v1368 = vadd.f32 %v1208, %v1360
        %v1369 = vadd.f32 %v1209, %v1362
        %v1370 = vadd.f32 %v1210, %v1364
        %s1371 = sld [smem:[#allocation14 + $0x4d]]
        %v1372 = vstv %s1371
        %v1373 = vmul.f32 %v1372, %v1064
        %v1374 = vmul.f32 %v1372, %v1065
        %v1375 = vmul.f32 %v1372, %v1066
        %1379 = vrot.lane.b32.xlu0 %v1373, 126
        %v1380 = vpop.permute.xlu0 %1379
        %1381 = vrot.lane.b32.xlu0 %v1374, 126
        %v1382 = vpop.permute.xlu0 %1381
        %1383 = vrot.lane.b32.xlu0 %v1375, 126
        %v1384 = vpop.permute.xlu0 %1383
        %v1388 = vadd.f32 %v1228, %v1380
        %v1389 = vadd.f32 %v1229, %v1382
        %v1390 = vadd.f32 %v1230, %v1384
        %s1391 = sld [smem:[#allocation14 + $0x5f]]
        %v1392 = vstv %s1391
        %v1393 = vmul.f32 %v1392, %v1064
        %v1394 = vmul.f32 %v1392, %v1065
        %v1395 = vmul.f32 %v1392, %v1066
        %1399 = vrot.lane.b32.xlu0 %v1393, 126
        %v1400 = vpop.permute.xlu0 %1399
        %1401 = vrot.lane.b32.xlu0 %v1394, 126
        %v1402 = vpop.permute.xlu0 %1401
        %1403 = vrot.lane.b32.xlu0 %v1395, 126
        %v1404 = vpop.permute.xlu0 %1403
        %v1408 = vadd.f32 %v1248, %v1400
        %v1409 = vadd.f32 %v1249, %v1402
        %v1410 = vadd.f32 %v1250, %v1404
        %s1411 = sld [smem:[#allocation14 + $0x71]]
        %v1412 = vstv %s1411
        %v1413 = vmul.f32 %v1412, %v1064
        %v1414 = vmul.f32 %v1412, %v1065
        %v1415 = vmul.f32 %v1412, %v1066
        %1419 = vrot.lane.b32.xlu0 %v1413, 126
        %v1420 = vpop.permute.xlu0 %1419
        %1421 = vrot.lane.b32.xlu0 %v1414, 126
        %v1422 = vpop.permute.xlu0 %1421
        %1423 = vrot.lane.b32.xlu0 %v1415, 126
        %v1424 = vpop.permute.xlu0 %1423
        %v1428 = vadd.f32 %v1268, %v1420
        %v1429 = vadd.f32 %v1269, %v1422
        %v1430 = vadd.f32 %v1270, %v1424
        %s1431 = sld [smem:[#allocation14 + $0x83]]
        %v1432 = vstv %s1431
        %v1433 = vmul.f32 %v1432, %v1064
        %v1434 = vmul.f32 %v1432, %v1065
        %v1435 = vmul.f32 %v1432, %v1066
        %1439 = vrot.lane.b32.xlu0 %v1433, 126
        %v1440 = vpop.permute.xlu0 %1439
        %1441 = vrot.lane.b32.xlu0 %v1434, 126
        %v1442 = vpop.permute.xlu0 %1441
        %1443 = vrot.lane.b32.xlu0 %v1435, 126
        %v1444 = vpop.permute.xlu0 %1443
        %v1448 = vadd.f32 %v1288, %v1440
        %v1449 = vadd.f32 %v1289, %v1442
        %v1450 = vadd.f32 %v1290, %v1444
        %v1451 = vld [vmem:[#allocation2 + $0x2] sm:$0xff]
        %v1452 = vld [vmem:[#allocation2 + $0xa] sm:$0xff]
        %v1453 = vld [vmem:[#allocation2 + $0x12] sm:$0x3]
        %s1454 = sld [smem:[#allocation14 + $0x6]]
        %v1455 = vstv %s1454
        %v1456 = vmul.f32 %v1455, %v1451
        %v1457 = vmul.f32 %v1455, %v1452
        %v1458 = vmul.f32 %v1455, %v1453
        %v1459 = vadd.f32 %v1308, %v1456
        %v1460 = vadd.f32 %v1309, %v1457
        %v1461 = vadd.f32 %v1310, %v1458
        %s1462 = sld [smem:[#allocation14 + $0x18]]
        %v1463 = vstv %s1462
        %v1464 = vmul.f32 %v1463, %v1451
        %v1465 = vmul.f32 %v1463, %v1452
        %v1466 = vmul.f32 %v1463, %v1453
        %v1467 = vadd.f32 %v1328, %v1464
        %v1468 = vadd.f32 %v1329, %v1465
        %v1469 = vadd.f32 %v1330, %v1466
        %s1470 = sld [smem:[#allocation14 + $0x2a]]
        %v1471 = vstv %s1470
        %v1472 = vmul.f32 %v1471, %v1451
        %v1473 = vmul.f32 %v1471, %v1452
        %v1474 = vmul.f32 %v1471, %v1453
        %v1475 = vadd.f32 %v1348, %v1472
        %v1476 = vadd.f32 %v1349, %v1473
        %v1477 = vadd.f32 %v1350, %v1474
        %s1478 = sld [smem:[#allocation14 + $0x3c]]
        %v1479 = vstv %s1478
        %v1480 = vmul.f32 %v1479, %v1451
        %v1481 = vmul.f32 %v1479, %v1452
        %v1482 = vmul.f32 %v1479, %v1453
        %v1483 = vadd.f32 %v1368, %v1480
        %v1484 = vadd.f32 %v1369, %v1481
        %v1485 = vadd.f32 %v1370, %v1482
        %s1486 = sld [smem:[#allocation14 + $0x4e]]
        %v1487 = vstv %s1486
        %v1488 = vmul.f32 %v1487, %v1451
        %v1489 = vmul.f32 %v1487, %v1452
        %v1490 = vmul.f32 %v1487, %v1453
        %v1491 = vadd.f32 %v1388, %v1488
        %v1492 = vadd.f32 %v1389, %v1489
        %v1493 = vadd.f32 %v1390, %v1490
        %s1494 = sld [smem:[#allocation14 + $0x60]]
        %v1495 = vstv %s1494
        %v1496 = vmul.f32 %v1495, %v1451
        %v1497 = vmul.f32 %v1495, %v1452
        %v1498 = vmul.f32 %v1495, %v1453
        %v1499 = vadd.f32 %v1408, %v1496
        %v1500 = vadd.f32 %v1409, %v1497
        %v1501 = vadd.f32 %v1410, %v1498
        %s1502 = sld [smem:[#allocation14 + $0x72]]
        %v1503 = vstv %s1502
        %v1504 = vmul.f32 %v1503, %v1451
        %v1505 = vmul.f32 %v1503, %v1452
        %v1506 = vmul.f32 %v1503, %v1453
        %v1507 = vadd.f32 %v1428, %v1504
        %v1508 = vadd.f32 %v1429, %v1505
        %v1509 = vadd.f32 %v1430, %v1506
        %s1510 = sld [smem:[#allocation14 + $0x84]]
        %v1511 = vstv %s1510
        %v1512 = vmul.f32 %v1511, %v1451
        %v1513 = vmul.f32 %v1511, %v1452
        %v1514 = vmul.f32 %v1511, %v1453
        %v1515 = vadd.f32 %v1448, %v1512
        %v1516 = vadd.f32 %v1449, %v1513
        %v1517 = vadd.f32 %v1450, %v1514
        %s1518 = sld [smem:[#allocation14 + $0x7]]
        %v1519 = vstv %s1518
        %v1520 = vmul.f32 %v1519, %v1451
        %v1521 = vmul.f32 %v1519, %v1452
        %v1522 = vmul.f32 %v1519, %v1453
        %1526 = vrot.lane.b32.xlu0 %v1520, 127
        %v1527 = vpop.permute.xlu0 %1526
        %1528 = vrot.lane.b32.xlu0 %v1521, 127
        %v1529 = vpop.permute.xlu0 %1528
        %1530 = vrot.lane.b32.xlu0 %v1522, 127
        %v1531 = vpop.permute.xlu0 %1530
        %v1535 = vadd.f32 %v1459, %v1527
        %v1536 = vadd.f32 %v1460, %v1529
        %v1537 = vadd.f32 %v1461, %v1531
        %s1538 = sld [smem:[#allocation14 + $0x19]]
        %v1539 = vstv %s1538
        %v1540 = vmul.f32 %v1539, %v1451
        %v1541 = vmul.f32 %v1539, %v1452
        %v1542 = vmul.f32 %v1539, %v1453
        %1546 = vrot.lane.b32.xlu0 %v1540, 127
        %v1547 = vpop.permute.xlu0 %1546
        %1548 = vrot.lane.b32.xlu0 %v1541, 127
        %v1549 = vpop.permute.xlu0 %1548
        %1550 = vrot.lane.b32.xlu0 %v1542, 127
        %v1551 = vpop.permute.xlu0 %1550
        %v1555 = vadd.f32 %v1467, %v1547
        %v1556 = vadd.f32 %v1468, %v1549
        %v1557 = vadd.f32 %v1469, %v1551
        %s1558 = sld [smem:[#allocation14 + $0x2b]]
        %v1559 = vstv %s1558
        %v1560 = vmul.f32 %v1559, %v1451
        %v1561 = vmul.f32 %v1559, %v1452
        %v1562 = vmul.f32 %v1559, %v1453
        %1566 = vrot.lane.b32.xlu0 %v1560, 127
        %v1567 = vpop.permute.xlu0 %1566
        %1568 = vrot.lane.b32.xlu0 %v1561, 127
        %v1569 = vpop.permute.xlu0 %1568
        %1570 = vrot.lane.b32.xlu0 %v1562, 127
        %v1571 = vpop.permute.xlu0 %1570
        %v1575 = vadd.f32 %v1475, %v1567
        %v1576 = vadd.f32 %v1476, %v1569
        %v1577 = vadd.f32 %v1477, %v1571
        %s1578 = sld [smem:[#allocation14 + $0x3d]]
        %v1579 = vstv %s1578
        %v1580 = vmul.f32 %v1579, %v1451
        %v1581 = vmul.f32 %v1579, %v1452
        %v1582 = vmul.f32 %v1579, %v1453
        %1586 = vrot.lane.b32.xlu0 %v1580, 127
        %v1587 = vpop.permute.xlu0 %1586
        %1588 = vrot.lane.b32.xlu0 %v1581, 127
        %v1589 = vpop.permute.xlu0 %1588
        %1590 = vrot.lane.b32.xlu0 %v1582, 127
        %v1591 = vpop.permute.xlu0 %1590
        %v1595 = vadd.f32 %v1483, %v1587
        %v1596 = vadd.f32 %v1484, %v1589
        %v1597 = vadd.f32 %v1485, %v1591
        %s1598 = sld [smem:[#allocation14 + $0x4f]]
        %v1599 = vstv %s1598
        %v1600 = vmul.f32 %v1599, %v1451
        %v1601 = vmul.f32 %v1599, %v1452
        %v1602 = vmul.f32 %v1599, %v1453
        %1606 = vrot.lane.b32.xlu0 %v1600, 127
        %v1607 = vpop.permute.xlu0 %1606
        %1608 = vrot.lane.b32.xlu0 %v1601, 127
        %v1609 = vpop.permute.xlu0 %1608
        %1610 = vrot.lane.b32.xlu0 %v1602, 127
        %v1611 = vpop.permute.xlu0 %1610
        %v1615 = vadd.f32 %v1491, %v1607
        %v1616 = vadd.f32 %v1492, %v1609
        %v1617 = vadd.f32 %v1493, %v1611
        %s1618 = sld [smem:[#allocation14 + $0x61]]
        %v1619 = vstv %s1618
        %v1620 = vmul.f32 %v1619, %v1451
        %v1621 = vmul.f32 %v1619, %v1452
        %v1622 = vmul.f32 %v1619, %v1453
        %1626 = vrot.lane.b32.xlu0 %v1620, 127
        %v1627 = vpop.permute.xlu0 %1626
        %1628 = vrot.lane.b32.xlu0 %v1621, 127
        %v1629 = vpop.permute.xlu0 %1628
        %1630 = vrot.lane.b32.xlu0 %v1622, 127
        %v1631 = vpop.permute.xlu0 %1630
        %v1635 = vadd.f32 %v1499, %v1627
        %v1636 = vadd.f32 %v1500, %v1629
        %v1637 = vadd.f32 %v1501, %v1631
        %s1638 = sld [smem:[#allocation14 + $0x73]]
        %v1639 = vstv %s1638
        %v1640 = vmul.f32 %v1639, %v1451
        %v1641 = vmul.f32 %v1639, %v1452
        %v1642 = vmul.f32 %v1639, %v1453
        %1646 = vrot.lane.b32.xlu0 %v1640, 127
        %v1647 = vpop.permute.xlu0 %1646
        %1648 = vrot.lane.b32.xlu0 %v1641, 127
        %v1649 = vpop.permute.xlu0 %1648
        %1650 = vrot.lane.b32.xlu0 %v1642, 127
        %v1651 = vpop.permute.xlu0 %1650
        %v1655 = vadd.f32 %v1507, %v1647
        %v1656 = vadd.f32 %v1508, %v1649
        %v1657 = vadd.f32 %v1509, %v1651
        %s1658 = sld [smem:[#allocation14 + $0x85]]
        %v1659 = vstv %s1658
        %v1660 = vmul.f32 %v1659, %v1451
        %v1661 = vmul.f32 %v1659, %v1452
        %v1662 = vmul.f32 %v1659, %v1453
        %1666 = vrot.lane.b32.xlu0 %v1660, 127
        %v1667 = vpop.permute.xlu0 %1666
        %1668 = vrot.lane.b32.xlu0 %v1661, 127
        %v1669 = vpop.permute.xlu0 %1668
        %1670 = vrot.lane.b32.xlu0 %v1662, 127
        %v1671 = vpop.permute.xlu0 %1670
        %v1675 = vadd.f32 %v1515, %v1667
        %v1676 = vadd.f32 %v1516, %v1669
        %v1677 = vadd.f32 %v1517, %v1671
        %s1678 = sld [smem:[#allocation14 + $0x8]]
        %v1679 = vstv %s1678
        %v1680 = vmul.f32 %v1679, %v1451
        %v1681 = vmul.f32 %v1679, %v1452
        %v1682 = vmul.f32 %v1679, %v1453
        %1686 = vrot.lane.b32.xlu0 %v1680, 126
        %v1687 = vpop.permute.xlu0 %1686
        %1688 = vrot.lane.b32.xlu0 %v1681, 126
        %v1689 = vpop.permute.xlu0 %1688
        %1690 = vrot.lane.b32.xlu0 %v1682, 126
        %v1691 = vpop.permute.xlu0 %1690
        %v1695 = vadd.f32 %v1535, %v1687
        %v1696 = vadd.f32 %v1536, %v1689
        %v1697 = vadd.f32 %v1537, %v1691
        %s1698 = sld [smem:[#allocation14 + $0x1a]]
        %v1699 = vstv %s1698
        %v1700 = vmul.f32 %v1699, %v1451
        %v1701 = vmul.f32 %v1699, %v1452
        %v1702 = vmul.f32 %v1699, %v1453
        %1706 = vrot.lane.b32.xlu0 %v1700, 126
        %v1707 = vpop.permute.xlu0 %1706
        %1708 = vrot.lane.b32.xlu0 %v1701, 126
        %v1709 = vpop.permute.xlu0 %1708
        %1710 = vrot.lane.b32.xlu0 %v1702, 126
        %v1711 = vpop.permute.xlu0 %1710
        %v1715 = vadd.f32 %v1555, %v1707
        %v1716 = vadd.f32 %v1556, %v1709
        %v1717 = vadd.f32 %v1557, %v1711
        %s1718 = sld [smem:[#allocation14 + $0x2c]]
        %v1719 = vstv %s1718
        %v1720 = vmul.f32 %v1719, %v1451
        %v1721 = vmul.f32 %v1719, %v1452
        %v1722 = vmul.f32 %v1719, %v1453
        %1726 = vrot.lane.b32.xlu0 %v1720, 126
        %v1727 = vpop.permute.xlu0 %1726
        %1728 = vrot.lane.b32.xlu0 %v1721, 126
        %v1729 = vpop.permute.xlu0 %1728
        %1730 = vrot.lane.b32.xlu0 %v1722, 126
        %v1731 = vpop.permute.xlu0 %1730
        %v1735 = vadd.f32 %v1575, %v1727
        %v1736 = vadd.f32 %v1576, %v1729
        %v1737 = vadd.f32 %v1577, %v1731
        %s1738 = sld [smem:[#allocation14 + $0x3e]]
        %v1739 = vstv %s1738
        %v1740 = vmul.f32 %v1739, %v1451
        %v1741 = vmul.f32 %v1739, %v1452
        %v1742 = vmul.f32 %v1739, %v1453
        %1746 = vrot.lane.b32.xlu0 %v1740, 126
        %v1747 = vpop.permute.xlu0 %1746
        %1748 = vrot.lane.b32.xlu0 %v1741, 126
        %v1749 = vpop.permute.xlu0 %1748
        %1750 = vrot.lane.b32.xlu0 %v1742, 126
        %v1751 = vpop.permute.xlu0 %1750
        %v1755 = vadd.f32 %v1595, %v1747
        %v1756 = vadd.f32 %v1596, %v1749
        %v1757 = vadd.f32 %v1597, %v1751
        %s1758 = sld [smem:[#allocation14 + $0x50]]
        %v1759 = vstv %s1758
        %v1760 = vmul.f32 %v1759, %v1451
        %v1761 = vmul.f32 %v1759, %v1452
        %v1762 = vmul.f32 %v1759, %v1453
        %1766 = vrot.lane.b32.xlu0 %v1760, 126
        %v1767 = vpop.permute.xlu0 %1766
        %1768 = vrot.lane.b32.xlu0 %v1761, 126
        %v1769 = vpop.permute.xlu0 %1768
        %1770 = vrot.lane.b32.xlu0 %v1762, 126
        %v1771 = vpop.permute.xlu0 %1770
        %v1775 = vadd.f32 %v1615, %v1767
        %v1776 = vadd.f32 %v1616, %v1769
        %v1777 = vadd.f32 %v1617, %v1771
        %s1778 = sld [smem:[#allocation14 + $0x62]]
        %v1779 = vstv %s1778
        %v1780 = vmul.f32 %v1779, %v1451
        %v1781 = vmul.f32 %v1779, %v1452
        %v1782 = vmul.f32 %v1779, %v1453
        %1786 = vrot.lane.b32.xlu0 %v1780, 126
        %v1787 = vpop.permute.xlu0 %1786
        %1788 = vrot.lane.b32.xlu0 %v1781, 126
        %v1789 = vpop.permute.xlu0 %1788
        %1790 = vrot.lane.b32.xlu0 %v1782, 126
        %v1791 = vpop.permute.xlu0 %1790
        %v1795 = vadd.f32 %v1635, %v1787
        %v1796 = vadd.f32 %v1636, %v1789
        %v1797 = vadd.f32 %v1637, %v1791
        %s1798 = sld [smem:[#allocation14 + $0x74]]
        %v1799 = vstv %s1798
        %v1800 = vmul.f32 %v1799, %v1451
        %v1801 = vmul.f32 %v1799, %v1452
        %v1802 = vmul.f32 %v1799, %v1453
        %1806 = vrot.lane.b32.xlu0 %v1800, 126
        %v1807 = vpop.permute.xlu0 %1806
        %1808 = vrot.lane.b32.xlu0 %v1801, 126
        %v1809 = vpop.permute.xlu0 %1808
        %1810 = vrot.lane.b32.xlu0 %v1802, 126
        %v1811 = vpop.permute.xlu0 %1810
        %v1815 = vadd.f32 %v1655, %v1807
        %v1816 = vadd.f32 %v1656, %v1809
        %v1817 = vadd.f32 %v1657, %v1811
        %s1818 = sld [smem:[#allocation14 + $0x86]]
        %v1819 = vstv %s1818
        %v1820 = vmul.f32 %v1819, %v1451
        %v1821 = vmul.f32 %v1819, %v1452
        %v1822 = vmul.f32 %v1819, %v1453
        %1826 = vrot.lane.b32.xlu0 %v1820, 126
        %v1827 = vpop.permute.xlu0 %1826
        %1828 = vrot.lane.b32.xlu0 %v1821, 126
        %v1829 = vpop.permute.xlu0 %1828
        %1830 = vrot.lane.b32.xlu0 %v1822, 126
        %v1831 = vpop.permute.xlu0 %1830
        %v1835 = vadd.f32 %v1675, %v1827
        %v1836 = vadd.f32 %v1676, %v1829
        %v1837 = vadd.f32 %v1677, %v1831
        %v1838 = vld [vmem:[%s674] sm:$0xff]
        %v1839 = vld [vmem:[%s674 + $0x8] sm:$0xff]
        %v1840 = vld [vmem:[%s674 + $0x10] sm:$0x3]
        %s1841 = sld [smem:[#allocation14 + $0x9]]
        %v1842 = vstv %s1841
        %v1843 = vmul.f32 %v1842, %v1838
        %v1844 = vmul.f32 %v1842, %v1839
        %v1845 = vmul.f32 %v1842, %v1840
        %v1846 = vadd.f32 %v1695, %v1843
        %v1847 = vadd.f32 %v1696, %v1844
        %v1848 = vadd.f32 %v1697, %v1845
        %s1849 = sld [smem:[#allocation14 + $0x1b]]
        %v1850 = vstv %s1849
        %v1851 = vmul.f32 %v1850, %v1838
        %v1852 = vmul.f32 %v1850, %v1839
        %v1853 = vmul.f32 %v1850, %v1840
        %v1854 = vadd.f32 %v1715, %v1851
        %v1855 = vadd.f32 %v1716, %v1852
        %v1856 = vadd.f32 %v1717, %v1853
        %s1857 = sld [smem:[#allocation14 + $0x2d]]
        %v1858 = vstv %s1857
        %v1859 = vmul.f32 %v1858, %v1838
        %v1860 = vmul.f32 %v1858, %v1839
        %v1861 = vmul.f32 %v1858, %v1840
        %v1862 = vadd.f32 %v1735, %v1859
        %v1863 = vadd.f32 %v1736, %v1860
        %v1864 = vadd.f32 %v1737, %v1861
        %s1865 = sld [smem:[#allocation14 + $0x3f]]
        %v1866 = vstv %s1865
        %v1867 = vmul.f32 %v1866, %v1838
        %v1868 = vmul.f32 %v1866, %v1839
        %v1869 = vmul.f32 %v1866, %v1840
        %v1870 = vadd.f32 %v1755, %v1867
        %v1871 = vadd.f32 %v1756, %v1868
        %v1872 = vadd.f32 %v1757, %v1869
        %s1873 = sld [smem:[#allocation14 + $0x51]]
        %v1874 = vstv %s1873
        %v1875 = vmul.f32 %v1874, %v1838
        %v1876 = vmul.f32 %v1874, %v1839
        %v1877 = vmul.f32 %v1874, %v1840
        %v1878 = vadd.f32 %v1775, %v1875
        %v1879 = vadd.f32 %v1776, %v1876
        %v1880 = vadd.f32 %v1777, %v1877
        %s1881 = sld [smem:[#allocation14 + $0x63]]
        %v1882 = vstv %s1881
        %v1883 = vmul.f32 %v1882, %v1838
        %v1884 = vmul.f32 %v1882, %v1839
        %v1885 = vmul.f32 %v1882, %v1840
        %v1886 = vadd.f32 %v1795, %v1883
        %v1887 = vadd.f32 %v1796, %v1884
        %v1888 = vadd.f32 %v1797, %v1885
        %s1889 = sld [smem:[#allocation14 + $0x75]]
        %v1890 = vstv %s1889
        %v1891 = vmul.f32 %v1890, %v1838
        %v1892 = vmul.f32 %v1890, %v1839
        %v1893 = vmul.f32 %v1890, %v1840
        %v1894 = vadd.f32 %v1815, %v1891
        %v1895 = vadd.f32 %v1816, %v1892
        %v1896 = vadd.f32 %v1817, %v1893
        %s1897 = sld [smem:[#allocation14 + $0x87]]
        %v1898 = vstv %s1897
        %v1899 = vmul.f32 %v1898, %v1838
        %v1900 = vmul.f32 %v1898, %v1839
        %v1901 = vmul.f32 %v1898, %v1840
        %v1902 = vadd.f32 %v1835, %v1899
        %v1903 = vadd.f32 %v1836, %v1900
        %v1904 = vadd.f32 %v1837, %v1901
        %s1905 = sld [smem:[#allocation14 + $0xa]]
        %v1906 = vstv %s1905
        %v1907 = vmul.f32 %v1906, %v1838
        %v1908 = vmul.f32 %v1906, %v1839
        %v1909 = vmul.f32 %v1906, %v1840
        %1913 = vrot.lane.b32.xlu0 %v1907, 127
        %v1914 = vpop.permute.xlu0 %1913
        %1915 = vrot.lane.b32.xlu0 %v1908, 127
        %v1916 = vpop.permute.xlu0 %1915
        %1917 = vrot.lane.b32.xlu0 %v1909, 127
        %v1918 = vpop.permute.xlu0 %1917
        %v1922 = vadd.f32 %v1846, %v1914
        %v1923 = vadd.f32 %v1847, %v1916
        %v1924 = vadd.f32 %v1848, %v1918
        %s1925 = sld [smem:[#allocation14 + $0x1c]]
        %v1926 = vstv %s1925
        %v1927 = vmul.f32 %v1926, %v1838
        %v1928 = vmul.f32 %v1926, %v1839
        %v1929 = vmul.f32 %v1926, %v1840
        %1933 = vrot.lane.b32.xlu0 %v1927, 127
        %v1934 = vpop.permute.xlu0 %1933
        %1935 = vrot.lane.b32.xlu0 %v1928, 127
        %v1936 = vpop.permute.xlu0 %1935
        %1937 = vrot.lane.b32.xlu0 %v1929, 127
        %v1938 = vpop.permute.xlu0 %1937
        %v1942 = vadd.f32 %v1854, %v1934
        %v1943 = vadd.f32 %v1855, %v1936
        %v1944 = vadd.f32 %v1856, %v1938
        %s1945 = sld [smem:[#allocation14 + $0x2e]]
        %v1946 = vstv %s1945
        %v1947 = vmul.f32 %v1946, %v1838
        %v1948 = vmul.f32 %v1946, %v1839
        %v1949 = vmul.f32 %v1946, %v1840
        %1953 = vrot.lane.b32.xlu0 %v1947, 127
        %v1954 = vpop.permute.xlu0 %1953
        %1955 = vrot.lane.b32.xlu0 %v1948, 127
        %v1956 = vpop.permute.xlu0 %1955
        %1957 = vrot.lane.b32.xlu0 %v1949, 127
        %v1958 = vpop.permute.xlu0 %1957
        %v1962 = vadd.f32 %v1862, %v1954
        %v1963 = vadd.f32 %v1863, %v1956
        %v1964 = vadd.f32 %v1864, %v1958
        %s1965 = sld [smem:[#allocation14 + $0x40]]
        %v1966 = vstv %s1965
        %v1967 = vmul.f32 %v1966, %v1838
        %v1968 = vmul.f32 %v1966, %v1839
        %v1969 = vmul.f32 %v1966, %v1840
        %1973 = vrot.lane.b32.xlu0 %v1967, 127
        %v1974 = vpop.permute.xlu0 %1973
        %1975 = vrot.lane.b32.xlu0 %v1968, 127
        %v1976 = vpop.permute.xlu0 %1975
        %1977 = vrot.lane.b32.xlu0 %v1969, 127
        %v1978 = vpop.permute.xlu0 %1977
        %v1982 = vadd.f32 %v1870, %v1974
        %v1983 = vadd.f32 %v1871, %v1976
        %v1984 = vadd.f32 %v1872, %v1978
        %s1985 = sld [smem:[#allocation14 + $0x52]]
        %v1986 = vstv %s1985
        %v1987 = vmul.f32 %v1986, %v1838
        %v1988 = vmul.f32 %v1986, %v1839
        %v1989 = vmul.f32 %v1986, %v1840
        %1993 = vrot.lane.b32.xlu0 %v1987, 127
        %v1994 = vpop.permute.xlu0 %1993
        %1995 = vrot.lane.b32.xlu0 %v1988, 127
        %v1996 = vpop.permute.xlu0 %1995
        %1997 = vrot.lane.b32.xlu0 %v1989, 127
        %v1998 = vpop.permute.xlu0 %1997
        %v2002 = vadd.f32 %v1878, %v1994
        %v2003 = vadd.f32 %v1879, %v1996
        %v2004 = vadd.f32 %v1880, %v1998
        %s2005 = sld [smem:[#allocation14 + $0x64]]
        %v2006 = vstv %s2005
        %v2007 = vmul.f32 %v2006, %v1838
        %v2008 = vmul.f32 %v2006, %v1839
        %v2009 = vmul.f32 %v2006, %v1840
        %2013 = vrot.lane.b32.xlu0 %v2007, 127
        %v2014 = vpop.permute.xlu0 %2013
        %2015 = vrot.lane.b32.xlu0 %v2008, 127
        %v2016 = vpop.permute.xlu0 %2015
        %2017 = vrot.lane.b32.xlu0 %v2009, 127
        %v2018 = vpop.permute.xlu0 %2017
        %v2022 = vadd.f32 %v1886, %v2014
        %v2023 = vadd.f32 %v1887, %v2016
        %v2024 = vadd.f32 %v1888, %v2018
        %s2025 = sld [smem:[#allocation14 + $0x76]]
        %v2026 = vstv %s2025
        %v2027 = vmul.f32 %v2026, %v1838
        %v2028 = vmul.f32 %v2026, %v1839
        %v2029 = vmul.f32 %v2026, %v1840
        %2033 = vrot.lane.b32.xlu0 %v2027, 127
        %v2034 = vpop.permute.xlu0 %2033
        %2035 = vrot.lane.b32.xlu0 %v2028, 127
        %v2036 = vpop.permute.xlu0 %2035
        %2037 = vrot.lane.b32.xlu0 %v2029, 127
        %v2038 = vpop.permute.xlu0 %2037
        %v2042 = vadd.f32 %v1894, %v2034
        %v2043 = vadd.f32 %v1895, %v2036
        %v2044 = vadd.f32 %v1896, %v2038
        %s2045 = sld [smem:[#allocation14 + $0x88]]
        %v2046 = vstv %s2045
        %v2047 = vmul.f32 %v2046, %v1838
        %v2048 = vmul.f32 %v2046, %v1839
        %v2049 = vmul.f32 %v2046, %v1840
        %2053 = vrot.lane.b32.xlu0 %v2047, 127
        %v2054 = vpop.permute.xlu0 %2053
        %2055 = vrot.lane.b32.xlu0 %v2048, 127
        %v2056 = vpop.permute.xlu0 %2055
        %2057 = vrot.lane.b32.xlu0 %v2049, 127
        %v2058 = vpop.permute.xlu0 %2057
        %v2062 = vadd.f32 %v1902, %v2054
        %v2063 = vadd.f32 %v1903, %v2056
        %v2064 = vadd.f32 %v1904, %v2058
        %s2065 = sld [smem:[#allocation14 + $0xb]]
        %v2066 = vstv %s2065
        %v2067 = vmul.f32 %v2066, %v1838
        %v2068 = vmul.f32 %v2066, %v1839
        %v2069 = vmul.f32 %v2066, %v1840
        %2073 = vrot.lane.b32.xlu0 %v2067, 126
        %v2074 = vpop.permute.xlu0 %2073
        %2075 = vrot.lane.b32.xlu0 %v2068, 126
        %v2076 = vpop.permute.xlu0 %2075
        %2077 = vrot.lane.b32.xlu0 %v2069, 126
        %v2078 = vpop.permute.xlu0 %2077
        %v2082 = vadd.f32 %v1922, %v2074
        %v2083 = vadd.f32 %v1923, %v2076
        %v2084 = vadd.f32 %v1924, %v2078
        %s2085 = sld [smem:[#allocation14 + $0x1d]]
        %v2086 = vstv %s2085
        %v2087 = vmul.f32 %v2086, %v1838
        %v2088 = vmul.f32 %v2086, %v1839
        %v2089 = vmul.f32 %v2086, %v1840
        %2093 = vrot.lane.b32.xlu0 %v2087, 126
        %v2094 = vpop.permute.xlu0 %2093
        %2095 = vrot.lane.b32.xlu0 %v2088, 126
        %v2096 = vpop.permute.xlu0 %2095
        %2097 = vrot.lane.b32.xlu0 %v2089, 126
        %v2098 = vpop.permute.xlu0 %2097
        %v2102 = vadd.f32 %v1942, %v2094
        %v2103 = vadd.f32 %v1943, %v2096
        %v2104 = vadd.f32 %v1944, %v2098
        %s2105 = sld [smem:[#allocation14 + $0x2f]]
        %v2106 = vstv %s2105
        %v2107 = vmul.f32 %v2106, %v1838
        %v2108 = vmul.f32 %v2106, %v1839
        %v2109 = vmul.f32 %v2106, %v1840
        %2113 = vrot.lane.b32.xlu0 %v2107, 126
        %v2114 = vpop.permute.xlu0 %2113
        %2115 = vrot.lane.b32.xlu0 %v2108, 126
        %v2116 = vpop.permute.xlu0 %2115
        %2117 = vrot.lane.b32.xlu0 %v2109, 126
        %v2118 = vpop.permute.xlu0 %2117
        %v2122 = vadd.f32 %v1962, %v2114
        %v2123 = vadd.f32 %v1963, %v2116
        %v2124 = vadd.f32 %v1964, %v2118
        %s2125 = sld [smem:[#allocation14 + $0x41]]
        %v2126 = vstv %s2125
        %v2127 = vmul.f32 %v2126, %v1838
        %v2128 = vmul.f32 %v2126, %v1839
        %v2129 = vmul.f32 %v2126, %v1840
        %2133 = vrot.lane.b32.xlu0 %v2127, 126
        %v2134 = vpop.permute.xlu0 %2133
        %2135 = vrot.lane.b32.xlu0 %v2128, 126
        %v2136 = vpop.permute.xlu0 %2135
        %2137 = vrot.lane.b32.xlu0 %v2129, 126
        %v2138 = vpop.permute.xlu0 %2137
        %v2142 = vadd.f32 %v1982, %v2134
        %v2143 = vadd.f32 %v1983, %v2136
        %v2144 = vadd.f32 %v1984, %v2138
        %s2145 = sld [smem:[#allocation14 + $0x53]]
        %v2146 = vstv %s2145
        %v2147 = vmul.f32 %v2146, %v1838
        %v2148 = vmul.f32 %v2146, %v1839
        %v2149 = vmul.f32 %v2146, %v1840
        %2153 = vrot.lane.b32.xlu0 %v2147, 126
        %v2154 = vpop.permute.xlu0 %2153
        %2155 = vrot.lane.b32.xlu0 %v2148, 126
        %v2156 = vpop.permute.xlu0 %2155
        %2157 = vrot.lane.b32.xlu0 %v2149, 126
        %v2158 = vpop.permute.xlu0 %2157
        %v2162 = vadd.f32 %v2002, %v2154
        %v2163 = vadd.f32 %v2003, %v2156
        %v2164 = vadd.f32 %v2004, %v2158
        %s2165 = sld [smem:[#allocation14 + $0x65]]
        %v2166 = vstv %s2165
        %v2167 = vmul.f32 %v2166, %v1838
        %v2168 = vmul.f32 %v2166, %v1839
        %v2169 = vmul.f32 %v2166, %v1840
        %2173 = vrot.lane.b32.xlu0 %v2167, 126
        %v2174 = vpop.permute.xlu0 %2173
        %2175 = vrot.lane.b32.xlu0 %v2168, 126
        %v2176 = vpop.permute.xlu0 %2175
        %2177 = vrot.lane.b32.xlu0 %v2169, 126
        %v2178 = vpop.permute.xlu0 %2177
        %v2182 = vadd.f32 %v2022, %v2174
        %v2183 = vadd.f32 %v2023, %v2176
        %v2184 = vadd.f32 %v2024, %v2178
        %s2185 = sld [smem:[#allocation14 + $0x77]]
        %v2186 = vstv %s2185
        %v2187 = vmul.f32 %v2186, %v1838
        %v2188 = vmul.f32 %v2186, %v1839
        %v2189 = vmul.f32 %v2186, %v1840
        %2193 = vrot.lane.b32.xlu0 %v2187, 126
        %v2194 = vpop.permute.xlu0 %2193
        %2195 = vrot.lane.b32.xlu0 %v2188, 126
        %v2196 = vpop.permute.xlu0 %2195
        %2197 = vrot.lane.b32.xlu0 %v2189, 126
        %v2198 = vpop.permute.xlu0 %2197
        %v2202 = vadd.f32 %v2042, %v2194
        %v2203 = vadd.f32 %v2043, %v2196
        %v2204 = vadd.f32 %v2044, %v2198
        %s2205 = sld [smem:[#allocation14 + $0x89]]
        %v2206 = vstv %s2205
        %v2207 = vmul.f32 %v2206, %v1838
        %v2208 = vmul.f32 %v2206, %v1839
        %v2209 = vmul.f32 %v2206, %v1840
        %2213 = vrot.lane.b32.xlu0 %v2207, 126
        %v2214 = vpop.permute.xlu0 %2213
        %2215 = vrot.lane.b32.xlu0 %v2208, 126
        %v2216 = vpop.permute.xlu0 %2215
        %2217 = vrot.lane.b32.xlu0 %v2209, 126
        %v2218 = vpop.permute.xlu0 %2217
        %v2222 = vadd.f32 %v2062, %v2214
        %v2223 = vadd.f32 %v2063, %v2216
        %v2224 = vadd.f32 %v2064, %v2218
        %v2225 = vld [vmem:[%s674 + $0x1] sm:$0xff]
        %v2226 = vld [vmem:[%s674 + $0x9] sm:$0xff]
        %v2227 = vld [vmem:[%s674 + $0x11] sm:$0x3]
        %s2228 = sld [smem:[#allocation14 + $0xc]]
        %v2229 = vstv %s2228
        %v2230 = vmul.f32 %v2229, %v2225
        %v2231 = vmul.f32 %v2229, %v2226
        %v2232 = vmul.f32 %v2229, %v2227
        %v2233 = vadd.f32 %v2082, %v2230
        %v2234 = vadd.f32 %v2083, %v2231
        %v2235 = vadd.f32 %v2084, %v2232
        %s2236 = sld [smem:[#allocation14 + $0x1e]]
        %v2237 = vstv %s2236
        %v2238 = vmul.f32 %v2237, %v2225
        %v2239 = vmul.f32 %v2237, %v2226
        %v2240 = vmul.f32 %v2237, %v2227
        %v2241 = vadd.f32 %v2102, %v2238
        %v2242 = vadd.f32 %v2103, %v2239
        %v2243 = vadd.f32 %v2104, %v2240
        %s2244 = sld [smem:[#allocation14 + $0x30]]
        %v2245 = vstv %s2244
        %v2246 = vmul.f32 %v2245, %v2225
        %v2247 = vmul.f32 %v2245, %v2226
        %v2248 = vmul.f32 %v2245, %v2227
        %v2249 = vadd.f32 %v2122, %v2246
        %v2250 = vadd.f32 %v2123, %v2247
        %v2251 = vadd.f32 %v2124, %v2248
        %s2252 = sld [smem:[#allocation14 + $0x42]]
        %v2253 = vstv %s2252
        %v2254 = vmul.f32 %v2253, %v2225
        %v2255 = vmul.f32 %v2253, %v2226
        %v2256 = vmul.f32 %v2253, %v2227
        %v2257 = vadd.f32 %v2142, %v2254
        %v2258 = vadd.f32 %v2143, %v2255
        %v2259 = vadd.f32 %v2144, %v2256
        %s2260 = sld [smem:[#allocation14 + $0x54]]
        %v2261 = vstv %s2260
        %v2262 = vmul.f32 %v2261, %v2225
        %v2263 = vmul.f32 %v2261, %v2226
        %v2264 = vmul.f32 %v2261, %v2227
        %v2265 = vadd.f32 %v2162, %v2262
        %v2266 = vadd.f32 %v2163, %v2263
        %v2267 = vadd.f32 %v2164, %v2264
        %s2268 = sld [smem:[#allocation14 + $0x66]]
        %v2269 = vstv %s2268
        %v2270 = vmul.f32 %v2269, %v2225
        %v2271 = vmul.f32 %v2269, %v2226
        %v2272 = vmul.f32 %v2269, %v2227
        %v2273 = vadd.f32 %v2182, %v2270
        %v2274 = vadd.f32 %v2183, %v2271
        %v2275 = vadd.f32 %v2184, %v2272
        %s2276 = sld [smem:[#allocation14 + $0x78]]
        %v2277 = vstv %s2276
        %v2278 = vmul.f32 %v2277, %v2225
        %v2279 = vmul.f32 %v2277, %v2226
        %v2280 = vmul.f32 %v2277, %v2227
        %v2281 = vadd.f32 %v2202, %v2278
        %v2282 = vadd.f32 %v2203, %v2279
        %v2283 = vadd.f32 %v2204, %v2280
        %s2284 = sld [smem:[#allocation14 + $0x8a]]
        %v2285 = vstv %s2284
        %v2286 = vmul.f32 %v2285, %v2225
        %v2287 = vmul.f32 %v2285, %v2226
        %v2288 = vmul.f32 %v2285, %v2227
        %v2289 = vadd.f32 %v2222, %v2286
        %v2290 = vadd.f32 %v2223, %v2287
        %v2291 = vadd.f32 %v2224, %v2288
        %s2292 = sld [smem:[#allocation14 + $0xd]]
        %v2293 = vstv %s2292
        %v2294 = vmul.f32 %v2293, %v2225
        %v2295 = vmul.f32 %v2293, %v2226
        %v2296 = vmul.f32 %v2293, %v2227
        %2300 = vrot.lane.b32.xlu0 %v2294, 127
        %v2301 = vpop.permute.xlu0 %2300
        %2302 = vrot.lane.b32.xlu0 %v2295, 127
        %v2303 = vpop.permute.xlu0 %2302
        %2304 = vrot.lane.b32.xlu0 %v2296, 127
        %v2305 = vpop.permute.xlu0 %2304
        %v2309 = vadd.f32 %v2233, %v2301
        %v2310 = vadd.f32 %v2234, %v2303
        %v2311 = vadd.f32 %v2235, %v2305
        %s2312 = sld [smem:[#allocation14 + $0x1f]]
        %v2313 = vstv %s2312
        %v2314 = vmul.f32 %v2313, %v2225
        %v2315 = vmul.f32 %v2313, %v2226
        %v2316 = vmul.f32 %v2313, %v2227
        %2320 = vrot.lane.b32.xlu0 %v2314, 127
        %v2321 = vpop.permute.xlu0 %2320
        %2322 = vrot.lane.b32.xlu0 %v2315, 127
        %v2323 = vpop.permute.xlu0 %2322
        %2324 = vrot.lane.b32.xlu0 %v2316, 127
        %v2325 = vpop.permute.xlu0 %2324
        %v2329 = vadd.f32 %v2241, %v2321
        %v2330 = vadd.f32 %v2242, %v2323
        %v2331 = vadd.f32 %v2243, %v2325
        %s2332 = sld [smem:[#allocation14 + $0x31]]
        %v2333 = vstv %s2332
        %v2334 = vmul.f32 %v2333, %v2225
        %v2335 = vmul.f32 %v2333, %v2226
        %v2336 = vmul.f32 %v2333, %v2227
        %2340 = vrot.lane.b32.xlu0 %v2334, 127
        %v2341 = vpop.permute.xlu0 %2340
        %2342 = vrot.lane.b32.xlu0 %v2335, 127
        %v2343 = vpop.permute.xlu0 %2342
        %2344 = vrot.lane.b32.xlu0 %v2336, 127
        %v2345 = vpop.permute.xlu0 %2344
        %v2349 = vadd.f32 %v2249, %v2341
        %v2350 = vadd.f32 %v2250, %v2343
        %v2351 = vadd.f32 %v2251, %v2345
        %s2352 = sld [smem:[#allocation14 + $0x43]]
        %v2353 = vstv %s2352
        %v2354 = vmul.f32 %v2353, %v2225
        %v2355 = vmul.f32 %v2353, %v2226
        %v2356 = vmul.f32 %v2353, %v2227
        %2360 = vrot.lane.b32.xlu0 %v2354, 127
        %v2361 = vpop.permute.xlu0 %2360
        %2362 = vrot.lane.b32.xlu0 %v2355, 127
        %v2363 = vpop.permute.xlu0 %2362
        %2364 = vrot.lane.b32.xlu0 %v2356, 127
        %v2365 = vpop.permute.xlu0 %2364
        %v2369 = vadd.f32 %v2257, %v2361
        %v2370 = vadd.f32 %v2258, %v2363
        %v2371 = vadd.f32 %v2259, %v2365
        %s2372 = sld [smem:[#allocation14 + $0x55]]
        %v2373 = vstv %s2372
        %v2374 = vmul.f32 %v2373, %v2225
        %v2375 = vmul.f32 %v2373, %v2226
        %v2376 = vmul.f32 %v2373, %v2227
        %2380 = vrot.lane.b32.xlu0 %v2374, 127
        %v2381 = vpop.permute.xlu0 %2380
        %2382 = vrot.lane.b32.xlu0 %v2375, 127
        %v2383 = vpop.permute.xlu0 %2382
        %2384 = vrot.lane.b32.xlu0 %v2376, 127
        %v2385 = vpop.permute.xlu0 %2384
        %v2389 = vadd.f32 %v2265, %v2381
        %v2390 = vadd.f32 %v2266, %v2383
        %v2391 = vadd.f32 %v2267, %v2385
        %s2392 = sld [smem:[#allocation14 + $0x67]]
        %v2393 = vstv %s2392
        %v2394 = vmul.f32 %v2393, %v2225
        %v2395 = vmul.f32 %v2393, %v2226
        %v2396 = vmul.f32 %v2393, %v2227
        %2400 = vrot.lane.b32.xlu0 %v2394, 127
        %v2401 = vpop.permute.xlu0 %2400
        %2402 = vrot.lane.b32.xlu0 %v2395, 127
        %v2403 = vpop.permute.xlu0 %2402
        %2404 = vrot.lane.b32.xlu0 %v2396, 127
        %v2405 = vpop.permute.xlu0 %2404
        %v2409 = vadd.f32 %v2273, %v2401
        %v2410 = vadd.f32 %v2274, %v2403
        %v2411 = vadd.f32 %v2275, %v2405
        %s2412 = sld [smem:[#allocation14 + $0x79]]
        %v2413 = vstv %s2412
        %v2414 = vmul.f32 %v2413, %v2225
        %v2415 = vmul.f32 %v2413, %v2226
        %v2416 = vmul.f32 %v2413, %v2227
        %2420 = vrot.lane.b32.xlu0 %v2414, 127
        %v2421 = vpop.permute.xlu0 %2420
        %2422 = vrot.lane.b32.xlu0 %v2415, 127
        %v2423 = vpop.permute.xlu0 %2422
        %2424 = vrot.lane.b32.xlu0 %v2416, 127
        %v2425 = vpop.permute.xlu0 %2424
        %v2429 = vadd.f32 %v2281, %v2421
        %v2430 = vadd.f32 %v2282, %v2423
        %v2431 = vadd.f32 %v2283, %v2425
        %s2432 = sld [smem:[#allocation14 + $0x8b]]
        %v2433 = vstv %s2432
        %v2434 = vmul.f32 %v2433, %v2225
        %v2435 = vmul.f32 %v2433, %v2226
        %v2436 = vmul.f32 %v2433, %v2227
        %2440 = vrot.lane.b32.xlu0 %v2434, 127
        %v2441 = vpop.permute.xlu0 %2440
        %2442 = vrot.lane.b32.xlu0 %v2435, 127
        %v2443 = vpop.permute.xlu0 %2442
        %2444 = vrot.lane.b32.xlu0 %v2436, 127
        %v2445 = vpop.permute.xlu0 %2444
        %v2449 = vadd.f32 %v2289, %v2441
        %v2450 = vadd.f32 %v2290, %v2443
        %v2451 = vadd.f32 %v2291, %v2445
        %s2452 = sld [smem:[#allocation14 + $0xe]]
        %v2453 = vstv %s2452
        %v2454 = vmul.f32 %v2453, %v2225
        %v2455 = vmul.f32 %v2453, %v2226
        %v2456 = vmul.f32 %v2453, %v2227
        %2460 = vrot.lane.b32.xlu0 %v2454, 126
        %v2461 = vpop.permute.xlu0 %2460
        %2462 = vrot.lane.b32.xlu0 %v2455, 126
        %v2463 = vpop.permute.xlu0 %2462
        %2464 = vrot.lane.b32.xlu0 %v2456, 126
        %v2465 = vpop.permute.xlu0 %2464
        %v2469 = vadd.f32 %v2309, %v2461
        %v2470 = vadd.f32 %v2310, %v2463
        %v2471 = vadd.f32 %v2311, %v2465
        %s2472 = sld [smem:[#allocation14 + $0x20]]
        %v2473 = vstv %s2472
        %v2474 = vmul.f32 %v2473, %v2225
        %v2475 = vmul.f32 %v2473, %v2226
        %v2476 = vmul.f32 %v2473, %v2227
        %2480 = vrot.lane.b32.xlu0 %v2474, 126
        %v2481 = vpop.permute.xlu0 %2480
        %2482 = vrot.lane.b32.xlu0 %v2475, 126
        %v2483 = vpop.permute.xlu0 %2482
        %2484 = vrot.lane.b32.xlu0 %v2476, 126
        %v2485 = vpop.permute.xlu0 %2484
        %v2489 = vadd.f32 %v2329, %v2481
        %v2490 = vadd.f32 %v2330, %v2483
        %v2491 = vadd.f32 %v2331, %v2485
        %s2492 = sld [smem:[#allocation14 + $0x32]]
        %v2493 = vstv %s2492
        %v2494 = vmul.f32 %v2493, %v2225
        %v2495 = vmul.f32 %v2493, %v2226
        %v2496 = vmul.f32 %v2493, %v2227
        %2500 = vrot.lane.b32.xlu0 %v2494, 126
        %v2501 = vpop.permute.xlu0 %2500
        %2502 = vrot.lane.b32.xlu0 %v2495, 126
        %v2503 = vpop.permute.xlu0 %2502
        %2504 = vrot.lane.b32.xlu0 %v2496, 126
        %v2505 = vpop.permute.xlu0 %2504
        %v2509 = vadd.f32 %v2349, %v2501
        %v2510 = vadd.f32 %v2350, %v2503
        %v2511 = vadd.f32 %v2351, %v2505
        %s2512 = sld [smem:[#allocation14 + $0x44]]
        %v2513 = vstv %s2512
        %v2514 = vmul.f32 %v2513, %v2225
        %v2515 = vmul.f32 %v2513, %v2226
        %v2516 = vmul.f32 %v2513, %v2227
        %2520 = vrot.lane.b32.xlu0 %v2514, 126
        %v2521 = vpop.permute.xlu0 %2520
        %2522 = vrot.lane.b32.xlu0 %v2515, 126
        %v2523 = vpop.permute.xlu0 %2522
        %2524 = vrot.lane.b32.xlu0 %v2516, 126
        %v2525 = vpop.permute.xlu0 %2524
        %v2529 = vadd.f32 %v2369, %v2521
        %v2530 = vadd.f32 %v2370, %v2523
        %v2531 = vadd.f32 %v2371, %v2525
        %s2532 = sld [smem:[#allocation14 + $0x56]]
        %v2533 = vstv %s2532
        %v2534 = vmul.f32 %v2533, %v2225
        %v2535 = vmul.f32 %v2533, %v2226
        %v2536 = vmul.f32 %v2533, %v2227
        %2540 = vrot.lane.b32.xlu0 %v2534, 126
        %v2541 = vpop.permute.xlu0 %2540
        %2542 = vrot.lane.b32.xlu0 %v2535, 126
        %v2543 = vpop.permute.xlu0 %2542
        %2544 = vrot.lane.b32.xlu0 %v2536, 126
        %v2545 = vpop.permute.xlu0 %2544
        %v2549 = vadd.f32 %v2389, %v2541
        %v2550 = vadd.f32 %v2390, %v2543
        %v2551 = vadd.f32 %v2391, %v2545
        %s2552 = sld [smem:[#allocation14 + $0x68]]
        %v2553 = vstv %s2552
        %v2554 = vmul.f32 %v2553, %v2225
        %v2555 = vmul.f32 %v2553, %v2226
        %v2556 = vmul.f32 %v2553, %v2227
        %2560 = vrot.lane.b32.xlu0 %v2554, 126
        %v2561 = vpop.permute.xlu0 %2560
        %2562 = vrot.lane.b32.xlu0 %v2555, 126
        %v2563 = vpop.permute.xlu0 %2562
        %2564 = vrot.lane.b32.xlu0 %v2556, 126
        %v2565 = vpop.permute.xlu0 %2564
        %v2569 = vadd.f32 %v2409, %v2561
        %v2570 = vadd.f32 %v2410, %v2563
        %v2571 = vadd.f32 %v2411, %v2565
        %s2572 = sld [smem:[#allocation14 + $0x7a]]
        %v2573 = vstv %s2572
        %v2574 = vmul.f32 %v2573, %v2225
        %v2575 = vmul.f32 %v2573, %v2226
        %v2576 = vmul.f32 %v2573, %v2227
        %2580 = vrot.lane.b32.xlu0 %v2574, 126
        %v2581 = vpop.permute.xlu0 %2580
        %2582 = vrot.lane.b32.xlu0 %v2575, 126
        %v2583 = vpop.permute.xlu0 %2582
        %2584 = vrot.lane.b32.xlu0 %v2576, 126
        %v2585 = vpop.permute.xlu0 %2584
        %v2589 = vadd.f32 %v2429, %v2581
        %v2590 = vadd.f32 %v2430, %v2583
        %v2591 = vadd.f32 %v2431, %v2585
        %s2592 = sld [smem:[#allocation14 + $0x8c]]
        %v2593 = vstv %s2592
        %v2594 = vmul.f32 %v2593, %v2225
        %v2595 = vmul.f32 %v2593, %v2226
        %v2596 = vmul.f32 %v2593, %v2227
        %2600 = vrot.lane.b32.xlu0 %v2594, 126
        %v2601 = vpop.permute.xlu0 %2600
        %2602 = vrot.lane.b32.xlu0 %v2595, 126
        %v2603 = vpop.permute.xlu0 %2602
        %2604 = vrot.lane.b32.xlu0 %v2596, 126
        %v2605 = vpop.permute.xlu0 %2604
        %v2609 = vadd.f32 %v2449, %v2601
        %v2610 = vadd.f32 %v2450, %v2603
        %v2611 = vadd.f32 %v2451, %v2605
        %v2612 = vld [vmem:[%s674 + $0x2] sm:$0xff]
        %v2613 = vld [vmem:[%s674 + $0xa] sm:$0xff]
        %v2614 = vld [vmem:[%s674 + $0x12] sm:$0x3]
        %s2615 = sld [smem:[#allocation14 + $0xf]]
        %v2616 = vstv %s2615
        %v2617 = vmul.f32 %v2616, %v2612
        %v2618 = vmul.f32 %v2616, %v2613
        %v2619 = vmul.f32 %v2616, %v2614
        %v2620 = vadd.f32 %v2469, %v2617
        %v2621 = vadd.f32 %v2470, %v2618
        %v2622 = vadd.f32 %v2471, %v2619
        %s2623 = sld [smem:[#allocation14 + $0x21]]
        %v2624 = vstv %s2623
        %v2625 = vmul.f32 %v2624, %v2612
        %v2626 = vmul.f32 %v2624, %v2613
        %v2627 = vmul.f32 %v2624, %v2614
        %v2628 = vadd.f32 %v2489, %v2625
        %v2629 = vadd.f32 %v2490, %v2626
        %v2630 = vadd.f32 %v2491, %v2627
        %s2631 = sld [smem:[#allocation14 + $0x33]]
        %v2632 = vstv %s2631
        %v2633 = vmul.f32 %v2632, %v2612
        %v2634 = vmul.f32 %v2632, %v2613
        %v2635 = vmul.f32 %v2632, %v2614
        %v2636 = vadd.f32 %v2509, %v2633
        %v2637 = vadd.f32 %v2510, %v2634
        %v2638 = vadd.f32 %v2511, %v2635
        %s2639 = sld [smem:[#allocation14 + $0x45]]
        %v2640 = vstv %s2639
        %v2641 = vmul.f32 %v2640, %v2612
        %v2642 = vmul.f32 %v2640, %v2613
        %v2643 = vmul.f32 %v2640, %v2614
        %v2644 = vadd.f32 %v2529, %v2641
        %v2645 = vadd.f32 %v2530, %v2642
        %v2646 = vadd.f32 %v2531, %v2643
        %s2647 = sld [smem:[#allocation14 + $0x57]]
        %v2648 = vstv %s2647
        %v2649 = vmul.f32 %v2648, %v2612
        %v2650 = vmul.f32 %v2648, %v2613
        %v2651 = vmul.f32 %v2648, %v2614
        %v2652 = vadd.f32 %v2549, %v2649
        %v2653 = vadd.f32 %v2550, %v2650
        %v2654 = vadd.f32 %v2551, %v2651
        %s2655 = sld [smem:[#allocation14 + $0x69]]
        %v2656 = vstv %s2655
        %v2657 = vmul.f32 %v2656, %v2612
        %v2658 = vmul.f32 %v2656, %v2613
        %v2659 = vmul.f32 %v2656, %v2614
        %v2660 = vadd.f32 %v2569, %v2657
        %v2661 = vadd.f32 %v2570, %v2658
        %v2662 = vadd.f32 %v2571, %v2659
        %s2663 = sld [smem:[#allocation14 + $0x7b]]
        %v2664 = vstv %s2663
        %v2665 = vmul.f32 %v2664, %v2612
        %v2666 = vmul.f32 %v2664, %v2613
        %v2667 = vmul.f32 %v2664, %v2614
        %v2668 = vadd.f32 %v2589, %v2665
        %v2669 = vadd.f32 %v2590, %v2666
        %v2670 = vadd.f32 %v2591, %v2667
        %s2671 = sld [smem:[#allocation14 + $0x8d]]
        %v2672 = vstv %s2671
        %v2673 = vmul.f32 %v2672, %v2612
        %v2674 = vmul.f32 %v2672, %v2613
        %v2675 = vmul.f32 %v2672, %v2614
        %v2676 = vadd.f32 %v2609, %v2673
        %v2677 = vadd.f32 %v2610, %v2674
        %v2678 = vadd.f32 %v2611, %v2675
        %s2679 = sld [smem:[#allocation14 + $0x10]]
        %v2680 = vstv %s2679
        %v2681 = vmul.f32 %v2680, %v2612
        %v2682 = vmul.f32 %v2680, %v2613
        %v2683 = vmul.f32 %v2680, %v2614
        %2687 = vrot.lane.b32.xlu0 %v2681, 127
        %v2688 = vpop.permute.xlu0 %2687
        %2689 = vrot.lane.b32.xlu0 %v2682, 127
        %v2690 = vpop.permute.xlu0 %2689
        %2691 = vrot.lane.b32.xlu0 %v2683, 127
        %v2692 = vpop.permute.xlu0 %2691
        %v2696 = vadd.f32 %v2620, %v2688
        %v2697 = vadd.f32 %v2621, %v2690
        %v2698 = vadd.f32 %v2622, %v2692
        %s2699 = sld [smem:[#allocation14 + $0x22]]
        %v2700 = vstv %s2699
        %v2701 = vmul.f32 %v2700, %v2612
        %v2702 = vmul.f32 %v2700, %v2613
        %v2703 = vmul.f32 %v2700, %v2614
        %2707 = vrot.lane.b32.xlu0 %v2701, 127
        %v2708 = vpop.permute.xlu0 %2707
        %2709 = vrot.lane.b32.xlu0 %v2702, 127
        %v2710 = vpop.permute.xlu0 %2709
        %2711 = vrot.lane.b32.xlu0 %v2703, 127
        %v2712 = vpop.permute.xlu0 %2711
        %v2716 = vadd.f32 %v2628, %v2708
        %v2717 = vadd.f32 %v2629, %v2710
        %v2718 = vadd.f32 %v2630, %v2712
        %s2719 = sld [smem:[#allocation14 + $0x34]]
        %v2720 = vstv %s2719
        %v2721 = vmul.f32 %v2720, %v2612
        %v2722 = vmul.f32 %v2720, %v2613
        %v2723 = vmul.f32 %v2720, %v2614
        %2727 = vrot.lane.b32.xlu0 %v2721, 127
        %v2728 = vpop.permute.xlu0 %2727
        %2729 = vrot.lane.b32.xlu0 %v2722, 127
        %v2730 = vpop.permute.xlu0 %2729
        %2731 = vrot.lane.b32.xlu0 %v2723, 127
        %v2732 = vpop.permute.xlu0 %2731
        %v2736 = vadd.f32 %v2636, %v2728
        %v2737 = vadd.f32 %v2637, %v2730
        %v2738 = vadd.f32 %v2638, %v2732
        %s2739 = sld [smem:[#allocation14 + $0x46]]
        %v2740 = vstv %s2739
        %v2741 = vmul.f32 %v2740, %v2612
        %v2742 = vmul.f32 %v2740, %v2613
        %v2743 = vmul.f32 %v2740, %v2614
        %2747 = vrot.lane.b32.xlu0 %v2741, 127
        %v2748 = vpop.permute.xlu0 %2747
        %2749 = vrot.lane.b32.xlu0 %v2742, 127
        %v2750 = vpop.permute.xlu0 %2749
        %2751 = vrot.lane.b32.xlu0 %v2743, 127
        %v2752 = vpop.permute.xlu0 %2751
        %v2756 = vadd.f32 %v2644, %v2748
        %v2757 = vadd.f32 %v2645, %v2750
        %v2758 = vadd.f32 %v2646, %v2752
        %s2759 = sld [smem:[#allocation14 + $0x58]]
        %v2760 = vstv %s2759
        %v2761 = vmul.f32 %v2760, %v2612
        %v2762 = vmul.f32 %v2760, %v2613
        %v2763 = vmul.f32 %v2760, %v2614
        %2767 = vrot.lane.b32.xlu0 %v2761, 127
        %v2768 = vpop.permute.xlu0 %2767
        %2769 = vrot.lane.b32.xlu0 %v2762, 127
        %v2770 = vpop.permute.xlu0 %2769
        %2771 = vrot.lane.b32.xlu0 %v2763, 127
        %v2772 = vpop.permute.xlu0 %2771
        %v2776 = vadd.f32 %v2652, %v2768
        %v2777 = vadd.f32 %v2653, %v2770
        %v2778 = vadd.f32 %v2654, %v2772
        %s2779 = sld [smem:[#allocation14 + $0x6a]]
        %v2780 = vstv %s2779
        %v2781 = vmul.f32 %v2780, %v2612
        %v2782 = vmul.f32 %v2780, %v2613
        %v2783 = vmul.f32 %v2780, %v2614
        %2787 = vrot.lane.b32.xlu0 %v2781, 127
        %v2788 = vpop.permute.xlu0 %2787
        %2789 = vrot.lane.b32.xlu0 %v2782, 127
        %v2790 = vpop.permute.xlu0 %2789
        %2791 = vrot.lane.b32.xlu0 %v2783, 127
        %v2792 = vpop.permute.xlu0 %2791
        %v2796 = vadd.f32 %v2660, %v2788
        %v2797 = vadd.f32 %v2661, %v2790
        %v2798 = vadd.f32 %v2662, %v2792
        %s2799 = sld [smem:[#allocation14 + $0x7c]]
        %v2800 = vstv %s2799
        %v2801 = vmul.f32 %v2800, %v2612
        %v2802 = vmul.f32 %v2800, %v2613
        %v2803 = vmul.f32 %v2800, %v2614
        %2807 = vrot.lane.b32.xlu0 %v2801, 127
        %v2808 = vpop.permute.xlu0 %2807
        %2809 = vrot.lane.b32.xlu0 %v2802, 127
        %v2810 = vpop.permute.xlu0 %2809
        %2811 = vrot.lane.b32.xlu0 %v2803, 127
        %v2812 = vpop.permute.xlu0 %2811
        %v2816 = vadd.f32 %v2668, %v2808
        %v2817 = vadd.f32 %v2669, %v2810
        %v2818 = vadd.f32 %v2670, %v2812
        %s2819 = sld [smem:[#allocation14 + $0x8e]]
        %v2820 = vstv %s2819
        %v2821 = vmul.f32 %v2820, %v2612
        %v2822 = vmul.f32 %v2820, %v2613
        %v2823 = vmul.f32 %v2820, %v2614
        %2827 = vrot.lane.b32.xlu0 %v2821, 127
        %v2828 = vpop.permute.xlu0 %2827
        %2829 = vrot.lane.b32.xlu0 %v2822, 127
        %v2830 = vpop.permute.xlu0 %2829
        %2831 = vrot.lane.b32.xlu0 %v2823, 127
        %v2832 = vpop.permute.xlu0 %2831
        %v2836 = vadd.f32 %v2676, %v2828
        %v2837 = vadd.f32 %v2677, %v2830
        %v2838 = vadd.f32 %v2678, %v2832
        %s2839 = sld [smem:[#allocation14 + $0x11]]
        %v2840 = vstv %s2839
        %v2841 = vmul.f32 %v2840, %v2612
        %v2842 = vmul.f32 %v2840, %v2613
        %v2843 = vmul.f32 %v2840, %v2614
        %2847 = vrot.lane.b32.xlu0 %v2841, 126
        %v2848 = vpop.permute.xlu0 %2847
        %2849 = vrot.lane.b32.xlu0 %v2842, 126
        %v2850 = vpop.permute.xlu0 %2849
        %2851 = vrot.lane.b32.xlu0 %v2843, 126
        %v2852 = vpop.permute.xlu0 %2851
        %v2856 = vadd.f32 %v2696, %v2848
        %v2857 = vadd.f32 %v2697, %v2850
        %v2858 = vadd.f32 %v2698, %v2852
        %s2859 = sld [smem:[#allocation14 + $0x23]]
        %v2860 = vstv %s2859
        %v2861 = vmul.f32 %v2860, %v2612
        %v2862 = vmul.f32 %v2860, %v2613
        %v2863 = vmul.f32 %v2860, %v2614
        %2867 = vrot.lane.b32.xlu0 %v2861, 126
        %v2868 = vpop.permute.xlu0 %2867
        %2869 = vrot.lane.b32.xlu0 %v2862, 126
        %v2870 = vpop.permute.xlu0 %2869
        %2871 = vrot.lane.b32.xlu0 %v2863, 126
        %v2872 = vpop.permute.xlu0 %2871
        %v2876 = vadd.f32 %v2716, %v2868
        %v2877 = vadd.f32 %v2717, %v2870
        %v2878 = vadd.f32 %v2718, %v2872
        %s2879 = sld [smem:[#allocation14 + $0x35]]
        %v2880 = vstv %s2879
        %v2881 = vmul.f32 %v2880, %v2612
        %v2882 = vmul.f32 %v2880, %v2613
        %v2883 = vmul.f32 %v2880, %v2614
        %2887 = vrot.lane.b32.xlu0 %v2881, 126
        %v2888 = vpop.permute.xlu0 %2887
        %2889 = vrot.lane.b32.xlu0 %v2882, 126
        %v2890 = vpop.permute.xlu0 %2889
        %2891 = vrot.lane.b32.xlu0 %v2883, 126
        %v2892 = vpop.permute.xlu0 %2891
        %v2896 = vadd.f32 %v2736, %v2888
        %v2897 = vadd.f32 %v2737, %v2890
        %v2898 = vadd.f32 %v2738, %v2892
        %s2899 = sld [smem:[#allocation14 + $0x47]]
        %v2900 = vstv %s2899
        %v2901 = vmul.f32 %v2900, %v2612
        %v2902 = vmul.f32 %v2900, %v2613
        %v2903 = vmul.f32 %v2900, %v2614
        %2907 = vrot.lane.b32.xlu0 %v2901, 126
        %v2908 = vpop.permute.xlu0 %2907
        %2909 = vrot.lane.b32.xlu0 %v2902, 126
        %v2910 = vpop.permute.xlu0 %2909
        %2911 = vrot.lane.b32.xlu0 %v2903, 126
        %v2912 = vpop.permute.xlu0 %2911
        %v2916 = vadd.f32 %v2756, %v2908
        %v2917 = vadd.f32 %v2757, %v2910
        %v2918 = vadd.f32 %v2758, %v2912
        %s2919 = sld [smem:[#allocation14 + $0x59]]
        %v2920 = vstv %s2919
        %v2921 = vmul.f32 %v2920, %v2612
        %v2922 = vmul.f32 %v2920, %v2613
        %v2923 = vmul.f32 %v2920, %v2614
        %2927 = vrot.lane.b32.xlu0 %v2921, 126
        %v2928 = vpop.permute.xlu0 %2927
        %2929 = vrot.lane.b32.xlu0 %v2922, 126
        %v2930 = vpop.permute.xlu0 %2929
        %2931 = vrot.lane.b32.xlu0 %v2923, 126
        %v2932 = vpop.permute.xlu0 %2931
        %v2936 = vadd.f32 %v2776, %v2928
        %v2937 = vadd.f32 %v2777, %v2930
        %v2938 = vadd.f32 %v2778, %v2932
        %s2939 = sld [smem:[#allocation14 + $0x6b]]
        %v2940 = vstv %s2939
        %v2941 = vmul.f32 %v2940, %v2612
        %v2942 = vmul.f32 %v2940, %v2613
        %v2943 = vmul.f32 %v2940, %v2614
        %2947 = vrot.lane.b32.xlu0 %v2941, 126
        %v2948 = vpop.permute.xlu0 %2947
        %2949 = vrot.lane.b32.xlu0 %v2942, 126
        %v2950 = vpop.permute.xlu0 %2949
        %2951 = vrot.lane.b32.xlu0 %v2943, 126
        %v2952 = vpop.permute.xlu0 %2951
        %v2956 = vadd.f32 %v2796, %v2948
        %v2957 = vadd.f32 %v2797, %v2950
        %v2958 = vadd.f32 %v2798, %v2952
        %s2959 = sld [smem:[#allocation14 + $0x7d]]
        %v2960 = vstv %s2959
        %v2961 = vmul.f32 %v2960, %v2612
        %v2962 = vmul.f32 %v2960, %v2613
        %v2963 = vmul.f32 %v2960, %v2614
        %2967 = vrot.lane.b32.xlu0 %v2961, 126
        %v2968 = vpop.permute.xlu0 %2967
        %2969 = vrot.lane.b32.xlu0 %v2962, 126
        %v2970 = vpop.permute.xlu0 %2969
        %2971 = vrot.lane.b32.xlu0 %v2963, 126
        %v2972 = vpop.permute.xlu0 %2971
        %v2976 = vadd.f32 %v2816, %v2968
        %v2977 = vadd.f32 %v2817, %v2970
        %v2978 = vadd.f32 %v2818, %v2972
        %s2979 = sld [smem:[#allocation14 + $0x8f]]
        %v2980 = vstv %s2979
        %v2981 = vmul.f32 %v2980, %v2612
        %v2982 = vmul.f32 %v2980, %v2613
        %v2983 = vmul.f32 %v2980, %v2614
        %2987 = vrot.lane.b32.xlu0 %v2981, 126
        %v2988 = vpop.permute.xlu0 %2987
        %2989 = vrot.lane.b32.xlu0 %v2982, 126
        %v2990 = vpop.permute.xlu0 %2989
        %2991 = vrot.lane.b32.xlu0 %v2983, 126
        %v2992 = vpop.permute.xlu0 %2991
        %v2996 = vadd.f32 %v2836, %v2988
        %v2997 = vadd.f32 %v2837, %v2990
        %v2998 = vadd.f32 %v2838, %v2992
        %v2999 = vlaneseq
        %v3000 = vshrl.u32 %v2999, 7
        %v3001 = vadd.s32 %v3000, 8
        %v3002 = vadd.s32 %v3000, 16
        %v3003 = vlaneseq
        %v3004 = vand.u32 %v3003, 127
        %vm3005 = vcmp.ge.s32.totalorder %v3000, 1
        %vm3006 = vcmp.ge.s32.totalorder %v3001, 1
        %vm3007 = vcmp.ge.s32.totalorder %v3002, 1
        %vm3008 = vcmp.le.s32.totalorder %v3000, 16
        %vm3009 = vcmp.le.s32.totalorder %v3001, 16
        %vm3010 = vcmp.le.s32.totalorder %v3002, 16
        %vm3011 = vmand %vm3005, %vm3008
        %vm3012 = vmand %vm3006, %vm3009
        %vm3013 = vmand %vm3007, %vm3010
        %vm3014 = vcmp.ge.s32.totalorder %v3004, 1
        %vm3015 = vmand %vm3011, %vm3014
        %vm3016 = vmand %vm3012, %vm3014
        %vm3017 = vmand %vm3013, %vm3014
        %vm3018 = vcmp.le.s32.totalorder %v3004, 16
        %vm3019 = vmand %vm3015, %vm3018
        %vm3020 = vmand %vm3016, %vm3018
        %vm3021 = vmand %vm3017, %vm3018
        %s3022 = sld [smem:[#allocation15]]
        %v3023 = vstv %s3022
        %v3024 = vadd.f32 %v2856, %v3023
        %v3025 = vadd.f32 %v2857, %v3023
        %v3026 = vadd.f32 %v2858, %v3023
        %v3027 = vmax.f32 %v3024, 0.0
        %v3028 = vmax.f32 %v3025, 0.0
        %v3029 = vmax.f32 %v3026, 0.0
        %v3030 = vsel %vm3019, %v3027, 0.0
        %v3031 = vsel %vm3020, %v3028, 0.0
        %v3032 = vsel %vm3021, %v3029, 0.0
        %vm3033 = vcmask 146432
        %3034 = vst.msk [vmem:[#allocation3] sm:$0xff] %vm3033, %v3030
        %3035 = vst.msk [vmem:[#allocation3 + $0x8] sm:$0xff] %vm3033, %v3031
        %vm3036 = vcmask 140288
        %3037 = vst.msk [vmem:[#allocation3 + $0x10] sm:$0x3] %vm3036, %v3032
        %s3038 = sld [smem:[#allocation15 + $0x1]]
        %v3039 = vstv %s3038
        %v3040 = vadd.f32 %v2876, %v3039
        %v3041 = vadd.f32 %v2877, %v3039
        %v3042 = vadd.f32 %v2878, %v3039
        %v3043 = vmax.f32 %v3040, 0.0
        %v3044 = vmax.f32 %v3041, 0.0
        %v3045 = vmax.f32 %v3042, 0.0
        %v3046 = vsel %vm3019, %v3043, 0.0
        %v3047 = vsel %vm3020, %v3044, 0.0
        %v3048 = vsel %vm3021, %v3045, 0.0
        %s3049 = scalar_lea.vmem [#allocation3], 24
        %3050 = vst.msk [vmem:[%s3049] sm:$0xff] %vm3033, %v3046
        %3051 = vst.msk [vmem:[%s3049 + $0x8] sm:$0xff] %vm3033, %v3047
        %3052 = vst.msk [vmem:[%s3049 + $0x10] sm:$0x3] %vm3036, %v3048
        %s3053 = sld [smem:[#allocation15 + $0x2]]
        %v3054 = vstv %s3053
        %v3055 = vadd.f32 %v2896, %v3054
        %v3056 = vadd.f32 %v2897, %v3054
        %v3057 = vadd.f32 %v2898, %v3054
        %v3058 = vmax.f32 %v3055, 0.0
        %v3059 = vmax.f32 %v3056, 0.0
        %v3060 = vmax.f32 %v3057, 0.0
        %v3061 = vsel %vm3019, %v3058, 0.0
        %v3062 = vsel %vm3020, %v3059, 0.0
        %v3063 = vsel %vm3021, %v3060, 0.0
        %s3064 = scalar_lea.vmem [#allocation3], 48
        %3065 = vst.msk [vmem:[%s3064] sm:$0xff] %vm3033, %v3061
        %3066 = vst.msk [vmem:[%s3064 + $0x8] sm:$0xff] %vm3033, %v3062
        %3067 = vst.msk [vmem:[%s3064 + $0x10] sm:$0x3] %vm3036, %v3063
        %s3068 = sld [smem:[#allocation15 + $0x3]]
        %v3069 = vstv %s3068
        %v3070 = vadd.f32 %v2916, %v3069
        %v3071 = vadd.f32 %v2917, %v3069
        %v3072 = vadd.f32 %v2918, %v3069
        %v3073 = vmax.f32 %v3070, 0.0
        %v3074 = vmax.f32 %v3071, 0.0
        %v3075 = vmax.f32 %v3072, 0.0
        %v3076 = vsel %vm3019, %v3073, 0.0
        %v3077 = vsel %vm3020, %v3074, 0.0
        %v3078 = vsel %vm3021, %v3075, 0.0
        %s3079 = scalar_lea.vmem [#allocation3], 72
        %3080 = vst.msk [vmem:[%s3079] sm:$0xff] %vm3033, %v3076
        %3081 = vst.msk [vmem:[%s3079 + $0x8] sm:$0xff] %vm3033, %v3077
        %3082 = vst.msk [vmem:[%s3079 + $0x10] sm:$0x3] %vm3036, %v3078
        %s3083 = sld [smem:[#allocation15 + $0x4]]
        %v3084 = vstv %s3083
        %v3085 = vadd.f32 %v2936, %v3084
        %v3086 = vadd.f32 %v2937, %v3084
        %v3087 = vadd.f32 %v2938, %v3084
        %v3088 = vmax.f32 %v3085, 0.0
        %v3089 = vmax.f32 %v3086, 0.0
        %v3090 = vmax.f32 %v3087, 0.0
        %v3091 = vsel %vm3019, %v3088, 0.0
        %v3092 = vsel %vm3020, %v3089, 0.0
        %v3093 = vsel %vm3021, %v3090, 0.0
        %s3094 = scalar_lea.vmem [#allocation3], 96
        %3095 = vst.msk [vmem:[%s3094] sm:$0xff] %vm3033, %v3091
        %3096 = vst.msk [vmem:[%s3094 + $0x8] sm:$0xff] %vm3033, %v3092
        %3097 = vst.msk [vmem:[%s3094 + $0x10] sm:$0x3] %vm3036, %v3093
        %s3098 = sld [smem:[#allocation15 + $0x5]]
        %v3099 = vstv %s3098
        %v3100 = vadd.f32 %v2956, %v3099
        %v3101 = vadd.f32 %v2957, %v3099
        %v3102 = vadd.f32 %v2958, %v3099
        %v3103 = vmax.f32 %v3100, 0.0
        %v3104 = vmax.f32 %v3101, 0.0
        %v3105 = vmax.f32 %v3102, 0.0
        %v3106 = vsel %vm3019, %v3103, 0.0
        %v3107 = vsel %vm3020, %v3104, 0.0
        %v3108 = vsel %vm3021, %v3105, 0.0
        %s3109 = scalar_lea.vmem [#allocation3], 120
        %3110 = vst.msk [vmem:[%s3109] sm:$0xff] %vm3033, %v3106
        %3111 = vst.msk [vmem:[%s3109 + $0x8] sm:$0xff] %vm3033, %v3107
        %3112 = vst.msk [vmem:[%s3109 + $0x10] sm:$0x3] %vm3036, %v3108
        %s3113 = sld [smem:[#allocation15 + $0x6]]
        %v3114 = vstv %s3113
        %v3115 = vadd.f32 %v2976, %v3114
        %v3116 = vadd.f32 %v2977, %v3114
        %v3117 = vadd.f32 %v2978, %v3114
        %v3118 = vmax.f32 %v3115, 0.0
        %v3119 = vmax.f32 %v3116, 0.0
        %v3120 = vmax.f32 %v3117, 0.0
        %v3121 = vsel %vm3019, %v3118, 0.0
        %v3122 = vsel %vm3020, %v3119, 0.0
        %v3123 = vsel %vm3021, %v3120, 0.0
        %s3124 = scalar_lea.vmem [#allocation3], 144
        %3125 = vst.msk [vmem:[%s3124] sm:$0xff] %vm3033, %v3121
        %3126 = vst.msk [vmem:[%s3124 + $0x8] sm:$0xff] %vm3033, %v3122
        %3127 = vst.msk [vmem:[%s3124 + $0x10] sm:$0x3] %vm3036, %v3123
        %s3128 = sld [smem:[#allocation15 + $0x7]]
        %v3129 = vstv %s3128
        %v3130 = vadd.f32 %v2996, %v3129
        %v3131 = vadd.f32 %v2997, %v3129
        %v3132 = vadd.f32 %v2998, %v3129
        %v3133 = vmax.f32 %v3130, 0.0
        %v3134 = vmax.f32 %v3131, 0.0
        %v3135 = vmax.f32 %v3132, 0.0
        %v3136 = vsel %vm3019, %v3133, 0.0
        %v3137 = vsel %vm3020, %v3134, 0.0
        %v3138 = vsel %vm3021, %v3135, 0.0
        %s3139 = scalar_lea.vmem [#allocation3], 168
        %3140 = vst.msk [vmem:[%s3139] sm:$0xff] %vm3033, %v3136
        %3141 = vst.msk [vmem:[%s3139 + $0x8] sm:$0xff] %vm3033, %v3137
        %3142 = vst.msk [vmem:[%s3139 + $0x10] sm:$0x3] %vm3036, %v3138
        %v3143 = vld [vmem:[#allocation3] sm:$0xff]
        %v3144 = vld [vmem:[#allocation3 + $0x8] sm:$0xff]
        %s3145 = sld [smem:[#allocation16]]
        %v3146 = vstv %s3145
        %v3147 = vmul.f32 %v3146, %v3143
        %v3148 = vmul.f32 %v3146, %v3144
        %v3149 = vadd.f32 %v3147, 0.0
        %v3150 = vadd.f32 %v3148, 0.0
        %s3151 = sld [smem:[#allocation16 + $0x48]]
        %v3152 = vstv %s3151
        %v3153 = vmul.f32 %v3152, %v3143
        %v3154 = vmul.f32 %v3152, %v3144
        %v3155 = vadd.f32 %v3153, 0.0
        %v3156 = vadd.f32 %v3154, 0.0
        %s3157 = sld [smem:[#allocation16 + $0x1]]
        %v3158 = vstv %s3157
        %v3159 = vmul.f32 %v3158, %v3143
        %v3160 = vmul.f32 %v3158, %v3144
        %3163 = vrot.lane.b32.xlu0 %v3159, 127
        %v3164 = vpop.permute.xlu0 %3163
        %3165 = vrot.lane.b32.xlu0 %v3160, 127
        %v3166 = vpop.permute.xlu0 %3165
        %v3169 = vadd.f32 %v3149, %v3164
        %v3170 = vadd.f32 %v3150, %v3166
        %s3171 = sld [smem:[#allocation16 + $0x49]]
        %v3172 = vstv %s3171
        %v3173 = vmul.f32 %v3172, %v3143
        %v3174 = vmul.f32 %v3172, %v3144
        %3177 = vrot.lane.b32.xlu0 %v3173, 127
        %v3178 = vpop.permute.xlu0 %3177
        %3179 = vrot.lane.b32.xlu0 %v3174, 127
        %v3180 = vpop.permute.xlu0 %3179
        %v3183 = vadd.f32 %v3155, %v3178
        %v3184 = vadd.f32 %v3156, %v3180
        %s3185 = sld [smem:[#allocation16 + $0x2]]
        %v3186 = vstv %s3185
        %v3187 = vmul.f32 %v3186, %v3143
        %v3188 = vmul.f32 %v3186, %v3144
        %3191 = vrot.lane.b32.xlu0 %v3187, 126
        %v3192 = vpop.permute.xlu0 %3191
        %3193 = vrot.lane.b32.xlu0 %v3188, 126
        %v3194 = vpop.permute.xlu0 %3193
        %v3197 = vadd.f32 %v3169, %v3192
        %v3198 = vadd.f32 %v3170, %v3194
        %s3199 = sld [smem:[#allocation16 + $0x4a]]
        %v3200 = vstv %s3199
        %v3201 = vmul.f32 %v3200, %v3143
        %v3202 = vmul.f32 %v3200, %v3144
        %3205 = vrot.lane.b32.xlu0 %v3201, 126
        %v3206 = vpop.permute.xlu0 %3205
        %3207 = vrot.lane.b32.xlu0 %v3202, 126
        %v3208 = vpop.permute.xlu0 %3207
        %v3211 = vadd.f32 %v3183, %v3206
        %v3212 = vadd.f32 %v3184, %v3208
        %v3213 = vld [vmem:[#allocation3 + $0x1] sm:$0xff]
        %v3214 = vld [vmem:[#allocation3 + $0x9] sm:$0xff]
        %s3215 = sld [smem:[#allocation16 + $0x3]]
        %v3216 = vstv %s3215
        %v3217 = vmul.f32 %v3216, %v3213
        %v3218 = vmul.f32 %v3216, %v3214
        %v3219 = vadd.f32 %v3197, %v3217
        %v3220 = vadd.f32 %v3198, %v3218
        %s3221 = sld [smem:[#allocation16 + $0x4b]]
        %v3222 = vstv %s3221
        %v3223 = vmul.f32 %v3222, %v3213
        %v3224 = vmul.f32 %v3222, %v3214
        %v3225 = vadd.f32 %v3211, %v3223
        %v3226 = vadd.f32 %v3212, %v3224
        %s3227 = sld [smem:[#allocation16 + $0x4]]
        %v3228 = vstv %s3227
        %v3229 = vmul.f32 %v3228, %v3213
        %v3230 = vmul.f32 %v3228, %v3214
        %3233 = vrot.lane.b32.xlu0 %v3229, 127
        %v3234 = vpop.permute.xlu0 %3233
        %3235 = vrot.lane.b32.xlu0 %v3230, 127
        %v3236 = vpop.permute.xlu0 %3235
        %v3239 = vadd.f32 %v3219, %v3234
        %v3240 = vadd.f32 %v3220, %v3236
        %s3241 = sld [smem:[#allocation16 + $0x4c]]
        %v3242 = vstv %s3241
        %v3243 = vmul.f32 %v3242, %v3213
        %v3244 = vmul.f32 %v3242, %v3214
        %3247 = vrot.lane.b32.xlu0 %v3243, 127
        %v3248 = vpop.permute.xlu0 %3247
        %3249 = vrot.lane.b32.xlu0 %v3244, 127
        %v3250 = vpop.permute.xlu0 %3249
        %v3253 = vadd.f32 %v3225, %v3248
        %v3254 = vadd.f32 %v3226, %v3250
        %s3255 = sld [smem:[#allocation16 + $0x5]]
        %v3256 = vstv %s3255
        %v3257 = vmul.f32 %v3256, %v3213
        %v3258 = vmul.f32 %v3256, %v3214
        %3261 = vrot.lane.b32.xlu0 %v3257, 126
        %v3262 = vpop.permute.xlu0 %3261
        %3263 = vrot.lane.b32.xlu0 %v3258, 126
        %v3264 = vpop.permute.xlu0 %3263
        %v3267 = vadd.f32 %v3239, %v3262
        %v3268 = vadd.f32 %v3240, %v3264
        %s3269 = sld [smem:[#allocation16 + $0x4d]]
        %v3270 = vstv %s3269
        %v3271 = vmul.f32 %v3270, %v3213
        %v3272 = vmul.f32 %v3270, %v3214
        %3275 = vrot.lane.b32.xlu0 %v3271, 126
        %v3276 = vpop.permute.xlu0 %3275
        %3277 = vrot.lane.b32.xlu0 %v3272, 126
        %v3278 = vpop.permute.xlu0 %3277
        %v3281 = vadd.f32 %v3253, %v3276
        %v3282 = vadd.f32 %v3254, %v3278
        %v3283 = vld [vmem:[#allocation3 + $0x2] sm:$0xff]
        %v3284 = vld [vmem:[#allocation3 + $0xa] sm:$0xff]
        %s3285 = sld [smem:[#allocation16 + $0x6]]
        %v3286 = vstv %s3285
        %v3287 = vmul.f32 %v3286, %v3283
        %v3288 = vmul.f32 %v3286, %v3284
        %v3289 = vadd.f32 %v3267, %v3287
        %v3290 = vadd.f32 %v3268, %v3288
        %s3291 = sld [smem:[#allocation16 + $0x4e]]
        %v3292 = vstv %s3291
        %v3293 = vmul.f32 %v3292, %v3283
        %v3294 = vmul.f32 %v3292, %v3284
        %v3295 = vadd.f32 %v3281, %v3293
        %v3296 = vadd.f32 %v3282, %v3294
        %s3297 = sld [smem:[#allocation16 + $0x7]]
        %v3298 = vstv %s3297
        %v3299 = vmul.f32 %v3298, %v3283
        %v3300 = vmul.f32 %v3298, %v3284
        %3303 = vrot.lane.b32.xlu0 %v3299, 127
        %v3304 = vpop.permute.xlu0 %3303
        %3305 = vrot.lane.b32.xlu0 %v3300, 127
        %v3306 = vpop.permute.xlu0 %3305
        %v3309 = vadd.f32 %v3289, %v3304
        %v3310 = vadd.f32 %v3290, %v3306
        %s3311 = sld [smem:[#allocation16 + $0x4f]]
        %v3312 = vstv %s3311
        %v3313 = vmul.f32 %v3312, %v3283
        %v3314 = vmul.f32 %v3312, %v3284
        %3317 = vrot.lane.b32.xlu0 %v3313, 127
        %v3318 = vpop.permute.xlu0 %3317
        %3319 = vrot.lane.b32.xlu0 %v3314, 127
        %v3320 = vpop.permute.xlu0 %3319
        %v3323 = vadd.f32 %v3295, %v3318
        %v3324 = vadd.f32 %v3296, %v3320
        %s3325 = sld [smem:[#allocation16 + $0x8]]
        %v3326 = vstv %s3325
        %v3327 = vmul.f32 %v3326, %v3283
        %v3328 = vmul.f32 %v3326, %v3284
        %3331 = vrot.lane.b32.xlu0 %v3327, 126
        %v3332 = vpop.permute.xlu0 %3331
        %3333 = vrot.lane.b32.xlu0 %v3328, 126
        %v3334 = vpop.permute.xlu0 %3333
        %v3337 = vadd.f32 %v3309, %v3332
        %v3338 = vadd.f32 %v3310, %v3334
        %s3339 = sld [smem:[#allocation16 + $0x50]]
        %v3340 = vstv %s3339
        %v3341 = vmul.f32 %v3340, %v3283
        %v3342 = vmul.f32 %v3340, %v3284
        %3345 = vrot.lane.b32.xlu0 %v3341, 126
        %v3346 = vpop.permute.xlu0 %3345
        %3347 = vrot.lane.b32.xlu0 %v3342, 126
        %v3348 = vpop.permute.xlu0 %3347
        %v3351 = vadd.f32 %v3323, %v3346
        %v3352 = vadd.f32 %v3324, %v3348
        %v3353 = vld [vmem:[%s3049] sm:$0xff]
        %v3354 = vld [vmem:[%s3049 + $0x8] sm:$0xff]
        %s3355 = sld [smem:[#allocation16 + $0x9]]
        %v3356 = vstv %s3355
        %v3357 = vmul.f32 %v3356, %v3353
        %v3358 = vmul.f32 %v3356, %v3354
        %v3359 = vadd.f32 %v3337, %v3357
        %v3360 = vadd.f32 %v3338, %v3358
        %s3361 = sld [smem:[#allocation16 + $0x51]]
        %v3362 = vstv %s3361
        %v3363 = vmul.f32 %v3362, %v3353
        %v3364 = vmul.f32 %v3362, %v3354
        %v3365 = vadd.f32 %v3351, %v3363
        %v3366 = vadd.f32 %v3352, %v3364
        %s3367 = sld [smem:[#allocation16 + $0xa]]
        %v3368 = vstv %s3367
        %v3369 = vmul.f32 %v3368, %v3353
        %v3370 = vmul.f32 %v3368, %v3354
        %3373 = vrot.lane.b32.xlu0 %v3369, 127
        %v3374 = vpop.permute.xlu0 %3373
        %3375 = vrot.lane.b32.xlu0 %v3370, 127
        %v3376 = vpop.permute.xlu0 %3375
        %v3379 = vadd.f32 %v3359, %v3374
        %v3380 = vadd.f32 %v3360, %v3376
        %s3381 = sld [smem:[#allocation16 + $0x52]]
        %v3382 = vstv %s3381
        %v3383 = vmul.f32 %v3382, %v3353
        %v3384 = vmul.f32 %v3382, %v3354
        %3387 = vrot.lane.b32.xlu0 %v3383, 127
        %v3388 = vpop.permute.xlu0 %3387
        %3389 = vrot.lane.b32.xlu0 %v3384, 127
        %v3390 = vpop.permute.xlu0 %3389
        %v3393 = vadd.f32 %v3365, %v3388
        %v3394 = vadd.f32 %v3366, %v3390
        %s3395 = sld [smem:[#allocation16 + $0xb]]
        %v3396 = vstv %s3395
        %v3397 = vmul.f32 %v3396, %v3353
        %v3398 = vmul.f32 %v3396, %v3354
        %3401 = vrot.lane.b32.xlu0 %v3397, 126
        %v3402 = vpop.permute.xlu0 %3401
        %3403 = vrot.lane.b32.xlu0 %v3398, 126
        %v3404 = vpop.permute.xlu0 %3403
        %v3407 = vadd.f32 %v3379, %v3402
        %v3408 = vadd.f32 %v3380, %v3404
        %s3409 = sld [smem:[#allocation16 + $0x53]]
        %v3410 = vstv %s3409
        %v3411 = vmul.f32 %v3410, %v3353
        %v3412 = vmul.f32 %v3410, %v3354
        %3415 = vrot.lane.b32.xlu0 %v3411, 126
        %v3416 = vpop.permute.xlu0 %3415
        %3417 = vrot.lane.b32.xlu0 %v3412, 126
        %v3418 = vpop.permute.xlu0 %3417
        %v3421 = vadd.f32 %v3393, %v3416
        %v3422 = vadd.f32 %v3394, %v3418
        %v3423 = vld [vmem:[%s3049 + $0x1] sm:$0xff]
        %v3424 = vld [vmem:[%s3049 + $0x9] sm:$0xff]
        %s3425 = sld [smem:[#allocation16 + $0xc]]
        %v3426 = vstv %s3425
        %v3427 = vmul.f32 %v3426, %v3423
        %v3428 = vmul.f32 %v3426, %v3424
        %v3429 = vadd.f32 %v3407, %v3427
        %v3430 = vadd.f32 %v3408, %v3428
        %s3431 = sld [smem:[#allocation16 + $0x54]]
        %v3432 = vstv %s3431
        %v3433 = vmul.f32 %v3432, %v3423
        %v3434 = vmul.f32 %v3432, %v3424
        %v3435 = vadd.f32 %v3421, %v3433
        %v3436 = vadd.f32 %v3422, %v3434
        %s3437 = sld [smem:[#allocation16 + $0xd]]
        %v3438 = vstv %s3437
        %v3439 = vmul.f32 %v3438, %v3423
        %v3440 = vmul.f32 %v3438, %v3424
        %3443 = vrot.lane.b32.xlu0 %v3439, 127
        %v3444 = vpop.permute.xlu0 %3443
        %3445 = vrot.lane.b32.xlu0 %v3440, 127
        %v3446 = vpop.permute.xlu0 %3445
        %v3449 = vadd.f32 %v3429, %v3444
        %v3450 = vadd.f32 %v3430, %v3446
        %s3451 = sld [smem:[#allocation16 + $0x55]]
        %v3452 = vstv %s3451
        %v3453 = vmul.f32 %v3452, %v3423
        %v3454 = vmul.f32 %v3452, %v3424
        %3457 = vrot.lane.b32.xlu0 %v3453, 127
        %v3458 = vpop.permute.xlu0 %3457
        %3459 = vrot.lane.b32.xlu0 %v3454, 127
        %v3460 = vpop.permute.xlu0 %3459
        %v3463 = vadd.f32 %v3435, %v3458
        %v3464 = vadd.f32 %v3436, %v3460
        %s3465 = sld [smem:[#allocation16 + $0xe]]
        %v3466 = vstv %s3465
        %v3467 = vmul.f32 %v3466, %v3423
        %v3468 = vmul.f32 %v3466, %v3424
        %3471 = vrot.lane.b32.xlu0 %v3467, 126
        %v3472 = vpop.permute.xlu0 %3471
        %3473 = vrot.lane.b32.xlu0 %v3468, 126
        %v3474 = vpop.permute.xlu0 %3473
        %v3477 = vadd.f32 %v3449, %v3472
        %v3478 = vadd.f32 %v3450, %v3474
        %s3479 = sld [smem:[#allocation16 + $0x56]]
        %v3480 = vstv %s3479
        %v3481 = vmul.f32 %v3480, %v3423
        %v3482 = vmul.f32 %v3480, %v3424
        %3485 = vrot.lane.b32.xlu0 %v3481, 126
        %v3486 = vpop.permute.xlu0 %3485
        %3487 = vrot.lane.b32.xlu0 %v3482, 126
        %v3488 = vpop.permute.xlu0 %3487
        %v3491 = vadd.f32 %v3463, %v3486
        %v3492 = vadd.f32 %v3464, %v3488
        %v3493 = vld [vmem:[%s3049 + $0x2] sm:$0xff]
        %v3494 = vld [vmem:[%s3049 + $0xa] sm:$0xff]
        %s3495 = sld [smem:[#allocation16 + $0xf]]
        %v3496 = vstv %s3495
        %v3497 = vmul.f32 %v3496, %v3493
        %v3498 = vmul.f32 %v3496, %v3494
        %v3499 = vadd.f32 %v3477, %v3497
        %v3500 = vadd.f32 %v3478, %v3498
        %s3501 = sld [smem:[#allocation16 + $0x57]]
        %v3502 = vstv %s3501
        %v3503 = vmul.f32 %v3502, %v3493
        %v3504 = vmul.f32 %v3502, %v3494
        %v3505 = vadd.f32 %v3491, %v3503
        %v3506 = vadd.f32 %v3492, %v3504
        %s3507 = sld [smem:[#allocation16 + $0x10]]
        %v3508 = vstv %s3507
        %v3509 = vmul.f32 %v3508, %v3493
        %v3510 = vmul.f32 %v3508, %v3494
        %3513 = vrot.lane.b32.xlu0 %v3509, 127
        %v3514 = vpop.permute.xlu0 %3513
        %3515 = vrot.lane.b32.xlu0 %v3510, 127
        %v3516 = vpop.permute.xlu0 %3515
        %v3519 = vadd.f32 %v3499, %v3514
        %v3520 = vadd.f32 %v3500, %v3516
        %s3521 = sld [smem:[#allocation16 + $0x58]]
        %v3522 = vstv %s3521
        %v3523 = vmul.f32 %v3522, %v3493
        %v3524 = vmul.f32 %v3522, %v3494
        %3527 = vrot.lane.b32.xlu0 %v3523, 127
        %v3528 = vpop.permute.xlu0 %3527
        %3529 = vrot.lane.b32.xlu0 %v3524, 127
        %v3530 = vpop.permute.xlu0 %3529
        %v3533 = vadd.f32 %v3505, %v3528
        %v3534 = vadd.f32 %v3506, %v3530
        %s3535 = sld [smem:[#allocation16 + $0x11]]
        %v3536 = vstv %s3535
        %v3537 = vmul.f32 %v3536, %v3493
        %v3538 = vmul.f32 %v3536, %v3494
        %3541 = vrot.lane.b32.xlu0 %v3537, 126
        %v3542 = vpop.permute.xlu0 %3541
        %3543 = vrot.lane.b32.xlu0 %v3538, 126
        %v3544 = vpop.permute.xlu0 %3543
        %v3547 = vadd.f32 %v3519, %v3542
        %v3548 = vadd.f32 %v3520, %v3544
        %s3549 = sld [smem:[#allocation16 + $0x59]]
        %v3550 = vstv %s3549
        %v3551 = vmul.f32 %v3550, %v3493
        %v3552 = vmul.f32 %v3550, %v3494
        %3555 = vrot.lane.b32.xlu0 %v3551, 126
        %v3556 = vpop.permute.xlu0 %3555
        %3557 = vrot.lane.b32.xlu0 %v3552, 126
        %v3558 = vpop.permute.xlu0 %3557
        %v3561 = vadd.f32 %v3533, %v3556
        %v3562 = vadd.f32 %v3534, %v3558
        %v3563 = vld [vmem:[%s3064] sm:$0xff]
        %v3564 = vld [vmem:[%s3064 + $0x8] sm:$0xff]
        %s3565 = sld [smem:[#allocation16 + $0x12]]
        %v3566 = vstv %s3565
        %v3567 = vmul.f32 %v3566, %v3563
        %v3568 = vmul.f32 %v3566, %v3564
        %v3569 = vadd.f32 %v3547, %v3567
        %v3570 = vadd.f32 %v3548, %v3568
        %s3571 = sld [smem:[#allocation16 + $0x5a]]
        %v3572 = vstv %s3571
        %v3573 = vmul.f32 %v3572, %v3563
        %v3574 = vmul.f32 %v3572, %v3564
        %v3575 = vadd.f32 %v3561, %v3573
        %v3576 = vadd.f32 %v3562, %v3574
        %s3577 = sld [smem:[#allocation16 + $0x13]]
        %v3578 = vstv %s3577
        %v3579 = vmul.f32 %v3578, %v3563
        %v3580 = vmul.f32 %v3578, %v3564
        %3583 = vrot.lane.b32.xlu0 %v3579, 127
        %v3584 = vpop.permute.xlu0 %3583
        %3585 = vrot.lane.b32.xlu0 %v3580, 127
        %v3586 = vpop.permute.xlu0 %3585
        %v3589 = vadd.f32 %v3569, %v3584
        %v3590 = vadd.f32 %v3570, %v3586
        %s3591 = sld [smem:[#allocation16 + $0x5b]]
        %v3592 = vstv %s3591
        %v3593 = vmul.f32 %v3592, %v3563
        %v3594 = vmul.f32 %v3592, %v3564
        %3597 = vrot.lane.b32.xlu0 %v3593, 127
        %v3598 = vpop.permute.xlu0 %3597
        %3599 = vrot.lane.b32.xlu0 %v3594, 127
        %v3600 = vpop.permute.xlu0 %3599
        %v3603 = vadd.f32 %v3575, %v3598
        %v3604 = vadd.f32 %v3576, %v3600
        %s3605 = sld [smem:[#allocation16 + $0x14]]
        %v3606 = vstv %s3605
        %v3607 = vmul.f32 %v3606, %v3563
        %v3608 = vmul.f32 %v3606, %v3564
        %3611 = vrot.lane.b32.xlu0 %v3607, 126
        %v3612 = vpop.permute.xlu0 %3611
        %3613 = vrot.lane.b32.xlu0 %v3608, 126
        %v3614 = vpop.permute.xlu0 %3613
        %v3617 = vadd.f32 %v3589, %v3612
        %v3618 = vadd.f32 %v3590, %v3614
        %s3619 = sld [smem:[#allocation16 + $0x5c]]
        %v3620 = vstv %s3619
        %v3621 = vmul.f32 %v3620, %v3563
        %v3622 = vmul.f32 %v3620, %v3564
        %3625 = vrot.lane.b32.xlu0 %v3621, 126
        %v3626 = vpop.permute.xlu0 %3625
        %3627 = vrot.lane.b32.xlu0 %v3622, 126
        %v3628 = vpop.permute.xlu0 %3627
        %v3631 = vadd.f32 %v3603, %v3626
        %v3632 = vadd.f32 %v3604, %v3628
        %v3633 = vld [vmem:[%s3064 + $0x1] sm:$0xff]
        %v3634 = vld [vmem:[%s3064 + $0x9] sm:$0xff]
        %s3635 = sld [smem:[#allocation16 + $0x15]]
        %v3636 = vstv %s3635
        %v3637 = vmul.f32 %v3636, %v3633
        %v3638 = vmul.f32 %v3636, %v3634
        %v3639 = vadd.f32 %v3617, %v3637
        %v3640 = vadd.f32 %v3618, %v3638
        %s3641 = sld [smem:[#allocation16 + $0x5d]]
        %v3642 = vstv %s3641
        %v3643 = vmul.f32 %v3642, %v3633
        %v3644 = vmul.f32 %v3642, %v3634
        %v3645 = vadd.f32 %v3631, %v3643
        %v3646 = vadd.f32 %v3632, %v3644
        %s3647 = sld [smem:[#allocation16 + $0x16]]
        %v3648 = vstv %s3647
        %v3649 = vmul.f32 %v3648, %v3633
        %v3650 = vmul.f32 %v3648, %v3634
        %3653 = vrot.lane.b32.xlu0 %v3649, 127
        %v3654 = vpop.permute.xlu0 %3653
        %3655 = vrot.lane.b32.xlu0 %v3650, 127
        %v3656 = vpop.permute.xlu0 %3655
        %v3659 = vadd.f32 %v3639, %v3654
        %v3660 = vadd.f32 %v3640, %v3656
        %s3661 = sld [smem:[#allocation16 + $0x5e]]
        %v3662 = vstv %s3661
        %v3663 = vmul.f32 %v3662, %v3633
        %v3664 = vmul.f32 %v3662, %v3634
        %3667 = vrot.lane.b32.xlu0 %v3663, 127
        %v3668 = vpop.permute.xlu0 %3667
        %3669 = vrot.lane.b32.xlu0 %v3664, 127
        %v3670 = vpop.permute.xlu0 %3669
        %v3673 = vadd.f32 %v3645, %v3668
        %v3674 = vadd.f32 %v3646, %v3670
        %s3675 = sld [smem:[#allocation16 + $0x17]]
        %v3676 = vstv %s3675
        %v3677 = vmul.f32 %v3676, %v3633
        %v3678 = vmul.f32 %v3676, %v3634
        %3681 = vrot.lane.b32.xlu0 %v3677, 126
        %v3682 = vpop.permute.xlu0 %3681
        %3683 = vrot.lane.b32.xlu0 %v3678, 126
        %v3684 = vpop.permute.xlu0 %3683
        %v3687 = vadd.f32 %v3659, %v3682
        %v3688 = vadd.f32 %v3660, %v3684
        %s3689 = sld [smem:[#allocation16 + $0x5f]]
        %v3690 = vstv %s3689
        %v3691 = vmul.f32 %v3690, %v3633
        %v3692 = vmul.f32 %v3690, %v3634
        %3695 = vrot.lane.b32.xlu0 %v3691, 126
        %v3696 = vpop.permute.xlu0 %3695
        %3697 = vrot.lane.b32.xlu0 %v3692, 126
        %v3698 = vpop.permute.xlu0 %3697
        %v3701 = vadd.f32 %v3673, %v3696
        %v3702 = vadd.f32 %v3674, %v3698
        %v3703 = vld [vmem:[%s3064 + $0x2] sm:$0xff]
        %v3704 = vld [vmem:[%s3064 + $0xa] sm:$0xff]
        %s3705 = sld [smem:[#allocation16 + $0x18]]
        %v3706 = vstv %s3705
        %v3707 = vmul.f32 %v3706, %v3703
        %v3708 = vmul.f32 %v3706, %v3704
        %v3709 = vadd.f32 %v3687, %v3707
        %v3710 = vadd.f32 %v3688, %v3708
        %s3711 = sld [smem:[#allocation16 + $0x60]]
        %v3712 = vstv %s3711
        %v3713 = vmul.f32 %v3712, %v3703
        %v3714 = vmul.f32 %v3712, %v3704
        %v3715 = vadd.f32 %v3701, %v3713
        %v3716 = vadd.f32 %v3702, %v3714
        %s3717 = sld [smem:[#allocation16 + $0x19]]
        %v3718 = vstv %s3717
        %v3719 = vmul.f32 %v3718, %v3703
        %v3720 = vmul.f32 %v3718, %v3704
        %3723 = vrot.lane.b32.xlu0 %v3719, 127
        %v3724 = vpop.permute.xlu0 %3723
        %3725 = vrot.lane.b32.xlu0 %v3720, 127
        %v3726 = vpop.permute.xlu0 %3725
        %v3729 = vadd.f32 %v3709, %v3724
        %v3730 = vadd.f32 %v3710, %v3726
        %s3731 = sld [smem:[#allocation16 + $0x61]]
        %v3732 = vstv %s3731
        %v3733 = vmul.f32 %v3732, %v3703
        %v3734 = vmul.f32 %v3732, %v3704
        %3737 = vrot.lane.b32.xlu0 %v3733, 127
        %v3738 = vpop.permute.xlu0 %3737
        %3739 = vrot.lane.b32.xlu0 %v3734, 127
        %v3740 = vpop.permute.xlu0 %3739
        %v3743 = vadd.f32 %v3715, %v3738
        %v3744 = vadd.f32 %v3716, %v3740
        %s3745 = sld [smem:[#allocation16 + $0x1a]]
        %v3746 = vstv %s3745
        %v3747 = vmul.f32 %v3746, %v3703
        %v3748 = vmul.f32 %v3746, %v3704
        %3751 = vrot.lane.b32.xlu0 %v3747, 126
        %v3752 = vpop.permute.xlu0 %3751
        %3753 = vrot.lane.b32.xlu0 %v3748, 126
        %v3754 = vpop.permute.xlu0 %3753
        %v3757 = vadd.f32 %v3729, %v3752
        %v3758 = vadd.f32 %v3730, %v3754
        %s3759 = sld [smem:[#allocation16 + $0x62]]
        %v3760 = vstv %s3759
        %v3761 = vmul.f32 %v3760, %v3703
        %v3762 = vmul.f32 %v3760, %v3704
        %3765 = vrot.lane.b32.xlu0 %v3761, 126
        %v3766 = vpop.permute.xlu0 %3765
        %3767 = vrot.lane.b32.xlu0 %v3762, 126
        %v3768 = vpop.permute.xlu0 %3767
        %v3771 = vadd.f32 %v3743, %v3766
        %v3772 = vadd.f32 %v3744, %v3768
        %v3773 = vld [vmem:[%s3079] sm:$0xff]
        %v3774 = vld [vmem:[%s3079 + $0x8] sm:$0xff]
        %s3775 = sld [smem:[#allocation16 + $0x1b]]
        %v3776 = vstv %s3775
        %v3777 = vmul.f32 %v3776, %v3773
        %v3778 = vmul.f32 %v3776, %v3774
        %v3779 = vadd.f32 %v3757, %v3777
        %v3780 = vadd.f32 %v3758, %v3778
        %s3781 = sld [smem:[#allocation16 + $0x63]]
        %v3782 = vstv %s3781
        %v3783 = vmul.f32 %v3782, %v3773
        %v3784 = vmul.f32 %v3782, %v3774
        %v3785 = vadd.f32 %v3771, %v3783
        %v3786 = vadd.f32 %v3772, %v3784
        %s3787 = sld [smem:[#allocation16 + $0x1c]]
        %v3788 = vstv %s3787
        %v3789 = vmul.f32 %v3788, %v3773
        %v3790 = vmul.f32 %v3788, %v3774
        %3793 = vrot.lane.b32.xlu0 %v3789, 127
        %v3794 = vpop.permute.xlu0 %3793
        %3795 = vrot.lane.b32.xlu0 %v3790, 127
        %v3796 = vpop.permute.xlu0 %3795
        %v3799 = vadd.f32 %v3779, %v3794
        %v3800 = vadd.f32 %v3780, %v3796
        %s3801 = sld [smem:[#allocation16 + $0x64]]
        %v3802 = vstv %s3801
        %v3803 = vmul.f32 %v3802, %v3773
        %v3804 = vmul.f32 %v3802, %v3774
        %3807 = vrot.lane.b32.xlu0 %v3803, 127
        %v3808 = vpop.permute.xlu0 %3807
        %3809 = vrot.lane.b32.xlu0 %v3804, 127
        %v3810 = vpop.permute.xlu0 %3809
        %v3813 = vadd.f32 %v3785, %v3808
        %v3814 = vadd.f32 %v3786, %v3810
        %s3815 = sld [smem:[#allocation16 + $0x1d]]
        %v3816 = vstv %s3815
        %v3817 = vmul.f32 %v3816, %v3773
        %v3818 = vmul.f32 %v3816, %v3774
        %3821 = vrot.lane.b32.xlu0 %v3817, 126
        %v3822 = vpop.permute.xlu0 %3821
        %3823 = vrot.lane.b32.xlu0 %v3818, 126
        %v3824 = vpop.permute.xlu0 %3823
        %v3827 = vadd.f32 %v3799, %v3822
        %v3828 = vadd.f32 %v3800, %v3824
        %s3829 = sld [smem:[#allocation16 + $0x65]]
        %v3830 = vstv %s3829
        %v3831 = vmul.f32 %v3830, %v3773
        %v3832 = vmul.f32 %v3830, %v3774
        %3835 = vrot.lane.b32.xlu0 %v3831, 126
        %v3836 = vpop.permute.xlu0 %3835
        %3837 = vrot.lane.b32.xlu0 %v3832, 126
        %v3838 = vpop.permute.xlu0 %3837
        %v3841 = vadd.f32 %v3813, %v3836
        %v3842 = vadd.f32 %v3814, %v3838
        %v3843 = vld [vmem:[%s3079 + $0x1] sm:$0xff]
        %v3844 = vld [vmem:[%s3079 + $0x9] sm:$0xff]
        %s3845 = sld [smem:[#allocation16 + $0x1e]]
        %v3846 = vstv %s3845
        %v3847 = vmul.f32 %v3846, %v3843
        %v3848 = vmul.f32 %v3846, %v3844
        %v3849 = vadd.f32 %v3827, %v3847
        %v3850 = vadd.f32 %v3828, %v3848
        %s3851 = sld [smem:[#allocation16 + $0x66]]
        %v3852 = vstv %s3851
        %v3853 = vmul.f32 %v3852, %v3843
        %v3854 = vmul.f32 %v3852, %v3844
        %v3855 = vadd.f32 %v3841, %v3853
        %v3856 = vadd.f32 %v3842, %v3854
        %s3857 = sld [smem:[#allocation16 + $0x1f]]
        %v3858 = vstv %s3857
        %v3859 = vmul.f32 %v3858, %v3843
        %v3860 = vmul.f32 %v3858, %v3844
        %3863 = vrot.lane.b32.xlu0 %v3859, 127
        %v3864 = vpop.permute.xlu0 %3863
        %3865 = vrot.lane.b32.xlu0 %v3860, 127
        %v3866 = vpop.permute.xlu0 %3865
        %v3869 = vadd.f32 %v3849, %v3864
        %v3870 = vadd.f32 %v3850, %v3866
        %s3871 = sld [smem:[#allocation16 + $0x67]]
        %v3872 = vstv %s3871
        %v3873 = vmul.f32 %v3872, %v3843
        %v3874 = vmul.f32 %v3872, %v3844
        %3877 = vrot.lane.b32.xlu0 %v3873, 127
        %v3878 = vpop.permute.xlu0 %3877
        %3879 = vrot.lane.b32.xlu0 %v3874, 127
        %v3880 = vpop.permute.xlu0 %3879
        %v3883 = vadd.f32 %v3855, %v3878
        %v3884 = vadd.f32 %v3856, %v3880
        %s3885 = sld [smem:[#allocation16 + $0x20]]
        %v3886 = vstv %s3885
        %v3887 = vmul.f32 %v3886, %v3843
        %v3888 = vmul.f32 %v3886, %v3844
        %3891 = vrot.lane.b32.xlu0 %v3887, 126
        %v3892 = vpop.permute.xlu0 %3891
        %3893 = vrot.lane.b32.xlu0 %v3888, 126
        %v3894 = vpop.permute.xlu0 %3893
        %v3897 = vadd.f32 %v3869, %v3892
        %v3898 = vadd.f32 %v3870, %v3894
        %s3899 = sld [smem:[#allocation16 + $0x68]]
        %v3900 = vstv %s3899
        %v3901 = vmul.f32 %v3900, %v3843
        %v3902 = vmul.f32 %v3900, %v3844
        %3905 = vrot.lane.b32.xlu0 %v3901, 126
        %v3906 = vpop.permute.xlu0 %3905
        %3907 = vrot.lane.b32.xlu0 %v3902, 126
        %v3908 = vpop.permute.xlu0 %3907
        %v3911 = vadd.f32 %v3883, %v3906
        %v3912 = vadd.f32 %v3884, %v3908
        %v3913 = vld [vmem:[%s3079 + $0x2] sm:$0xff]
        %v3914 = vld [vmem:[%s3079 + $0xa] sm:$0xff]
        %s3915 = sld [smem:[#allocation16 + $0x21]]
        %v3916 = vstv %s3915
        %v3917 = vmul.f32 %v3916, %v3913
        %v3918 = vmul.f32 %v3916, %v3914
        %v3919 = vadd.f32 %v3897, %v3917
        %v3920 = vadd.f32 %v3898, %v3918
        %s3921 = sld [smem:[#allocation16 + $0x69]]
        %v3922 = vstv %s3921
        %v3923 = vmul.f32 %v3922, %v3913
        %v3924 = vmul.f32 %v3922, %v3914
        %v3925 = vadd.f32 %v3911, %v3923
        %v3926 = vadd.f32 %v3912, %v3924
        %s3927 = sld [smem:[#allocation16 + $0x22]]
        %v3928 = vstv %s3927
        %v3929 = vmul.f32 %v3928, %v3913
        %v3930 = vmul.f32 %v3928, %v3914
        %3933 = vrot.lane.b32.xlu0 %v3929, 127
        %v3934 = vpop.permute.xlu0 %3933
        %3935 = vrot.lane.b32.xlu0 %v3930, 127
        %v3936 = vpop.permute.xlu0 %3935
        %v3939 = vadd.f32 %v3919, %v3934
        %v3940 = vadd.f32 %v3920, %v3936
        %s3941 = sld [smem:[#allocation16 + $0x6a]]
        %v3942 = vstv %s3941
        %v3943 = vmul.f32 %v3942, %v3913
        %v3944 = vmul.f32 %v3942, %v3914
        %3947 = vrot.lane.b32.xlu0 %v3943, 127
        %v3948 = vpop.permute.xlu0 %3947
        %3949 = vrot.lane.b32.xlu0 %v3944, 127
        %v3950 = vpop.permute.xlu0 %3949
        %v3953 = vadd.f32 %v3925, %v3948
        %v3954 = vadd.f32 %v3926, %v3950
        %s3955 = sld [smem:[#allocation16 + $0x23]]
        %v3956 = vstv %s3955
        %v3957 = vmul.f32 %v3956, %v3913
        %v3958 = vmul.f32 %v3956, %v3914
        %3961 = vrot.lane.b32.xlu0 %v3957, 126
        %v3962 = vpop.permute.xlu0 %3961
        %3963 = vrot.lane.b32.xlu0 %v3958, 126
        %v3964 = vpop.permute.xlu0 %3963
        %v3967 = vadd.f32 %v3939, %v3962
        %v3968 = vadd.f32 %v3940, %v3964
        %s3969 = sld [smem:[#allocation16 + $0x6b]]
        %v3970 = vstv %s3969
        %v3971 = vmul.f32 %v3970, %v3913
        %v3972 = vmul.f32 %v3970, %v3914
        %3975 = vrot.lane.b32.xlu0 %v3971, 126
        %v3976 = vpop.permute.xlu0 %3975
        %3977 = vrot.lane.b32.xlu0 %v3972, 126
        %v3978 = vpop.permute.xlu0 %3977
        %v3981 = vadd.f32 %v3953, %v3976
        %v3982 = vadd.f32 %v3954, %v3978
        %v3983 = vld [vmem:[%s3094] sm:$0xff]
        %v3984 = vld [vmem:[%s3094 + $0x8] sm:$0xff]
        %s3985 = sld [smem:[#allocation16 + $0x24]]
        %v3986 = vstv %s3985
        %v3987 = vmul.f32 %v3986, %v3983
        %v3988 = vmul.f32 %v3986, %v3984
        %v3989 = vadd.f32 %v3967, %v3987
        %v3990 = vadd.f32 %v3968, %v3988
        %s3991 = sld [smem:[#allocation16 + $0x6c]]
        %v3992 = vstv %s3991
        %v3993 = vmul.f32 %v3992, %v3983
        %v3994 = vmul.f32 %v3992, %v3984
        %v3995 = vadd.f32 %v3981, %v3993
        %v3996 = vadd.f32 %v3982, %v3994
        %s3997 = sld [smem:[#allocation16 + $0x25]]
        %v3998 = vstv %s3997
        %v3999 = vmul.f32 %v3998, %v3983
        %v4000 = vmul.f32 %v3998, %v3984
        %4003 = vrot.lane.b32.xlu0 %v3999, 127
        %v4004 = vpop.permute.xlu0 %4003
        %4005 = vrot.lane.b32.xlu0 %v4000, 127
        %v4006 = vpop.permute.xlu0 %4005
        %v4009 = vadd.f32 %v3989, %v4004
        %v4010 = vadd.f32 %v3990, %v4006
        %s4011 = sld [smem:[#allocation16 + $0x6d]]
        %v4012 = vstv %s4011
        %v4013 = vmul.f32 %v4012, %v3983
        %v4014 = vmul.f32 %v4012, %v3984
        %4017 = vrot.lane.b32.xlu0 %v4013, 127
        %v4018 = vpop.permute.xlu0 %4017
        %4019 = vrot.lane.b32.xlu0 %v4014, 127
        %v4020 = vpop.permute.xlu0 %4019
        %v4023 = vadd.f32 %v3995, %v4018
        %v4024 = vadd.f32 %v3996, %v4020
        %s4025 = sld [smem:[#allocation16 + $0x26]]
        %v4026 = vstv %s4025
        %v4027 = vmul.f32 %v4026, %v3983
        %v4028 = vmul.f32 %v4026, %v3984
        %4031 = vrot.lane.b32.xlu0 %v4027, 126
        %v4032 = vpop.permute.xlu0 %4031
        %4033 = vrot.lane.b32.xlu0 %v4028, 126
        %v4034 = vpop.permute.xlu0 %4033
        %v4037 = vadd.f32 %v4009, %v4032
        %v4038 = vadd.f32 %v4010, %v4034
        %s4039 = sld [smem:[#allocation16 + $0x6e]]
        %v4040 = vstv %s4039
        %v4041 = vmul.f32 %v4040, %v3983
        %v4042 = vmul.f32 %v4040, %v3984
        %4045 = vrot.lane.b32.xlu0 %v4041, 126
        %v4046 = vpop.permute.xlu0 %4045
        %4047 = vrot.lane.b32.xlu0 %v4042, 126
        %v4048 = vpop.permute.xlu0 %4047
        %v4051 = vadd.f32 %v4023, %v4046
        %v4052 = vadd.f32 %v4024, %v4048
        %v4053 = vld [vmem:[%s3094 + $0x1] sm:$0xff]
        %v4054 = vld [vmem:[%s3094 + $0x9] sm:$0xff]
        %s4055 = sld [smem:[#allocation16 + $0x27]]
        %v4056 = vstv %s4055
        %v4057 = vmul.f32 %v4056, %v4053
        %v4058 = vmul.f32 %v4056, %v4054
        %v4059 = vadd.f32 %v4037, %v4057
        %v4060 = vadd.f32 %v4038, %v4058
        %s4061 = sld [smem:[#allocation16 + $0x6f]]
        %v4062 = vstv %s4061
        %v4063 = vmul.f32 %v4062, %v4053
        %v4064 = vmul.f32 %v4062, %v4054
        %v4065 = vadd.f32 %v4051, %v4063
        %v4066 = vadd.f32 %v4052, %v4064
        %s4067 = sld [smem:[#allocation16 + $0x28]]
        %v4068 = vstv %s4067
        %v4069 = vmul.f32 %v4068, %v4053
        %v4070 = vmul.f32 %v4068, %v4054
        %4073 = vrot.lane.b32.xlu0 %v4069, 127
        %v4074 = vpop.permute.xlu0 %4073
        %4075 = vrot.lane.b32.xlu0 %v4070, 127
        %v4076 = vpop.permute.xlu0 %4075
        %v4079 = vadd.f32 %v4059, %v4074
        %v4080 = vadd.f32 %v4060, %v4076
        %s4081 = sld [smem:[#allocation16 + $0x70]]
        %v4082 = vstv %s4081
        %v4083 = vmul.f32 %v4082, %v4053
        %v4084 = vmul.f32 %v4082, %v4054
        %4087 = vrot.lane.b32.xlu0 %v4083, 127
        %v4088 = vpop.permute.xlu0 %4087
        %4089 = vrot.lane.b32.xlu0 %v4084, 127
        %v4090 = vpop.permute.xlu0 %4089
        %v4093 = vadd.f32 %v4065, %v4088
        %v4094 = vadd.f32 %v4066, %v4090
        %s4095 = sld [smem:[#allocation16 + $0x29]]
        %v4096 = vstv %s4095
        %v4097 = vmul.f32 %v4096, %v4053
        %v4098 = vmul.f32 %v4096, %v4054
        %4101 = vrot.lane.b32.xlu0 %v4097, 126
        %v4102 = vpop.permute.xlu0 %4101
        %4103 = vrot.lane.b32.xlu0 %v4098, 126
        %v4104 = vpop.permute.xlu0 %4103
        %v4107 = vadd.f32 %v4079, %v4102
        %v4108 = vadd.f32 %v4080, %v4104
        %s4109 = sld [smem:[#allocation16 + $0x71]]
        %v4110 = vstv %s4109
        %v4111 = vmul.f32 %v4110, %v4053
        %v4112 = vmul.f32 %v4110, %v4054
        %4115 = vrot.lane.b32.xlu0 %v4111, 126
        %v4116 = vpop.permute.xlu0 %4115
        %4117 = vrot.lane.b32.xlu0 %v4112, 126
        %v4118 = vpop.permute.xlu0 %4117
        %v4121 = vadd.f32 %v4093, %v4116
        %v4122 = vadd.f32 %v4094, %v4118
        %v4123 = vld [vmem:[%s3094 + $0x2] sm:$0xff]
        %v4124 = vld [vmem:[%s3094 + $0xa] sm:$0xff]
        %s4125 = sld [smem:[#allocation16 + $0x2a]]
        %v4126 = vstv %s4125
        %v4127 = vmul.f32 %v4126, %v4123
        %v4128 = vmul.f32 %v4126, %v4124
        %v4129 = vadd.f32 %v4107, %v4127
        %v4130 = vadd.f32 %v4108, %v4128
        %s4131 = sld [smem:[#allocation16 + $0x72]]
        %v4132 = vstv %s4131
        %v4133 = vmul.f32 %v4132, %v4123
        %v4134 = vmul.f32 %v4132, %v4124
        %v4135 = vadd.f32 %v4121, %v4133
        %v4136 = vadd.f32 %v4122, %v4134
        %s4137 = sld [smem:[#allocation16 + $0x2b]]
        %v4138 = vstv %s4137
        %v4139 = vmul.f32 %v4138, %v4123
        %v4140 = vmul.f32 %v4138, %v4124
        %4143 = vrot.lane.b32.xlu0 %v4139, 127
        %v4144 = vpop.permute.xlu0 %4143
        %4145 = vrot.lane.b32.xlu0 %v4140, 127
        %v4146 = vpop.permute.xlu0 %4145
        %v4149 = vadd.f32 %v4129, %v4144
        %v4150 = vadd.f32 %v4130, %v4146
        %s4151 = sld [smem:[#allocation16 + $0x73]]
        %v4152 = vstv %s4151
        %v4153 = vmul.f32 %v4152, %v4123
        %v4154 = vmul.f32 %v4152, %v4124
        %4157 = vrot.lane.b32.xlu0 %v4153, 127
        %v4158 = vpop.permute.xlu0 %4157
        %4159 = vrot.lane.b32.xlu0 %v4154, 127
        %v4160 = vpop.permute.xlu0 %4159
        %v4163 = vadd.f32 %v4135, %v4158
        %v4164 = vadd.f32 %v4136, %v4160
        %s4165 = sld [smem:[#allocation16 + $0x2c]]
        %v4166 = vstv %s4165
        %v4167 = vmul.f32 %v4166, %v4123
        %v4168 = vmul.f32 %v4166, %v4124
        %4171 = vrot.lane.b32.xlu0 %v4167, 126
        %v4172 = vpop.permute.xlu0 %4171
        %4173 = vrot.lane.b32.xlu0 %v4168, 126
        %v4174 = vpop.permute.xlu0 %4173
        %v4177 = vadd.f32 %v4149, %v4172
        %v4178 = vadd.f32 %v4150, %v4174
        %s4179 = sld [smem:[#allocation16 + $0x74]]
        %v4180 = vstv %s4179
        %v4181 = vmul.f32 %v4180, %v4123
        %v4182 = vmul.f32 %v4180, %v4124
        %4185 = vrot.lane.b32.xlu0 %v4181, 126
        %v4186 = vpop.permute.xlu0 %4185
        %4187 = vrot.lane.b32.xlu0 %v4182, 126
        %v4188 = vpop.permute.xlu0 %4187
        %v4191 = vadd.f32 %v4163, %v4186
        %v4192 = vadd.f32 %v4164, %v4188
        %v4193 = vld [vmem:[%s3109] sm:$0xff]
        %v4194 = vld [vmem:[%s3109 + $0x8] sm:$0xff]
        %s4195 = sld [smem:[#allocation16 + $0x2d]]
        %v4196 = vstv %s4195
        %v4197 = vmul.f32 %v4196, %v4193
        %v4198 = vmul.f32 %v4196, %v4194
        %v4199 = vadd.f32 %v4177, %v4197
        %v4200 = vadd.f32 %v4178, %v4198
        %s4201 = sld [smem:[#allocation16 + $0x75]]
        %v4202 = vstv %s4201
        %v4203 = vmul.f32 %v4202, %v4193
        %v4204 = vmul.f32 %v4202, %v4194
        %v4205 = vadd.f32 %v4191, %v4203
        %v4206 = vadd.f32 %v4192, %v4204
        %s4207 = sld [smem:[#allocation16 + $0x2e]]
        %v4208 = vstv %s4207
        %v4209 = vmul.f32 %v4208, %v4193
        %v4210 = vmul.f32 %v4208, %v4194
        %4213 = vrot.lane.b32.xlu0 %v4209, 127
        %v4214 = vpop.permute.xlu0 %4213
        %4215 = vrot.lane.b32.xlu0 %v4210, 127
        %v4216 = vpop.permute.xlu0 %4215
        %v4219 = vadd.f32 %v4199, %v4214
        %v4220 = vadd.f32 %v4200, %v4216
        %s4221 = sld [smem:[#allocation16 + $0x76]]
        %v4222 = vstv %s4221
        %v4223 = vmul.f32 %v4222, %v4193
        %v4224 = vmul.f32 %v4222, %v4194
        %4227 = vrot.lane.b32.xlu0 %v4223, 127
        %v4228 = vpop.permute.xlu0 %4227
        %4229 = vrot.lane.b32.xlu0 %v4224, 127
        %v4230 = vpop.permute.xlu0 %4229
        %v4233 = vadd.f32 %v4205, %v4228
        %v4234 = vadd.f32 %v4206, %v4230
        %s4235 = sld [smem:[#allocation16 + $0x2f]]
        %v4236 = vstv %s4235
        %v4237 = vmul.f32 %v4236, %v4193
        %v4238 = vmul.f32 %v4236, %v4194
        %4241 = vrot.lane.b32.xlu0 %v4237, 126
        %v4242 = vpop.permute.xlu0 %4241
        %4243 = vrot.lane.b32.xlu0 %v4238, 126
        %v4244 = vpop.permute.xlu0 %4243
        %v4247 = vadd.f32 %v4219, %v4242
        %v4248 = vadd.f32 %v4220, %v4244
        %s4249 = sld [smem:[#allocation16 + $0x77]]
        %v4250 = vstv %s4249
        %v4251 = vmul.f32 %v4250, %v4193
        %v4252 = vmul.f32 %v4250, %v4194
        %4255 = vrot.lane.b32.xlu0 %v4251, 126
        %v4256 = vpop.permute.xlu0 %4255
        %4257 = vrot.lane.b32.xlu0 %v4252, 126
        %v4258 = vpop.permute.xlu0 %4257
        %v4261 = vadd.f32 %v4233, %v4256
        %v4262 = vadd.f32 %v4234, %v4258
        %v4263 = vld [vmem:[%s3109 + $0x1] sm:$0xff]
        %v4264 = vld [vmem:[%s3109 + $0x9] sm:$0xff]
        %s4265 = sld [smem:[#allocation16 + $0x30]]
        %v4266 = vstv %s4265
        %v4267 = vmul.f32 %v4266, %v4263
        %v4268 = vmul.f32 %v4266, %v4264
        %v4269 = vadd.f32 %v4247, %v4267
        %v4270 = vadd.f32 %v4248, %v4268
        %s4271 = sld [smem:[#allocation16 + $0x78]]
        %v4272 = vstv %s4271
        %v4273 = vmul.f32 %v4272, %v4263
        %v4274 = vmul.f32 %v4272, %v4264
        %v4275 = vadd.f32 %v4261, %v4273
        %v4276 = vadd.f32 %v4262, %v4274
        %s4277 = sld [smem:[#allocation16 + $0x31]]
        %v4278 = vstv %s4277
        %v4279 = vmul.f32 %v4278, %v4263
        %v4280 = vmul.f32 %v4278, %v4264
        %4283 = vrot.lane.b32.xlu0 %v4279, 127
        %v4284 = vpop.permute.xlu0 %4283
        %4285 = vrot.lane.b32.xlu0 %v4280, 127
        %v4286 = vpop.permute.xlu0 %4285
        %v4289 = vadd.f32 %v4269, %v4284
        %v4290 = vadd.f32 %v4270, %v4286
        %s4291 = sld [smem:[#allocation16 + $0x79]]
        %v4292 = vstv %s4291
        %v4293 = vmul.f32 %v4292, %v4263
        %v4294 = vmul.f32 %v4292, %v4264
        %4297 = vrot.lane.b32.xlu0 %v4293, 127
        %v4298 = vpop.permute.xlu0 %4297
        %4299 = vrot.lane.b32.xlu0 %v4294, 127
        %v4300 = vpop.permute.xlu0 %4299
        %v4303 = vadd.f32 %v4275, %v4298
        %v4304 = vadd.f32 %v4276, %v4300
        %s4305 = sld [smem:[#allocation16 + $0x32]]
        %v4306 = vstv %s4305
        %v4307 = vmul.f32 %v4306, %v4263
        %v4308 = vmul.f32 %v4306, %v4264
        %4311 = vrot.lane.b32.xlu0 %v4307, 126
        %v4312 = vpop.permute.xlu0 %4311
        %4313 = vrot.lane.b32.xlu0 %v4308, 126
        %v4314 = vpop.permute.xlu0 %4313
        %v4317 = vadd.f32 %v4289, %v4312
        %v4318 = vadd.f32 %v4290, %v4314
        %s4319 = sld [smem:[#allocation16 + $0x7a]]
        %v4320 = vstv %s4319
        %v4321 = vmul.f32 %v4320, %v4263
        %v4322 = vmul.f32 %v4320, %v4264
        %4325 = vrot.lane.b32.xlu0 %v4321, 126
        %v4326 = vpop.permute.xlu0 %4325
        %4327 = vrot.lane.b32.xlu0 %v4322, 126
        %v4328 = vpop.permute.xlu0 %4327
        %v4331 = vadd.f32 %v4303, %v4326
        %v4332 = vadd.f32 %v4304, %v4328
        %v4333 = vld [vmem:[%s3109 + $0x2] sm:$0xff]
        %v4334 = vld [vmem:[%s3109 + $0xa] sm:$0xff]
        %s4335 = sld [smem:[#allocation16 + $0x33]]
        %v4336 = vstv %s4335
        %v4337 = vmul.f32 %v4336, %v4333
        %v4338 = vmul.f32 %v4336, %v4334
        %v4339 = vadd.f32 %v4317, %v4337
        %v4340 = vadd.f32 %v4318, %v4338
        %s4341 = sld [smem:[#allocation16 + $0x7b]]
        %v4342 = vstv %s4341
        %v4343 = vmul.f32 %v4342, %v4333
        %v4344 = vmul.f32 %v4342, %v4334
        %v4345 = vadd.f32 %v4331, %v4343
        %v4346 = vadd.f32 %v4332, %v4344
        %s4347 = sld [smem:[#allocation16 + $0x34]]
        %v4348 = vstv %s4347
        %v4349 = vmul.f32 %v4348, %v4333
        %v4350 = vmul.f32 %v4348, %v4334
        %4353 = vrot.lane.b32.xlu0 %v4349, 127
        %v4354 = vpop.permute.xlu0 %4353
        %4355 = vrot.lane.b32.xlu0 %v4350, 127
        %v4356 = vpop.permute.xlu0 %4355
        %v4359 = vadd.f32 %v4339, %v4354
        %v4360 = vadd.f32 %v4340, %v4356
        %s4361 = sld [smem:[#allocation16 + $0x7c]]
        %v4362 = vstv %s4361
        %v4363 = vmul.f32 %v4362, %v4333
        %v4364 = vmul.f32 %v4362, %v4334
        %4367 = vrot.lane.b32.xlu0 %v4363, 127
        %v4368 = vpop.permute.xlu0 %4367
        %4369 = vrot.lane.b32.xlu0 %v4364, 127
        %v4370 = vpop.permute.xlu0 %4369
        %v4373 = vadd.f32 %v4345, %v4368
        %v4374 = vadd.f32 %v4346, %v4370
        %s4375 = sld [smem:[#allocation16 + $0x35]]
        %v4376 = vstv %s4375
        %v4377 = vmul.f32 %v4376, %v4333
        %v4378 = vmul.f32 %v4376, %v4334
        %4381 = vrot.lane.b32.xlu0 %v4377, 126
        %v4382 = vpop.permute.xlu0 %4381
        %4383 = vrot.lane.b32.xlu0 %v4378, 126
        %v4384 = vpop.permute.xlu0 %4383
        %v4387 = vadd.f32 %v4359, %v4382
        %v4388 = vadd.f32 %v4360, %v4384
        %s4389 = sld [smem:[#allocation16 + $0x7d]]
        %v4390 = vstv %s4389
        %v4391 = vmul.f32 %v4390, %v4333
        %v4392 = vmul.f32 %v4390, %v4334
        %4395 = vrot.lane.b32.xlu0 %v4391, 126
        %v4396 = vpop.permute.xlu0 %4395
        %4397 = vrot.lane.b32.xlu0 %v4392, 126
        %v4398 = vpop.permute.xlu0 %4397
        %v4401 = vadd.f32 %v4373, %v4396
        %v4402 = vadd.f32 %v4374, %v4398
        %v4403 = vld [vmem:[%s3124] sm:$0xff]
        %v4404 = vld [vmem:[%s3124 + $0x8] sm:$0xff]
        %s4405 = sld [smem:[#allocation16 + $0x36]]
        %v4406 = vstv %s4405
        %v4407 = vmul.f32 %v4406, %v4403
        %v4408 = vmul.f32 %v4406, %v4404
        %v4409 = vadd.f32 %v4387, %v4407
        %v4410 = vadd.f32 %v4388, %v4408
        %s4411 = sld [smem:[#allocation16 + $0x7e]]
        %v4412 = vstv %s4411
        %v4413 = vmul.f32 %v4412, %v4403
        %v4414 = vmul.f32 %v4412, %v4404
        %v4415 = vadd.f32 %v4401, %v4413
        %v4416 = vadd.f32 %v4402, %v4414
        %s4417 = sld [smem:[#allocation16 + $0x37]]
        %v4418 = vstv %s4417
        %v4419 = vmul.f32 %v4418, %v4403
        %v4420 = vmul.f32 %v4418, %v4404
        %4423 = vrot.lane.b32.xlu0 %v4419, 127
        %v4424 = vpop.permute.xlu0 %4423
        %4425 = vrot.lane.b32.xlu0 %v4420, 127
        %v4426 = vpop.permute.xlu0 %4425
        %v4429 = vadd.f32 %v4409, %v4424
        %v4430 = vadd.f32 %v4410, %v4426
        %s4431 = sld [smem:[#allocation16 + $0x7f]]
        %v4432 = vstv %s4431
        %v4433 = vmul.f32 %v4432, %v4403
        %v4434 = vmul.f32 %v4432, %v4404
        %4437 = vrot.lane.b32.xlu0 %v4433, 127
        %v4438 = vpop.permute.xlu0 %4437
        %4439 = vrot.lane.b32.xlu0 %v4434, 127
        %v4440 = vpop.permute.xlu0 %4439
        %v4443 = vadd.f32 %v4415, %v4438
        %v4444 = vadd.f32 %v4416, %v4440
        %s4445 = sld [smem:[#allocation16 + $0x38]]
        %v4446 = vstv %s4445
        %v4447 = vmul.f32 %v4446, %v4403
        %v4448 = vmul.f32 %v4446, %v4404
        %4451 = vrot.lane.b32.xlu0 %v4447, 126
        %v4452 = vpop.permute.xlu0 %4451
        %4453 = vrot.lane.b32.xlu0 %v4448, 126
        %v4454 = vpop.permute.xlu0 %4453
        %v4457 = vadd.f32 %v4429, %v4452
        %v4458 = vadd.f32 %v4430, %v4454
        %s4459 = sld [smem:[#allocation16 + $0x80]]
        %v4460 = vstv %s4459
        %v4461 = vmul.f32 %v4460, %v4403
        %v4462 = vmul.f32 %v4460, %v4404
        %4465 = vrot.lane.b32.xlu0 %v4461, 126
        %v4466 = vpop.permute.xlu0 %4465
        %4467 = vrot.lane.b32.xlu0 %v4462, 126
        %v4468 = vpop.permute.xlu0 %4467
        %v4471 = vadd.f32 %v4443, %v4466
        %v4472 = vadd.f32 %v4444, %v4468
        %v4473 = vld [vmem:[%s3124 + $0x1] sm:$0xff]
        %v4474 = vld [vmem:[%s3124 + $0x9] sm:$0xff]
        %s4475 = sld [smem:[#allocation16 + $0x39]]
        %v4476 = vstv %s4475
        %v4477 = vmul.f32 %v4476, %v4473
        %v4478 = vmul.f32 %v4476, %v4474
        %v4479 = vadd.f32 %v4457, %v4477
        %v4480 = vadd.f32 %v4458, %v4478
        %s4481 = sld [smem:[#allocation16 + $0x81]]
        %v4482 = vstv %s4481
        %v4483 = vmul.f32 %v4482, %v4473
        %v4484 = vmul.f32 %v4482, %v4474
        %v4485 = vadd.f32 %v4471, %v4483
        %v4486 = vadd.f32 %v4472, %v4484
        %s4487 = sld [smem:[#allocation16 + $0x3a]]
        %v4488 = vstv %s4487
        %v4489 = vmul.f32 %v4488, %v4473
        %v4490 = vmul.f32 %v4488, %v4474
        %4493 = vrot.lane.b32.xlu0 %v4489, 127
        %v4494 = vpop.permute.xlu0 %4493
        %4495 = vrot.lane.b32.xlu0 %v4490, 127
        %v4496 = vpop.permute.xlu0 %4495
        %v4499 = vadd.f32 %v4479, %v4494
        %v4500 = vadd.f32 %v4480, %v4496
        %s4501 = sld [smem:[#allocation16 + $0x82]]
        %v4502 = vstv %s4501
        %v4503 = vmul.f32 %v4502, %v4473
        %v4504 = vmul.f32 %v4502, %v4474
        %4507 = vrot.lane.b32.xlu0 %v4503, 127
        %v4508 = vpop.permute.xlu0 %4507
        %4509 = vrot.lane.b32.xlu0 %v4504, 127
        %v4510 = vpop.permute.xlu0 %4509
        %v4513 = vadd.f32 %v4485, %v4508
        %v4514 = vadd.f32 %v4486, %v4510
        %s4515 = sld [smem:[#allocation16 + $0x3b]]
        %v4516 = vstv %s4515
        %v4517 = vmul.f32 %v4516, %v4473
        %v4518 = vmul.f32 %v4516, %v4474
        %4521 = vrot.lane.b32.xlu0 %v4517, 126
        %v4522 = vpop.permute.xlu0 %4521
        %4523 = vrot.lane.b32.xlu0 %v4518, 126
        %v4524 = vpop.permute.xlu0 %4523
        %v4527 = vadd.f32 %v4499, %v4522
        %v4528 = vadd.f32 %v4500, %v4524
        %s4529 = sld [smem:[#allocation16 + $0x83]]
        %v4530 = vstv %s4529
        %v4531 = vmul.f32 %v4530, %v4473
        %v4532 = vmul.f32 %v4530, %v4474
        %4535 = vrot.lane.b32.xlu0 %v4531, 126
        %v4536 = vpop.permute.xlu0 %4535
        %4537 = vrot.lane.b32.xlu0 %v4532, 126
        %v4538 = vpop.permute.xlu0 %4537
        %v4541 = vadd.f32 %v4513, %v4536
        %v4542 = vadd.f32 %v4514, %v4538
        %v4543 = vld [vmem:[%s3124 + $0x2] sm:$0xff]
        %v4544 = vld [vmem:[%s3124 + $0xa] sm:$0xff]
        %s4545 = sld [smem:[#allocation16 + $0x3c]]
        %v4546 = vstv %s4545
        %v4547 = vmul.f32 %v4546, %v4543
        %v4548 = vmul.f32 %v4546, %v4544
        %v4549 = vadd.f32 %v4527, %v4547
        %v4550 = vadd.f32 %v4528, %v4548
        %s4551 = sld [smem:[#allocation16 + $0x84]]
        %v4552 = vstv %s4551
        %v4553 = vmul.f32 %v4552, %v4543
        %v4554 = vmul.f32 %v4552, %v4544
        %v4555 = vadd.f32 %v4541, %v4553
        %v4556 = vadd.f32 %v4542, %v4554
        %s4557 = sld [smem:[#allocation16 + $0x3d]]
        %v4558 = vstv %s4557
        %v4559 = vmul.f32 %v4558, %v4543
        %v4560 = vmul.f32 %v4558, %v4544
        %4563 = vrot.lane.b32.xlu0 %v4559, 127
        %v4564 = vpop.permute.xlu0 %4563
        %4565 = vrot.lane.b32.xlu0 %v4560, 127
        %v4566 = vpop.permute.xlu0 %4565
        %v4569 = vadd.f32 %v4549, %v4564
        %v4570 = vadd.f32 %v4550, %v4566
        %s4571 = sld [smem:[#allocation16 + $0x85]]
        %v4572 = vstv %s4571
        %v4573 = vmul.f32 %v4572, %v4543
        %v4574 = vmul.f32 %v4572, %v4544
        %4577 = vrot.lane.b32.xlu0 %v4573, 127
        %v4578 = vpop.permute.xlu0 %4577
        %4579 = vrot.lane.b32.xlu0 %v4574, 127
        %v4580 = vpop.permute.xlu0 %4579
        %v4583 = vadd.f32 %v4555, %v4578
        %v4584 = vadd.f32 %v4556, %v4580
        %s4585 = sld [smem:[#allocation16 + $0x3e]]
        %v4586 = vstv %s4585
        %v4587 = vmul.f32 %v4586, %v4543
        %v4588 = vmul.f32 %v4586, %v4544
        %4591 = vrot.lane.b32.xlu0 %v4587, 126
        %v4592 = vpop.permute.xlu0 %4591
        %4593 = vrot.lane.b32.xlu0 %v4588, 126
        %v4594 = vpop.permute.xlu0 %4593
        %v4597 = vadd.f32 %v4569, %v4592
        %v4598 = vadd.f32 %v4570, %v4594
        %s4599 = sld [smem:[#allocation16 + $0x86]]
        %v4600 = vstv %s4599
        %v4601 = vmul.f32 %v4600, %v4543
        %v4602 = vmul.f32 %v4600, %v4544
        %4605 = vrot.lane.b32.xlu0 %v4601, 126
        %v4606 = vpop.permute.xlu0 %4605
        %4607 = vrot.lane.b32.xlu0 %v4602, 126
        %v4608 = vpop.permute.xlu0 %4607
        %v4611 = vadd.f32 %v4583, %v4606
        %v4612 = vadd.f32 %v4584, %v4608
        %v4613 = vld [vmem:[%s3139] sm:$0xff]
        %v4614 = vld [vmem:[%s3139 + $0x8] sm:$0xff]
        %s4615 = sld [smem:[#allocation16 + $0x3f]]
        %v4616 = vstv %s4615
        %v4617 = vmul.f32 %v4616, %v4613
        %v4618 = vmul.f32 %v4616, %v4614
        %v4619 = vadd.f32 %v4597, %v4617
        %v4620 = vadd.f32 %v4598, %v4618
        %s4621 = sld [smem:[#allocation16 + $0x87]]
        %v4622 = vstv %s4621
        %v4623 = vmul.f32 %v4622, %v4613
        %v4624 = vmul.f32 %v4622, %v4614
        %v4625 = vadd.f32 %v4611, %v4623
        %v4626 = vadd.f32 %v4612, %v4624
        %s4627 = sld [smem:[#allocation16 + $0x40]]
        %v4628 = vstv %s4627
        %v4629 = vmul.f32 %v4628, %v4613
        %v4630 = vmul.f32 %v4628, %v4614
        %4633 = vrot.lane.b32.xlu0 %v4629, 127
        %v4634 = vpop.permute.xlu0 %4633
        %4635 = vrot.lane.b32.xlu0 %v4630, 127
        %v4636 = vpop.permute.xlu0 %4635
        %v4639 = vadd.f32 %v4619, %v4634
        %v4640 = vadd.f32 %v4620, %v4636
        %s4641 = sld [smem:[#allocation16 + $0x88]]
        %v4642 = vstv %s4641
        %v4643 = vmul.f32 %v4642, %v4613
        %v4644 = vmul.f32 %v4642, %v4614
        %4647 = vrot.lane.b32.xlu0 %v4643, 127
        %v4648 = vpop.permute.xlu0 %4647
        %4649 = vrot.lane.b32.xlu0 %v4644, 127
        %v4650 = vpop.permute.xlu0 %4649
        %v4653 = vadd.f32 %v4625, %v4648
        %v4654 = vadd.f32 %v4626, %v4650
        %s4655 = sld [smem:[#allocation16 + $0x41]]
        %v4656 = vstv %s4655
        %v4657 = vmul.f32 %v4656, %v4613
        %v4658 = vmul.f32 %v4656, %v4614
        %4661 = vrot.lane.b32.xlu0 %v4657, 126
        %v4662 = vpop.permute.xlu0 %4661
        %4663 = vrot.lane.b32.xlu0 %v4658, 126
        %v4664 = vpop.permute.xlu0 %4663
        %v4667 = vadd.f32 %v4639, %v4662
        %v4668 = vadd.f32 %v4640, %v4664
        %s4669 = sld [smem:[#allocation16 + $0x89]]
        %v4670 = vstv %s4669
        %v4671 = vmul.f32 %v4670, %v4613
        %v4672 = vmul.f32 %v4670, %v4614
        %4675 = vrot.lane.b32.xlu0 %v4671, 126
        %v4676 = vpop.permute.xlu0 %4675
        %4677 = vrot.lane.b32.xlu0 %v4672, 126
        %v4678 = vpop.permute.xlu0 %4677
        %v4681 = vadd.f32 %v4653, %v4676
        %v4682 = vadd.f32 %v4654, %v4678
        %v4683 = vld [vmem:[%s3139 + $0x1] sm:$0xff]
        %v4684 = vld [vmem:[%s3139 + $0x9] sm:$0xff]
        %s4685 = sld [smem:[#allocation16 + $0x42]]
        %v4686 = vstv %s4685
        %v4687 = vmul.f32 %v4686, %v4683
        %v4688 = vmul.f32 %v4686, %v4684
        %v4689 = vadd.f32 %v4667, %v4687
        %v4690 = vadd.f32 %v4668, %v4688
        %s4691 = sld [smem:[#allocation16 + $0x8a]]
        %v4692 = vstv %s4691
        %v4693 = vmul.f32 %v4692, %v4683
        %v4694 = vmul.f32 %v4692, %v4684
        %v4695 = vadd.f32 %v4681, %v4693
        %v4696 = vadd.f32 %v4682, %v4694
        %s4697 = sld [smem:[#allocation16 + $0x43]]
        %v4698 = vstv %s4697
        %v4699 = vmul.f32 %v4698, %v4683
        %v4700 = vmul.f32 %v4698, %v4684
        %4703 = vrot.lane.b32.xlu0 %v4699, 127
        %v4704 = vpop.permute.xlu0 %4703
        %4705 = vrot.lane.b32.xlu0 %v4700, 127
        %v4706 = vpop.permute.xlu0 %4705
        %v4709 = vadd.f32 %v4689, %v4704
        %v4710 = vadd.f32 %v4690, %v4706
        %s4711 = sld [smem:[#allocation16 + $0x8b]]
        %v4712 = vstv %s4711
        %v4713 = vmul.f32 %v4712, %v4683
        %v4714 = vmul.f32 %v4712, %v4684
        %4717 = vrot.lane.b32.xlu0 %v4713, 127
        %v4718 = vpop.permute.xlu0 %4717
        %4719 = vrot.lane.b32.xlu0 %v4714, 127
        %v4720 = vpop.permute.xlu0 %4719
        %v4723 = vadd.f32 %v4695, %v4718
        %v4724 = vadd.f32 %v4696, %v4720
        %s4725 = sld [smem:[#allocation16 + $0x44]]
        %v4726 = vstv %s4725
        %v4727 = vmul.f32 %v4726, %v4683
        %v4728 = vmul.f32 %v4726, %v4684
        %4731 = vrot.lane.b32.xlu0 %v4727, 126
        %v4732 = vpop.permute.xlu0 %4731
        %4733 = vrot.lane.b32.xlu0 %v4728, 126
        %v4734 = vpop.permute.xlu0 %4733
        %v4737 = vadd.f32 %v4709, %v4732
        %v4738 = vadd.f32 %v4710, %v4734
        %s4739 = sld [smem:[#allocation16 + $0x8c]]
        %v4740 = vstv %s4739
        %v4741 = vmul.f32 %v4740, %v4683
        %v4742 = vmul.f32 %v4740, %v4684
        %4745 = vrot.lane.b32.xlu0 %v4741, 126
        %v4746 = vpop.permute.xlu0 %4745
        %4747 = vrot.lane.b32.xlu0 %v4742, 126
        %v4748 = vpop.permute.xlu0 %4747
        %v4751 = vadd.f32 %v4723, %v4746
        %v4752 = vadd.f32 %v4724, %v4748
        %v4753 = vld [vmem:[%s3139 + $0x2] sm:$0xff]
        %v4754 = vld [vmem:[%s3139 + $0xa] sm:$0xff]
        %s4755 = sld [smem:[#allocation16 + $0x45]]
        %v4756 = vstv %s4755
        %v4757 = vmul.f32 %v4756, %v4753
        %v4758 = vmul.f32 %v4756, %v4754
        %v4759 = vadd.f32 %v4737, %v4757
        %v4760 = vadd.f32 %v4738, %v4758
        %s4761 = sld [smem:[#allocation16 + $0x8d]]
        %v4762 = vstv %s4761
        %v4763 = vmul.f32 %v4762, %v4753
        %v4764 = vmul.f32 %v4762, %v4754
        %v4765 = vadd.f32 %v4751, %v4763
        %v4766 = vadd.f32 %v4752, %v4764
        %s4767 = sld [smem:[#allocation16 + $0x46]]
        %v4768 = vstv %s4767
        %v4769 = vmul.f32 %v4768, %v4753
        %v4770 = vmul.f32 %v4768, %v4754
        %4773 = vrot.lane.b32.xlu0 %v4769, 127
        %v4774 = vpop.permute.xlu0 %4773
        %4775 = vrot.lane.b32.xlu0 %v4770, 127
        %v4776 = vpop.permute.xlu0 %4775
        %v4779 = vadd.f32 %v4759, %v4774
        %v4780 = vadd.f32 %v4760, %v4776
        %s4781 = sld [smem:[#allocation16 + $0x8e]]
        %v4782 = vstv %s4781
        %v4783 = vmul.f32 %v4782, %v4753
        %v4784 = vmul.f32 %v4782, %v4754
        %4787 = vrot.lane.b32.xlu0 %v4783, 127
        %v4788 = vpop.permute.xlu0 %4787
        %4789 = vrot.lane.b32.xlu0 %v4784, 127
        %v4790 = vpop.permute.xlu0 %4789
        %v4793 = vadd.f32 %v4765, %v4788
        %v4794 = vadd.f32 %v4766, %v4790
        %s4795 = sld [smem:[#allocation16 + $0x47]]
        %v4796 = vstv %s4795
        %v4797 = vmul.f32 %v4796, %v4753
        %v4798 = vmul.f32 %v4796, %v4754
        %4801 = vrot.lane.b32.xlu0 %v4797, 126
        %v4802 = vpop.permute.xlu0 %4801
        %4803 = vrot.lane.b32.xlu0 %v4798, 126
        %v4804 = vpop.permute.xlu0 %4803
        %v4807 = vadd.f32 %v4779, %v4802
        %v4808 = vadd.f32 %v4780, %v4804
        %s4809 = sld [smem:[#allocation16 + $0x8f]]
        %v4810 = vstv %s4809
        %v4811 = vmul.f32 %v4810, %v4753
        %v4812 = vmul.f32 %v4810, %v4754
        %4815 = vrot.lane.b32.xlu0 %v4811, 126
        %v4816 = vpop.permute.xlu0 %4815
        %4817 = vrot.lane.b32.xlu0 %v4812, 126
        %v4818 = vpop.permute.xlu0 %4817
        %v4821 = vadd.f32 %v4793, %v4816
        %v4822 = vadd.f32 %v4794, %v4818
        %s4823 = sld [smem:[#allocation18]]
        %v4824 = vstv %s4823
        %v4825 = vadd.f32 %v4807, %v4824
        %v4826 = vadd.f32 %v4808, %v4824
        %s4827 = sld [smem:[#allocation18 + $0x1]]
        %v4828 = vstv %s4827
        %v4829 = vadd.f32 %v4821, %v4828
        %v4830 = vadd.f32 %v4822, %v4828
        %v4831 = vld [vmem:[%s452] sm:$0xff]
        %v4832 = vld [vmem:[%s452 + $0x8] sm:$0xff]
        %v4833 = vld [vmem:[%s462] sm:$0xff]
        %v4834 = vld [vmem:[%s462 + $0x8] sm:$0xff]
        %v4835 = vmul.f32 %v4831, %v4825
        %v4836 = vmul.f32 %v4832, %v4826
        %v4837 = vmul.f32 %v4833, %v4829
        %v4838 = vmul.f32 %v4834, %v4830
        %v4839 = vsub.f32 %v4835, %v4837
        %v4840 = vsub.f32 %v4836, %v4838
        %vm4841 = vcmask 130048
        %4842 = vst.msk [vmem:[%s531] sm:$0xff] %vm4841, %v4839
        %4843 = vst.msk [vmem:[%s531 + $0x8] sm:$0xff] %vm4841, %v4840
        %v4844 = vmul.f32 %v4831, %v4829
        %v4845 = vmul.f32 %v4832, %v4830
        %v4846 = vmul.f32 %v4833, %v4825
        %v4847 = vmul.f32 %v4834, %v4826
        %v4848 = vadd.f32 %v4844, %v4846
        %v4849 = vadd.f32 %v4845, %v4847
        %4850 = vst.msk [vmem:[%s538] sm:$0xff] %vm4841, %v4848
        %4851 = vst.msk [vmem:[%s538 + $0x8] sm:$0xff] %vm4841, %v4849
        %v4852 = vld [vmem:[%s563] sm:$0xff]
        %v4853 = vld [vmem:[%s563 + $0x8] sm:$0xff]
        %v4854 = vld [vmem:[%s566] sm:$0xff]
        %v4855 = vld [vmem:[%s566 + $0x8] sm:$0xff]
        %v4856 = vmul.f32 %v4852, %v4825
        %v4857 = vmul.f32 %v4853, %v4826
        %v4858 = vmul.f32 %v4854, %v4829
        %v4859 = vmul.f32 %v4855, %v4830
        %v4860 = vsub.f32 %v4856, %v4858
        %v4861 = vsub.f32 %v4857, %v4859
        %s4862 = scalar_lea.vmem %s531, 16 [#allocation19]
        %4863 = vst.msk [vmem:[%s4862] sm:$0xff] %vm4841, %v4860
        %4864 = vst.msk [vmem:[%s4862 + $0x8] sm:$0xff] %vm4841, %v4861
        %v4865 = vmul.f32 %v4852, %v4829
        %v4866 = vmul.f32 %v4853, %v4830
        %v4867 = vmul.f32 %v4854, %v4825
        %v4868 = vmul.f32 %v4855, %v4826
        %v4869 = vadd.f32 %v4865, %v4867
        %v4870 = vadd.f32 %v4866, %v4868
        %s4871 = scalar_lea.vmem %s538, 16 [#allocation20]
        %4872 = vst.msk [vmem:[%s4871] sm:$0xff] %vm4841, %v4869
        %4873 = vst.msk [vmem:[%s4871 + $0x8] sm:$0xff] %vm4841, %v4870
        %v4874 = vld [vmem:[%s591] sm:$0xff]
        %v4875 = vld [vmem:[%s591 + $0x8] sm:$0xff]
        %v4876 = vld [vmem:[%s594] sm:$0xff]
        %v4877 = vld [vmem:[%s594 + $0x8] sm:$0xff]
        %v4878 = vmul.f32 %v4874, %v4825
        %v4879 = vmul.f32 %v4875, %v4826
        %v4880 = vmul.f32 %v4876, %v4829
        %v4881 = vmul.f32 %v4877, %v4830
        %v4882 = vsub.f32 %v4878, %v4880
        %v4883 = vsub.f32 %v4879, %v4881
        %s4884 = scalar_lea.vmem %s531, 32 [#allocation19]
        %4885 = vst.msk [vmem:[%s4884] sm:$0xff] %vm4841, %v4882
        %4886 = vst.msk [vmem:[%s4884 + $0x8] sm:$0xff] %vm4841, %v4883
        %v4887 = vmul.f32 %v4874, %v4829
        %v4888 = vmul.f32 %v4875, %v4830
        %v4889 = vmul.f32 %v4876, %v4825
        %v4890 = vmul.f32 %v4877, %v4826
        %v4891 = vadd.f32 %v4887, %v4889
        %v4892 = vadd.f32 %v4888, %v4890
        %s4893 = scalar_lea.vmem %s538, 32 [#allocation20]
        %4894 = vst.msk [vmem:[%s4893] sm:$0xff] %vm4841, %v4891
        %4895 = vst.msk [vmem:[%s4893 + $0x8] sm:$0xff] %vm4841, %v4892
        %v4896 = vld [vmem:[%s619] sm:$0xff]
        %v4897 = vld [vmem:[%s619 + $0x8] sm:$0xff]
        %v4898 = vld [vmem:[%s622] sm:$0xff]
        %v4899 = vld [vmem:[%s622 + $0x8] sm:$0xff]
        %v4900 = vmul.f32 %v4896, %v4825
        %v4901 = vmul.f32 %v4897, %v4826
        %v4902 = vmul.f32 %v4898, %v4829
        %v4903 = vmul.f32 %v4899, %v4830
        %v4904 = vsub.f32 %v4900, %v4902
        %v4905 = vsub.f32 %v4901, %v4903
        %s4906 = scalar_lea.vmem %s531, 48 [#allocation19]
        %4907 = vst.msk [vmem:[%s4906] sm:$0xff] %vm4841, %v4904
        %4908 = vst.msk [vmem:[%s4906 + $0x8] sm:$0xff] %vm4841, %v4905
        %v4909 = vmul.f32 %v4896, %v4829
        %v4910 = vmul.f32 %v4897, %v4830
        %v4911 = vmul.f32 %v4898, %v4825
        %v4912 = vmul.f32 %v4899, %v4826
        %v4913 = vadd.f32 %v4909, %v4911
        %v4914 = vadd.f32 %v4910, %v4912
        %s4915 = scalar_lea.vmem %s538, 48 [#allocation20]
        %4916 = vst.msk [vmem:[%s4915] sm:$0xff] %vm4841, %v4913
        %4917 = vst.msk [vmem:[%s4915 + $0x8] sm:$0xff] %vm4841, %v4914
        %s4918 = sand.u32 %s235, 1
        %s4919 = scalar_lea.sflag [#allocation6], %s4918
        %s4920 = sand.u32 %s235, 1
        %s4921 = smul.addr %s4920, 64
        %s4922 = scalar_lea.vmem [#allocation19], %s4921
        %s4923 = sand.u32 %s261, 1
        %s4924 = scalar_lea.sflag [#allocation21], %s4923
        %s4925 = sand.u32 %s261, 1
        %s4926 = smul.addr %s4925, 64
        %s4927 = scalar_lea.vmem [#allocation20], %s4926
        // Predicated region
        $region85: #{tpu_custom_call.1} parent=51 // pred_check
          %p4928 = pneg %p245
        $region86: #{tpu_custom_call.1} parent=51 // pred_check_branch
          %4930 = sbr.rel (%p4928) target = $region88
        $region87: #{tpu_custom_call.1} parent=51 // pred_region
          %4932 = vsyncadd %s4919, 0
          %s4933 = smul.addr %s39, 8
          %s4934 = smul.addr %s4933, 8
          %s4935 = scalar_lea.hbm %s8, %s4934
          %s4936 = sshll.u32 %s4922, 4
          %s4937 = int_to_ptr.vmem [resolvable:$true] %s4936
          %s4938 = sshll.u32 %s4935, 4
          %s4939 = int_to_ptr.hbm [resolvable:$true] %s4938
          %4944 = dma.vmem_to_hbm [thread:$0]  %s4937, 1024, %s4939, %s4919, 128, 128, 8
        $region88: #{tpu_custom_call.1} parent=51 // pred_fallthru
          _
        // Predicated region
        $region89: #{tpu_custom_call.1} parent=51 // pred_check
          %p4945 = pneg %p271
        $region90: #{tpu_custom_call.1} parent=51 // pred_check_branch
          %4947 = sbr.rel (%p4945) target = $region92
        $region91: #{tpu_custom_call.1} parent=51 // pred_region
          %4949 = vsyncadd %s4924, 0
          %s4950 = smul.addr %s39, 8
          %s4951 = smul.addr %s4950, 8
          %s4952 = scalar_lea.hbm %s9, %s4951
          %s4953 = sshll.u32 %s4927, 4
          %s4954 = int_to_ptr.vmem [resolvable:$true] %s4953
          %s4955 = sshll.u32 %s4952, 4
          %s4956 = int_to_ptr.hbm [resolvable:$true] %s4955
          %4961 = dma.vmem_to_hbm [thread:$0]  %s4954, 1024, %s4956, %s4924, 128, 128, 8
        $region92: #{tpu_custom_call.1} parent=51 // pred_fallthru
          _
      $region52: #{tpu_custom_call.1} parent=5 // pred_fallthru
        _
      %p4962 = scmp.le.s32.totalorder 2, %s34
      // Predicated region
      $region93: #{tpu_custom_call.1} parent=5 // pred_check
        %p4963 = pneg %p4962
      $region94: #{tpu_custom_call.1} parent=5 // pred_check_branch
        %4965 = sbr.rel (%p4963) target = $region96
      $region95: #{tpu_custom_call.1} parent=5 // pred_region
        %s4966 = ssub.s32 %s34, 2
        // Predicated region
        $region97: #{tpu_custom_call.1} parent=95 // pred_check
          %p4967 = pneg %p251
        $region98: #{tpu_custom_call.1} parent=95 // pred_check_branch
          %4969 = sbr.rel (%p4967) target = $region100
        $region99: #{tpu_custom_call.1} parent=95 // pred_region
          %s4970 = sand.u32 %s236, 1
          %s4971 = scalar_lea.sflag [#allocation6], %s4970
          %s4972 = sand.u32 %s236, 1
          %s4973 = smul.addr %s4972, 64
          %s4974 = scalar_lea.vmem [#allocation19], %s4973
          %4976 = dma.done %s4971, 1024
        $region100: #{tpu_custom_call.1} parent=95 // pred_fallthru
          _
        // Predicated region
        $region101: #{tpu_custom_call.1} parent=95 // pred_check
          %p4977 = pneg %p277
        $region102: #{tpu_custom_call.1} parent=95 // pred_check_branch
          %4979 = sbr.rel (%p4977) target = $region104
        $region103: #{tpu_custom_call.1} parent=95 // pred_region
          %s4980 = sand.u32 %s262, 1
          %s4981 = scalar_lea.sflag [#allocation21], %s4980
          %s4982 = sand.u32 %s262, 1
          %s4983 = smul.addr %s4982, 64
          %s4984 = scalar_lea.vmem [#allocation20], %s4983
          %4986 = dma.done %s4981, 1024
        $region104: #{tpu_custom_call.1} parent=95 // pred_fallthru
          _
      $region96: #{tpu_custom_call.1} parent=5 // pred_fallthru
        _
    $region6: #{tpu_custom_call.1} parent=1 // loop_footer
      %s38 = sadd.s32 1, %s34
    $region7: #{tpu_custom_call.1} parent=1 // loop_footer_branch
      %33 = sbr.rel target = $region3
    $region8: #{tpu_custom_call.1} parent=1 // loop_exit
      _
    %4987 = vsyncpa [#allocation5], 1
    %s4988 = scalar_lea.sflag [#allocation5], 1
    %4989 = vsyncpa %s4988, 1
    %4990 = vsyncpa [#allocation10], 1
    %s4991 = scalar_lea.sflag [#allocation10], 1
    %4992 = vsyncpa %s4991, 1
    %4993 = vsyncpa [#allocation13], 1
    %s4994 = scalar_lea.sflag [#allocation13], 1
    %4995 = vsyncpa %s4994, 1
    %4996 = vsyncpa [#allocation6], 1
    %s4997 = scalar_lea.sflag [#allocation6], 1
    %4998 = vsyncpa %s4997, 1
    %4999 = vsyncpa [#allocation21], 1
    %s5000 = scalar_lea.sflag [#allocation21], 1
    %5001 = vsyncpa %s5000, 1
    %5002 = vsyncpa [#allocation7], 1
    %s5003 = scalar_lea.sflag [#allocation7], 1
    %5004 = vsyncpa %s5003, 1
    %5005 = vsyncpa [#allocation8], 1
    %s5006 = scalar_lea.sflag [#allocation8], 1
    %5007 = vsyncpa %s5006, 1
    %5008 = vsyncpa [#allocation17], 1

</llo_original>
